<compile_context>
chip_gen: v7x
topology: tpu7x:2x2x1
jax: 0.10.0
libtpu: 0.0.40
codegen_flags: <defaults>
</compile_context>

<pallas_src>
import jax
import jax.numpy as jnp
from jax.experimental import pallas as pl
from jax.experimental.pallas import tpu as pltpu


EMBEDDING_DIM = 32
MLP_LAYERS = [64, 32, 16, 8]
LANES = 128
TILE_B = 2048  # batch tile: multiple of 8*128 so the output block is a clean (8k, 128) tile


def ncf_kernel(
    gmf_ref, mlp_ref,
    w1_ref, b1_ref, w2_ref, b2_ref, w3_ref, b3_ref, w4_ref, b4_ref,
    wp_gmf_ref, wp_mlp_ref, bp_ref,
    out_ref,
):
    # --- MLP branch: 4 MXU matmuls, bf16 operands, f32 accumulation. ---
    def layer(x_bf16, w_ref, b_ref):
        y = jnp.dot(x_bf16, w_ref[...], preferred_element_type=jnp.float32) + b_ref[...]
        return jnp.maximum(y, 0.0)                                   # ReLU in f32

    x = layer(mlp_ref[...], w1_ref, b1_ref)                          # (TB, 64)  single K=64 dot
    x = layer(x.astype(jnp.bfloat16), w2_ref, b2_ref)                # (TB, 32)
    x = layer(x.astype(jnp.bfloat16), w3_ref, b3_ref)                # (TB, 16)
    x = layer(x.astype(jnp.bfloat16), w4_ref, b4_ref)                # (TB, 8)

    # --- Fusion + predict layer as VPU multiply + lane reduction (f32).
    #     (An N=1 matmul would waste MXU columns and serialize behind the MLP.)
    logits = (
        jnp.sum(gmf_ref[...] * wp_gmf_ref[...], axis=-1)
        + jnp.sum(x * wp_mlp_ref[...], axis=-1)
        + bp_ref[0, 0]
    )                                                                # (TB,)

    # Lane-dense store: output block is (TB // 128, 128) with batch on the lane axis.
    # (Implicit sublane->lane relayout here; XLU has slack vs. the MXU-bound body.)
    out_ref[...] = jax.nn.sigmoid(logits).reshape(out_ref.shape)


def init_params(key, num_users, num_items, embedding_dim=EMBEDDING_DIM,
                mlp_layers=MLP_LAYERS):
    """Deterministic synthetic parameter init (shapes match the nn.Module), stored in f32."""
    keys = jax.random.split(key, 16)
    p = {}
    p["user_emb_gmf"] = jax.random.normal(keys[0], (num_users, embedding_dim), jnp.float32) * 0.1
    p["item_emb_gmf"] = jax.random.normal(keys[1], (num_items, embedding_dim), jnp.float32) * 0.1
    p["user_emb_mlp"] = jax.random.normal(keys[2], (num_users, embedding_dim), jnp.float32) * 0.1
    p["item_emb_mlp"] = jax.random.normal(keys[3], (num_items, embedding_dim), jnp.float32) * 0.1

    in_dim = embedding_dim * 2
    for li, out_dim in enumerate(mlp_layers):
        scale = 1.0 / jnp.sqrt(jnp.float32(in_dim))
        p[f"mlp_w{li + 1}"] = jax.random.uniform(keys[4 + li], (in_dim, out_dim),
                                                 jnp.float32, -scale, scale)
        p[f"mlp_b{li + 1}"] = jax.random.uniform(keys[8 + li], (1, out_dim),
                                                 jnp.float32, -scale, scale)
        in_dim = out_dim

    fusion_dim = embedding_dim + mlp_layers[-1]
    scale = 1.0 / jnp.sqrt(jnp.float32(fusion_dim))
    wp = jax.random.uniform(keys[12], (1, fusion_dim), jnp.float32, -scale, scale)
    p["predict_w_gmf"] = wp[:, :embedding_dim]   # (1, E)     row vector for VPU reduce
    p["predict_w_mlp"] = wp[:, embedding_dim:]   # (1, last)
    p["predict_b"] = jax.random.uniform(keys[13], (1, 1), jnp.float32, -scale, scale)
    return p


def ncf_forward(params, user_indices, item_indices, *, tile_b=TILE_B):
    assert tile_b % (8 * LANES) == 0, "tile_b must be a multiple of 1024"
    batch = user_indices.shape[0]
    emb_dim = params["user_emb_gmf"].shape[1]

    # Embedding lookups (gather) — plain XLA; the gmf product and the um|im concat fuse into
    # the gather, so the kernel only reads a (B, E) f32 gmf and a (B, 2E) bf16 mlp input.
    ug = jnp.take(params["user_emb_gmf"], user_indices, axis=0)      # (B, E)
    ig = jnp.take(params["item_emb_gmf"], item_indices, axis=0)      # (B, E)
    um = jnp.take(params["user_emb_mlp"], user_indices, axis=0)      # (B, E)
    im = jnp.take(params["item_emb_mlp"], item_indices, axis=0)      # (B, E)
    gmf = ug * ig                                                    # (B, E)  f32
    mlp_in = jnp.concatenate([um, im], axis=-1).astype(jnp.bfloat16)  # (B, 2E) bf16

    num_tiles = pl.cdiv(batch, tile_b)
    b_pad = num_tiles * tile_b
    pad = b_pad - batch
    if pad:
        gmf = jnp.pad(gmf, ((0, pad), (0, 0)))
        mlp_in = jnp.pad(mlp_in, ((0, pad), (0, 0)))

    gmf_spec = pl.BlockSpec((tile_b, emb_dim), lambda i: (i, 0))
    mlp_spec = pl.BlockSpec((tile_b, 2 * emb_dim), lambda i: (i, 0))

    def resident(shape):
        # Whole weight/bias tensor stays VMEM-resident across all grid steps.
        return pl.BlockSpec(shape, lambda i: (0, 0))

    # bf16 copies of the MXU weights (tiny; f32 master copies preserved in params).
    w1 = params["mlp_w1"].astype(jnp.bfloat16)
    w2 = params["mlp_w2"].astype(jnp.bfloat16)
    w3 = params["mlp_w3"].astype(jnp.bfloat16)
    w4 = params["mlp_w4"].astype(jnp.bfloat16)

    sub = tile_b // LANES  # sublane rows per output block

    out = pl.pallas_call(
        ncf_kernel,
        out_shape=jax.ShapeDtypeStruct((b_pad // LANES, LANES), jnp.float32),
        grid=(num_tiles,),
        in_specs=[
            gmf_spec, mlp_spec,
            resident(w1.shape), resident(params["mlp_b1"].shape),
            resident(w2.shape), resident(params["mlp_b2"].shape),
            resident(w3.shape), resident(params["mlp_b3"].shape),
            resident(w4.shape), resident(params["mlp_b4"].shape),
            resident(params["predict_w_gmf"].shape),
            resident(params["predict_w_mlp"].shape),
            pl.BlockSpec(memory_space=pltpu.MemorySpace.SMEM),   # scalar predict bias
        ],
        out_specs=pl.BlockSpec((sub, LANES), lambda i: (i, 0)),
        compiler_params=pltpu.CompilerParams(
            dimension_semantics=("parallel",)),
    )(
        gmf, mlp_in,
        w1, params["mlp_b1"],
        w2, params["mlp_b2"],
        w3, params["mlp_b3"],
        w4, params["mlp_b4"],
        params["predict_w_gmf"], params["predict_w_mlp"], params["predict_b"],
    )
    # Lane-dense slab -> (batch, 1)
    return out.reshape(-1)[:batch, None]


def ncf_reference(params, user_indices, item_indices):
    """Pure-JAX f32 reference (matches the PyTorch module math)."""
    ug = jnp.take(params["user_emb_gmf"], user_indices, axis=0)
    ig = jnp.take(params["item_emb_gmf"], item_indices, axis=0)
    um = jnp.take(params["user_emb_mlp"], user_indices, axis=0)
    im = jnp.take(params["item_emb_mlp"], item_indices, axis=0)
    gmf = ug * ig
    x = jnp.concatenate([um, im], axis=-1)
    x = jnp.maximum(x @ params["mlp_w1"] + params["mlp_b1"], 0.0)
    x = jnp.maximum(x @ params["mlp_w2"] + params["mlp_b2"], 0.0)
    x = jnp.maximum(x @ params["mlp_w3"] + params["mlp_b3"], 0.0)
    x = jnp.maximum(x @ params["mlp_w4"] + params["mlp_b4"], 0.0)
    logits = (gmf @ params["predict_w_gmf"].T
              + x @ params["predict_w_mlp"].T
              + params["predict_b"])
    return jax.nn.sigmoid(logits)


if __name__ == "__main__":
    num_users, num_items = 100, 200

    key = jax.random.PRNGKey(0)
    pkey, ukey, ikey = jax.random.split(key, 3)
    params = init_params(pkey, num_users, num_items)

    fwd = jax.jit(ncf_forward)

    # bf16 MXU operands (f32 accumulation) vs f32 reference -> relaxed tolerance.
    TOL = dict(atol=2e-2, rtol=2e-2)

    # Small single-tile check (batch=8, padded to one 2048-row tile).
    batch = 8
    user_indices = jax.random.randint(ukey, (batch,), 0, num_users, dtype=jnp.int32)
    item_indices = jax.random.randint(ikey, (batch,), 0, num_items, dtype=jnp.int32)
    out = jax.block_until_ready(fwd(params, user_indices, item_indices))
    ref = ncf_reference(params, user_indices, item_indices)
    assert out.shape == (batch, 1)
    assert jnp.allclose(out, ref, **TOL), "mismatch vs reference (batch=8)"

    # Multi-tile check (grid of 3 tiles with a ragged remainder, exercises both TCs on v7x).
    batch2 = 2 * TILE_B + 5
    u2key, i2key = jax.random.split(jax.random.PRNGKey(1))
    user_indices2 = jax.random.randint(u2key, (batch2,), 0, num_users, dtype=jnp.int32)
    item_indices2 = jax.random.randint(i2key, (batch2,), 0, num_items, dtype=jnp.int32)
    out2 = jax.block_until_ready(fwd(params, user_indices2, item_indices2))
    ref2 = ncf_reference(params, user_indices2, item_indices2)
    assert out2.shape == (batch2, 1)
    assert jnp.allclose(out2, ref2, **TOL), "mismatch vs reference (multi-tile)"

    print("KERNEL_OK")
</pallas_src>

<mosaic_0001>
module attributes {stable_mosaic.version = 11 : i64} {
  func.func @ncf_kernel(%arg0: i32, %arg1: memref<2048x32xf32, #tpu.memory_space<vmem>>, %arg2: memref<2048x64xbf16, #tpu.memory_space<vmem>>, %arg3: memref<64x64xbf16, #tpu.memory_space<vmem>>, %arg4: memref<1x64xf32, #tpu.memory_space<vmem>>, %arg5: memref<64x32xbf16, #tpu.memory_space<vmem>>, %arg6: memref<1x32xf32, #tpu.memory_space<vmem>>, %arg7: memref<32x16xbf16, #tpu.memory_space<vmem>>, %arg8: memref<1x16xf32, #tpu.memory_space<vmem>>, %arg9: memref<16x8xbf16, #tpu.memory_space<vmem>>, %arg10: memref<1x8xf32, #tpu.memory_space<vmem>>, %arg11: memref<1x32xf32, #tpu.memory_space<vmem>>, %arg12: memref<1x8xf32, #tpu.memory_space<vmem>>, %arg13: memref<1x1xf32, #tpu.memory_space<smem>>, %arg14: memref<16x128xf32, #tpu.memory_space<vmem>>) attributes {dimension_semantics = [#tpu.dimension_semantics<parallel>], iteration_bounds = array<i64: 1>, scalar_prefetch = 0 : i64, scratch_operands = 0 : i64, tpu.core_type = #tpu.core_type<tc>, window_params = [{transform_indices = @transform_0, window_bounds = array<i64: 2048, 32>}, {transform_indices = @transform_1, window_bounds = array<i64: 2048, 64>}, {pipeline_mode = #tpu.pipeline_mode<synchronous>, transform_indices = @transform_2, window_bounds = array<i64: 64, 64>}, {pipeline_mode = #tpu.pipeline_mode<synchronous>, transform_indices = @transform_3, window_bounds = array<i64: 1, 64>}, {pipeline_mode = #tpu.pipeline_mode<synchronous>, transform_indices = @transform_4, window_bounds = array<i64: 64, 32>}, {pipeline_mode = #tpu.pipeline_mode<synchronous>, transform_indices = @transform_5, window_bounds = array<i64: 1, 32>}, {pipeline_mode = #tpu.pipeline_mode<synchronous>, transform_indices = @transform_6, window_bounds = array<i64: 32, 16>}, {pipeline_mode = #tpu.pipeline_mode<synchronous>, transform_indices = @transform_7, window_bounds = array<i64: 1, 16>}, {pipeline_mode = #tpu.pipeline_mode<synchronous>, transform_indices = @transform_8, window_bounds = array<i64: 16, 8>}, {pipeline_mode = #tpu.pipeline_mode<synchronous>, transform_indices = @transform_9, window_bounds = array<i64: 1, 8>}, {pipeline_mode = #tpu.pipeline_mode<synchronous>, transform_indices = @transform_10, window_bounds = array<i64: 1, 32>}, {pipeline_mode = #tpu.pipeline_mode<synchronous>, transform_indices = @transform_11, window_bounds = array<i64: 1, 8>}, {transform_indices = @transform_12, window_bounds = array<i64: 1, 1>}, {transform_indices = @transform_13, window_bounds = array<i64: 16, 128>}]} {
    %c0 = arith.constant 0 : index
    %c0_0 = arith.constant 0 : index
    %0 = vector.load %arg2[%c0, %c0_0] : memref<2048x64xbf16, #tpu.memory_space<vmem>>, vector<2048x64xbf16>
    %c0_1 = arith.constant 0 : index
    %c0_2 = arith.constant 0 : index
    %1 = vector.load %arg3[%c0_1, %c0_2] : memref<64x64xbf16, #tpu.memory_space<vmem>>, vector<64x64xbf16>
    %cst = arith.constant dense<0.000000e+00> : vector<2048x64xf32>
    %2 = tpu.matmul %0, %1, %cst {dimension_numbers = #tpu.dot_dimension_numbers<[1], [0], [0], [1], [0, 0, 1, 1], [], []>} : vector<2048x64xbf16>, vector<64x64xbf16>, vector<2048x64xf32> -> vector<2048x64xf32>
    %c0_3 = arith.constant 0 : index
    %c0_4 = arith.constant 0 : index
    %3 = vector.load %arg4[%c0_3, %c0_4] : memref<1x64xf32, #tpu.memory_space<vmem>>, vector<1x64xf32>
    %4 = vector.broadcast %3 : vector<1x64xf32> to vector<2048x64xf32>
    %5 = arith.addf %2, %4 : vector<2048x64xf32>
    %cst_5 = arith.constant 0.000000e+00 : f32
    %6 = vector.broadcast %cst_5 : f32 to vector<2048x64xf32>
    %7 = arith.maximumf %5, %6 : vector<2048x64xf32>
    %8 = arith.truncf %7 : vector<2048x64xf32> to vector<2048x64xbf16>
    %c0_6 = arith.constant 0 : index
    %c0_7 = arith.constant 0 : index
    %9 = vector.load %arg5[%c0_6, %c0_7] : memref<64x32xbf16, #tpu.memory_space<vmem>>, vector<64x32xbf16>
    %cst_8 = arith.constant dense<0.000000e+00> : vector<2048x32xf32>
    %10 = tpu.matmul %8, %9, %cst_8 {dimension_numbers = #tpu.dot_dimension_numbers<[1], [0], [0], [1], [0, 0, 1, 1], [], []>} : vector<2048x64xbf16>, vector<64x32xbf16>, vector<2048x32xf32> -> vector<2048x32xf32>
    %c0_9 = arith.constant 0 : index
    %c0_10 = arith.constant 0 : index
    %11 = vector.load %arg6[%c0_9, %c0_10] : memref<1x32xf32, #tpu.memory_space<vmem>>, vector<1x32xf32>
    %12 = vector.broadcast %11 : vector<1x32xf32> to vector<2048x32xf32>
    %13 = arith.addf %10, %12 : vector<2048x32xf32>
    %cst_11 = arith.constant 0.000000e+00 : f32
    %14 = vector.broadcast %cst_11 : f32 to vector<2048x32xf32>
    %15 = arith.maximumf %13, %14 : vector<2048x32xf32>
    %16 = arith.truncf %15 : vector<2048x32xf32> to vector<2048x32xbf16>
    %c0_12 = arith.constant 0 : index
    %c0_13 = arith.constant 0 : index
    %17 = vector.load %arg7[%c0_12, %c0_13] : memref<32x16xbf16, #tpu.memory_space<vmem>>, vector<32x16xbf16>
    %cst_14 = arith.constant dense<0.000000e+00> : vector<2048x16xf32>
    %18 = tpu.matmul %16, %17, %cst_14 {dimension_numbers = #tpu.dot_dimension_numbers<[1], [0], [0], [1], [0, 0, 1, 1], [], []>} : vector<2048x32xbf16>, vector<32x16xbf16>, vector<2048x16xf32> -> vector<2048x16xf32>
    %c0_15 = arith.constant 0 : index
    %c0_16 = arith.constant 0 : index
    %19 = vector.load %arg8[%c0_15, %c0_16] : memref<1x16xf32, #tpu.memory_space<vmem>>, vector<1x16xf32>
    %20 = vector.broadcast %19 : vector<1x16xf32> to vector<2048x16xf32>
    %21 = arith.addf %18, %20 : vector<2048x16xf32>
    %cst_17 = arith.constant 0.000000e+00 : f32
    %22 = vector.broadcast %cst_17 : f32 to vector<2048x16xf32>
    %23 = arith.maximumf %21, %22 : vector<2048x16xf32>
    %24 = arith.truncf %23 : vector<2048x16xf32> to vector<2048x16xbf16>
    %c0_18 = arith.constant 0 : index
    %c0_19 = arith.constant 0 : index
    %25 = vector.load %arg9[%c0_18, %c0_19] : memref<16x8xbf16, #tpu.memory_space<vmem>>, vector<16x8xbf16>
    %cst_20 = arith.constant dense<0.000000e+00> : vector<2048x8xf32>
    %26 = tpu.matmul %24, %25, %cst_20 {dimension_numbers = #tpu.dot_dimension_numbers<[1], [0], [0], [1], [0, 0, 1, 1], [], []>} : vector<2048x16xbf16>, vector<16x8xbf16>, vector<2048x8xf32> -> vector<2048x8xf32>
    %c0_21 = arith.constant 0 : index
    %c0_22 = arith.constant 0 : index
    %27 = vector.load %arg10[%c0_21, %c0_22] : memref<1x8xf32, #tpu.memory_space<vmem>>, vector<1x8xf32>
    %28 = vector.broadcast %27 : vector<1x8xf32> to vector<2048x8xf32>
    %29 = arith.addf %26, %28 : vector<2048x8xf32>
    %cst_23 = arith.constant 0.000000e+00 : f32
    %30 = vector.broadcast %cst_23 : f32 to vector<2048x8xf32>
    %31 = arith.maximumf %29, %30 : vector<2048x8xf32>
    %c0_24 = arith.constant 0 : index
    %c0_25 = arith.constant 0 : index
    %32 = vector.load %arg1[%c0_24, %c0_25] : memref<2048x32xf32, #tpu.memory_space<vmem>>, vector<2048x32xf32>
    %c0_26 = arith.constant 0 : index
    %c0_27 = arith.constant 0 : index
    %33 = vector.load %arg11[%c0_26, %c0_27] : memref<1x32xf32, #tpu.memory_space<vmem>>, vector<1x32xf32>
    %34 = vector.broadcast %33 : vector<1x32xf32> to vector<2048x32xf32>
    %35 = arith.mulf %32, %34 : vector<2048x32xf32>
    %cst_28 = arith.constant dense<0.000000e+00> : vector<2048xf32>
    %36 = vector.multi_reduction <add>, %35, %cst_28 [1] : vector<2048x32xf32> to vector<2048xf32>
    %c0_29 = arith.constant 0 : index
    %c0_30 = arith.constant 0 : index
    %37 = vector.load %arg12[%c0_29, %c0_30] : memref<1x8xf32, #tpu.memory_space<vmem>>, vector<1x8xf32>
    %38 = vector.broadcast %37 : vector<1x8xf32> to vector<2048x8xf32>
    %39 = arith.mulf %31, %38 : vector<2048x8xf32>
    %cst_31 = arith.constant dense<0.000000e+00> : vector<2048xf32>
    %40 = vector.multi_reduction <add>, %39, %cst_31 [1] : vector<2048x8xf32> to vector<2048xf32>
    %41 = arith.addf %36, %40 : vector<2048xf32>
    %c0_32 = arith.constant 0 : index
    %c0_33 = arith.constant 0 : index
    %42 = memref.load %arg13[%c0_32, %c0_33] : memref<1x1xf32, #tpu.memory_space<smem>>
    %43 = vector.broadcast %42 : f32 to vector<2048xf32>
    %44 = arith.addf %41, %43 : vector<2048xf32>
    %45 = arith.negf %44 : vector<2048xf32>
    %46 = math.exp %45 : vector<2048xf32>
    %cst_34 = arith.constant 1.000000e+00 : f32
    %47 = vector.broadcast %cst_34 : f32 to vector<2048xf32>
    %48 = arith.addf %47, %46 : vector<2048xf32>
    %49 = arith.divf %47, %48 : vector<2048xf32>
    %50 = vector.shape_cast %49 : vector<2048xf32> to vector<16x128xf32>
    %c0_35 = arith.constant 0 : index
    %c0_36 = arith.constant 0 : index
    %51 = vector.load %arg14[%c0_35, %c0_36] : memref<16x128xf32, #tpu.memory_space<vmem>>, vector<16x128xf32>
    tpu.vector_store %arg14[%c0_35, %c0_36], %50 {strides = array<i32>} : memref<16x128xf32, #tpu.memory_space<vmem>>, vector<16x128xf32>,
    return
  }
  func.func @transform_0(%arg0: i32) -> (i32, i32) {
    %c0_i32 = arith.constant 0 : i32
    %c0_i32_0 = arith.constant 0 : i32
    return %arg0, %c0_i32 : i32, i32
  }
  func.func @transform_1(%arg0: i32) -> (i32, i32) {
    %c0_i32 = arith.constant 0 : i32
    %c0_i32_0 = arith.constant 0 : i32
    return %arg0, %c0_i32 : i32, i32
  }
  func.func @transform_2(%arg0: i32) -> (i32, i32) {
    %c0_i32 = arith.constant 0 : i32
    %c0_i32_0 = arith.constant 0 : i32
    %c0_i32_1 = arith.constant 0 : i32
    return %c0_i32, %c0_i32_0 : i32, i32
  }
  func.func @transform_3(%arg0: i32) -> (i32, i32) {
    %c0_i32 = arith.constant 0 : i32
    %c0_i32_0 = arith.constant 0 : i32
    %c0_i32_1 = arith.constant 0 : i32
    return %c0_i32, %c0_i32_0 : i32, i32
  }
  func.func @transform_4(%arg0: i32) -> (i32, i32) {
    %c0_i32 = arith.constant 0 : i32
    %c0_i32_0 = arith.constant 0 : i32
    %c0_i32_1 = arith.constant 0 : i32
    return %c0_i32, %c0_i32_0 : i32, i32
  }
  func.func @transform_5(%arg0: i32) -> (i32, i32) {
    %c0_i32 = arith.constant 0 : i32
    %c0_i32_0 = arith.constant 0 : i32
    %c0_i32_1 = arith.constant 0 : i32
    return %c0_i32, %c0_i32_0 : i32, i32
  }
  func.func @transform_6(%arg0: i32) -> (i32, i32) {
    %c0_i32 = arith.constant 0 : i32
    %c0_i32_0 = arith.constant 0 : i32
    %c0_i32_1 = arith.constant 0 : i32
    return %c0_i32, %c0_i32_0 : i32, i32
  }
  func.func @transform_7(%arg0: i32) -> (i32, i32) {
    %c0_i32 = arith.constant 0 : i32
    %c0_i32_0 = arith.constant 0 : i32
    %c0_i32_1 = arith.constant 0 : i32
    return %c0_i32, %c0_i32_0 : i32, i32
  }
  func.func @transform_8(%arg0: i32) -> (i32, i32) {
    %c0_i32 = arith.constant 0 : i32
    %c0_i32_0 = arith.constant 0 : i32
    %c0_i32_1 = arith.constant 0 : i32
    return %c0_i32, %c0_i32_0 : i32, i32
  }
  func.func @transform_9(%arg0: i32) -> (i32, i32) {
    %c0_i32 = arith.constant 0 : i32
    %c0_i32_0 = arith.constant 0 : i32
    %c0_i32_1 = arith.constant 0 : i32
    return %c0_i32, %c0_i32_0 : i32, i32
  }
  func.func @transform_10(%arg0: i32) -> (i32, i32) {
    %c0_i32 = arith.constant 0 : i32
    %c0_i32_0 = arith.constant 0 : i32
    %c0_i32_1 = arith.constant 0 : i32
    return %c0_i32, %c0_i32_0 : i32, i32
  }
  func.func @transform_11(%arg0: i32) -> (i32, i32) {
    %c0_i32 = arith.constant 0 : i32
    %c0_i32_0 = arith.constant 0 : i32
    %c0_i32_1 = arith.constant 0 : i32
    return %c0_i32, %c0_i32_0 : i32, i32
  }
  func.func @transform_12(%arg0: i32) -> (i32, i32) {
    %c0_i32 = arith.constant 0 : i32
    %c0_i32_0 = arith.constant 0 : i32
    %c0_i32_1 = arith.constant 0 : i32
    return %c0_i32, %c0_i32_0 : i32, i32
  }
  func.func @transform_13(%arg0: i32) -> (i32, i32) {
    %c0_i32 = arith.constant 0 : i32
    %c0_i32_0 = arith.constant 0 : i32
    return %arg0, %c0_i32 : i32, i32
  }
}

</mosaic_0001>

<llo_original>
// kernel: ncf_forward.1
$region0: #{ncf_forward.1}
  #allocation0 [shape = 'u32[]', space=smem, size = 0x4, offset = 0x4, fixed_abs, tag = 'smem constant byte address 0x4 - core index']
  #allocation1 [shape = 'u32[144,128]{1,0:T(1,128)}', space=vmem, size = 0x12000, scoped, tag = 'internal scratch']
  #allocation2 [shape = 'f32[1,1]{1,0:T(1,128)S(6)}', space=smem, size = 0x200, scoped, tag = 'scoped memory for ncf_forward.1']
  %s0 = inlined_call_operand.vmem [shape: f32[2048,32], index: 0, kind: input, shape index: {}]
  %s1 = inlined_call_operand.vmem [shape: bf16[2048,64], index: 1, kind: input, shape index: {}]
  %s2 = inlined_call_operand.vmem [shape: bf16[64,64], index: 2, kind: input, shape index: {}]
  %s3 = inlined_call_operand.vmem [shape: f32[1,64], index: 3, kind: input, shape index: {}]
  %s4 = inlined_call_operand.vmem [shape: bf16[64,32], index: 4, kind: input, shape index: {}]
  %s5 = inlined_call_operand.vmem [shape: f32[1,32], index: 5, kind: input, shape index: {}]
  %s6 = inlined_call_operand.vmem [shape: bf16[32,16], index: 6, kind: input, shape index: {}]
  %s7 = inlined_call_operand.vmem [shape: f32[1,16], index: 7, kind: input, shape index: {}]
  %s8 = inlined_call_operand.vmem [shape: bf16[16,8], index: 8, kind: input, shape index: {}]
  %s9 = inlined_call_operand.vmem [shape: f32[1,8], index: 9, kind: input, shape index: {}]
  %s10 = inlined_call_operand.vmem [shape: f32[1,32], index: 10, kind: input, shape index: {}]
  %s11 = inlined_call_operand.vmem [shape: f32[1,8], index: 11, kind: input, shape index: {}]
  %s12 = inlined_call_operand.<no memory space> [shape: f32[1,1], index: 12, kind: input, shape index: {}]
  %s13 = inlined_call_operand.vmem [shape: f32[16,128], index: 13, kind: output, shape index: {}]
  %s14 = sld [smem:[#allocation0]]
  $region62: #{ncf_forward.1} parent=0
    _
  %s16 = ssub.s32 1, %s14
  %s17 = scalar_select 0, %s16, %s14
  %18 = sst [smem:[#allocation2]] %s12
  // Predicated region
  $region2: #{ncf_forward.1} parent=0 // pred_check
    _
  $region3: #{ncf_forward.1} parent=0 // pred_check_branch
    %20 = sbr.rel (0) target = $region5
  $region4: #{ncf_forward.1} parent=0 // pred_region
    _
  $region5: #{ncf_forward.1} parent=0 // pred_fallthru
    _
  // Predicated region
  $region6: #{ncf_forward.1} parent=0 // pred_check
    _
  $region7: #{ncf_forward.1} parent=0 // pred_check_branch
    %22 = sbr.rel (0) target = $region9
  $region8: #{ncf_forward.1} parent=0 // pred_region
    _
  $region9: #{ncf_forward.1} parent=0 // pred_fallthru
    _
  // Predicated region
  $region10: #{ncf_forward.1} parent=0 // pred_check
    _
  $region11: #{ncf_forward.1} parent=0 // pred_check_branch
    %24 = sbr.rel (0) target = $region13
  $region12: #{ncf_forward.1} parent=0 // pred_region
    _
  $region13: #{ncf_forward.1} parent=0 // pred_fallthru
    _
  // Predicated region
  $region14: #{ncf_forward.1} parent=0 // pred_check
    _
  $region15: #{ncf_forward.1} parent=0 // pred_check_branch
    %26 = sbr.rel (0) target = $region17
  $region16: #{ncf_forward.1} parent=0 // pred_region
    _
  $region17: #{ncf_forward.1} parent=0 // pred_fallthru
    _
  // Predicated region
  $region18: #{ncf_forward.1} parent=0 // pred_check
    _
  $region19: #{ncf_forward.1} parent=0 // pred_check_branch
    %28 = sbr.rel (0) target = $region21
  $region20: #{ncf_forward.1} parent=0 // pred_region
    _
  $region21: #{ncf_forward.1} parent=0 // pred_fallthru
    _
  // Predicated region
  $region22: #{ncf_forward.1} parent=0 // pred_check
    _
  $region23: #{ncf_forward.1} parent=0 // pred_check_branch
    %30 = sbr.rel (0) target = $region25
  $region24: #{ncf_forward.1} parent=0 // pred_region
    _
  $region25: #{ncf_forward.1} parent=0 // pred_fallthru
    _
  // Predicated region
  $region26: #{ncf_forward.1} parent=0 // pred_check
    _
  $region27: #{ncf_forward.1} parent=0 // pred_check_branch
    %32 = sbr.rel (0) target = $region29
  $region28: #{ncf_forward.1} parent=0 // pred_region
    _
  $region29: #{ncf_forward.1} parent=0 // pred_fallthru
    _
  // Predicated region
  $region30: #{ncf_forward.1} parent=0 // pred_check
    _
  $region31: #{ncf_forward.1} parent=0 // pred_check_branch
    %34 = sbr.rel (0) target = $region33
  $region32: #{ncf_forward.1} parent=0 // pred_region
    _
  $region33: #{ncf_forward.1} parent=0 // pred_fallthru
    _
  // Predicated region
  $region34: #{ncf_forward.1} parent=0 // pred_check
    _
  $region35: #{ncf_forward.1} parent=0 // pred_check_branch
    %36 = sbr.rel (0) target = $region37
  $region36: #{ncf_forward.1} parent=0 // pred_region
    _
  $region37: #{ncf_forward.1} parent=0 // pred_fallthru
    _
  // Predicated region
  $region38: #{ncf_forward.1} parent=0 // pred_check
    _
  $region39: #{ncf_forward.1} parent=0 // pred_check_branch
    %38 = sbr.rel (0) target = $region41
  $region40: #{ncf_forward.1} parent=0 // pred_region
    _
  $region41: #{ncf_forward.1} parent=0 // pred_fallthru
    _
  // Predicated region
  $region42: #{ncf_forward.1} parent=0 // pred_check
    _
  $region43: #{ncf_forward.1} parent=0 // pred_check_branch
    %40 = sbr.rel (0) target = $region45
  $region44: #{ncf_forward.1} parent=0 // pred_region
    _
  $region45: #{ncf_forward.1} parent=0 // pred_fallthru
    _
  // Predicated region
  $region46: #{ncf_forward.1} parent=0 // pred_check
    _
  $region47: #{ncf_forward.1} parent=0 // pred_check_branch
    %42 = sbr.rel (0) target = $region49
  $region48: #{ncf_forward.1} parent=0 // pred_region
    _
  $region49: #{ncf_forward.1} parent=0 // pred_fallthru
    _
  // Predicated region
  $region50: #{ncf_forward.1} parent=0 // pred_check
    _
  $region51: #{ncf_forward.1} parent=0 // pred_check_branch
    %44 = sbr.rel (0) target = $region53
  $region52: #{ncf_forward.1} parent=0 // pred_region
    _
  $region53: #{ncf_forward.1} parent=0 // pred_fallthru
    _
  %v46 = vld [vmem:[%s1] sm:$0xf]
  %v47 = vld [vmem:[%s1 + $0x4] sm:$0xf]
  %v48 = vld [vmem:[%s1 + $0x8] sm:$0xf]
  %v49 = vld [vmem:[%s1 + $0xc] sm:$0xf]
  %v50 = vld [vmem:[%s1 + $0x10] sm:$0xf]
  %v51 = vld [vmem:[%s1 + $0x14] sm:$0xf]
  %v52 = vld [vmem:[%s1 + $0x18] sm:$0xf]
  %v53 = vld [vmem:[%s1 + $0x1c] sm:$0xf]
  %v54 = vld [vmem:[%s1 + $0x20] sm:$0xf]
  %v55 = vld [vmem:[%s1 + $0x24] sm:$0xf]
  %v56 = vld [vmem:[%s1 + $0x28] sm:$0xf]
  %v57 = vld [vmem:[%s1 + $0x2c] sm:$0xf]
  %v58 = vld [vmem:[%s1 + $0x30] sm:$0xf]
  %v59 = vld [vmem:[%s1 + $0x34] sm:$0xf]
  %v60 = vld [vmem:[%s1 + $0x38] sm:$0xf]
  %v61 = vld [vmem:[%s1 + $0x3c] sm:$0xf]
  %v62 = vld [vmem:[%s1 + $0x40] sm:$0xf]
  %v63 = vld [vmem:[%s1 + $0x44] sm:$0xf]
  %v64 = vld [vmem:[%s1 + $0x48] sm:$0xf]
  %v65 = vld [vmem:[%s1 + $0x4c] sm:$0xf]
  %v66 = vld [vmem:[%s1 + $0x50] sm:$0xf]
  %v67 = vld [vmem:[%s1 + $0x54] sm:$0xf]
  %v68 = vld [vmem:[%s1 + $0x58] sm:$0xf]
  %v69 = vld [vmem:[%s1 + $0x5c] sm:$0xf]
  %v70 = vld [vmem:[%s1 + $0x60] sm:$0xf]
  %v71 = vld [vmem:[%s1 + $0x64] sm:$0xf]
  %v72 = vld [vmem:[%s1 + $0x68] sm:$0xf]
  %v73 = vld [vmem:[%s1 + $0x6c] sm:$0xf]
  %v74 = vld [vmem:[%s1 + $0x70] sm:$0xf]
  %v75 = vld [vmem:[%s1 + $0x74] sm:$0xf]
  %v76 = vld [vmem:[%s1 + $0x78] sm:$0xf]
  %v77 = vld [vmem:[%s1 + $0x7c] sm:$0xf]
  %v78 = vld [vmem:[%s1 + $0x80] sm:$0xf]
  %v79 = vld [vmem:[%s1 + $0x84] sm:$0xf]
  %v80 = vld [vmem:[%s1 + $0x88] sm:$0xf]
  %v81 = vld [vmem:[%s1 + $0x8c] sm:$0xf]
  %v82 = vld [vmem:[%s1 + $0x90] sm:$0xf]
  %v83 = vld [vmem:[%s1 + $0x94] sm:$0xf]
  %v84 = vld [vmem:[%s1 + $0x98] sm:$0xf]
  %v85 = vld [vmem:[%s1 + $0x9c] sm:$0xf]
  %v86 = vld [vmem:[%s1 + $0xa0] sm:$0xf]
  %v87 = vld [vmem:[%s1 + $0xa4] sm:$0xf]
  %v88 = vld [vmem:[%s1 + $0xa8] sm:$0xf]
  %v89 = vld [vmem:[%s1 + $0xac] sm:$0xf]
  %v90 = vld [vmem:[%s1 + $0xb0] sm:$0xf]
  %v91 = vld [vmem:[%s1 + $0xb4] sm:$0xf]
  %v92 = vld [vmem:[%s1 + $0xb8] sm:$0xf]
  %v93 = vld [vmem:[%s1 + $0xbc] sm:$0xf]
  %v94 = vld [vmem:[%s1 + $0xc0] sm:$0xf]
  %v95 = vld [vmem:[%s1 + $0xc4] sm:$0xf]
  %v96 = vld [vmem:[%s1 + $0xc8] sm:$0xf]
  %v97 = vld [vmem:[%s1 + $0xcc] sm:$0xf]
  %v98 = vld [vmem:[%s1 + $0xd0] sm:$0xf]
  %v99 = vld [vmem:[%s1 + $0xd4] sm:$0xf]
  %v100 = vld [vmem:[%s1 + $0xd8] sm:$0xf]
  %v101 = vld [vmem:[%s1 + $0xdc] sm:$0xf]
  %v102 = vld [vmem:[%s1 + $0xe0] sm:$0xf]
  %v103 = vld [vmem:[%s1 + $0xe4] sm:$0xf]
  %v104 = vld [vmem:[%s1 + $0xe8] sm:$0xf]
  %v105 = vld [vmem:[%s1 + $0xec] sm:$0xf]
  %v106 = vld [vmem:[%s1 + $0xf0] sm:$0xf]
  %v107 = vld [vmem:[%s1 + $0xf4] sm:$0xf]
  %v108 = vld [vmem:[%s1 + $0xf8] sm:$0xf]
  %v109 = vld [vmem:[%s1 + $0xfc] sm:$0xf]
  %v110 = vld [vmem:[%s1 + $0x100] sm:$0xf]
  %v111 = vld [vmem:[%s1 + $0x104] sm:$0xf]
  %v112 = vld [vmem:[%s1 + $0x108] sm:$0xf]
  %v113 = vld [vmem:[%s1 + $0x10c] sm:$0xf]
  %v114 = vld [vmem:[%s1 + $0x110] sm:$0xf]
  %v115 = vld [vmem:[%s1 + $0x114] sm:$0xf]
  %v116 = vld [vmem:[%s1 + $0x118] sm:$0xf]
  %v117 = vld [vmem:[%s1 + $0x11c] sm:$0xf]
  %v118 = vld [vmem:[%s1 + $0x120] sm:$0xf]
  %v119 = vld [vmem:[%s1 + $0x124] sm:$0xf]
  %v120 = vld [vmem:[%s1 + $0x128] sm:$0xf]
  %v121 = vld [vmem:[%s1 + $0x12c] sm:$0xf]
  %v122 = vld [vmem:[%s1 + $0x130] sm:$0xf]
  %v123 = vld [vmem:[%s1 + $0x134] sm:$0xf]
  %v124 = vld [vmem:[%s1 + $0x138] sm:$0xf]
  %v125 = vld [vmem:[%s1 + $0x13c] sm:$0xf]
  %v126 = vld [vmem:[%s1 + $0x140] sm:$0xf]
  %v127 = vld [vmem:[%s1 + $0x144] sm:$0xf]
  %v128 = vld [vmem:[%s1 + $0x148] sm:$0xf]
  %v129 = vld [vmem:[%s1 + $0x14c] sm:$0xf]
  %v130 = vld [vmem:[%s1 + $0x150] sm:$0xf]
  %v131 = vld [vmem:[%s1 + $0x154] sm:$0xf]
  %v132 = vld [vmem:[%s1 + $0x158] sm:$0xf]
  %v133 = vld [vmem:[%s1 + $0x15c] sm:$0xf]
  %v134 = vld [vmem:[%s1 + $0x160] sm:$0xf]
  %v135 = vld [vmem:[%s1 + $0x164] sm:$0xf]
  %v136 = vld [vmem:[%s1 + $0x168] sm:$0xf]
  %v137 = vld [vmem:[%s1 + $0x16c] sm:$0xf]
  %v138 = vld [vmem:[%s1 + $0x170] sm:$0xf]
  %v139 = vld [vmem:[%s1 + $0x174] sm:$0xf]
  %v140 = vld [vmem:[%s1 + $0x178] sm:$0xf]
  %v141 = vld [vmem:[%s1 + $0x17c] sm:$0xf]
  %v142 = vld [vmem:[%s1 + $0x180] sm:$0xf]
  %v143 = vld [vmem:[%s1 + $0x184] sm:$0xf]
  %v144 = vld [vmem:[%s1 + $0x188] sm:$0xf]
  %v145 = vld [vmem:[%s1 + $0x18c] sm:$0xf]
  %v146 = vld [vmem:[%s1 + $0x190] sm:$0xf]
  %v147 = vld [vmem:[%s1 + $0x194] sm:$0xf]
  %v148 = vld [vmem:[%s1 + $0x198] sm:$0xf]
  %v149 = vld [vmem:[%s1 + $0x19c] sm:$0xf]
  %v150 = vld [vmem:[%s1 + $0x1a0] sm:$0xf]
  %v151 = vld [vmem:[%s1 + $0x1a4] sm:$0xf]
  %v152 = vld [vmem:[%s1 + $0x1a8] sm:$0xf]
  %v153 = vld [vmem:[%s1 + $0x1ac] sm:$0xf]
  %v154 = vld [vmem:[%s1 + $0x1b0] sm:$0xf]
  %v155 = vld [vmem:[%s1 + $0x1b4] sm:$0xf]
  %v156 = vld [vmem:[%s1 + $0x1b8] sm:$0xf]
  %v157 = vld [vmem:[%s1 + $0x1bc] sm:$0xf]
  %v158 = vld [vmem:[%s1 + $0x1c0] sm:$0xf]
  %v159 = vld [vmem:[%s1 + $0x1c4] sm:$0xf]
  %v160 = vld [vmem:[%s1 + $0x1c8] sm:$0xf]
  %v161 = vld [vmem:[%s1 + $0x1cc] sm:$0xf]
  %v162 = vld [vmem:[%s1 + $0x1d0] sm:$0xf]
  %v163 = vld [vmem:[%s1 + $0x1d4] sm:$0xf]
  %v164 = vld [vmem:[%s1 + $0x1d8] sm:$0xf]
  %v165 = vld [vmem:[%s1 + $0x1dc] sm:$0xf]
  %v166 = vld [vmem:[%s1 + $0x1e0] sm:$0xf]
  %v167 = vld [vmem:[%s1 + $0x1e4] sm:$0xf]
  %v168 = vld [vmem:[%s1 + $0x1e8] sm:$0xf]
  %v169 = vld [vmem:[%s1 + $0x1ec] sm:$0xf]
  %v170 = vld [vmem:[%s1 + $0x1f0] sm:$0xf]
  %v171 = vld [vmem:[%s1 + $0x1f4] sm:$0xf]
  %v172 = vld [vmem:[%s1 + $0x1f8] sm:$0xf]
  %v173 = vld [vmem:[%s1 + $0x1fc] sm:$0xf]
  %v174 = vld [vmem:[%s1 + $0x200] sm:$0xf]
  %v175 = vld [vmem:[%s1 + $0x204] sm:$0xf]
  %v176 = vld [vmem:[%s1 + $0x208] sm:$0xf]
  %v177 = vld [vmem:[%s1 + $0x20c] sm:$0xf]
  %v178 = vld [vmem:[%s1 + $0x210] sm:$0xf]
  %v179 = vld [vmem:[%s1 + $0x214] sm:$0xf]
  %v180 = vld [vmem:[%s1 + $0x218] sm:$0xf]
  %v181 = vld [vmem:[%s1 + $0x21c] sm:$0xf]
  %v182 = vld [vmem:[%s1 + $0x220] sm:$0xf]
  %v183 = vld [vmem:[%s1 + $0x224] sm:$0xf]
  %v184 = vld [vmem:[%s1 + $0x228] sm:$0xf]
  %v185 = vld [vmem:[%s1 + $0x22c] sm:$0xf]
  %v186 = vld [vmem:[%s1 + $0x230] sm:$0xf]
  %v187 = vld [vmem:[%s1 + $0x234] sm:$0xf]
  %v188 = vld [vmem:[%s1 + $0x238] sm:$0xf]
  %v189 = vld [vmem:[%s1 + $0x23c] sm:$0xf]
  %v190 = vld [vmem:[%s1 + $0x240] sm:$0xf]
  %v191 = vld [vmem:[%s1 + $0x244] sm:$0xf]
  %v192 = vld [vmem:[%s1 + $0x248] sm:$0xf]
  %v193 = vld [vmem:[%s1 + $0x24c] sm:$0xf]
  %v194 = vld [vmem:[%s1 + $0x250] sm:$0xf]
  %v195 = vld [vmem:[%s1 + $0x254] sm:$0xf]
  %v196 = vld [vmem:[%s1 + $0x258] sm:$0xf]
  %v197 = vld [vmem:[%s1 + $0x25c] sm:$0xf]
  %v198 = vld [vmem:[%s1 + $0x260] sm:$0xf]
  %v199 = vld [vmem:[%s1 + $0x264] sm:$0xf]
  %v200 = vld [vmem:[%s1 + $0x268] sm:$0xf]
  %v201 = vld [vmem:[%s1 + $0x26c] sm:$0xf]
  %v202 = vld [vmem:[%s1 + $0x270] sm:$0xf]
  %v203 = vld [vmem:[%s1 + $0x274] sm:$0xf]
  %v204 = vld [vmem:[%s1 + $0x278] sm:$0xf]
  %v205 = vld [vmem:[%s1 + $0x27c] sm:$0xf]
  %v206 = vld [vmem:[%s1 + $0x280] sm:$0xf]
  %v207 = vld [vmem:[%s1 + $0x284] sm:$0xf]
  %v208 = vld [vmem:[%s1 + $0x288] sm:$0xf]
  %v209 = vld [vmem:[%s1 + $0x28c] sm:$0xf]
  %v210 = vld [vmem:[%s1 + $0x290] sm:$0xf]
  %v211 = vld [vmem:[%s1 + $0x294] sm:$0xf]
  %v212 = vld [vmem:[%s1 + $0x298] sm:$0xf]
  %v213 = vld [vmem:[%s1 + $0x29c] sm:$0xf]
  %v214 = vld [vmem:[%s1 + $0x2a0] sm:$0xf]
  %v215 = vld [vmem:[%s1 + $0x2a4] sm:$0xf]
  %v216 = vld [vmem:[%s1 + $0x2a8] sm:$0xf]
  %v217 = vld [vmem:[%s1 + $0x2ac] sm:$0xf]
  %v218 = vld [vmem:[%s1 + $0x2b0] sm:$0xf]
  %v219 = vld [vmem:[%s1 + $0x2b4] sm:$0xf]
  %v220 = vld [vmem:[%s1 + $0x2b8] sm:$0xf]
  %v221 = vld [vmem:[%s1 + $0x2bc] sm:$0xf]
  %v222 = vld [vmem:[%s1 + $0x2c0] sm:$0xf]
  %v223 = vld [vmem:[%s1 + $0x2c4] sm:$0xf]
  %v224 = vld [vmem:[%s1 + $0x2c8] sm:$0xf]
  %v225 = vld [vmem:[%s1 + $0x2cc] sm:$0xf]
  %v226 = vld [vmem:[%s1 + $0x2d0] sm:$0xf]
  %v227 = vld [vmem:[%s1 + $0x2d4] sm:$0xf]
  %v228 = vld [vmem:[%s1 + $0x2d8] sm:$0xf]
  %v229 = vld [vmem:[%s1 + $0x2dc] sm:$0xf]
  %v230 = vld [vmem:[%s1 + $0x2e0] sm:$0xf]
  %v231 = vld [vmem:[%s1 + $0x2e4] sm:$0xf]
  %v232 = vld [vmem:[%s1 + $0x2e8] sm:$0xf]
  %v233 = vld [vmem:[%s1 + $0x2ec] sm:$0xf]
  %v234 = vld [vmem:[%s1 + $0x2f0] sm:$0xf]
  %v235 = vld [vmem:[%s1 + $0x2f4] sm:$0xf]
  %v236 = vld [vmem:[%s1 + $0x2f8] sm:$0xf]
  %v237 = vld [vmem:[%s1 + $0x2fc] sm:$0xf]
  %v238 = vld [vmem:[%s1 + $0x300] sm:$0xf]
  %v239 = vld [vmem:[%s1 + $0x304] sm:$0xf]
  %v240 = vld [vmem:[%s1 + $0x308] sm:$0xf]
  %v241 = vld [vmem:[%s1 + $0x30c] sm:$0xf]
  %v242 = vld [vmem:[%s1 + $0x310] sm:$0xf]
  %v243 = vld [vmem:[%s1 + $0x314] sm:$0xf]
  %v244 = vld [vmem:[%s1 + $0x318] sm:$0xf]
  %v245 = vld [vmem:[%s1 + $0x31c] sm:$0xf]
  %v246 = vld [vmem:[%s1 + $0x320] sm:$0xf]
  %v247 = vld [vmem:[%s1 + $0x324] sm:$0xf]
  %v248 = vld [vmem:[%s1 + $0x328] sm:$0xf]
  %v249 = vld [vmem:[%s1 + $0x32c] sm:$0xf]
  %v250 = vld [vmem:[%s1 + $0x330] sm:$0xf]
  %v251 = vld [vmem:[%s1 + $0x334] sm:$0xf]
  %v252 = vld [vmem:[%s1 + $0x338] sm:$0xf]
  %v253 = vld [vmem:[%s1 + $0x33c] sm:$0xf]
  %v254 = vld [vmem:[%s1 + $0x340] sm:$0xf]
  %v255 = vld [vmem:[%s1 + $0x344] sm:$0xf]
  %v256 = vld [vmem:[%s1 + $0x348] sm:$0xf]
  %v257 = vld [vmem:[%s1 + $0x34c] sm:$0xf]
  %v258 = vld [vmem:[%s1 + $0x350] sm:$0xf]
  %v259 = vld [vmem:[%s1 + $0x354] sm:$0xf]
  %v260 = vld [vmem:[%s1 + $0x358] sm:$0xf]
  %v261 = vld [vmem:[%s1 + $0x35c] sm:$0xf]
  %v262 = vld [vmem:[%s1 + $0x360] sm:$0xf]
  %v263 = vld [vmem:[%s1 + $0x364] sm:$0xf]
  %v264 = vld [vmem:[%s1 + $0x368] sm:$0xf]
  %v265 = vld [vmem:[%s1 + $0x36c] sm:$0xf]
  %v266 = vld [vmem:[%s1 + $0x370] sm:$0xf]
  %v267 = vld [vmem:[%s1 + $0x374] sm:$0xf]
  %v268 = vld [vmem:[%s1 + $0x378] sm:$0xf]
  %v269 = vld [vmem:[%s1 + $0x37c] sm:$0xf]
  %v270 = vld [vmem:[%s1 + $0x380] sm:$0xf]
  %v271 = vld [vmem:[%s1 + $0x384] sm:$0xf]
  %v272 = vld [vmem:[%s1 + $0x388] sm:$0xf]
  %v273 = vld [vmem:[%s1 + $0x38c] sm:$0xf]
  %v274 = vld [vmem:[%s1 + $0x390] sm:$0xf]
  %v275 = vld [vmem:[%s1 + $0x394] sm:$0xf]
  %v276 = vld [vmem:[%s1 + $0x398] sm:$0xf]
  %v277 = vld [vmem:[%s1 + $0x39c] sm:$0xf]
  %v278 = vld [vmem:[%s1 + $0x3a0] sm:$0xf]
  %v279 = vld [vmem:[%s1 + $0x3a4] sm:$0xf]
  %v280 = vld [vmem:[%s1 + $0x3a8] sm:$0xf]
  %v281 = vld [vmem:[%s1 + $0x3ac] sm:$0xf]
  %v282 = vld [vmem:[%s1 + $0x3b0] sm:$0xf]
  %v283 = vld [vmem:[%s1 + $0x3b4] sm:$0xf]
  %v284 = vld [vmem:[%s1 + $0x3b8] sm:$0xf]
  %v285 = vld [vmem:[%s1 + $0x3bc] sm:$0xf]
  %v286 = vld [vmem:[%s1 + $0x3c0] sm:$0xf]
  %v287 = vld [vmem:[%s1 + $0x3c4] sm:$0xf]
  %v288 = vld [vmem:[%s1 + $0x3c8] sm:$0xf]
  %v289 = vld [vmem:[%s1 + $0x3cc] sm:$0xf]
  %v290 = vld [vmem:[%s1 + $0x3d0] sm:$0xf]
  %v291 = vld [vmem:[%s1 + $0x3d4] sm:$0xf]
  %v292 = vld [vmem:[%s1 + $0x3d8] sm:$0xf]
  %v293 = vld [vmem:[%s1 + $0x3dc] sm:$0xf]
  %v294 = vld [vmem:[%s1 + $0x3e0] sm:$0xf]
  %v295 = vld [vmem:[%s1 + $0x3e4] sm:$0xf]
  %v296 = vld [vmem:[%s1 + $0x3e8] sm:$0xf]
  %v297 = vld [vmem:[%s1 + $0x3ec] sm:$0xf]
  %v298 = vld [vmem:[%s1 + $0x3f0] sm:$0xf]
  %v299 = vld [vmem:[%s1 + $0x3f4] sm:$0xf]
  %v300 = vld [vmem:[%s1 + $0x3f8] sm:$0xf]
  %v301 = vld [vmem:[%s1 + $0x3fc] sm:$0xf]
  %v302 = vld [vmem:[%s2] sm:$0xf]
  %v303 = vld [vmem:[%s2 + $0x4] sm:$0xf]
  %v304 = vld [vmem:[%s2 + $0x8] sm:$0xf]
  %v305 = vld [vmem:[%s2 + $0xc] sm:$0xf]
  %v306 = vld [vmem:[%s2 + $0x10] sm:$0xf]
  %v307 = vld [vmem:[%s2 + $0x14] sm:$0xf]
  %v308 = vld [vmem:[%s2 + $0x18] sm:$0xf]
  %v309 = vld [vmem:[%s2 + $0x1c] sm:$0xf]
  %v310 = vld [vmem:[%s3] sm:$0x1]
  %v312 = vlaneseq
  %v313 = vshrl.u32 %v312, 7
  %v314 = vsub.s32 0, %v313
  %v315 = vrot.slane %v310, %v314
  %v573 = vunpack.c.l.b16 %v46
  %v574 = vunpack.c.l.b16 %v47
  %v575 = vunpack.c.l.b16 %v48
  %v576 = vunpack.c.l.b16 %v49
  %v577 = vunpack.c.l.b16 %v50
  %v578 = vunpack.c.l.b16 %v51
  %v579 = vunpack.c.l.b16 %v52
  %v580 = vunpack.c.l.b16 %v53
  %v581 = vunpack.c.l.b16 %v54
  %v582 = vunpack.c.l.b16 %v55
  %v583 = vunpack.c.l.b16 %v56
  %v584 = vunpack.c.l.b16 %v57
  %v585 = vunpack.c.l.b16 %v58
  %v586 = vunpack.c.l.b16 %v59
  %v587 = vunpack.c.l.b16 %v60
  %v588 = vunpack.c.l.b16 %v61
  %v589 = vunpack.c.l.b16 %v62
  %v590 = vunpack.c.l.b16 %v63
  %v591 = vunpack.c.l.b16 %v64
  %v592 = vunpack.c.l.b16 %v65
  %v593 = vunpack.c.l.b16 %v66
  %v594 = vunpack.c.l.b16 %v67
  %v595 = vunpack.c.l.b16 %v68
  %v596 = vunpack.c.l.b16 %v69
  %v597 = vunpack.c.l.b16 %v70
  %v598 = vunpack.c.l.b16 %v71
  %v599 = vunpack.c.l.b16 %v72
  %v600 = vunpack.c.l.b16 %v73
  %v601 = vunpack.c.l.b16 %v74
  %v602 = vunpack.c.l.b16 %v75
  %v603 = vunpack.c.l.b16 %v76
  %v604 = vunpack.c.l.b16 %v77
  %v605 = vunpack.c.l.b16 %v78
  %v606 = vunpack.c.l.b16 %v79
  %v607 = vunpack.c.l.b16 %v80
  %v608 = vunpack.c.l.b16 %v81
  %v609 = vunpack.c.l.b16 %v82
  %v610 = vunpack.c.l.b16 %v83
  %v611 = vunpack.c.l.b16 %v84
  %v612 = vunpack.c.l.b16 %v85
  %v613 = vunpack.c.l.b16 %v86
  %v614 = vunpack.c.l.b16 %v87
  %v615 = vunpack.c.l.b16 %v88
  %v616 = vunpack.c.l.b16 %v89
  %v617 = vunpack.c.l.b16 %v90
  %v618 = vunpack.c.l.b16 %v91
  %v619 = vunpack.c.l.b16 %v92
  %v620 = vunpack.c.l.b16 %v93
  %v621 = vunpack.c.l.b16 %v94
  %v622 = vunpack.c.l.b16 %v95
  %v623 = vunpack.c.l.b16 %v96
  %v624 = vunpack.c.l.b16 %v97
  %v625 = vunpack.c.l.b16 %v98
  %v626 = vunpack.c.l.b16 %v99
  %v627 = vunpack.c.l.b16 %v100
  %v628 = vunpack.c.l.b16 %v101
  %v629 = vunpack.c.l.b16 %v102
  %v630 = vunpack.c.l.b16 %v103
  %v631 = vunpack.c.l.b16 %v104
  %v632 = vunpack.c.l.b16 %v105
  %v633 = vunpack.c.l.b16 %v106
  %v634 = vunpack.c.l.b16 %v107
  %v635 = vunpack.c.l.b16 %v108
  %v636 = vunpack.c.l.b16 %v109
  %v637 = vunpack.c.l.b16 %v110
  %v638 = vunpack.c.l.b16 %v111
  %v639 = vunpack.c.l.b16 %v112
  %v640 = vunpack.c.l.b16 %v113
  %v641 = vunpack.c.l.b16 %v114
  %v642 = vunpack.c.l.b16 %v115
  %v643 = vunpack.c.l.b16 %v116
  %v644 = vunpack.c.l.b16 %v117
  %v645 = vunpack.c.l.b16 %v118
  %v646 = vunpack.c.l.b16 %v119
  %v647 = vunpack.c.l.b16 %v120
  %v648 = vunpack.c.l.b16 %v121
  %v649 = vunpack.c.l.b16 %v122
  %v650 = vunpack.c.l.b16 %v123
  %v651 = vunpack.c.l.b16 %v124
  %v652 = vunpack.c.l.b16 %v125
  %v653 = vunpack.c.l.b16 %v126
  %v654 = vunpack.c.l.b16 %v127
  %v655 = vunpack.c.l.b16 %v128
  %v656 = vunpack.c.l.b16 %v129
  %v657 = vunpack.c.l.b16 %v130
  %v658 = vunpack.c.l.b16 %v131
  %v659 = vunpack.c.l.b16 %v132
  %v660 = vunpack.c.l.b16 %v133
  %v661 = vunpack.c.l.b16 %v134
  %v662 = vunpack.c.l.b16 %v135
  %v663 = vunpack.c.l.b16 %v136
  %v664 = vunpack.c.l.b16 %v137
  %v665 = vunpack.c.l.b16 %v138
  %v666 = vunpack.c.l.b16 %v139
  %v667 = vunpack.c.l.b16 %v140
  %v668 = vunpack.c.l.b16 %v141
  %v669 = vunpack.c.l.b16 %v142
  %v670 = vunpack.c.l.b16 %v143
  %v671 = vunpack.c.l.b16 %v144
  %v672 = vunpack.c.l.b16 %v145
  %v673 = vunpack.c.l.b16 %v146
  %v674 = vunpack.c.l.b16 %v147
  %v675 = vunpack.c.l.b16 %v148
  %v676 = vunpack.c.l.b16 %v149
  %v677 = vunpack.c.l.b16 %v150
  %v678 = vunpack.c.l.b16 %v151
  %v679 = vunpack.c.l.b16 %v152
  %v680 = vunpack.c.l.b16 %v153
  %v681 = vunpack.c.l.b16 %v154
  %v682 = vunpack.c.l.b16 %v155
  %v683 = vunpack.c.l.b16 %v156
  %v684 = vunpack.c.l.b16 %v157
  %v685 = vunpack.c.l.b16 %v158
  %v686 = vunpack.c.l.b16 %v159
  %v687 = vunpack.c.l.b16 %v160
  %v688 = vunpack.c.l.b16 %v161
  %v689 = vunpack.c.l.b16 %v162
  %v690 = vunpack.c.l.b16 %v163
  %v691 = vunpack.c.l.b16 %v164
  %v692 = vunpack.c.l.b16 %v165
  %v693 = vunpack.c.l.b16 %v166
  %v694 = vunpack.c.l.b16 %v167
  %v695 = vunpack.c.l.b16 %v168
  %v696 = vunpack.c.l.b16 %v169
  %v697 = vunpack.c.l.b16 %v170
  %v698 = vunpack.c.l.b16 %v171
  %v699 = vunpack.c.l.b16 %v172
  %v700 = vunpack.c.l.b16 %v173
  %v701 = vunpack.c.l.b16 %v174
  %v702 = vunpack.c.l.b16 %v175
  %v703 = vunpack.c.l.b16 %v176
  %v704 = vunpack.c.l.b16 %v177
  %v705 = vunpack.c.l.b16 %v178
  %v706 = vunpack.c.l.b16 %v179
  %v707 = vunpack.c.l.b16 %v180
  %v708 = vunpack.c.l.b16 %v181
  %v709 = vunpack.c.l.b16 %v182
  %v710 = vunpack.c.l.b16 %v183
  %v711 = vunpack.c.l.b16 %v184
  %v712 = vunpack.c.l.b16 %v185
  %v713 = vunpack.c.l.b16 %v186
  %v714 = vunpack.c.l.b16 %v187
  %v715 = vunpack.c.l.b16 %v188
  %v716 = vunpack.c.l.b16 %v189
  %v717 = vunpack.c.l.b16 %v190
  %v718 = vunpack.c.l.b16 %v191
  %v719 = vunpack.c.l.b16 %v192
  %v720 = vunpack.c.l.b16 %v193
  %v721 = vunpack.c.l.b16 %v194
  %v722 = vunpack.c.l.b16 %v195
  %v723 = vunpack.c.l.b16 %v196
  %v724 = vunpack.c.l.b16 %v197
  %v725 = vunpack.c.l.b16 %v198
  %v726 = vunpack.c.l.b16 %v199
  %v727 = vunpack.c.l.b16 %v200
  %v728 = vunpack.c.l.b16 %v201
  %v729 = vunpack.c.l.b16 %v202
  %v730 = vunpack.c.l.b16 %v203
  %v731 = vunpack.c.l.b16 %v204
  %v732 = vunpack.c.l.b16 %v205
  %v733 = vunpack.c.l.b16 %v206
  %v734 = vunpack.c.l.b16 %v207
  %v735 = vunpack.c.l.b16 %v208
  %v736 = vunpack.c.l.b16 %v209
  %v737 = vunpack.c.l.b16 %v210
  %v738 = vunpack.c.l.b16 %v211
  %v739 = vunpack.c.l.b16 %v212
  %v740 = vunpack.c.l.b16 %v213
  %v741 = vunpack.c.l.b16 %v214
  %v742 = vunpack.c.l.b16 %v215
  %v743 = vunpack.c.l.b16 %v216
  %v744 = vunpack.c.l.b16 %v217
  %v745 = vunpack.c.l.b16 %v218
  %v746 = vunpack.c.l.b16 %v219
  %v747 = vunpack.c.l.b16 %v220
  %v748 = vunpack.c.l.b16 %v221
  %v749 = vunpack.c.l.b16 %v222
  %v750 = vunpack.c.l.b16 %v223
  %v751 = vunpack.c.l.b16 %v224
  %v752 = vunpack.c.l.b16 %v225
  %v753 = vunpack.c.l.b16 %v226
  %v754 = vunpack.c.l.b16 %v227
  %v755 = vunpack.c.l.b16 %v228
  %v756 = vunpack.c.l.b16 %v229
  %v757 = vunpack.c.l.b16 %v230
  %v758 = vunpack.c.l.b16 %v231
  %v759 = vunpack.c.l.b16 %v232
  %v760 = vunpack.c.l.b16 %v233
  %v761 = vunpack.c.l.b16 %v234
  %v762 = vunpack.c.l.b16 %v235
  %v763 = vunpack.c.l.b16 %v236
  %v764 = vunpack.c.l.b16 %v237
  %v765 = vunpack.c.l.b16 %v238
  %v766 = vunpack.c.l.b16 %v239
  %v767 = vunpack.c.l.b16 %v240
  %v768 = vunpack.c.l.b16 %v241
  %v769 = vunpack.c.l.b16 %v242
  %v770 = vunpack.c.l.b16 %v243
  %v771 = vunpack.c.l.b16 %v244
  %v772 = vunpack.c.l.b16 %v245
  %v773 = vunpack.c.l.b16 %v246
  %v774 = vunpack.c.l.b16 %v247
  %v775 = vunpack.c.l.b16 %v248
  %v776 = vunpack.c.l.b16 %v249
  %v777 = vunpack.c.l.b16 %v250
  %v778 = vunpack.c.l.b16 %v251
  %v779 = vunpack.c.l.b16 %v252
  %v780 = vunpack.c.l.b16 %v253
  %v781 = vunpack.c.l.b16 %v254
  %v782 = vunpack.c.l.b16 %v255
  %v783 = vunpack.c.l.b16 %v256
  %v784 = vunpack.c.l.b16 %v257
  %v785 = vunpack.c.l.b16 %v258
  %v786 = vunpack.c.l.b16 %v259
  %v787 = vunpack.c.l.b16 %v260
  %v788 = vunpack.c.l.b16 %v261
  %v789 = vunpack.c.l.b16 %v262
  %v790 = vunpack.c.l.b16 %v263
  %v791 = vunpack.c.l.b16 %v264
  %v792 = vunpack.c.l.b16 %v265
  %v793 = vunpack.c.l.b16 %v266
  %v794 = vunpack.c.l.b16 %v267
  %v795 = vunpack.c.l.b16 %v268
  %v796 = vunpack.c.l.b16 %v269
  %v797 = vunpack.c.l.b16 %v270
  %v798 = vunpack.c.l.b16 %v271
  %v799 = vunpack.c.l.b16 %v272
  %v800 = vunpack.c.l.b16 %v273
  %v801 = vunpack.c.l.b16 %v274
  %v802 = vunpack.c.l.b16 %v275
  %v803 = vunpack.c.l.b16 %v276
  %v804 = vunpack.c.l.b16 %v277
  %v805 = vunpack.c.l.b16 %v278
  %v806 = vunpack.c.l.b16 %v279
  %v807 = vunpack.c.l.b16 %v280
  %v808 = vunpack.c.l.b16 %v281
  %v809 = vunpack.c.l.b16 %v282
  %v810 = vunpack.c.l.b16 %v283
  %v811 = vunpack.c.l.b16 %v284
  %v812 = vunpack.c.l.b16 %v285
  %v813 = vunpack.c.l.b16 %v286
  %v814 = vunpack.c.l.b16 %v287
  %v815 = vunpack.c.l.b16 %v288
  %v816 = vunpack.c.l.b16 %v289
  %v817 = vunpack.c.l.b16 %v290
  %v818 = vunpack.c.l.b16 %v291
  %v819 = vunpack.c.l.b16 %v292
  %v820 = vunpack.c.l.b16 %v293
  %v821 = vunpack.c.l.b16 %v294
  %v822 = vunpack.c.l.b16 %v295
  %v823 = vunpack.c.l.b16 %v296
  %v824 = vunpack.c.l.b16 %v297
  %v825 = vunpack.c.l.b16 %v298
  %v826 = vunpack.c.l.b16 %v299
  %v827 = vunpack.c.l.b16 %v300
  %v828 = vunpack.c.l.b16 %v301
  %v829 = vpack.c.b16 %v574, %v573
  %v830 = vpack.c.b16 %v576, %v575
  %v831 = vpack.c.b16 %v578, %v577
  %v832 = vpack.c.b16 %v580, %v579
  %v833 = vpack.c.b16 %v582, %v581
  %v834 = vpack.c.b16 %v584, %v583
  %v835 = vpack.c.b16 %v586, %v585
  %v836 = vpack.c.b16 %v588, %v587
  %v837 = vpack.c.b16 %v590, %v589
  %v838 = vpack.c.b16 %v592, %v591
  %v839 = vpack.c.b16 %v594, %v593
  %v840 = vpack.c.b16 %v596, %v595
  %v841 = vpack.c.b16 %v598, %v597
  %v842 = vpack.c.b16 %v600, %v599
  %v843 = vpack.c.b16 %v602, %v601
  %v844 = vpack.c.b16 %v604, %v603
  %v845 = vpack.c.b16 %v606, %v605
  %v846 = vpack.c.b16 %v608, %v607
  %v847 = vpack.c.b16 %v610, %v609
  %v848 = vpack.c.b16 %v612, %v611
  %v849 = vpack.c.b16 %v614, %v613
  %v850 = vpack.c.b16 %v616, %v615
  %v851 = vpack.c.b16 %v618, %v617
  %v852 = vpack.c.b16 %v620, %v619
  %v853 = vpack.c.b16 %v622, %v621
  %v854 = vpack.c.b16 %v624, %v623
  %v855 = vpack.c.b16 %v626, %v625
  %v856 = vpack.c.b16 %v628, %v627
  %v857 = vpack.c.b16 %v630, %v629
  %v858 = vpack.c.b16 %v632, %v631
  %v859 = vpack.c.b16 %v634, %v633
  %v860 = vpack.c.b16 %v636, %v635
  %v861 = vpack.c.b16 %v638, %v637
  %v862 = vpack.c.b16 %v640, %v639
  %v863 = vpack.c.b16 %v642, %v641
  %v864 = vpack.c.b16 %v644, %v643
  %v865 = vpack.c.b16 %v646, %v645
  %v866 = vpack.c.b16 %v648, %v647
  %v867 = vpack.c.b16 %v650, %v649
  %v868 = vpack.c.b16 %v652, %v651
  %v869 = vpack.c.b16 %v654, %v653
  %v870 = vpack.c.b16 %v656, %v655
  %v871 = vpack.c.b16 %v658, %v657
  %v872 = vpack.c.b16 %v660, %v659
  %v873 = vpack.c.b16 %v662, %v661
  %v874 = vpack.c.b16 %v664, %v663
  %v875 = vpack.c.b16 %v666, %v665
  %v876 = vpack.c.b16 %v668, %v667
  %v877 = vpack.c.b16 %v670, %v669
  %v878 = vpack.c.b16 %v672, %v671
  %v879 = vpack.c.b16 %v674, %v673
  %v880 = vpack.c.b16 %v676, %v675
  %v881 = vpack.c.b16 %v678, %v677
  %v882 = vpack.c.b16 %v680, %v679
  %v883 = vpack.c.b16 %v682, %v681
  %v884 = vpack.c.b16 %v684, %v683
  %v885 = vpack.c.b16 %v686, %v685
  %v886 = vpack.c.b16 %v688, %v687
  %v887 = vpack.c.b16 %v690, %v689
  %v888 = vpack.c.b16 %v692, %v691
  %v889 = vpack.c.b16 %v694, %v693
  %v890 = vpack.c.b16 %v696, %v695
  %v891 = vpack.c.b16 %v698, %v697
  %v892 = vpack.c.b16 %v700, %v699
  %v893 = vpack.c.b16 %v702, %v701
  %v894 = vpack.c.b16 %v704, %v703
  %v895 = vpack.c.b16 %v706, %v705
  %v896 = vpack.c.b16 %v708, %v707
  %v897 = vpack.c.b16 %v710, %v709
  %v898 = vpack.c.b16 %v712, %v711
  %v899 = vpack.c.b16 %v714, %v713
  %v900 = vpack.c.b16 %v716, %v715
  %v901 = vpack.c.b16 %v718, %v717
  %v902 = vpack.c.b16 %v720, %v719
  %v903 = vpack.c.b16 %v722, %v721
  %v904 = vpack.c.b16 %v724, %v723
  %v905 = vpack.c.b16 %v726, %v725
  %v906 = vpack.c.b16 %v728, %v727
  %v907 = vpack.c.b16 %v730, %v729
  %v908 = vpack.c.b16 %v732, %v731
  %v909 = vpack.c.b16 %v734, %v733
  %v910 = vpack.c.b16 %v736, %v735
  %v911 = vpack.c.b16 %v738, %v737
  %v912 = vpack.c.b16 %v740, %v739
  %v913 = vpack.c.b16 %v742, %v741
  %v914 = vpack.c.b16 %v744, %v743
  %v915 = vpack.c.b16 %v746, %v745
  %v916 = vpack.c.b16 %v748, %v747
  %v917 = vpack.c.b16 %v750, %v749
  %v918 = vpack.c.b16 %v752, %v751
  %v919 = vpack.c.b16 %v754, %v753
  %v920 = vpack.c.b16 %v756, %v755
  %v921 = vpack.c.b16 %v758, %v757
  %v922 = vpack.c.b16 %v760, %v759
  %v923 = vpack.c.b16 %v762, %v761
  %v924 = vpack.c.b16 %v764, %v763
  %v925 = vpack.c.b16 %v766, %v765
  %v926 = vpack.c.b16 %v768, %v767
  %v927 = vpack.c.b16 %v770, %v769
  %v928 = vpack.c.b16 %v772, %v771
  %v929 = vpack.c.b16 %v774, %v773
  %v930 = vpack.c.b16 %v776, %v775
  %v931 = vpack.c.b16 %v778, %v777
  %v932 = vpack.c.b16 %v780, %v779
  %v933 = vpack.c.b16 %v782, %v781
  %v934 = vpack.c.b16 %v784, %v783
  %v935 = vpack.c.b16 %v786, %v785
  %v936 = vpack.c.b16 %v788, %v787
  %v937 = vpack.c.b16 %v790, %v789
  %v938 = vpack.c.b16 %v792, %v791
  %v939 = vpack.c.b16 %v794, %v793
  %v940 = vpack.c.b16 %v796, %v795
  %v941 = vpack.c.b16 %v798, %v797
  %v942 = vpack.c.b16 %v800, %v799
  %v943 = vpack.c.b16 %v802, %v801
  %v944 = vpack.c.b16 %v804, %v803
  %v945 = vpack.c.b16 %v806, %v805
  %v946 = vpack.c.b16 %v808, %v807
  %v947 = vpack.c.b16 %v810, %v809
  %v948 = vpack.c.b16 %v812, %v811
  %v949 = vpack.c.b16 %v814, %v813
  %v950 = vpack.c.b16 %v816, %v815
  %v951 = vpack.c.b16 %v818, %v817
  %v952 = vpack.c.b16 %v820, %v819
  %v953 = vpack.c.b16 %v822, %v821
  %v954 = vpack.c.b16 %v824, %v823
  %v955 = vpack.c.b16 %v826, %v825
  %v956 = vpack.c.b16 %v828, %v827
  %v965 = vunpack.c.l.b16 %v302
  %v966 = vunpack.c.l.b16 %v303
  %v967 = vunpack.c.l.b16 %v304
  %v968 = vunpack.c.l.b16 %v305
  %v969 = vunpack.c.l.b16 %v306
  %v970 = vunpack.c.l.b16 %v307
  %v971 = vunpack.c.l.b16 %v308
  %v972 = vunpack.c.l.b16 %v309
  %v973 = vpack.c.b16 %v966, %v965
  %v974 = vpack.c.b16 %v968, %v967
  %v975 = vpack.c.b16 %v970, %v969
  %v976 = vpack.c.b16 %v972, %v971
  %vm981 = vcmask 523264
  %v983 = vsel %vm981, %v829, 0
  %v986 = vsel %vm981, %v830, 0
  %v989 = vsel %vm981, %v831, 0
  %v992 = vsel %vm981, %v832, 0
  %v995 = vsel %vm981, %v833, 0
  %v998 = vsel %vm981, %v834, 0
  %v1001 = vsel %vm981, %v835, 0
  %v1004 = vsel %vm981, %v836, 0
  %v1007 = vsel %vm981, %v837, 0
  %v1010 = vsel %vm981, %v838, 0
  %v1013 = vsel %vm981, %v839, 0
  %v1016 = vsel %vm981, %v840, 0
  %v1019 = vsel %vm981, %v841, 0
  %v1022 = vsel %vm981, %v842, 0
  %v1025 = vsel %vm981, %v843, 0
  %v1028 = vsel %vm981, %v844, 0
  %v1031 = vsel %vm981, %v845, 0
  %v1034 = vsel %vm981, %v846, 0
  %v1037 = vsel %vm981, %v847, 0
  %v1040 = vsel %vm981, %v848, 0
  %v1043 = vsel %vm981, %v849, 0
  %v1046 = vsel %vm981, %v850, 0
  %v1049 = vsel %vm981, %v851, 0
  %v1052 = vsel %vm981, %v852, 0
  %v1055 = vsel %vm981, %v853, 0
  %v1058 = vsel %vm981, %v854, 0
  %v1061 = vsel %vm981, %v855, 0
  %v1064 = vsel %vm981, %v856, 0
  %v1067 = vsel %vm981, %v857, 0
  %v1070 = vsel %vm981, %v858, 0
  %v1073 = vsel %vm981, %v859, 0
  %v1076 = vsel %vm981, %v860, 0
  %v1079 = vsel %vm981, %v861, 0
  %v1082 = vsel %vm981, %v862, 0
  %v1085 = vsel %vm981, %v863, 0
  %v1088 = vsel %vm981, %v864, 0
  %v1091 = vsel %vm981, %v865, 0
  %v1094 = vsel %vm981, %v866, 0
  %v1097 = vsel %vm981, %v867, 0
  %v1100 = vsel %vm981, %v868, 0
  %v1103 = vsel %vm981, %v869, 0
  %v1106 = vsel %vm981, %v870, 0
  %v1109 = vsel %vm981, %v871, 0
  %v1112 = vsel %vm981, %v872, 0
  %v1115 = vsel %vm981, %v873, 0
  %v1118 = vsel %vm981, %v874, 0
  %v1121 = vsel %vm981, %v875, 0
  %v1124 = vsel %vm981, %v876, 0
  %v1127 = vsel %vm981, %v877, 0
  %v1130 = vsel %vm981, %v878, 0
  %v1133 = vsel %vm981, %v879, 0
  %v1136 = vsel %vm981, %v880, 0
  %v1139 = vsel %vm981, %v881, 0
  %v1142 = vsel %vm981, %v882, 0
  %v1145 = vsel %vm981, %v883, 0
  %v1148 = vsel %vm981, %v884, 0
  %v1151 = vsel %vm981, %v885, 0
  %v1154 = vsel %vm981, %v886, 0
  %v1157 = vsel %vm981, %v887, 0
  %v1160 = vsel %vm981, %v888, 0
  %v1163 = vsel %vm981, %v889, 0
  %v1166 = vsel %vm981, %v890, 0
  %v1169 = vsel %vm981, %v891, 0
  %v1172 = vsel %vm981, %v892, 0
  %v1175 = vsel %vm981, %v893, 0
  %v1178 = vsel %vm981, %v894, 0
  %v1181 = vsel %vm981, %v895, 0
  %v1184 = vsel %vm981, %v896, 0
  %v1187 = vsel %vm981, %v897, 0
  %v1190 = vsel %vm981, %v898, 0
  %v1193 = vsel %vm981, %v899, 0
  %v1196 = vsel %vm981, %v900, 0
  %v1199 = vsel %vm981, %v901, 0
  %v1202 = vsel %vm981, %v902, 0
  %v1205 = vsel %vm981, %v903, 0
  %v1208 = vsel %vm981, %v904, 0
  %v1211 = vsel %vm981, %v905, 0
  %v1214 = vsel %vm981, %v906, 0
  %v1217 = vsel %vm981, %v907, 0
  %v1220 = vsel %vm981, %v908, 0
  %v1223 = vsel %vm981, %v909, 0
  %v1226 = vsel %vm981, %v910, 0
  %v1229 = vsel %vm981, %v911, 0
  %v1232 = vsel %vm981, %v912, 0
  %v1235 = vsel %vm981, %v913, 0
  %v1238 = vsel %vm981, %v914, 0
  %v1241 = vsel %vm981, %v915, 0
  %v1244 = vsel %vm981, %v916, 0
  %v1247 = vsel %vm981, %v917, 0
  %v1250 = vsel %vm981, %v918, 0
  %v1253 = vsel %vm981, %v919, 0
  %v1256 = vsel %vm981, %v920, 0
  %v1259 = vsel %vm981, %v921, 0
  %v1262 = vsel %vm981, %v922, 0
  %v1265 = vsel %vm981, %v923, 0
  %v1268 = vsel %vm981, %v924, 0
  %v1271 = vsel %vm981, %v925, 0
  %v1274 = vsel %vm981, %v926, 0
  %v1277 = vsel %vm981, %v927, 0
  %v1280 = vsel %vm981, %v928, 0
  %v1283 = vsel %vm981, %v929, 0
  %v1286 = vsel %vm981, %v930, 0
  %v1289 = vsel %vm981, %v931, 0
  %v1292 = vsel %vm981, %v932, 0
  %v1295 = vsel %vm981, %v933, 0
  %v1298 = vsel %vm981, %v934, 0
  %v1301 = vsel %vm981, %v935, 0
  %v1304 = vsel %vm981, %v936, 0
  %v1307 = vsel %vm981, %v937, 0
  %v1310 = vsel %vm981, %v938, 0
  %v1313 = vsel %vm981, %v939, 0
  %v1316 = vsel %vm981, %v940, 0
  %v1319 = vsel %vm981, %v941, 0
  %v1322 = vsel %vm981, %v942, 0
  %v1325 = vsel %vm981, %v943, 0
  %v1328 = vsel %vm981, %v944, 0
  %v1331 = vsel %vm981, %v945, 0
  %v1334 = vsel %vm981, %v946, 0
  %v1337 = vsel %vm981, %v947, 0
  %v1340 = vsel %vm981, %v948, 0
  %v1343 = vsel %vm981, %v949, 0
  %v1346 = vsel %vm981, %v950, 0
  %v1349 = vsel %vm981, %v951, 0
  %v1352 = vsel %vm981, %v952, 0
  %v1355 = vsel %vm981, %v953, 0
  %v1358 = vsel %vm981, %v954, 0
  %v1361 = vsel %vm981, %v955, 0
  %v1364 = vsel %vm981, %v956, 0
  %1366 = vmatprep.subr.bf16.mxu0 0
  %1367 = vmatpush1.bf16.msra.mxu0 %v973
  %1368 = vmatprep.subr.bf16.mxu0 0
  %1369 = vmatpush1.bf16.msra.mxu0 %v974
  %1370 = vmatprep.subr.bf16.mxu0 0
  %1371 = vmatpush1.bf16.msra.mxu0 %v975
  %1372 = vmatprep.subr.bf16.mxu0 0
  %1373 = vmatpush1.bf16.msra.mxu0 %v976
  %1374 = vmatprep.subr.bf16.mxu0 0
  %1375 = vmatpush1.bf16.msra.mxu0 0
  %1376 = vmatprep.subr.bf16.mxu0 0
  %1377 = vmatpush1.bf16.msra.mxu0 0
  %1378 = vmatprep.subr.bf16.mxu0 0
  %1379 = vmatpush1.bf16.msra.mxu0 0
  %1380 = vmatprep.subr.bf16.mxu0 0
  %1381 = vmatpush1.bf16.msra.mxu0 0
  %1382 = vmatprep.subr.bf16.mxu0 0
  %1383 = vmatpush1.bf16.msra.mxu0 0
  %1384 = vmatprep.subr.bf16.mxu0 0
  %1385 = vmatpush1.bf16.msra.mxu0 0
  %1386 = vmatprep.subr.bf16.mxu0 0
  %1387 = vmatpush1.bf16.msra.mxu0 0
  %1388 = vmatprep.subr.bf16.mxu0 0
  %1389 = vmatpush1.bf16.msra.mxu0 0
  %1390 = vmatprep.subr.bf16.mxu0 0
  %1391 = vmatpush1.bf16.msra.mxu0 0
  %1392 = vmatprep.subr.bf16.mxu0 0
  %1393 = vmatpush1.bf16.msra.mxu0 0
  %1394 = vmatprep.subr.bf16.mxu0 0
  %1395 = vmatpush1.bf16.msra.mxu0 0
  %1396 = vmatprep.subr.bf16.mxu0 0
  %1397 = vmatpush1.bf16.msra.mxu0 0
  %1398 = vmatprep.mubr.bf16.mxu0 0
  %1399 = vmatmul.mubr.bf16.gmra.mrb[0].mxu0 %v983
  %v1400 = vpop.f32.mrb[0].mxu0
  %v1401 = vadd.f32 %v315, %v1400
  %v1402 = vpop.f32.mrb[0].mxu0
  %v1403 = vpop.f32.mrb[0].mxu0
  %v1404 = vadd.f32 %v315, %v1403
  %v1405 = vpop.f32.mrb[0].mxu0
  %1406 = vmatprep.mubr.bf16.mxu0 0
  %1407 = vmatmul.mubr.bf16.gmra.mrb[0].mxu0 %v986
  %v1408 = vpop.f32.mrb[0].mxu0
  %v1409 = vadd.f32 %v315, %v1408
  %v1410 = vpop.f32.mrb[0].mxu0
  %v1411 = vpop.f32.mrb[0].mxu0
  %v1412 = vadd.f32 %v315, %v1411
  %v1413 = vpop.f32.mrb[0].mxu0
  %1414 = vmatprep.mubr.bf16.mxu0 0
  %1415 = vmatmul.mubr.bf16.gmra.mrb[0].mxu0 %v989
  %v1416 = vpop.f32.mrb[0].mxu0
  %v1417 = vadd.f32 %v315, %v1416
  %v1418 = vpop.f32.mrb[0].mxu0
  %v1419 = vpop.f32.mrb[0].mxu0
  %v1420 = vadd.f32 %v315, %v1419
  %v1421 = vpop.f32.mrb[0].mxu0
  %1422 = vmatprep.mubr.bf16.mxu0 0
  %1423 = vmatmul.mubr.bf16.gmra.mrb[0].mxu0 %v992
  %v1424 = vpop.f32.mrb[0].mxu0
  %v1425 = vadd.f32 %v315, %v1424
  %v1426 = vpop.f32.mrb[0].mxu0
  %v1427 = vpop.f32.mrb[0].mxu0
  %v1428 = vadd.f32 %v315, %v1427
  %v1429 = vpop.f32.mrb[0].mxu0
  %1430 = vmatprep.mubr.bf16.mxu0 0
  %1431 = vmatmul.mubr.bf16.gmra.mrb[0].mxu0 %v995
  %v1432 = vpop.f32.mrb[0].mxu0
  %v1433 = vadd.f32 %v315, %v1432
  %v1434 = vpop.f32.mrb[0].mxu0
  %v1435 = vpop.f32.mrb[0].mxu0
  %v1436 = vadd.f32 %v315, %v1435
  %v1437 = vpop.f32.mrb[0].mxu0
  %1438 = vmatprep.mubr.bf16.mxu0 0
  %1439 = vmatmul.mubr.bf16.gmra.mrb[0].mxu0 %v998
  %v1440 = vpop.f32.mrb[0].mxu0
  %v1441 = vadd.f32 %v315, %v1440
  %v1442 = vpop.f32.mrb[0].mxu0
  %v1443 = vpop.f32.mrb[0].mxu0
  %v1444 = vadd.f32 %v315, %v1443
  %v1445 = vpop.f32.mrb[0].mxu0
  %1446 = vmatprep.mubr.bf16.mxu0 0
  %1447 = vmatmul.mubr.bf16.gmra.mrb[0].mxu0 %v1001
  %v1448 = vpop.f32.mrb[0].mxu0
  %v1449 = vadd.f32 %v315, %v1448
  %v1450 = vpop.f32.mrb[0].mxu0
  %v1451 = vpop.f32.mrb[0].mxu0
  %v1452 = vadd.f32 %v315, %v1451
  %v1453 = vpop.f32.mrb[0].mxu0
  %1454 = vmatprep.mubr.bf16.mxu0 0
  %1455 = vmatmul.mubr.bf16.gmra.mrb[0].mxu0 %v1004
  %v1456 = vpop.f32.mrb[0].mxu0
  %v1457 = vadd.f32 %v315, %v1456
  %v1458 = vpop.f32.mrb[0].mxu0
  %v1459 = vpop.f32.mrb[0].mxu0
  %v1460 = vadd.f32 %v315, %v1459
  %v1461 = vpop.f32.mrb[0].mxu0
  %1462 = vmatprep.mubr.bf16.mxu0 0
  %1463 = vmatmul.mubr.bf16.gmra.mrb[0].mxu0 %v1007
  %v1464 = vpop.f32.mrb[0].mxu0
  %v1465 = vadd.f32 %v315, %v1464
  %v1466 = vpop.f32.mrb[0].mxu0
  %v1467 = vpop.f32.mrb[0].mxu0
  %v1468 = vadd.f32 %v315, %v1467
  %v1469 = vpop.f32.mrb[0].mxu0
  %1470 = vmatprep.mubr.bf16.mxu0 0
  %1471 = vmatmul.mubr.bf16.gmra.mrb[0].mxu0 %v1010
  %v1472 = vpop.f32.mrb[0].mxu0
  %v1473 = vadd.f32 %v315, %v1472
  %v1474 = vpop.f32.mrb[0].mxu0
  %v1475 = vpop.f32.mrb[0].mxu0
  %v1476 = vadd.f32 %v315, %v1475
  %v1477 = vpop.f32.mrb[0].mxu0
  %1478 = vmatprep.mubr.bf16.mxu0 0
  %1479 = vmatmul.mubr.bf16.gmra.mrb[0].mxu0 %v1013
  %v1480 = vpop.f32.mrb[0].mxu0
  %v1481 = vadd.f32 %v315, %v1480
  %v1482 = vpop.f32.mrb[0].mxu0
  %v1483 = vpop.f32.mrb[0].mxu0
  %v1484 = vadd.f32 %v315, %v1483
  %v1485 = vpop.f32.mrb[0].mxu0
  %1486 = vmatprep.mubr.bf16.mxu0 0
  %1487 = vmatmul.mubr.bf16.gmra.mrb[0].mxu0 %v1016
  %v1488 = vpop.f32.mrb[0].mxu0
  %v1489 = vadd.f32 %v315, %v1488
  %v1490 = vpop.f32.mrb[0].mxu0
  %v1491 = vpop.f32.mrb[0].mxu0
  %v1492 = vadd.f32 %v315, %v1491
  %v1493 = vpop.f32.mrb[0].mxu0
  %1494 = vmatprep.mubr.bf16.mxu0 0
  %1495 = vmatmul.mubr.bf16.gmra.mrb[0].mxu0 %v1019
  %v1496 = vpop.f32.mrb[0].mxu0
  %v1497 = vadd.f32 %v315, %v1496
  %v1498 = vpop.f32.mrb[0].mxu0
  %v1499 = vpop.f32.mrb[0].mxu0
  %v1500 = vadd.f32 %v315, %v1499
  %v1501 = vpop.f32.mrb[0].mxu0
  %1502 = vmatprep.mubr.bf16.mxu0 0
  %1503 = vmatmul.mubr.bf16.gmra.mrb[0].mxu0 %v1022
  %v1504 = vpop.f32.mrb[0].mxu0
  %v1505 = vadd.f32 %v315, %v1504
  %v1506 = vpop.f32.mrb[0].mxu0
  %v1507 = vpop.f32.mrb[0].mxu0
  %v1508 = vadd.f32 %v315, %v1507
  %v1509 = vpop.f32.mrb[0].mxu0
  %1510 = vmatprep.mubr.bf16.mxu0 0
  %1511 = vmatmul.mubr.bf16.gmra.mrb[0].mxu0 %v1025
  %v1512 = vpop.f32.mrb[0].mxu0
  %v1513 = vadd.f32 %v315, %v1512
  %v1514 = vpop.f32.mrb[0].mxu0
  %v1515 = vpop.f32.mrb[0].mxu0
  %v1516 = vadd.f32 %v315, %v1515
  %v1517 = vpop.f32.mrb[0].mxu0
  %1518 = vmatprep.mubr.bf16.mxu0 0
  %1519 = vmatmul.mubr.bf16.gmra.mrb[0].mxu0 %v1028
  %v1520 = vpop.f32.mrb[0].mxu0
  %v1521 = vadd.f32 %v315, %v1520
  %v1522 = vpop.f32.mrb[0].mxu0
  %v1523 = vpop.f32.mrb[0].mxu0
  %v1524 = vadd.f32 %v315, %v1523
  %v1525 = vpop.f32.mrb[0].mxu0
  %1526 = vmatprep.mubr.bf16.mxu0 0
  %1527 = vmatmul.mubr.bf16.gmra.mrb[0].mxu0 %v1031
  %v1528 = vpop.f32.mrb[0].mxu0
  %v1529 = vadd.f32 %v315, %v1528
  %v1530 = vpop.f32.mrb[0].mxu0
  %v1531 = vpop.f32.mrb[0].mxu0
  %v1532 = vadd.f32 %v315, %v1531
  %v1533 = vpop.f32.mrb[0].mxu0
  %1534 = vmatprep.mubr.bf16.mxu0 0
  %1535 = vmatmul.mubr.bf16.gmra.mrb[0].mxu0 %v1034
  %v1536 = vpop.f32.mrb[0].mxu0
  %v1537 = vadd.f32 %v315, %v1536
  %v1538 = vpop.f32.mrb[0].mxu0
  %v1539 = vpop.f32.mrb[0].mxu0
  %v1540 = vadd.f32 %v315, %v1539
  %v1541 = vpop.f32.mrb[0].mxu0
  %1542 = vmatprep.mubr.bf16.mxu0 0
  %1543 = vmatmul.mubr.bf16.gmra.mrb[0].mxu0 %v1037
  %v1544 = vpop.f32.mrb[0].mxu0
  %v1545 = vadd.f32 %v315, %v1544
  %v1546 = vpop.f32.mrb[0].mxu0
  %v1547 = vpop.f32.mrb[0].mxu0
  %v1548 = vadd.f32 %v315, %v1547
  %v1549 = vpop.f32.mrb[0].mxu0
  %1550 = vmatprep.mubr.bf16.mxu0 0
  %1551 = vmatmul.mubr.bf16.gmra.mrb[0].mxu0 %v1040
  %v1552 = vpop.f32.mrb[0].mxu0
  %v1553 = vadd.f32 %v315, %v1552
  %v1554 = vpop.f32.mrb[0].mxu0
  %v1555 = vpop.f32.mrb[0].mxu0
  %v1556 = vadd.f32 %v315, %v1555
  %v1557 = vpop.f32.mrb[0].mxu0
  %1558 = vmatprep.mubr.bf16.mxu0 0
  %1559 = vmatmul.mubr.bf16.gmra.mrb[0].mxu0 %v1043
  %v1560 = vpop.f32.mrb[0].mxu0
  %v1561 = vadd.f32 %v315, %v1560
  %v1562 = vpop.f32.mrb[0].mxu0
  %v1563 = vpop.f32.mrb[0].mxu0
  %v1564 = vadd.f32 %v315, %v1563
  %v1565 = vpop.f32.mrb[0].mxu0
  %1566 = vmatprep.mubr.bf16.mxu0 0
  %1567 = vmatmul.mubr.bf16.gmra.mrb[0].mxu0 %v1046
  %v1568 = vpop.f32.mrb[0].mxu0
  %v1569 = vadd.f32 %v315, %v1568
  %v1570 = vpop.f32.mrb[0].mxu0
  %v1571 = vpop.f32.mrb[0].mxu0
  %v1572 = vadd.f32 %v315, %v1571
  %v1573 = vpop.f32.mrb[0].mxu0
  %1574 = vmatprep.mubr.bf16.mxu0 0
  %1575 = vmatmul.mubr.bf16.gmra.mrb[0].mxu0 %v1049
  %v1576 = vpop.f32.mrb[0].mxu0
  %v1577 = vadd.f32 %v315, %v1576
  %v1578 = vpop.f32.mrb[0].mxu0
  %v1579 = vpop.f32.mrb[0].mxu0
  %v1580 = vadd.f32 %v315, %v1579
  %v1581 = vpop.f32.mrb[0].mxu0
  %1582 = vmatprep.mubr.bf16.mxu0 0
  %1583 = vmatmul.mubr.bf16.gmra.mrb[0].mxu0 %v1052
  %v1584 = vpop.f32.mrb[0].mxu0
  %v1585 = vadd.f32 %v315, %v1584
  %v1586 = vpop.f32.mrb[0].mxu0
  %v1587 = vpop.f32.mrb[0].mxu0
  %v1588 = vadd.f32 %v315, %v1587
  %v1589 = vpop.f32.mrb[0].mxu0
  %1590 = vmatprep.mubr.bf16.mxu0 0
  %1591 = vmatmul.mubr.bf16.gmra.mrb[0].mxu0 %v1055
  %v1592 = vpop.f32.mrb[0].mxu0
  %v1593 = vadd.f32 %v315, %v1592
  %v1594 = vpop.f32.mrb[0].mxu0
  %v1595 = vpop.f32.mrb[0].mxu0
  %v1596 = vadd.f32 %v315, %v1595
  %v1597 = vpop.f32.mrb[0].mxu0
  %1598 = vmatprep.mubr.bf16.mxu0 0
  %1599 = vmatmul.mubr.bf16.gmra.mrb[0].mxu0 %v1058
  %v1600 = vpop.f32.mrb[0].mxu0
  %v1601 = vadd.f32 %v315, %v1600
  %v1602 = vpop.f32.mrb[0].mxu0
  %v1603 = vpop.f32.mrb[0].mxu0
  %v1604 = vadd.f32 %v315, %v1603
  %v1605 = vpop.f32.mrb[0].mxu0
  %1606 = vmatprep.mubr.bf16.mxu0 0
  %1607 = vmatmul.mubr.bf16.gmra.mrb[0].mxu0 %v1061
  %v1608 = vpop.f32.mrb[0].mxu0
  %v1609 = vadd.f32 %v315, %v1608
  %v1610 = vpop.f32.mrb[0].mxu0
  %v1611 = vpop.f32.mrb[0].mxu0
  %v1612 = vadd.f32 %v315, %v1611
  %v1613 = vpop.f32.mrb[0].mxu0
  %1614 = vmatprep.mubr.bf16.mxu0 0
  %1615 = vmatmul.mubr.bf16.gmra.mrb[0].mxu0 %v1064
  %v1616 = vpop.f32.mrb[0].mxu0
  %v1617 = vadd.f32 %v315, %v1616
  %v1618 = vpop.f32.mrb[0].mxu0
  %v1619 = vpop.f32.mrb[0].mxu0
  %v1620 = vadd.f32 %v315, %v1619
  %v1621 = vpop.f32.mrb[0].mxu0
  %1622 = vmatprep.mubr.bf16.mxu0 0
  %1623 = vmatmul.mubr.bf16.gmra.mrb[0].mxu0 %v1067
  %v1624 = vpop.f32.mrb[0].mxu0
  %v1625 = vadd.f32 %v315, %v1624
  %v1626 = vpop.f32.mrb[0].mxu0
  %v1627 = vpop.f32.mrb[0].mxu0
  %v1628 = vadd.f32 %v315, %v1627
  %v1629 = vpop.f32.mrb[0].mxu0
  %1630 = vmatprep.mubr.bf16.mxu0 0
  %1631 = vmatmul.mubr.bf16.gmra.mrb[0].mxu0 %v1070
  %v1632 = vpop.f32.mrb[0].mxu0
  %v1633 = vadd.f32 %v315, %v1632
  %v1634 = vpop.f32.mrb[0].mxu0
  %v1635 = vpop.f32.mrb[0].mxu0
  %v1636 = vadd.f32 %v315, %v1635
  %v1637 = vpop.f32.mrb[0].mxu0
  %1638 = vmatprep.mubr.bf16.mxu0 0
  %1639 = vmatmul.mubr.bf16.gmra.mrb[0].mxu0 %v1073
  %v1640 = vpop.f32.mrb[0].mxu0
  %v1641 = vadd.f32 %v315, %v1640
  %v1642 = vpop.f32.mrb[0].mxu0
  %v1643 = vpop.f32.mrb[0].mxu0
  %v1644 = vadd.f32 %v315, %v1643
  %v1645 = vpop.f32.mrb[0].mxu0
  %1646 = vmatprep.mubr.bf16.mxu0 0
  %1647 = vmatmul.mubr.bf16.gmra.mrb[0].mxu0 %v1076
  %v1648 = vpop.f32.mrb[0].mxu0
  %v1649 = vadd.f32 %v315, %v1648
  %v1650 = vpop.f32.mrb[0].mxu0
  %v1651 = vpop.f32.mrb[0].mxu0
  %v1652 = vadd.f32 %v315, %v1651
  %v1653 = vpop.f32.mrb[0].mxu0
  %1654 = vmatprep.mubr.bf16.mxu0 0
  %1655 = vmatmul.mubr.bf16.gmra.mrb[0].mxu0 %v1079
  %v1656 = vpop.f32.mrb[0].mxu0
  %v1657 = vadd.f32 %v315, %v1656
  %v1658 = vpop.f32.mrb[0].mxu0
  %v1659 = vpop.f32.mrb[0].mxu0
  %v1660 = vadd.f32 %v315, %v1659
  %v1661 = vpop.f32.mrb[0].mxu0
  %1662 = vmatprep.mubr.bf16.mxu0 0
  %1663 = vmatmul.mubr.bf16.gmra.mrb[0].mxu0 %v1082
  %v1664 = vpop.f32.mrb[0].mxu0
  %v1665 = vadd.f32 %v315, %v1664
  %v1666 = vpop.f32.mrb[0].mxu0
  %v1667 = vpop.f32.mrb[0].mxu0
  %v1668 = vadd.f32 %v315, %v1667
  %v1669 = vpop.f32.mrb[0].mxu0
  %1670 = vmatprep.mubr.bf16.mxu0 0
  %1671 = vmatmul.mubr.bf16.gmra.mrb[0].mxu0 %v1085
  %v1672 = vpop.f32.mrb[0].mxu0
  %v1673 = vadd.f32 %v315, %v1672
  %v1674 = vpop.f32.mrb[0].mxu0
  %v1675 = vpop.f32.mrb[0].mxu0
  %v1676 = vadd.f32 %v315, %v1675
  %v1677 = vpop.f32.mrb[0].mxu0
  %1678 = vmatprep.mubr.bf16.mxu0 0
  %1679 = vmatmul.mubr.bf16.gmra.mrb[0].mxu0 %v1088
  %v1680 = vpop.f32.mrb[0].mxu0
  %v1681 = vadd.f32 %v315, %v1680
  %v1682 = vpop.f32.mrb[0].mxu0
  %v1683 = vpop.f32.mrb[0].mxu0
  %v1684 = vadd.f32 %v315, %v1683
  %v1685 = vpop.f32.mrb[0].mxu0
  %1686 = vmatprep.mubr.bf16.mxu0 0
  %1687 = vmatmul.mubr.bf16.gmra.mrb[0].mxu0 %v1091
  %v1688 = vpop.f32.mrb[0].mxu0
  %v1689 = vadd.f32 %v315, %v1688
  %v1690 = vpop.f32.mrb[0].mxu0
  %v1691 = vpop.f32.mrb[0].mxu0
  %v1692 = vadd.f32 %v315, %v1691
  %v1693 = vpop.f32.mrb[0].mxu0
  %1694 = vmatprep.mubr.bf16.mxu0 0
  %1695 = vmatmul.mubr.bf16.gmra.mrb[0].mxu0 %v1094
  %v1696 = vpop.f32.mrb[0].mxu0
  %v1697 = vadd.f32 %v315, %v1696
  %v1698 = vpop.f32.mrb[0].mxu0
  %v1699 = vpop.f32.mrb[0].mxu0
  %v1700 = vadd.f32 %v315, %v1699
  %v1701 = vpop.f32.mrb[0].mxu0
  %1702 = vmatprep.mubr.bf16.mxu0 0
  %1703 = vmatmul.mubr.bf16.gmra.mrb[0].mxu0 %v1097
  %v1704 = vpop.f32.mrb[0].mxu0
  %v1705 = vadd.f32 %v315, %v1704
  %v1706 = vpop.f32.mrb[0].mxu0
  %v1707 = vpop.f32.mrb[0].mxu0
  %v1708 = vadd.f32 %v315, %v1707
  %v1709 = vpop.f32.mrb[0].mxu0
  %1710 = vmatprep.mubr.bf16.mxu0 0
  %1711 = vmatmul.mubr.bf16.gmra.mrb[0].mxu0 %v1100
  %v1712 = vpop.f32.mrb[0].mxu0
  %v1713 = vadd.f32 %v315, %v1712
  %v1714 = vpop.f32.mrb[0].mxu0
  %v1715 = vpop.f32.mrb[0].mxu0
  %v1716 = vadd.f32 %v315, %v1715
  %v1717 = vpop.f32.mrb[0].mxu0
  %1718 = vmatprep.mubr.bf16.mxu0 0
  %1719 = vmatmul.mubr.bf16.gmra.mrb[0].mxu0 %v1103
  %v1720 = vpop.f32.mrb[0].mxu0
  %v1721 = vadd.f32 %v315, %v1720
  %v1722 = vpop.f32.mrb[0].mxu0
  %v1723 = vpop.f32.mrb[0].mxu0
  %v1724 = vadd.f32 %v315, %v1723
  %v1725 = vpop.f32.mrb[0].mxu0
  %1726 = vmatprep.mubr.bf16.mxu0 0
  %1727 = vmatmul.mubr.bf16.gmra.mrb[0].mxu0 %v1106
  %v1728 = vpop.f32.mrb[0].mxu0
  %v1729 = vadd.f32 %v315, %v1728
  %v1730 = vpop.f32.mrb[0].mxu0
  %v1731 = vpop.f32.mrb[0].mxu0
  %v1732 = vadd.f32 %v315, %v1731
  %v1733 = vpop.f32.mrb[0].mxu0
  %1734 = vmatprep.mubr.bf16.mxu0 0
  %1735 = vmatmul.mubr.bf16.gmra.mrb[0].mxu0 %v1109
  %v1736 = vpop.f32.mrb[0].mxu0
  %v1737 = vadd.f32 %v315, %v1736
  %v1738 = vpop.f32.mrb[0].mxu0
  %v1739 = vpop.f32.mrb[0].mxu0
  %v1740 = vadd.f32 %v315, %v1739
  %v1741 = vpop.f32.mrb[0].mxu0
  %1742 = vmatprep.mubr.bf16.mxu0 0
  %1743 = vmatmul.mubr.bf16.gmra.mrb[0].mxu0 %v1112
  %v1744 = vpop.f32.mrb[0].mxu0
  %v1745 = vadd.f32 %v315, %v1744
  %v1746 = vpop.f32.mrb[0].mxu0
  %v1747 = vpop.f32.mrb[0].mxu0
  %v1748 = vadd.f32 %v315, %v1747
  %v1749 = vpop.f32.mrb[0].mxu0
  %1750 = vmatprep.mubr.bf16.mxu0 0
  %1751 = vmatmul.mubr.bf16.gmra.mrb[0].mxu0 %v1115
  %v1752 = vpop.f32.mrb[0].mxu0
  %v1753 = vadd.f32 %v315, %v1752
  %v1754 = vpop.f32.mrb[0].mxu0
  %v1755 = vpop.f32.mrb[0].mxu0
  %v1756 = vadd.f32 %v315, %v1755
  %v1757 = vpop.f32.mrb[0].mxu0
  %1758 = vmatprep.mubr.bf16.mxu0 0
  %1759 = vmatmul.mubr.bf16.gmra.mrb[0].mxu0 %v1118
  %v1760 = vpop.f32.mrb[0].mxu0
  %v1761 = vadd.f32 %v315, %v1760
  %v1762 = vpop.f32.mrb[0].mxu0
  %v1763 = vpop.f32.mrb[0].mxu0
  %v1764 = vadd.f32 %v315, %v1763
  %v1765 = vpop.f32.mrb[0].mxu0
  %1766 = vmatprep.mubr.bf16.mxu0 0
  %1767 = vmatmul.mubr.bf16.gmra.mrb[0].mxu0 %v1121
  %v1768 = vpop.f32.mrb[0].mxu0
  %v1769 = vadd.f32 %v315, %v1768
  %v1770 = vpop.f32.mrb[0].mxu0
  %v1771 = vpop.f32.mrb[0].mxu0
  %v1772 = vadd.f32 %v315, %v1771
  %v1773 = vpop.f32.mrb[0].mxu0
  %1774 = vmatprep.mubr.bf16.mxu0 0
  %1775 = vmatmul.mubr.bf16.gmra.mrb[0].mxu0 %v1124
  %v1776 = vpop.f32.mrb[0].mxu0
  %v1777 = vadd.f32 %v315, %v1776
  %v1778 = vpop.f32.mrb[0].mxu0
  %v1779 = vpop.f32.mrb[0].mxu0
  %v1780 = vadd.f32 %v315, %v1779
  %v1781 = vpop.f32.mrb[0].mxu0
  %1782 = vmatprep.mubr.bf16.mxu0 0
  %1783 = vmatmul.mubr.bf16.gmra.mrb[0].mxu0 %v1127
  %v1784 = vpop.f32.mrb[0].mxu0
  %v1785 = vadd.f32 %v315, %v1784
  %v1786 = vpop.f32.mrb[0].mxu0
  %v1787 = vpop.f32.mrb[0].mxu0
  %v1788 = vadd.f32 %v315, %v1787
  %v1789 = vpop.f32.mrb[0].mxu0
  %1790 = vmatprep.mubr.bf16.mxu0 0
  %1791 = vmatmul.mubr.bf16.gmra.mrb[0].mxu0 %v1130
  %v1792 = vpop.f32.mrb[0].mxu0
  %v1793 = vadd.f32 %v315, %v1792
  %v1794 = vpop.f32.mrb[0].mxu0
  %v1795 = vpop.f32.mrb[0].mxu0
  %v1796 = vadd.f32 %v315, %v1795
  %v1797 = vpop.f32.mrb[0].mxu0
  %1798 = vmatprep.mubr.bf16.mxu0 0
  %1799 = vmatmul.mubr.bf16.gmra.mrb[0].mxu0 %v1133
  %v1800 = vpop.f32.mrb[0].mxu0
  %v1801 = vadd.f32 %v315, %v1800
  %v1802 = vpop.f32.mrb[0].mxu0
  %v1803 = vpop.f32.mrb[0].mxu0
  %v1804 = vadd.f32 %v315, %v1803
  %v1805 = vpop.f32.mrb[0].mxu0
  %1806 = vmatprep.mubr.bf16.mxu0 0
  %1807 = vmatmul.mubr.bf16.gmra.mrb[0].mxu0 %v1136
  %v1808 = vpop.f32.mrb[0].mxu0
  %v1809 = vadd.f32 %v315, %v1808
  %v1810 = vpop.f32.mrb[0].mxu0
  %v1811 = vpop.f32.mrb[0].mxu0
  %v1812 = vadd.f32 %v315, %v1811
  %v1813 = vpop.f32.mrb[0].mxu0
  %1814 = vmatprep.mubr.bf16.mxu0 0
  %1815 = vmatmul.mubr.bf16.gmra.mrb[0].mxu0 %v1139
  %v1816 = vpop.f32.mrb[0].mxu0
  %v1817 = vadd.f32 %v315, %v1816
  %v1818 = vpop.f32.mrb[0].mxu0
  %v1819 = vpop.f32.mrb[0].mxu0
  %v1820 = vadd.f32 %v315, %v1819
  %v1821 = vpop.f32.mrb[0].mxu0
  %1822 = vmatprep.mubr.bf16.mxu0 0
  %1823 = vmatmul.mubr.bf16.gmra.mrb[0].mxu0 %v1142
  %v1824 = vpop.f32.mrb[0].mxu0
  %v1825 = vadd.f32 %v315, %v1824
  %v1826 = vpop.f32.mrb[0].mxu0
  %v1827 = vpop.f32.mrb[0].mxu0
  %v1828 = vadd.f32 %v315, %v1827
  %v1829 = vpop.f32.mrb[0].mxu0
  %1830 = vmatprep.mubr.bf16.mxu0 0
  %1831 = vmatmul.mubr.bf16.gmra.mrb[0].mxu0 %v1145
  %v1832 = vpop.f32.mrb[0].mxu0
  %v1833 = vadd.f32 %v315, %v1832
  %v1834 = vpop.f32.mrb[0].mxu0
  %v1835 = vpop.f32.mrb[0].mxu0
  %v1836 = vadd.f32 %v315, %v1835
  %v1837 = vpop.f32.mrb[0].mxu0
  %1838 = vmatprep.mubr.bf16.mxu0 0
  %1839 = vmatmul.mubr.bf16.gmra.mrb[0].mxu0 %v1148
  %v1840 = vpop.f32.mrb[0].mxu0
  %v1841 = vadd.f32 %v315, %v1840
  %v1842 = vpop.f32.mrb[0].mxu0
  %v1843 = vpop.f32.mrb[0].mxu0
  %v1844 = vadd.f32 %v315, %v1843
  %v1845 = vpop.f32.mrb[0].mxu0
  %1846 = vmatprep.mubr.bf16.mxu0 0
  %1847 = vmatmul.mubr.bf16.gmra.mrb[0].mxu0 %v1151
  %v1848 = vpop.f32.mrb[0].mxu0
  %v1849 = vadd.f32 %v315, %v1848
  %v1850 = vpop.f32.mrb[0].mxu0
  %v1851 = vpop.f32.mrb[0].mxu0
  %v1852 = vadd.f32 %v315, %v1851
  %v1853 = vpop.f32.mrb[0].mxu0
  %1854 = vmatprep.mubr.bf16.mxu0 0
  %1855 = vmatmul.mubr.bf16.gmra.mrb[0].mxu0 %v1154
  %v1856 = vpop.f32.mrb[0].mxu0
  %v1857 = vadd.f32 %v315, %v1856
  %v1858 = vpop.f32.mrb[0].mxu0
  %v1859 = vpop.f32.mrb[0].mxu0
  %v1860 = vadd.f32 %v315, %v1859
  %v1861 = vpop.f32.mrb[0].mxu0
  %1862 = vmatprep.mubr.bf16.mxu0 0
  %1863 = vmatmul.mubr.bf16.gmra.mrb[0].mxu0 %v1157
  %v1864 = vpop.f32.mrb[0].mxu0
  %v1865 = vadd.f32 %v315, %v1864
  %v1866 = vpop.f32.mrb[0].mxu0
  %v1867 = vpop.f32.mrb[0].mxu0
  %v1868 = vadd.f32 %v315, %v1867
  %v1869 = vpop.f32.mrb[0].mxu0
  %1870 = vmatprep.mubr.bf16.mxu0 0
  %1871 = vmatmul.mubr.bf16.gmra.mrb[0].mxu0 %v1160
  %v1872 = vpop.f32.mrb[0].mxu0
  %v1873 = vadd.f32 %v315, %v1872
  %v1874 = vpop.f32.mrb[0].mxu0
  %v1875 = vpop.f32.mrb[0].mxu0
  %v1876 = vadd.f32 %v315, %v1875
  %v1877 = vpop.f32.mrb[0].mxu0
  %1878 = vmatprep.mubr.bf16.mxu0 0
  %1879 = vmatmul.mubr.bf16.gmra.mrb[0].mxu0 %v1163
  %v1880 = vpop.f32.mrb[0].mxu0
  %v1881 = vadd.f32 %v315, %v1880
  %v1882 = vpop.f32.mrb[0].mxu0
  %v1883 = vpop.f32.mrb[0].mxu0
  %v1884 = vadd.f32 %v315, %v1883
  %v1885 = vpop.f32.mrb[0].mxu0
  %1886 = vmatprep.mubr.bf16.mxu0 0
  %1887 = vmatmul.mubr.bf16.gmra.mrb[0].mxu0 %v1166
  %v1888 = vpop.f32.mrb[0].mxu0
  %v1889 = vadd.f32 %v315, %v1888
  %v1890 = vpop.f32.mrb[0].mxu0
  %v1891 = vpop.f32.mrb[0].mxu0
  %v1892 = vadd.f32 %v315, %v1891
  %v1893 = vpop.f32.mrb[0].mxu0
  %1894 = vmatprep.mubr.bf16.mxu0 0
  %1895 = vmatmul.mubr.bf16.gmra.mrb[0].mxu0 %v1169
  %v1896 = vpop.f32.mrb[0].mxu0
  %v1897 = vadd.f32 %v315, %v1896
  %v1898 = vpop.f32.mrb[0].mxu0
  %v1899 = vpop.f32.mrb[0].mxu0
  %v1900 = vadd.f32 %v315, %v1899
  %v1901 = vpop.f32.mrb[0].mxu0
  %1902 = vmatprep.mubr.bf16.mxu0 0
  %1903 = vmatmul.mubr.bf16.gmra.mrb[0].mxu0 %v1172
  %v1904 = vpop.f32.mrb[0].mxu0
  %v1905 = vadd.f32 %v315, %v1904
  %v1906 = vpop.f32.mrb[0].mxu0
  %v1907 = vpop.f32.mrb[0].mxu0
  %v1908 = vadd.f32 %v315, %v1907
  %v1909 = vpop.f32.mrb[0].mxu0
  %1910 = vmatprep.mubr.bf16.mxu0 0
  %1911 = vmatmul.mubr.bf16.gmra.mrb[0].mxu0 %v1175
  %v1912 = vpop.f32.mrb[0].mxu0
  %v1913 = vadd.f32 %v315, %v1912
  %v1914 = vpop.f32.mrb[0].mxu0
  %v1915 = vpop.f32.mrb[0].mxu0
  %v1916 = vadd.f32 %v315, %v1915
  %v1917 = vpop.f32.mrb[0].mxu0
  %1918 = vmatprep.mubr.bf16.mxu0 0
  %1919 = vmatmul.mubr.bf16.gmra.mrb[0].mxu0 %v1178
  %v1920 = vpop.f32.mrb[0].mxu0
  %v1921 = vadd.f32 %v315, %v1920
  %v1922 = vpop.f32.mrb[0].mxu0
  %v1923 = vpop.f32.mrb[0].mxu0
  %v1924 = vadd.f32 %v315, %v1923
  %v1925 = vpop.f32.mrb[0].mxu0
  %1926 = vmatprep.mubr.bf16.mxu0 0
  %1927 = vmatmul.mubr.bf16.gmra.mrb[0].mxu0 %v1181
  %v1928 = vpop.f32.mrb[0].mxu0
  %v1929 = vadd.f32 %v315, %v1928
  %v1930 = vpop.f32.mrb[0].mxu0
  %v1931 = vpop.f32.mrb[0].mxu0
  %v1932 = vadd.f32 %v315, %v1931
  %v1933 = vpop.f32.mrb[0].mxu0
  %1934 = vmatprep.mubr.bf16.mxu0 0
  %1935 = vmatmul.mubr.bf16.gmra.mrb[0].mxu0 %v1184
  %v1936 = vpop.f32.mrb[0].mxu0
  %v1937 = vadd.f32 %v315, %v1936
  %v1938 = vpop.f32.mrb[0].mxu0
  %v1939 = vpop.f32.mrb[0].mxu0
  %v1940 = vadd.f32 %v315, %v1939
  %v1941 = vpop.f32.mrb[0].mxu0
  %1942 = vmatprep.mubr.bf16.mxu0 0
  %1943 = vmatmul.mubr.bf16.gmra.mrb[0].mxu0 %v1187
  %v1944 = vpop.f32.mrb[0].mxu0
  %v1945 = vadd.f32 %v315, %v1944
  %v1946 = vpop.f32.mrb[0].mxu0
  %v1947 = vpop.f32.mrb[0].mxu0
  %v1948 = vadd.f32 %v315, %v1947
  %v1949 = vpop.f32.mrb[0].mxu0
  %1950 = vmatprep.mubr.bf16.mxu0 0
  %1951 = vmatmul.mubr.bf16.gmra.mrb[0].mxu0 %v1190
  %v1952 = vpop.f32.mrb[0].mxu0
  %v1953 = vadd.f32 %v315, %v1952
  %v1954 = vpop.f32.mrb[0].mxu0
  %v1955 = vpop.f32.mrb[0].mxu0
  %v1956 = vadd.f32 %v315, %v1955
  %v1957 = vpop.f32.mrb[0].mxu0
  %1958 = vmatprep.mubr.bf16.mxu0 0
  %1959 = vmatmul.mubr.bf16.gmra.mrb[0].mxu0 %v1193
  %v1960 = vpop.f32.mrb[0].mxu0
  %v1961 = vadd.f32 %v315, %v1960
  %v1962 = vpop.f32.mrb[0].mxu0
  %v1963 = vpop.f32.mrb[0].mxu0
  %v1964 = vadd.f32 %v315, %v1963
  %v1965 = vpop.f32.mrb[0].mxu0
  %1966 = vmatprep.mubr.bf16.mxu0 0
  %1967 = vmatmul.mubr.bf16.gmra.mrb[0].mxu0 %v1196
  %v1968 = vpop.f32.mrb[0].mxu0
  %v1969 = vadd.f32 %v315, %v1968
  %v1970 = vpop.f32.mrb[0].mxu0
  %v1971 = vpop.f32.mrb[0].mxu0
  %v1972 = vadd.f32 %v315, %v1971
  %v1973 = vpop.f32.mrb[0].mxu0
  %1974 = vmatprep.mubr.bf16.mxu0 0
  %1975 = vmatmul.mubr.bf16.gmra.mrb[0].mxu0 %v1199
  %v1976 = vpop.f32.mrb[0].mxu0
  %v1977 = vadd.f32 %v315, %v1976
  %v1978 = vpop.f32.mrb[0].mxu0
  %v1979 = vpop.f32.mrb[0].mxu0
  %v1980 = vadd.f32 %v315, %v1979
  %v1981 = vpop.f32.mrb[0].mxu0
  %1982 = vmatprep.mubr.bf16.mxu0 0
  %1983 = vmatmul.mubr.bf16.gmra.mrb[0].mxu0 %v1202
  %v1984 = vpop.f32.mrb[0].mxu0
  %v1985 = vadd.f32 %v315, %v1984
  %v1986 = vpop.f32.mrb[0].mxu0
  %v1987 = vpop.f32.mrb[0].mxu0
  %v1988 = vadd.f32 %v315, %v1987
  %v1989 = vpop.f32.mrb[0].mxu0
  %1990 = vmatprep.mubr.bf16.mxu0 0
  %1991 = vmatmul.mubr.bf16.gmra.mrb[0].mxu0 %v1205
  %v1992 = vpop.f32.mrb[0].mxu0
  %v1993 = vadd.f32 %v315, %v1992
  %v1994 = vpop.f32.mrb[0].mxu0
  %v1995 = vpop.f32.mrb[0].mxu0
  %v1996 = vadd.f32 %v315, %v1995
  %v1997 = vpop.f32.mrb[0].mxu0
  %1998 = vmatprep.mubr.bf16.mxu0 0
  %1999 = vmatmul.mubr.bf16.gmra.mrb[0].mxu0 %v1208
  %v2000 = vpop.f32.mrb[0].mxu0
  %v2001 = vadd.f32 %v315, %v2000
  %v2002 = vpop.f32.mrb[0].mxu0
  %v2003 = vpop.f32.mrb[0].mxu0
  %v2004 = vadd.f32 %v315, %v2003
  %v2005 = vpop.f32.mrb[0].mxu0
  %2006 = vmatprep.mubr.bf16.mxu0 0
  %2007 = vmatmul.mubr.bf16.gmra.mrb[0].mxu0 %v1211
  %v2008 = vpop.f32.mrb[0].mxu0
  %v2009 = vadd.f32 %v315, %v2008
  %v2010 = vpop.f32.mrb[0].mxu0
  %v2011 = vpop.f32.mrb[0].mxu0
  %v2012 = vadd.f32 %v315, %v2011
  %v2013 = vpop.f32.mrb[0].mxu0
  %2014 = vmatprep.mubr.bf16.mxu0 0
  %2015 = vmatmul.mubr.bf16.gmra.mrb[0].mxu0 %v1214
  %v2016 = vpop.f32.mrb[0].mxu0
  %v2017 = vadd.f32 %v315, %v2016
  %v2018 = vpop.f32.mrb[0].mxu0
  %v2019 = vpop.f32.mrb[0].mxu0
  %v2020 = vadd.f32 %v315, %v2019
  %v2021 = vpop.f32.mrb[0].mxu0
  %2022 = vmatprep.mubr.bf16.mxu0 0
  %2023 = vmatmul.mubr.bf16.gmra.mrb[0].mxu0 %v1217
  %v2024 = vpop.f32.mrb[0].mxu0
  %v2025 = vadd.f32 %v315, %v2024
  %v2026 = vpop.f32.mrb[0].mxu0
  %v2027 = vpop.f32.mrb[0].mxu0
  %v2028 = vadd.f32 %v315, %v2027
  %v2029 = vpop.f32.mrb[0].mxu0
  %2030 = vmatprep.mubr.bf16.mxu0 0
  %2031 = vmatmul.mubr.bf16.gmra.mrb[0].mxu0 %v1220
  %v2032 = vpop.f32.mrb[0].mxu0
  %v2033 = vadd.f32 %v315, %v2032
  %v2034 = vpop.f32.mrb[0].mxu0
  %v2035 = vpop.f32.mrb[0].mxu0
  %v2036 = vadd.f32 %v315, %v2035
  %v2037 = vpop.f32.mrb[0].mxu0
  %2038 = vmatprep.mubr.bf16.mxu0 0
  %2039 = vmatmul.mubr.bf16.gmra.mrb[0].mxu0 %v1223
  %v2040 = vpop.f32.mrb[0].mxu0
  %v2041 = vadd.f32 %v315, %v2040
  %v2042 = vpop.f32.mrb[0].mxu0
  %v2043 = vpop.f32.mrb[0].mxu0
  %v2044 = vadd.f32 %v315, %v2043
  %v2045 = vpop.f32.mrb[0].mxu0
  %2046 = vmatprep.mubr.bf16.mxu0 0
  %2047 = vmatmul.mubr.bf16.gmra.mrb[0].mxu0 %v1226
  %v2048 = vpop.f32.mrb[0].mxu0
  %v2049 = vadd.f32 %v315, %v2048
  %v2050 = vpop.f32.mrb[0].mxu0
  %v2051 = vpop.f32.mrb[0].mxu0
  %v2052 = vadd.f32 %v315, %v2051
  %v2053 = vpop.f32.mrb[0].mxu0
  %2054 = vmatprep.mubr.bf16.mxu0 0
  %2055 = vmatmul.mubr.bf16.gmra.mrb[0].mxu0 %v1229
  %v2056 = vpop.f32.mrb[0].mxu0
  %v2057 = vadd.f32 %v315, %v2056
  %v2058 = vpop.f32.mrb[0].mxu0
  %v2059 = vpop.f32.mrb[0].mxu0
  %v2060 = vadd.f32 %v315, %v2059
  %v2061 = vpop.f32.mrb[0].mxu0
  %2062 = vmatprep.mubr.bf16.mxu0 0
  %2063 = vmatmul.mubr.bf16.gmra.mrb[0].mxu0 %v1232
  %v2064 = vpop.f32.mrb[0].mxu0
  %v2065 = vadd.f32 %v315, %v2064
  %v2066 = vpop.f32.mrb[0].mxu0
  %v2067 = vpop.f32.mrb[0].mxu0
  %v2068 = vadd.f32 %v315, %v2067
  %v2069 = vpop.f32.mrb[0].mxu0
  %2070 = vmatprep.mubr.bf16.mxu0 0
  %2071 = vmatmul.mubr.bf16.gmra.mrb[0].mxu0 %v1235
  %v2072 = vpop.f32.mrb[0].mxu0
  %v2073 = vadd.f32 %v315, %v2072
  %v2074 = vpop.f32.mrb[0].mxu0
  %v2075 = vpop.f32.mrb[0].mxu0
  %v2076 = vadd.f32 %v315, %v2075
  %v2077 = vpop.f32.mrb[0].mxu0
  %2078 = vmatprep.mubr.bf16.mxu0 0
  %2079 = vmatmul.mubr.bf16.gmra.mrb[0].mxu0 %v1238
  %v2080 = vpop.f32.mrb[0].mxu0
  %v2081 = vadd.f32 %v315, %v2080
  %v2082 = vpop.f32.mrb[0].mxu0
  %v2083 = vpop.f32.mrb[0].mxu0
  %v2084 = vadd.f32 %v315, %v2083
  %v2085 = vpop.f32.mrb[0].mxu0
  %2086 = vmatprep.mubr.bf16.mxu0 0
  %2087 = vmatmul.mubr.bf16.gmra.mrb[0].mxu0 %v1241
  %v2088 = vpop.f32.mrb[0].mxu0
  %v2089 = vadd.f32 %v315, %v2088
  %v2090 = vpop.f32.mrb[0].mxu0
  %v2091 = vpop.f32.mrb[0].mxu0
  %v2092 = vadd.f32 %v315, %v2091
  %v2093 = vpop.f32.mrb[0].mxu0
  %2094 = vmatprep.mubr.bf16.mxu0 0
  %2095 = vmatmul.mubr.bf16.gmra.mrb[0].mxu0 %v1244
  %v2096 = vpop.f32.mrb[0].mxu0
  %v2097 = vadd.f32 %v315, %v2096
  %v2098 = vpop.f32.mrb[0].mxu0
  %v2099 = vpop.f32.mrb[0].mxu0
  %v2100 = vadd.f32 %v315, %v2099
  %v2101 = vpop.f32.mrb[0].mxu0
  %2102 = vmatprep.mubr.bf16.mxu0 0
  %2103 = vmatmul.mubr.bf16.gmra.mrb[0].mxu0 %v1247
  %v2104 = vpop.f32.mrb[0].mxu0
  %v2105 = vadd.f32 %v315, %v2104
  %v2106 = vpop.f32.mrb[0].mxu0
  %v2107 = vpop.f32.mrb[0].mxu0
  %v2108 = vadd.f32 %v315, %v2107
  %v2109 = vpop.f32.mrb[0].mxu0
  %2110 = vmatprep.mubr.bf16.mxu0 0
  %2111 = vmatmul.mubr.bf16.gmra.mrb[0].mxu0 %v1250
  %v2112 = vpop.f32.mrb[0].mxu0
  %v2113 = vadd.f32 %v315, %v2112
  %v2114 = vpop.f32.mrb[0].mxu0
  %v2115 = vpop.f32.mrb[0].mxu0
  %v2116 = vadd.f32 %v315, %v2115
  %v2117 = vpop.f32.mrb[0].mxu0
  %2118 = vmatprep.mubr.bf16.mxu0 0
  %2119 = vmatmul.mubr.bf16.gmra.mrb[0].mxu0 %v1253
  %v2120 = vpop.f32.mrb[0].mxu0
  %v2121 = vadd.f32 %v315, %v2120
  %v2122 = vpop.f32.mrb[0].mxu0
  %v2123 = vpop.f32.mrb[0].mxu0
  %v2124 = vadd.f32 %v315, %v2123
  %v2125 = vpop.f32.mrb[0].mxu0
  %2126 = vmatprep.mubr.bf16.mxu0 0
  %2127 = vmatmul.mubr.bf16.gmra.mrb[0].mxu0 %v1256
  %v2128 = vpop.f32.mrb[0].mxu0
  %v2129 = vadd.f32 %v315, %v2128
  %v2130 = vpop.f32.mrb[0].mxu0
  %v2131 = vpop.f32.mrb[0].mxu0
  %v2132 = vadd.f32 %v315, %v2131
  %v2133 = vpop.f32.mrb[0].mxu0
  %2134 = vmatprep.mubr.bf16.mxu0 0
  %2135 = vmatmul.mubr.bf16.gmra.mrb[0].mxu0 %v1259
  %v2136 = vpop.f32.mrb[0].mxu0
  %v2137 = vadd.f32 %v315, %v2136
  %v2138 = vpop.f32.mrb[0].mxu0
  %v2139 = vpop.f32.mrb[0].mxu0
  %v2140 = vadd.f32 %v315, %v2139
  %v2141 = vpop.f32.mrb[0].mxu0
  %2142 = vmatprep.mubr.bf16.mxu0 0
  %2143 = vmatmul.mubr.bf16.gmra.mrb[0].mxu0 %v1262
  %v2144 = vpop.f32.mrb[0].mxu0
  %v2145 = vadd.f32 %v315, %v2144
  %v2146 = vpop.f32.mrb[0].mxu0
  %v2147 = vpop.f32.mrb[0].mxu0
  %v2148 = vadd.f32 %v315, %v2147
  %v2149 = vpop.f32.mrb[0].mxu0
  %2150 = vmatprep.mubr.bf16.mxu0 0
  %2151 = vmatmul.mubr.bf16.gmra.mrb[0].mxu0 %v1265
  %v2152 = vpop.f32.mrb[0].mxu0
  %v2153 = vadd.f32 %v315, %v2152
  %v2154 = vpop.f32.mrb[0].mxu0
  %v2155 = vpop.f32.mrb[0].mxu0
  %v2156 = vadd.f32 %v315, %v2155
  %v2157 = vpop.f32.mrb[0].mxu0
  %2158 = vmatprep.mubr.bf16.mxu0 0
  %2159 = vmatmul.mubr.bf16.gmra.mrb[0].mxu0 %v1268
  %v2160 = vpop.f32.mrb[0].mxu0
  %v2161 = vadd.f32 %v315, %v2160
  %v2162 = vpop.f32.mrb[0].mxu0
  %v2163 = vpop.f32.mrb[0].mxu0
  %v2164 = vadd.f32 %v315, %v2163
  %v2165 = vpop.f32.mrb[0].mxu0
  %2166 = vmatprep.mubr.bf16.mxu0 0
  %2167 = vmatmul.mubr.bf16.gmra.mrb[0].mxu0 %v1271
  %v2168 = vpop.f32.mrb[0].mxu0
  %v2169 = vadd.f32 %v315, %v2168
  %v2170 = vpop.f32.mrb[0].mxu0
  %v2171 = vpop.f32.mrb[0].mxu0
  %v2172 = vadd.f32 %v315, %v2171
  %v2173 = vpop.f32.mrb[0].mxu0
  %2174 = vmatprep.mubr.bf16.mxu0 0
  %2175 = vmatmul.mubr.bf16.gmra.mrb[0].mxu0 %v1274
  %v2176 = vpop.f32.mrb[0].mxu0
  %v2177 = vadd.f32 %v315, %v2176
  %v2178 = vpop.f32.mrb[0].mxu0
  %v2179 = vpop.f32.mrb[0].mxu0
  %v2180 = vadd.f32 %v315, %v2179
  %v2181 = vpop.f32.mrb[0].mxu0
  %2182 = vmatprep.mubr.bf16.mxu0 0
  %2183 = vmatmul.mubr.bf16.gmra.mrb[0].mxu0 %v1277
  %v2184 = vpop.f32.mrb[0].mxu0
  %v2185 = vadd.f32 %v315, %v2184
  %v2186 = vpop.f32.mrb[0].mxu0
  %v2187 = vpop.f32.mrb[0].mxu0
  %v2188 = vadd.f32 %v315, %v2187
  %v2189 = vpop.f32.mrb[0].mxu0
  %2190 = vmatprep.mubr.bf16.mxu0 0
  %2191 = vmatmul.mubr.bf16.gmra.mrb[0].mxu0 %v1280
  %v2192 = vpop.f32.mrb[0].mxu0
  %v2193 = vadd.f32 %v315, %v2192
  %v2194 = vpop.f32.mrb[0].mxu0
  %v2195 = vpop.f32.mrb[0].mxu0
  %v2196 = vadd.f32 %v315, %v2195
  %v2197 = vpop.f32.mrb[0].mxu0
  %2198 = vmatprep.mubr.bf16.mxu0 0
  %2199 = vmatmul.mubr.bf16.gmra.mrb[0].mxu0 %v1283
  %v2200 = vpop.f32.mrb[0].mxu0
  %v2201 = vadd.f32 %v315, %v2200
  %v2202 = vpop.f32.mrb[0].mxu0
  %v2203 = vpop.f32.mrb[0].mxu0
  %v2204 = vadd.f32 %v315, %v2203
  %v2205 = vpop.f32.mrb[0].mxu0
  %2206 = vmatprep.mubr.bf16.mxu0 0
  %2207 = vmatmul.mubr.bf16.gmra.mrb[0].mxu0 %v1286
  %v2208 = vpop.f32.mrb[0].mxu0
  %v2209 = vadd.f32 %v315, %v2208
  %v2210 = vpop.f32.mrb[0].mxu0
  %v2211 = vpop.f32.mrb[0].mxu0
  %v2212 = vadd.f32 %v315, %v2211
  %v2213 = vpop.f32.mrb[0].mxu0
  %2214 = vmatprep.mubr.bf16.mxu0 0
  %2215 = vmatmul.mubr.bf16.gmra.mrb[0].mxu0 %v1289
  %v2216 = vpop.f32.mrb[0].mxu0
  %v2217 = vadd.f32 %v315, %v2216
  %v2218 = vpop.f32.mrb[0].mxu0
  %v2219 = vpop.f32.mrb[0].mxu0
  %v2220 = vadd.f32 %v315, %v2219
  %v2221 = vpop.f32.mrb[0].mxu0
  %2222 = vmatprep.mubr.bf16.mxu0 0
  %2223 = vmatmul.mubr.bf16.gmra.mrb[0].mxu0 %v1292
  %v2224 = vpop.f32.mrb[0].mxu0
  %v2225 = vadd.f32 %v315, %v2224
  %v2226 = vpop.f32.mrb[0].mxu0
  %v2227 = vpop.f32.mrb[0].mxu0
  %v2228 = vadd.f32 %v315, %v2227
  %v2229 = vpop.f32.mrb[0].mxu0
  %2230 = vmatprep.mubr.bf16.mxu0 0
  %2231 = vmatmul.mubr.bf16.gmra.mrb[0].mxu0 %v1295
  %v2232 = vpop.f32.mrb[0].mxu0
  %v2233 = vadd.f32 %v315, %v2232
  %v2234 = vpop.f32.mrb[0].mxu0
  %v2235 = vpop.f32.mrb[0].mxu0
  %v2236 = vadd.f32 %v315, %v2235
  %v2237 = vpop.f32.mrb[0].mxu0
  %2238 = vmatprep.mubr.bf16.mxu0 0
  %2239 = vmatmul.mubr.bf16.gmra.mrb[0].mxu0 %v1298
  %v2240 = vpop.f32.mrb[0].mxu0
  %v2241 = vadd.f32 %v315, %v2240
  %v2242 = vpop.f32.mrb[0].mxu0
  %v2243 = vpop.f32.mrb[0].mxu0
  %v2244 = vadd.f32 %v315, %v2243
  %v2245 = vpop.f32.mrb[0].mxu0
  %2246 = vmatprep.mubr.bf16.mxu0 0
  %2247 = vmatmul.mubr.bf16.gmra.mrb[0].mxu0 %v1301
  %v2248 = vpop.f32.mrb[0].mxu0
  %v2249 = vadd.f32 %v315, %v2248
  %v2250 = vpop.f32.mrb[0].mxu0
  %v2251 = vpop.f32.mrb[0].mxu0
  %v2252 = vadd.f32 %v315, %v2251
  %v2253 = vpop.f32.mrb[0].mxu0
  %2254 = vmatprep.mubr.bf16.mxu0 0
  %2255 = vmatmul.mubr.bf16.gmra.mrb[0].mxu0 %v1304
  %v2256 = vpop.f32.mrb[0].mxu0
  %v2257 = vadd.f32 %v315, %v2256
  %v2258 = vpop.f32.mrb[0].mxu0
  %v2259 = vpop.f32.mrb[0].mxu0
  %v2260 = vadd.f32 %v315, %v2259
  %v2261 = vpop.f32.mrb[0].mxu0
  %2262 = vmatprep.mubr.bf16.mxu0 0
  %2263 = vmatmul.mubr.bf16.gmra.mrb[0].mxu0 %v1307
  %v2264 = vpop.f32.mrb[0].mxu0
  %v2265 = vadd.f32 %v315, %v2264
  %v2266 = vpop.f32.mrb[0].mxu0
  %v2267 = vpop.f32.mrb[0].mxu0
  %v2268 = vadd.f32 %v315, %v2267
  %v2269 = vpop.f32.mrb[0].mxu0
  %2270 = vmatprep.mubr.bf16.mxu0 0
  %2271 = vmatmul.mubr.bf16.gmra.mrb[0].mxu0 %v1310
  %v2272 = vpop.f32.mrb[0].mxu0
  %v2273 = vadd.f32 %v315, %v2272
  %v2274 = vpop.f32.mrb[0].mxu0
  %v2275 = vpop.f32.mrb[0].mxu0
  %v2276 = vadd.f32 %v315, %v2275
  %v2277 = vpop.f32.mrb[0].mxu0
  %2278 = vmatprep.mubr.bf16.mxu0 0
  %2279 = vmatmul.mubr.bf16.gmra.mrb[0].mxu0 %v1313
  %v2280 = vpop.f32.mrb[0].mxu0
  %v2281 = vadd.f32 %v315, %v2280
  %v2282 = vpop.f32.mrb[0].mxu0
  %v2283 = vpop.f32.mrb[0].mxu0
  %v2284 = vadd.f32 %v315, %v2283
  %v2285 = vpop.f32.mrb[0].mxu0
  %2286 = vmatprep.mubr.bf16.mxu0 0
  %2287 = vmatmul.mubr.bf16.gmra.mrb[0].mxu0 %v1316
  %v2288 = vpop.f32.mrb[0].mxu0
  %v2289 = vadd.f32 %v315, %v2288
  %v2290 = vpop.f32.mrb[0].mxu0
  %v2291 = vpop.f32.mrb[0].mxu0
  %v2292 = vadd.f32 %v315, %v2291
  %v2293 = vpop.f32.mrb[0].mxu0
  %2294 = vmatprep.mubr.bf16.mxu0 0
  %2295 = vmatmul.mubr.bf16.gmra.mrb[0].mxu0 %v1319
  %v2296 = vpop.f32.mrb[0].mxu0
  %v2297 = vadd.f32 %v315, %v2296
  %v2298 = vpop.f32.mrb[0].mxu0
  %v2299 = vpop.f32.mrb[0].mxu0
  %v2300 = vadd.f32 %v315, %v2299
  %v2301 = vpop.f32.mrb[0].mxu0
  %2302 = vmatprep.mubr.bf16.mxu0 0
  %2303 = vmatmul.mubr.bf16.gmra.mrb[0].mxu0 %v1322
  %v2304 = vpop.f32.mrb[0].mxu0
  %v2305 = vadd.f32 %v315, %v2304
  %v2306 = vpop.f32.mrb[0].mxu0
  %v2307 = vpop.f32.mrb[0].mxu0
  %v2308 = vadd.f32 %v315, %v2307
  %v2309 = vpop.f32.mrb[0].mxu0
  %2310 = vmatprep.mubr.bf16.mxu0 0
  %2311 = vmatmul.mubr.bf16.gmra.mrb[0].mxu0 %v1325
  %v2312 = vpop.f32.mrb[0].mxu0
  %v2313 = vadd.f32 %v315, %v2312
  %v2314 = vpop.f32.mrb[0].mxu0
  %v2315 = vpop.f32.mrb[0].mxu0
  %v2316 = vadd.f32 %v315, %v2315
  %v2317 = vpop.f32.mrb[0].mxu0
  %2318 = vmatprep.mubr.bf16.mxu0 0
  %2319 = vmatmul.mubr.bf16.gmra.mrb[0].mxu0 %v1328
  %v2320 = vpop.f32.mrb[0].mxu0
  %v2321 = vadd.f32 %v315, %v2320
  %v2322 = vpop.f32.mrb[0].mxu0
  %v2323 = vpop.f32.mrb[0].mxu0
  %v2324 = vadd.f32 %v315, %v2323
  %v2325 = vpop.f32.mrb[0].mxu0
  %2326 = vmatprep.mubr.bf16.mxu0 0
  %2327 = vmatmul.mubr.bf16.gmra.mrb[0].mxu0 %v1331
  %v2328 = vpop.f32.mrb[0].mxu0
  %v2329 = vadd.f32 %v315, %v2328
  %v2330 = vpop.f32.mrb[0].mxu0
  %v2331 = vpop.f32.mrb[0].mxu0
  %v2332 = vadd.f32 %v315, %v2331
  %v2333 = vpop.f32.mrb[0].mxu0
  %2334 = vmatprep.mubr.bf16.mxu0 0
  %2335 = vmatmul.mubr.bf16.gmra.mrb[0].mxu0 %v1334
  %v2336 = vpop.f32.mrb[0].mxu0
  %v2337 = vadd.f32 %v315, %v2336
  %v2338 = vpop.f32.mrb[0].mxu0
  %v2339 = vpop.f32.mrb[0].mxu0
  %v2340 = vadd.f32 %v315, %v2339
  %v2341 = vpop.f32.mrb[0].mxu0
  %2342 = vmatprep.mubr.bf16.mxu0 0
  %2343 = vmatmul.mubr.bf16.gmra.mrb[0].mxu0 %v1337
  %v2344 = vpop.f32.mrb[0].mxu0
  %v2345 = vadd.f32 %v315, %v2344
  %v2346 = vpop.f32.mrb[0].mxu0
  %v2347 = vpop.f32.mrb[0].mxu0
  %v2348 = vadd.f32 %v315, %v2347
  %v2349 = vpop.f32.mrb[0].mxu0
  %2350 = vmatprep.mubr.bf16.mxu0 0
  %2351 = vmatmul.mubr.bf16.gmra.mrb[0].mxu0 %v1340
  %v2352 = vpop.f32.mrb[0].mxu0
  %v2353 = vadd.f32 %v315, %v2352
  %v2354 = vpop.f32.mrb[0].mxu0
  %v2355 = vpop.f32.mrb[0].mxu0
  %v2356 = vadd.f32 %v315, %v2355
  %v2357 = vpop.f32.mrb[0].mxu0
  %2358 = vmatprep.mubr.bf16.mxu0 0
  %2359 = vmatmul.mubr.bf16.gmra.mrb[0].mxu0 %v1343
  %v2360 = vpop.f32.mrb[0].mxu0
  %v2361 = vadd.f32 %v315, %v2360
  %v2362 = vpop.f32.mrb[0].mxu0
  %v2363 = vpop.f32.mrb[0].mxu0
  %v2364 = vadd.f32 %v315, %v2363
  %v2365 = vpop.f32.mrb[0].mxu0
  %2366 = vmatprep.mubr.bf16.mxu0 0
  %2367 = vmatmul.mubr.bf16.gmra.mrb[0].mxu0 %v1346
  %v2368 = vpop.f32.mrb[0].mxu0
  %v2369 = vadd.f32 %v315, %v2368
  %v2370 = vpop.f32.mrb[0].mxu0
  %v2371 = vpop.f32.mrb[0].mxu0
  %v2372 = vadd.f32 %v315, %v2371
  %v2373 = vpop.f32.mrb[0].mxu0
  %2374 = vmatprep.mubr.bf16.mxu0 0
  %2375 = vmatmul.mubr.bf16.gmra.mrb[0].mxu0 %v1349
  %v2376 = vpop.f32.mrb[0].mxu0
  %v2377 = vadd.f32 %v315, %v2376
  %v2378 = vpop.f32.mrb[0].mxu0
  %v2379 = vpop.f32.mrb[0].mxu0
  %v2380 = vadd.f32 %v315, %v2379
  %v2381 = vpop.f32.mrb[0].mxu0
  %2382 = vmatprep.mubr.bf16.mxu0 0
  %2383 = vmatmul.mubr.bf16.gmra.mrb[0].mxu0 %v1352
  %v2384 = vpop.f32.mrb[0].mxu0
  %v2385 = vadd.f32 %v315, %v2384
  %v2386 = vpop.f32.mrb[0].mxu0
  %v2387 = vpop.f32.mrb[0].mxu0
  %v2388 = vadd.f32 %v315, %v2387
  %v2389 = vpop.f32.mrb[0].mxu0
  %2390 = vmatprep.mubr.bf16.mxu0 0
  %2391 = vmatmul.mubr.bf16.gmra.mrb[0].mxu0 %v1355
  %v2392 = vpop.f32.mrb[0].mxu0
  %v2393 = vadd.f32 %v315, %v2392
  %v2394 = vpop.f32.mrb[0].mxu0
  %v2395 = vpop.f32.mrb[0].mxu0
  %v2396 = vadd.f32 %v315, %v2395
  %v2397 = vpop.f32.mrb[0].mxu0
  %2398 = vmatprep.mubr.bf16.mxu0 0
  %2399 = vmatmul.mubr.bf16.gmra.mrb[0].mxu0 %v1358
  %v2400 = vpop.f32.mrb[0].mxu0
  %v2401 = vadd.f32 %v315, %v2400
  %v2402 = vpop.f32.mrb[0].mxu0
  %v2403 = vpop.f32.mrb[0].mxu0
  %v2404 = vadd.f32 %v315, %v2403
  %v2405 = vpop.f32.mrb[0].mxu0
  %2406 = vmatprep.mubr.bf16.mxu0 0
  %2407 = vmatmul.mubr.bf16.gmra.mrb[0].mxu0 %v1361
  %v2408 = vpop.f32.mrb[0].mxu0
  %v2409 = vadd.f32 %v315, %v2408
  %v2410 = vpop.f32.mrb[0].mxu0
  %v2411 = vpop.f32.mrb[0].mxu0
  %v2412 = vadd.f32 %v315, %v2411
  %v2413 = vpop.f32.mrb[0].mxu0
  %2414 = vmatprep.mubr.bf16.mxu0 0
  %2415 = vmatmul.mubr.bf16.gmra.mrb[0].mxu0 %v1364
  %v2416 = vpop.f32.mrb[0].mxu0
  %v2417 = vadd.f32 %v315, %v2416
  %v2418 = vpop.f32.mrb[0].mxu0
  %v2419 = vpop.f32.mrb[0].mxu0
  %v2420 = vadd.f32 %v315, %v2419
  %v2421 = vpop.f32.mrb[0].mxu0
  %2422 = vdwg.mxu0
  %v2423 = vmax.f32 %v1401, 0.0
  %v2424 = vmax.f32 %v1404, 0.0
  %v2425 = vmax.f32 %v1409, 0.0
  %v2426 = vmax.f32 %v1412, 0.0
  %v2427 = vmax.f32 %v1417, 0.0
  %v2428 = vmax.f32 %v1420, 0.0
  %v2429 = vmax.f32 %v1425, 0.0
  %v2430 = vmax.f32 %v1428, 0.0
  %v2431 = vmax.f32 %v1433, 0.0
  %v2432 = vmax.f32 %v1436, 0.0
  %v2433 = vmax.f32 %v1441, 0.0
  %v2434 = vmax.f32 %v1444, 0.0
  %v2435 = vmax.f32 %v1449, 0.0
  %v2436 = vmax.f32 %v1452, 0.0
  %v2437 = vmax.f32 %v1457, 0.0
  %v2438 = vmax.f32 %v1460, 0.0
  %v2439 = vmax.f32 %v1465, 0.0
  %v2440 = vmax.f32 %v1468, 0.0
  %v2441 = vmax.f32 %v1473, 0.0
  %v2442 = vmax.f32 %v1476, 0.0
  %v2443 = vmax.f32 %v1481, 0.0
  %v2444 = vmax.f32 %v1484, 0.0
  %v2445 = vmax.f32 %v1489, 0.0
  %v2446 = vmax.f32 %v1492, 0.0
  %v2447 = vmax.f32 %v1497, 0.0
  %v2448 = vmax.f32 %v1500, 0.0
  %v2449 = vmax.f32 %v1505, 0.0
  %v2450 = vmax.f32 %v1508, 0.0
  %v2451 = vmax.f32 %v1513, 0.0
  %v2452 = vmax.f32 %v1516, 0.0
  %v2453 = vmax.f32 %v1521, 0.0
  %v2454 = vmax.f32 %v1524, 0.0
  %v2455 = vmax.f32 %v1529, 0.0
  %v2456 = vmax.f32 %v1532, 0.0
  %v2457 = vmax.f32 %v1537, 0.0
  %v2458 = vmax.f32 %v1540, 0.0
  %v2459 = vmax.f32 %v1545, 0.0
  %v2460 = vmax.f32 %v1548, 0.0
  %v2461 = vmax.f32 %v1553, 0.0
  %v2462 = vmax.f32 %v1556, 0.0
  %v2463 = vmax.f32 %v1561, 0.0
  %v2464 = vmax.f32 %v1564, 0.0
  %v2465 = vmax.f32 %v1569, 0.0
  %v2466 = vmax.f32 %v1572, 0.0
  %v2467 = vmax.f32 %v1577, 0.0
  %v2468 = vmax.f32 %v1580, 0.0
  %v2469 = vmax.f32 %v1585, 0.0
  %v2470 = vmax.f32 %v1588, 0.0
  %v2471 = vmax.f32 %v1593, 0.0
  %v2472 = vmax.f32 %v1596, 0.0
  %v2473 = vmax.f32 %v1601, 0.0
  %v2474 = vmax.f32 %v1604, 0.0
  %v2475 = vmax.f32 %v1609, 0.0
  %v2476 = vmax.f32 %v1612, 0.0
  %v2477 = vmax.f32 %v1617, 0.0
  %v2478 = vmax.f32 %v1620, 0.0
  %v2479 = vmax.f32 %v1625, 0.0
  %v2480 = vmax.f32 %v1628, 0.0
  %v2481 = vmax.f32 %v1633, 0.0
  %v2482 = vmax.f32 %v1636, 0.0
  %v2483 = vmax.f32 %v1641, 0.0
  %v2484 = vmax.f32 %v1644, 0.0
  %v2485 = vmax.f32 %v1649, 0.0
  %v2486 = vmax.f32 %v1652, 0.0
  %v2487 = vmax.f32 %v1657, 0.0
  %v2488 = vmax.f32 %v1660, 0.0
  %v2489 = vmax.f32 %v1665, 0.0
  %v2490 = vmax.f32 %v1668, 0.0
  %v2491 = vmax.f32 %v1673, 0.0
  %v2492 = vmax.f32 %v1676, 0.0
  %v2493 = vmax.f32 %v1681, 0.0
  %v2494 = vmax.f32 %v1684, 0.0
  %v2495 = vmax.f32 %v1689, 0.0
  %v2496 = vmax.f32 %v1692, 0.0
  %v2497 = vmax.f32 %v1697, 0.0
  %v2498 = vmax.f32 %v1700, 0.0
  %v2499 = vmax.f32 %v1705, 0.0
  %v2500 = vmax.f32 %v1708, 0.0
  %v2501 = vmax.f32 %v1713, 0.0
  %v2502 = vmax.f32 %v1716, 0.0
  %v2503 = vmax.f32 %v1721, 0.0
  %v2504 = vmax.f32 %v1724, 0.0
  %v2505 = vmax.f32 %v1729, 0.0
  %v2506 = vmax.f32 %v1732, 0.0
  %v2507 = vmax.f32 %v1737, 0.0
  %v2508 = vmax.f32 %v1740, 0.0
  %v2509 = vmax.f32 %v1745, 0.0
  %v2510 = vmax.f32 %v1748, 0.0
  %v2511 = vmax.f32 %v1753, 0.0
  %v2512 = vmax.f32 %v1756, 0.0
  %v2513 = vmax.f32 %v1761, 0.0
  %v2514 = vmax.f32 %v1764, 0.0
  %v2515 = vmax.f32 %v1769, 0.0
  %v2516 = vmax.f32 %v1772, 0.0
  %v2517 = vmax.f32 %v1777, 0.0
  %v2518 = vmax.f32 %v1780, 0.0
  %v2519 = vmax.f32 %v1785, 0.0
  %v2520 = vmax.f32 %v1788, 0.0
  %v2521 = vmax.f32 %v1793, 0.0
  %v2522 = vmax.f32 %v1796, 0.0
  %v2523 = vmax.f32 %v1801, 0.0
  %v2524 = vmax.f32 %v1804, 0.0
  %v2525 = vmax.f32 %v1809, 0.0
  %v2526 = vmax.f32 %v1812, 0.0
  %v2527 = vmax.f32 %v1817, 0.0
  %v2528 = vmax.f32 %v1820, 0.0
  %v2529 = vmax.f32 %v1825, 0.0
  %v2530 = vmax.f32 %v1828, 0.0
  %v2531 = vmax.f32 %v1833, 0.0
  %v2532 = vmax.f32 %v1836, 0.0
  %v2533 = vmax.f32 %v1841, 0.0
  %v2534 = vmax.f32 %v1844, 0.0
  %v2535 = vmax.f32 %v1849, 0.0
  %v2536 = vmax.f32 %v1852, 0.0
  %v2537 = vmax.f32 %v1857, 0.0
  %v2538 = vmax.f32 %v1860, 0.0
  %v2539 = vmax.f32 %v1865, 0.0
  %v2540 = vmax.f32 %v1868, 0.0
  %v2541 = vmax.f32 %v1873, 0.0
  %v2542 = vmax.f32 %v1876, 0.0
  %v2543 = vmax.f32 %v1881, 0.0
  %v2544 = vmax.f32 %v1884, 0.0
  %v2545 = vmax.f32 %v1889, 0.0
  %v2546 = vmax.f32 %v1892, 0.0
  %v2547 = vmax.f32 %v1897, 0.0
  %v2548 = vmax.f32 %v1900, 0.0
  %v2549 = vmax.f32 %v1905, 0.0
  %v2550 = vmax.f32 %v1908, 0.0
  %v2551 = vmax.f32 %v1913, 0.0
  %v2552 = vmax.f32 %v1916, 0.0
  %v2553 = vmax.f32 %v1921, 0.0
  %v2554 = vmax.f32 %v1924, 0.0
  %v2555 = vmax.f32 %v1929, 0.0
  %v2556 = vmax.f32 %v1932, 0.0
  %v2557 = vmax.f32 %v1937, 0.0
  %v2558 = vmax.f32 %v1940, 0.0
  %v2559 = vmax.f32 %v1945, 0.0
  %v2560 = vmax.f32 %v1948, 0.0
  %v2561 = vmax.f32 %v1953, 0.0
  %v2562 = vmax.f32 %v1956, 0.0
  %v2563 = vmax.f32 %v1961, 0.0
  %v2564 = vmax.f32 %v1964, 0.0
  %v2565 = vmax.f32 %v1969, 0.0
  %v2566 = vmax.f32 %v1972, 0.0
  %v2567 = vmax.f32 %v1977, 0.0
  %v2568 = vmax.f32 %v1980, 0.0
  %v2569 = vmax.f32 %v1985, 0.0
  %v2570 = vmax.f32 %v1988, 0.0
  %v2571 = vmax.f32 %v1993, 0.0
  %v2572 = vmax.f32 %v1996, 0.0
  %v2573 = vmax.f32 %v2001, 0.0
  %v2574 = vmax.f32 %v2004, 0.0
  %v2575 = vmax.f32 %v2009, 0.0
  %v2576 = vmax.f32 %v2012, 0.0
  %v2577 = vmax.f32 %v2017, 0.0
  %v2578 = vmax.f32 %v2020, 0.0
  %v2579 = vmax.f32 %v2025, 0.0
  %v2580 = vmax.f32 %v2028, 0.0
  %v2581 = vmax.f32 %v2033, 0.0
  %v2582 = vmax.f32 %v2036, 0.0
  %v2583 = vmax.f32 %v2041, 0.0
  %v2584 = vmax.f32 %v2044, 0.0
  %v2585 = vmax.f32 %v2049, 0.0
  %v2586 = vmax.f32 %v2052, 0.0
  %v2587 = vmax.f32 %v2057, 0.0
  %v2588 = vmax.f32 %v2060, 0.0
  %v2589 = vmax.f32 %v2065, 0.0
  %v2590 = vmax.f32 %v2068, 0.0
  %v2591 = vmax.f32 %v2073, 0.0
  %v2592 = vmax.f32 %v2076, 0.0
  %v2593 = vmax.f32 %v2081, 0.0
  %v2594 = vmax.f32 %v2084, 0.0
  %v2595 = vmax.f32 %v2089, 0.0
  %v2596 = vmax.f32 %v2092, 0.0
  %v2597 = vmax.f32 %v2097, 0.0
  %v2598 = vmax.f32 %v2100, 0.0
  %v2599 = vmax.f32 %v2105, 0.0
  %v2600 = vmax.f32 %v2108, 0.0
  %v2601 = vmax.f32 %v2113, 0.0
  %v2602 = vmax.f32 %v2116, 0.0
  %v2603 = vmax.f32 %v2121, 0.0
  %v2604 = vmax.f32 %v2124, 0.0
  %v2605 = vmax.f32 %v2129, 0.0
  %v2606 = vmax.f32 %v2132, 0.0
  %v2607 = vmax.f32 %v2137, 0.0
  %v2608 = vmax.f32 %v2140, 0.0
  %v2609 = vmax.f32 %v2145, 0.0
  %v2610 = vmax.f32 %v2148, 0.0
  %v2611 = vmax.f32 %v2153, 0.0
  %v2612 = vmax.f32 %v2156, 0.0
  %v2613 = vmax.f32 %v2161, 0.0
  %v2614 = vmax.f32 %v2164, 0.0
  %v2615 = vmax.f32 %v2169, 0.0
  %v2616 = vmax.f32 %v2172, 0.0
  %v2617 = vmax.f32 %v2177, 0.0
  %v2618 = vmax.f32 %v2180, 0.0
  %v2619 = vmax.f32 %v2185, 0.0
  %v2620 = vmax.f32 %v2188, 0.0
  %v2621 = vmax.f32 %v2193, 0.0
  %v2622 = vmax.f32 %v2196, 0.0
  %v2623 = vmax.f32 %v2201, 0.0
  %v2624 = vmax.f32 %v2204, 0.0
  %v2625 = vmax.f32 %v2209, 0.0
  %v2626 = vmax.f32 %v2212, 0.0
  %v2627 = vmax.f32 %v2217, 0.0
  %v2628 = vmax.f32 %v2220, 0.0
  %v2629 = vmax.f32 %v2225, 0.0
  %v2630 = vmax.f32 %v2228, 0.0
  %v2631 = vmax.f32 %v2233, 0.0
  %v2632 = vmax.f32 %v2236, 0.0
  %v2633 = vmax.f32 %v2241, 0.0
  %v2634 = vmax.f32 %v2244, 0.0
  %v2635 = vmax.f32 %v2249, 0.0
  %v2636 = vmax.f32 %v2252, 0.0
  %v2637 = vmax.f32 %v2257, 0.0
  %v2638 = vmax.f32 %v2260, 0.0
  %v2639 = vmax.f32 %v2265, 0.0
  %v2640 = vmax.f32 %v2268, 0.0
  %v2641 = vmax.f32 %v2273, 0.0
  %v2642 = vmax.f32 %v2276, 0.0
  %v2643 = vmax.f32 %v2281, 0.0
  %v2644 = vmax.f32 %v2284, 0.0
  %v2645 = vmax.f32 %v2289, 0.0
  %v2646 = vmax.f32 %v2292, 0.0
  %v2647 = vmax.f32 %v2297, 0.0
  %v2648 = vmax.f32 %v2300, 0.0
  %v2649 = vmax.f32 %v2305, 0.0
  %v2650 = vmax.f32 %v2308, 0.0
  %v2651 = vmax.f32 %v2313, 0.0
  %v2652 = vmax.f32 %v2316, 0.0
  %v2653 = vmax.f32 %v2321, 0.0
  %v2654 = vmax.f32 %v2324, 0.0
  %v2655 = vmax.f32 %v2329, 0.0
  %v2656 = vmax.f32 %v2332, 0.0
  %v2657 = vmax.f32 %v2337, 0.0
  %v2658 = vmax.f32 %v2340, 0.0
  %v2659 = vmax.f32 %v2345, 0.0
  %v2660 = vmax.f32 %v2348, 0.0
  %v2661 = vmax.f32 %v2353, 0.0
  %v2662 = vmax.f32 %v2356, 0.0
  %v2663 = vmax.f32 %v2361, 0.0
  %v2664 = vmax.f32 %v2364, 0.0
  %v2665 = vmax.f32 %v2369, 0.0
  %v2666 = vmax.f32 %v2372, 0.0
  %v2667 = vmax.f32 %v2377, 0.0
  %v2668 = vmax.f32 %v2380, 0.0
  %v2669 = vmax.f32 %v2385, 0.0
  %v2670 = vmax.f32 %v2388, 0.0
  %v2671 = vmax.f32 %v2393, 0.0
  %v2672 = vmax.f32 %v2396, 0.0
  %v2673 = vmax.f32 %v2401, 0.0
  %v2674 = vmax.f32 %v2404, 0.0
  %v2675 = vmax.f32 %v2409, 0.0
  %v2676 = vmax.f32 %v2412, 0.0
  %v2677 = vmax.f32 %v2417, 0.0
  %v2678 = vmax.f32 %v2420, 0.0
  %v2679 = vpack.c.bf16 %v2424, %v2423
  %v2680 = vpack.c.bf16 %v2426, %v2425
  %v2681 = vpack.c.bf16 %v2428, %v2427
  %v2682 = vpack.c.bf16 %v2430, %v2429
  %v2683 = vpack.c.bf16 %v2432, %v2431
  %v2684 = vpack.c.bf16 %v2434, %v2433
  %v2685 = vpack.c.bf16 %v2436, %v2435
  %v2686 = vpack.c.bf16 %v2438, %v2437
  %v2687 = vpack.c.bf16 %v2440, %v2439
  %v2688 = vpack.c.bf16 %v2442, %v2441
  %v2689 = vpack.c.bf16 %v2444, %v2443
  %v2690 = vpack.c.bf16 %v2446, %v2445
  %v2691 = vpack.c.bf16 %v2448, %v2447
  %v2692 = vpack.c.bf16 %v2450, %v2449
  %v2693 = vpack.c.bf16 %v2452, %v2451
  %v2694 = vpack.c.bf16 %v2454, %v2453
  %v2695 = vpack.c.bf16 %v2456, %v2455
  %v2696 = vpack.c.bf16 %v2458, %v2457
  %v2697 = vpack.c.bf16 %v2460, %v2459
  %v2698 = vpack.c.bf16 %v2462, %v2461
  %v2699 = vpack.c.bf16 %v2464, %v2463
  %v2700 = vpack.c.bf16 %v2466, %v2465
  %v2701 = vpack.c.bf16 %v2468, %v2467
  %v2702 = vpack.c.bf16 %v2470, %v2469
  %v2703 = vpack.c.bf16 %v2472, %v2471
  %v2704 = vpack.c.bf16 %v2474, %v2473
  %v2705 = vpack.c.bf16 %v2476, %v2475
  %v2706 = vpack.c.bf16 %v2478, %v2477
  %v2707 = vpack.c.bf16 %v2480, %v2479
  %v2708 = vpack.c.bf16 %v2482, %v2481
  %v2709 = vpack.c.bf16 %v2484, %v2483
  %v2710 = vpack.c.bf16 %v2486, %v2485
  %v2711 = vpack.c.bf16 %v2488, %v2487
  %v2712 = vpack.c.bf16 %v2490, %v2489
  %v2713 = vpack.c.bf16 %v2492, %v2491
  %v2714 = vpack.c.bf16 %v2494, %v2493
  %v2715 = vpack.c.bf16 %v2496, %v2495
  %v2716 = vpack.c.bf16 %v2498, %v2497
  %v2717 = vpack.c.bf16 %v2500, %v2499
  %v2718 = vpack.c.bf16 %v2502, %v2501
  %v2719 = vpack.c.bf16 %v2504, %v2503
  %v2720 = vpack.c.bf16 %v2506, %v2505
  %v2721 = vpack.c.bf16 %v2508, %v2507
  %v2722 = vpack.c.bf16 %v2510, %v2509
  %v2723 = vpack.c.bf16 %v2512, %v2511
  %v2724 = vpack.c.bf16 %v2514, %v2513
  %v2725 = vpack.c.bf16 %v2516, %v2515
  %v2726 = vpack.c.bf16 %v2518, %v2517
  %v2727 = vpack.c.bf16 %v2520, %v2519
  %v2728 = vpack.c.bf16 %v2522, %v2521
  %v2729 = vpack.c.bf16 %v2524, %v2523
  %v2730 = vpack.c.bf16 %v2526, %v2525
  %v2731 = vpack.c.bf16 %v2528, %v2527
  %v2732 = vpack.c.bf16 %v2530, %v2529
  %v2733 = vpack.c.bf16 %v2532, %v2531
  %v2734 = vpack.c.bf16 %v2534, %v2533
  %v2735 = vpack.c.bf16 %v2536, %v2535
  %v2736 = vpack.c.bf16 %v2538, %v2537
  %v2737 = vpack.c.bf16 %v2540, %v2539
  %v2738 = vpack.c.bf16 %v2542, %v2541
  %v2739 = vpack.c.bf16 %v2544, %v2543
  %v2740 = vpack.c.bf16 %v2546, %v2545
  %v2741 = vpack.c.bf16 %v2548, %v2547
  %v2742 = vpack.c.bf16 %v2550, %v2549
  %v2743 = vpack.c.bf16 %v2552, %v2551
  %v2744 = vpack.c.bf16 %v2554, %v2553
  %v2745 = vpack.c.bf16 %v2556, %v2555
  %v2746 = vpack.c.bf16 %v2558, %v2557
  %v2747 = vpack.c.bf16 %v2560, %v2559
  %v2748 = vpack.c.bf16 %v2562, %v2561
  %v2749 = vpack.c.bf16 %v2564, %v2563
  %v2750 = vpack.c.bf16 %v2566, %v2565
  %v2751 = vpack.c.bf16 %v2568, %v2567
  %v2752 = vpack.c.bf16 %v2570, %v2569
  %v2753 = vpack.c.bf16 %v2572, %v2571
  %v2754 = vpack.c.bf16 %v2574, %v2573
  %v2755 = vpack.c.bf16 %v2576, %v2575
  %v2756 = vpack.c.bf16 %v2578, %v2577
  %v2757 = vpack.c.bf16 %v2580, %v2579
  %v2758 = vpack.c.bf16 %v2582, %v2581
  %v2759 = vpack.c.bf16 %v2584, %v2583
  %v2760 = vpack.c.bf16 %v2586, %v2585
  %v2761 = vpack.c.bf16 %v2588, %v2587
  %v2762 = vpack.c.bf16 %v2590, %v2589
  %v2763 = vpack.c.bf16 %v2592, %v2591
  %v2764 = vpack.c.bf16 %v2594, %v2593
  %v2765 = vpack.c.bf16 %v2596, %v2595
  %v2766 = vpack.c.bf16 %v2598, %v2597
  %v2767 = vpack.c.bf16 %v2600, %v2599
  %v2768 = vpack.c.bf16 %v2602, %v2601
  %v2769 = vpack.c.bf16 %v2604, %v2603
  %v2770 = vpack.c.bf16 %v2606, %v2605
  %v2771 = vpack.c.bf16 %v2608, %v2607
  %v2772 = vpack.c.bf16 %v2610, %v2609
  %v2773 = vpack.c.bf16 %v2612, %v2611
  %v2774 = vpack.c.bf16 %v2614, %v2613
  %v2775 = vpack.c.bf16 %v2616, %v2615
  %v2776 = vpack.c.bf16 %v2618, %v2617
  %v2777 = vpack.c.bf16 %v2620, %v2619
  %v2778 = vpack.c.bf16 %v2622, %v2621
  %v2779 = vpack.c.bf16 %v2624, %v2623
  %v2780 = vpack.c.bf16 %v2626, %v2625
  %v2781 = vpack.c.bf16 %v2628, %v2627
  %v2782 = vpack.c.bf16 %v2630, %v2629
  %v2783 = vpack.c.bf16 %v2632, %v2631
  %v2784 = vpack.c.bf16 %v2634, %v2633
  %v2785 = vpack.c.bf16 %v2636, %v2635
  %v2786 = vpack.c.bf16 %v2638, %v2637
  %v2787 = vpack.c.bf16 %v2640, %v2639
  %v2788 = vpack.c.bf16 %v2642, %v2641
  %v2789 = vpack.c.bf16 %v2644, %v2643
  %v2790 = vpack.c.bf16 %v2646, %v2645
  %v2791 = vpack.c.bf16 %v2648, %v2647
  %v2792 = vpack.c.bf16 %v2650, %v2649
  %v2793 = vpack.c.bf16 %v2652, %v2651
  %v2794 = vpack.c.bf16 %v2654, %v2653
  %v2795 = vpack.c.bf16 %v2656, %v2655
  %v2796 = vpack.c.bf16 %v2658, %v2657
  %v2797 = vpack.c.bf16 %v2660, %v2659
  %v2798 = vpack.c.bf16 %v2662, %v2661
  %v2799 = vpack.c.bf16 %v2664, %v2663
  %v2800 = vpack.c.bf16 %v2666, %v2665
  %v2801 = vpack.c.bf16 %v2668, %v2667
  %v2802 = vpack.c.bf16 %v2670, %v2669
  %v2803 = vpack.c.bf16 %v2672, %v2671
  %v2804 = vpack.c.bf16 %v2674, %v2673
  %v2805 = vpack.c.bf16 %v2676, %v2675
  %v2806 = vpack.c.bf16 %v2678, %v2677
  %v2807 = vld [vmem:[%s4] sm:$0xf]
  %v2808 = vld [vmem:[%s4 + $0x4] sm:$0xf]
  %v2809 = vld [vmem:[%s4 + $0x8] sm:$0xf]
  %v2810 = vld [vmem:[%s4 + $0xc] sm:$0xf]
  %v2811 = vld [vmem:[%s4 + $0x10] sm:$0xf]
  %v2812 = vld [vmem:[%s4 + $0x14] sm:$0xf]
  %v2813 = vld [vmem:[%s4 + $0x18] sm:$0xf]
  %v2814 = vld [vmem:[%s4 + $0x1c] sm:$0xf]
  %v2815 = vld [vmem:[%s5] sm:$0x1]
  %v2817 = vlaneseq
  %v2818 = vshrl.u32 %v2817, 7
  %v2819 = vsub.s32 0, %v2818
  %v2820 = vrot.slane %v2815, %v2819
  %v2830 = vunpack.c.l.b16 %v2807
  %v2831 = vunpack.c.l.b16 %v2808
  %v2832 = vunpack.c.l.b16 %v2809
  %v2833 = vunpack.c.l.b16 %v2810
  %v2834 = vunpack.c.l.b16 %v2811
  %v2835 = vunpack.c.l.b16 %v2812
  %v2836 = vunpack.c.l.b16 %v2813
  %v2837 = vunpack.c.l.b16 %v2814
  %v2838 = vpack.c.b16 %v2831, %v2830
  %v2839 = vpack.c.b16 %v2833, %v2832
  %v2840 = vpack.c.b16 %v2835, %v2834
  %v2841 = vpack.c.b16 %v2837, %v2836
  %v2847 = vsel %vm981, %v2679, 0
  %v2850 = vsel %vm981, %v2680, 0
  %v2853 = vsel %vm981, %v2681, 0
  %v2856 = vsel %vm981, %v2682, 0
  %v2859 = vsel %vm981, %v2683, 0
  %v2862 = vsel %vm981, %v2684, 0
  %v2865 = vsel %vm981, %v2685, 0
  %v2868 = vsel %vm981, %v2686, 0
  %v2871 = vsel %vm981, %v2687, 0
  %v2874 = vsel %vm981, %v2688, 0
  %v2877 = vsel %vm981, %v2689, 0
  %v2880 = vsel %vm981, %v2690, 0
  %v2883 = vsel %vm981, %v2691, 0
  %v2886 = vsel %vm981, %v2692, 0
  %v2889 = vsel %vm981, %v2693, 0
  %v2892 = vsel %vm981, %v2694, 0
  %v2895 = vsel %vm981, %v2695, 0
  %v2898 = vsel %vm981, %v2696, 0
  %v2901 = vsel %vm981, %v2697, 0
  %v2904 = vsel %vm981, %v2698, 0
  %v2907 = vsel %vm981, %v2699, 0
  %v2910 = vsel %vm981, %v2700, 0
  %v2913 = vsel %vm981, %v2701, 0
  %v2916 = vsel %vm981, %v2702, 0
  %v2919 = vsel %vm981, %v2703, 0
  %v2922 = vsel %vm981, %v2704, 0
  %v2925 = vsel %vm981, %v2705, 0
  %v2928 = vsel %vm981, %v2706, 0
  %v2931 = vsel %vm981, %v2707, 0
  %v2934 = vsel %vm981, %v2708, 0
  %v2937 = vsel %vm981, %v2709, 0
  %v2940 = vsel %vm981, %v2710, 0
  %v2943 = vsel %vm981, %v2711, 0
  %v2946 = vsel %vm981, %v2712, 0
  %v2949 = vsel %vm981, %v2713, 0
  %v2952 = vsel %vm981, %v2714, 0
  %v2955 = vsel %vm981, %v2715, 0
  %v2958 = vsel %vm981, %v2716, 0
  %v2961 = vsel %vm981, %v2717, 0
  %v2964 = vsel %vm981, %v2718, 0
  %v2967 = vsel %vm981, %v2719, 0
  %v2970 = vsel %vm981, %v2720, 0
  %v2973 = vsel %vm981, %v2721, 0
  %v2976 = vsel %vm981, %v2722, 0
  %v2979 = vsel %vm981, %v2723, 0
  %v2982 = vsel %vm981, %v2724, 0
  %v2985 = vsel %vm981, %v2725, 0
  %v2988 = vsel %vm981, %v2726, 0
  %v2991 = vsel %vm981, %v2727, 0
  %v2994 = vsel %vm981, %v2728, 0
  %v2997 = vsel %vm981, %v2729, 0
  %v3000 = vsel %vm981, %v2730, 0
  %v3003 = vsel %vm981, %v2731, 0
  %v3006 = vsel %vm981, %v2732, 0
  %v3009 = vsel %vm981, %v2733, 0
  %v3012 = vsel %vm981, %v2734, 0
  %v3015 = vsel %vm981, %v2735, 0
  %v3018 = vsel %vm981, %v2736, 0
  %v3021 = vsel %vm981, %v2737, 0
  %v3024 = vsel %vm981, %v2738, 0
  %v3027 = vsel %vm981, %v2739, 0
  %v3030 = vsel %vm981, %v2740, 0
  %v3033 = vsel %vm981, %v2741, 0
  %v3036 = vsel %vm981, %v2742, 0
  %v3039 = vsel %vm981, %v2743, 0
  %v3042 = vsel %vm981, %v2744, 0
  %v3045 = vsel %vm981, %v2745, 0
  %v3048 = vsel %vm981, %v2746, 0
  %v3051 = vsel %vm981, %v2747, 0
  %v3054 = vsel %vm981, %v2748, 0
  %v3057 = vsel %vm981, %v2749, 0
  %v3060 = vsel %vm981, %v2750, 0
  %v3063 = vsel %vm981, %v2751, 0
  %v3066 = vsel %vm981, %v2752, 0
  %v3069 = vsel %vm981, %v2753, 0
  %v3072 = vsel %vm981, %v2754, 0
  %v3075 = vsel %vm981, %v2755, 0
  %v3078 = vsel %vm981, %v2756, 0
  %v3081 = vsel %vm981, %v2757, 0
  %v3084 = vsel %vm981, %v2758, 0
  %v3087 = vsel %vm981, %v2759, 0
  %v3090 = vsel %vm981, %v2760, 0
  %v3093 = vsel %vm981, %v2761, 0
  %v3096 = vsel %vm981, %v2762, 0
  %v3099 = vsel %vm981, %v2763, 0
  %v3102 = vsel %vm981, %v2764, 0
  %v3105 = vsel %vm981, %v2765, 0
  %v3108 = vsel %vm981, %v2766, 0
  %v3111 = vsel %vm981, %v2767, 0
  %v3114 = vsel %vm981, %v2768, 0
  %v3117 = vsel %vm981, %v2769, 0
  %v3120 = vsel %vm981, %v2770, 0
  %v3123 = vsel %vm981, %v2771, 0
  %v3126 = vsel %vm981, %v2772, 0
  %v3129 = vsel %vm981, %v2773, 0
  %v3132 = vsel %vm981, %v2774, 0
  %v3135 = vsel %vm981, %v2775, 0
  %v3138 = vsel %vm981, %v2776, 0
  %v3141 = vsel %vm981, %v2777, 0
  %v3144 = vsel %vm981, %v2778, 0
  %v3147 = vsel %vm981, %v2779, 0
  %v3150 = vsel %vm981, %v2780, 0
  %v3153 = vsel %vm981, %v2781, 0
  %v3156 = vsel %vm981, %v2782, 0
  %v3159 = vsel %vm981, %v2783, 0
  %v3162 = vsel %vm981, %v2784, 0
  %v3165 = vsel %vm981, %v2785, 0
  %v3168 = vsel %vm981, %v2786, 0
  %v3171 = vsel %vm981, %v2787, 0
  %v3174 = vsel %vm981, %v2788, 0
  %v3177 = vsel %vm981, %v2789, 0
  %v3180 = vsel %vm981, %v2790, 0
  %v3183 = vsel %vm981, %v2791, 0
  %v3186 = vsel %vm981, %v2792, 0
  %v3189 = vsel %vm981, %v2793, 0
  %v3192 = vsel %vm981, %v2794, 0
  %v3195 = vsel %vm981, %v2795, 0
  %v3198 = vsel %vm981, %v2796, 0
  %v3201 = vsel %vm981, %v2797, 0
  %v3204 = vsel %vm981, %v2798, 0
  %v3207 = vsel %vm981, %v2799, 0
  %v3210 = vsel %vm981, %v2800, 0
  %v3213 = vsel %vm981, %v2801, 0
  %v3216 = vsel %vm981, %v2802, 0
  %v3219 = vsel %vm981, %v2803, 0
  %v3222 = vsel %vm981, %v2804, 0
  %v3225 = vsel %vm981, %v2805, 0
  %v3228 = vsel %vm981, %v2806, 0
  %3230 = vmatprep.subr.bf16.mxu0 0
  %3231 = vmatpush1.bf16.msra.mxu0 %v2838
  %3232 = vmatprep.subr.bf16.mxu0 0
  %3233 = vmatpush1.bf16.msra.mxu0 %v2839
  %3234 = vmatprep.subr.bf16.mxu0 0
  %3235 = vmatpush1.bf16.msra.mxu0 %v2840
  %3236 = vmatprep.subr.bf16.mxu0 0
  %3237 = vmatpush1.bf16.msra.mxu0 %v2841
  %3238 = vmatprep.subr.bf16.mxu0 0
  %3239 = vmatpush1.bf16.msra.mxu0 0
  %3240 = vmatprep.subr.bf16.mxu0 0
  %3241 = vmatpush1.bf16.msra.mxu0 0
  %3242 = vmatprep.subr.bf16.mxu0 0
  %3243 = vmatpush1.bf16.msra.mxu0 0
  %3244 = vmatprep.subr.bf16.mxu0 0
  %3245 = vmatpush1.bf16.msra.mxu0 0
  %3246 = vmatprep.subr.bf16.mxu0 0
  %3247 = vmatpush1.bf16.msra.mxu0 0
  %3248 = vmatprep.subr.bf16.mxu0 0
  %3249 = vmatpush1.bf16.msra.mxu0 0
  %3250 = vmatprep.subr.bf16.mxu0 0
  %3251 = vmatpush1.bf16.msra.mxu0 0
  %3252 = vmatprep.subr.bf16.mxu0 0
  %3253 = vmatpush1.bf16.msra.mxu0 0
  %3254 = vmatprep.subr.bf16.mxu0 0
  %3255 = vmatpush1.bf16.msra.mxu0 0
  %3256 = vmatprep.subr.bf16.mxu0 0
  %3257 = vmatpush1.bf16.msra.mxu0 0
  %3258 = vmatprep.subr.bf16.mxu0 0
  %3259 = vmatpush1.bf16.msra.mxu0 0
  %3260 = vmatprep.subr.bf16.mxu0 0
  %3261 = vmatpush1.bf16.msra.mxu0 0
  %3262 = vmatprep.mubr.bf16.mxu0 0
  %3263 = vmatmul.mubr.bf16.gmra.mrb[0].mxu0 %v2847
  %v3264 = vpop.f32.mrb[0].mxu0
  %v3265 = vadd.f32 %v2820, %v3264
  %v3266 = vpop.f32.mrb[0].mxu0
  %v3267 = vpop.f32.mrb[0].mxu0
  %v3268 = vadd.f32 %v2820, %v3267
  %v3269 = vpop.f32.mrb[0].mxu0
  %3270 = vmatprep.mubr.bf16.mxu0 0
  %3271 = vmatmul.mubr.bf16.gmra.mrb[0].mxu0 %v2850
  %v3272 = vpop.f32.mrb[0].mxu0
  %v3273 = vadd.f32 %v2820, %v3272
  %v3274 = vpop.f32.mrb[0].mxu0
  %v3275 = vpop.f32.mrb[0].mxu0
  %v3276 = vadd.f32 %v2820, %v3275
  %v3277 = vpop.f32.mrb[0].mxu0
  %3278 = vmatprep.mubr.bf16.mxu0 0
  %3279 = vmatmul.mubr.bf16.gmra.mrb[0].mxu0 %v2853
  %v3280 = vpop.f32.mrb[0].mxu0
  %v3281 = vadd.f32 %v2820, %v3280
  %v3282 = vpop.f32.mrb[0].mxu0
  %v3283 = vpop.f32.mrb[0].mxu0
  %v3284 = vadd.f32 %v2820, %v3283
  %v3285 = vpop.f32.mrb[0].mxu0
  %3286 = vmatprep.mubr.bf16.mxu0 0
  %3287 = vmatmul.mubr.bf16.gmra.mrb[0].mxu0 %v2856
  %v3288 = vpop.f32.mrb[0].mxu0
  %v3289 = vadd.f32 %v2820, %v3288
  %v3290 = vpop.f32.mrb[0].mxu0
  %v3291 = vpop.f32.mrb[0].mxu0
  %v3292 = vadd.f32 %v2820, %v3291
  %v3293 = vpop.f32.mrb[0].mxu0
  %3294 = vmatprep.mubr.bf16.mxu0 0
  %3295 = vmatmul.mubr.bf16.gmra.mrb[0].mxu0 %v2859
  %v3296 = vpop.f32.mrb[0].mxu0
  %v3297 = vadd.f32 %v2820, %v3296
  %v3298 = vpop.f32.mrb[0].mxu0
  %v3299 = vpop.f32.mrb[0].mxu0
  %v3300 = vadd.f32 %v2820, %v3299
  %v3301 = vpop.f32.mrb[0].mxu0
  %3302 = vmatprep.mubr.bf16.mxu0 0
  %3303 = vmatmul.mubr.bf16.gmra.mrb[0].mxu0 %v2862
  %v3304 = vpop.f32.mrb[0].mxu0
  %v3305 = vadd.f32 %v2820, %v3304
  %v3306 = vpop.f32.mrb[0].mxu0
  %v3307 = vpop.f32.mrb[0].mxu0
  %v3308 = vadd.f32 %v2820, %v3307
  %v3309 = vpop.f32.mrb[0].mxu0
  %3310 = vmatprep.mubr.bf16.mxu0 0
  %3311 = vmatmul.mubr.bf16.gmra.mrb[0].mxu0 %v2865
  %v3312 = vpop.f32.mrb[0].mxu0
  %v3313 = vadd.f32 %v2820, %v3312
  %v3314 = vpop.f32.mrb[0].mxu0
  %v3315 = vpop.f32.mrb[0].mxu0
  %v3316 = vadd.f32 %v2820, %v3315
  %v3317 = vpop.f32.mrb[0].mxu0
  %3318 = vmatprep.mubr.bf16.mxu0 0
  %3319 = vmatmul.mubr.bf16.gmra.mrb[0].mxu0 %v2868
  %v3320 = vpop.f32.mrb[0].mxu0
  %v3321 = vadd.f32 %v2820, %v3320
  %v3322 = vpop.f32.mrb[0].mxu0
  %v3323 = vpop.f32.mrb[0].mxu0
  %v3324 = vadd.f32 %v2820, %v3323
  %v3325 = vpop.f32.mrb[0].mxu0
  %3326 = vmatprep.mubr.bf16.mxu0 0
  %3327 = vmatmul.mubr.bf16.gmra.mrb[0].mxu0 %v2871
  %v3328 = vpop.f32.mrb[0].mxu0
  %v3329 = vadd.f32 %v2820, %v3328
  %v3330 = vpop.f32.mrb[0].mxu0
  %v3331 = vpop.f32.mrb[0].mxu0
  %v3332 = vadd.f32 %v2820, %v3331
  %v3333 = vpop.f32.mrb[0].mxu0
  %3334 = vmatprep.mubr.bf16.mxu0 0
  %3335 = vmatmul.mubr.bf16.gmra.mrb[0].mxu0 %v2874
  %v3336 = vpop.f32.mrb[0].mxu0
  %v3337 = vadd.f32 %v2820, %v3336
  %v3338 = vpop.f32.mrb[0].mxu0
  %v3339 = vpop.f32.mrb[0].mxu0
  %v3340 = vadd.f32 %v2820, %v3339
  %v3341 = vpop.f32.mrb[0].mxu0
  %3342 = vmatprep.mubr.bf16.mxu0 0
  %3343 = vmatmul.mubr.bf16.gmra.mrb[0].mxu0 %v2877
  %v3344 = vpop.f32.mrb[0].mxu0
  %v3345 = vadd.f32 %v2820, %v3344
  %v3346 = vpop.f32.mrb[0].mxu0
  %v3347 = vpop.f32.mrb[0].mxu0
  %v3348 = vadd.f32 %v2820, %v3347
  %v3349 = vpop.f32.mrb[0].mxu0
  %3350 = vmatprep.mubr.bf16.mxu0 0
  %3351 = vmatmul.mubr.bf16.gmra.mrb[0].mxu0 %v2880
  %v3352 = vpop.f32.mrb[0].mxu0
  %v3353 = vadd.f32 %v2820, %v3352
  %v3354 = vpop.f32.mrb[0].mxu0
  %v3355 = vpop.f32.mrb[0].mxu0
  %v3356 = vadd.f32 %v2820, %v3355
  %v3357 = vpop.f32.mrb[0].mxu0
  %3358 = vmatprep.mubr.bf16.mxu0 0
  %3359 = vmatmul.mubr.bf16.gmra.mrb[0].mxu0 %v2883
  %v3360 = vpop.f32.mrb[0].mxu0
  %v3361 = vadd.f32 %v2820, %v3360
  %v3362 = vpop.f32.mrb[0].mxu0
  %v3363 = vpop.f32.mrb[0].mxu0
  %v3364 = vadd.f32 %v2820, %v3363
  %v3365 = vpop.f32.mrb[0].mxu0
  %3366 = vmatprep.mubr.bf16.mxu0 0
  %3367 = vmatmul.mubr.bf16.gmra.mrb[0].mxu0 %v2886
  %v3368 = vpop.f32.mrb[0].mxu0
  %v3369 = vadd.f32 %v2820, %v3368
  %v3370 = vpop.f32.mrb[0].mxu0
  %v3371 = vpop.f32.mrb[0].mxu0
  %v3372 = vadd.f32 %v2820, %v3371
  %v3373 = vpop.f32.mrb[0].mxu0
  %3374 = vmatprep.mubr.bf16.mxu0 0
  %3375 = vmatmul.mubr.bf16.gmra.mrb[0].mxu0 %v2889
  %v3376 = vpop.f32.mrb[0].mxu0
  %v3377 = vadd.f32 %v2820, %v3376
  %v3378 = vpop.f32.mrb[0].mxu0
  %v3379 = vpop.f32.mrb[0].mxu0
  %v3380 = vadd.f32 %v2820, %v3379
  %v3381 = vpop.f32.mrb[0].mxu0
  %3382 = vmatprep.mubr.bf16.mxu0 0
  %3383 = vmatmul.mubr.bf16.gmra.mrb[0].mxu0 %v2892
  %v3384 = vpop.f32.mrb[0].mxu0
  %v3385 = vadd.f32 %v2820, %v3384
  %v3386 = vpop.f32.mrb[0].mxu0
  %v3387 = vpop.f32.mrb[0].mxu0
  %v3388 = vadd.f32 %v2820, %v3387
  %v3389 = vpop.f32.mrb[0].mxu0
  %3390 = vmatprep.mubr.bf16.mxu0 0
  %3391 = vmatmul.mubr.bf16.gmra.mrb[0].mxu0 %v2895
  %v3392 = vpop.f32.mrb[0].mxu0
  %v3393 = vadd.f32 %v2820, %v3392
  %v3394 = vpop.f32.mrb[0].mxu0
  %v3395 = vpop.f32.mrb[0].mxu0
  %v3396 = vadd.f32 %v2820, %v3395
  %v3397 = vpop.f32.mrb[0].mxu0
  %3398 = vmatprep.mubr.bf16.mxu0 0
  %3399 = vmatmul.mubr.bf16.gmra.mrb[0].mxu0 %v2898
  %v3400 = vpop.f32.mrb[0].mxu0
  %v3401 = vadd.f32 %v2820, %v3400
  %v3402 = vpop.f32.mrb[0].mxu0
  %v3403 = vpop.f32.mrb[0].mxu0
  %v3404 = vadd.f32 %v2820, %v3403
  %v3405 = vpop.f32.mrb[0].mxu0
  %3406 = vmatprep.mubr.bf16.mxu0 0
  %3407 = vmatmul.mubr.bf16.gmra.mrb[0].mxu0 %v2901
  %v3408 = vpop.f32.mrb[0].mxu0
  %v3409 = vadd.f32 %v2820, %v3408
  %v3410 = vpop.f32.mrb[0].mxu0
  %v3411 = vpop.f32.mrb[0].mxu0
  %v3412 = vadd.f32 %v2820, %v3411
  %v3413 = vpop.f32.mrb[0].mxu0
  %3414 = vmatprep.mubr.bf16.mxu0 0
  %3415 = vmatmul.mubr.bf16.gmra.mrb[0].mxu0 %v2904
  %v3416 = vpop.f32.mrb[0].mxu0
  %v3417 = vadd.f32 %v2820, %v3416
  %v3418 = vpop.f32.mrb[0].mxu0
  %v3419 = vpop.f32.mrb[0].mxu0
  %v3420 = vadd.f32 %v2820, %v3419
  %v3421 = vpop.f32.mrb[0].mxu0
  %3422 = vmatprep.mubr.bf16.mxu0 0
  %3423 = vmatmul.mubr.bf16.gmra.mrb[0].mxu0 %v2907
  %v3424 = vpop.f32.mrb[0].mxu0
  %v3425 = vadd.f32 %v2820, %v3424
  %v3426 = vpop.f32.mrb[0].mxu0
  %v3427 = vpop.f32.mrb[0].mxu0
  %v3428 = vadd.f32 %v2820, %v3427
  %v3429 = vpop.f32.mrb[0].mxu0
  %3430 = vmatprep.mubr.bf16.mxu0 0
  %3431 = vmatmul.mubr.bf16.gmra.mrb[0].mxu0 %v2910
  %v3432 = vpop.f32.mrb[0].mxu0
  %v3433 = vadd.f32 %v2820, %v3432
  %v3434 = vpop.f32.mrb[0].mxu0
  %v3435 = vpop.f32.mrb[0].mxu0
  %v3436 = vadd.f32 %v2820, %v3435
  %v3437 = vpop.f32.mrb[0].mxu0
  %3438 = vmatprep.mubr.bf16.mxu0 0
  %3439 = vmatmul.mubr.bf16.gmra.mrb[0].mxu0 %v2913
  %v3440 = vpop.f32.mrb[0].mxu0
  %v3441 = vadd.f32 %v2820, %v3440
  %v3442 = vpop.f32.mrb[0].mxu0
  %v3443 = vpop.f32.mrb[0].mxu0
  %v3444 = vadd.f32 %v2820, %v3443
  %v3445 = vpop.f32.mrb[0].mxu0
  %3446 = vmatprep.mubr.bf16.mxu0 0
  %3447 = vmatmul.mubr.bf16.gmra.mrb[0].mxu0 %v2916
  %v3448 = vpop.f32.mrb[0].mxu0
  %v3449 = vadd.f32 %v2820, %v3448
  %v3450 = vpop.f32.mrb[0].mxu0
  %v3451 = vpop.f32.mrb[0].mxu0
  %v3452 = vadd.f32 %v2820, %v3451
  %v3453 = vpop.f32.mrb[0].mxu0
  %3454 = vmatprep.mubr.bf16.mxu0 0
  %3455 = vmatmul.mubr.bf16.gmra.mrb[0].mxu0 %v2919
  %v3456 = vpop.f32.mrb[0].mxu0
  %v3457 = vadd.f32 %v2820, %v3456
  %v3458 = vpop.f32.mrb[0].mxu0
  %v3459 = vpop.f32.mrb[0].mxu0
  %v3460 = vadd.f32 %v2820, %v3459
  %v3461 = vpop.f32.mrb[0].mxu0
  %3462 = vmatprep.mubr.bf16.mxu0 0
  %3463 = vmatmul.mubr.bf16.gmra.mrb[0].mxu0 %v2922
  %v3464 = vpop.f32.mrb[0].mxu0
  %v3465 = vadd.f32 %v2820, %v3464
  %v3466 = vpop.f32.mrb[0].mxu0
  %v3467 = vpop.f32.mrb[0].mxu0
  %v3468 = vadd.f32 %v2820, %v3467
  %v3469 = vpop.f32.mrb[0].mxu0
  %3470 = vmatprep.mubr.bf16.mxu0 0
  %3471 = vmatmul.mubr.bf16.gmra.mrb[0].mxu0 %v2925
  %v3472 = vpop.f32.mrb[0].mxu0
  %v3473 = vadd.f32 %v2820, %v3472
  %v3474 = vpop.f32.mrb[0].mxu0
  %v3475 = vpop.f32.mrb[0].mxu0
  %v3476 = vadd.f32 %v2820, %v3475
  %v3477 = vpop.f32.mrb[0].mxu0
  %3478 = vmatprep.mubr.bf16.mxu0 0
  %3479 = vmatmul.mubr.bf16.gmra.mrb[0].mxu0 %v2928
  %v3480 = vpop.f32.mrb[0].mxu0
  %v3481 = vadd.f32 %v2820, %v3480
  %v3482 = vpop.f32.mrb[0].mxu0
  %v3483 = vpop.f32.mrb[0].mxu0
  %v3484 = vadd.f32 %v2820, %v3483
  %v3485 = vpop.f32.mrb[0].mxu0
  %3486 = vmatprep.mubr.bf16.mxu0 0
  %3487 = vmatmul.mubr.bf16.gmra.mrb[0].mxu0 %v2931
  %v3488 = vpop.f32.mrb[0].mxu0
  %v3489 = vadd.f32 %v2820, %v3488
  %v3490 = vpop.f32.mrb[0].mxu0
  %v3491 = vpop.f32.mrb[0].mxu0
  %v3492 = vadd.f32 %v2820, %v3491
  %v3493 = vpop.f32.mrb[0].mxu0
  %3494 = vmatprep.mubr.bf16.mxu0 0
  %3495 = vmatmul.mubr.bf16.gmra.mrb[0].mxu0 %v2934
  %v3496 = vpop.f32.mrb[0].mxu0
  %v3497 = vadd.f32 %v2820, %v3496
  %v3498 = vpop.f32.mrb[0].mxu0
  %v3499 = vpop.f32.mrb[0].mxu0
  %v3500 = vadd.f32 %v2820, %v3499
  %v3501 = vpop.f32.mrb[0].mxu0
  %3502 = vmatprep.mubr.bf16.mxu0 0
  %3503 = vmatmul.mubr.bf16.gmra.mrb[0].mxu0 %v2937
  %v3504 = vpop.f32.mrb[0].mxu0
  %v3505 = vadd.f32 %v2820, %v3504
  %v3506 = vpop.f32.mrb[0].mxu0
  %v3507 = vpop.f32.mrb[0].mxu0
  %v3508 = vadd.f32 %v2820, %v3507
  %v3509 = vpop.f32.mrb[0].mxu0
  %3510 = vmatprep.mubr.bf16.mxu0 0
  %3511 = vmatmul.mubr.bf16.gmra.mrb[0].mxu0 %v2940
  %v3512 = vpop.f32.mrb[0].mxu0
  %v3513 = vadd.f32 %v2820, %v3512
  %v3514 = vpop.f32.mrb[0].mxu0
  %v3515 = vpop.f32.mrb[0].mxu0
  %v3516 = vadd.f32 %v2820, %v3515
  %v3517 = vpop.f32.mrb[0].mxu0
  %3518 = vmatprep.mubr.bf16.mxu0 0
  %3519 = vmatmul.mubr.bf16.gmra.mrb[0].mxu0 %v2943
  %v3520 = vpop.f32.mrb[0].mxu0
  %v3521 = vadd.f32 %v2820, %v3520
  %v3522 = vpop.f32.mrb[0].mxu0
  %v3523 = vpop.f32.mrb[0].mxu0
  %v3524 = vadd.f32 %v2820, %v3523
  %v3525 = vpop.f32.mrb[0].mxu0
  %3526 = vmatprep.mubr.bf16.mxu0 0
  %3527 = vmatmul.mubr.bf16.gmra.mrb[0].mxu0 %v2946
  %v3528 = vpop.f32.mrb[0].mxu0
  %v3529 = vadd.f32 %v2820, %v3528
  %v3530 = vpop.f32.mrb[0].mxu0
  %v3531 = vpop.f32.mrb[0].mxu0
  %v3532 = vadd.f32 %v2820, %v3531
  %v3533 = vpop.f32.mrb[0].mxu0
  %3534 = vmatprep.mubr.bf16.mxu0 0
  %3535 = vmatmul.mubr.bf16.gmra.mrb[0].mxu0 %v2949
  %v3536 = vpop.f32.mrb[0].mxu0
  %v3537 = vadd.f32 %v2820, %v3536
  %v3538 = vpop.f32.mrb[0].mxu0
  %v3539 = vpop.f32.mrb[0].mxu0
  %v3540 = vadd.f32 %v2820, %v3539
  %v3541 = vpop.f32.mrb[0].mxu0
  %3542 = vmatprep.mubr.bf16.mxu0 0
  %3543 = vmatmul.mubr.bf16.gmra.mrb[0].mxu0 %v2952
  %v3544 = vpop.f32.mrb[0].mxu0
  %v3545 = vadd.f32 %v2820, %v3544
  %v3546 = vpop.f32.mrb[0].mxu0
  %v3547 = vpop.f32.mrb[0].mxu0
  %v3548 = vadd.f32 %v2820, %v3547
  %v3549 = vpop.f32.mrb[0].mxu0
  %3550 = vmatprep.mubr.bf16.mxu0 0
  %3551 = vmatmul.mubr.bf16.gmra.mrb[0].mxu0 %v2955
  %v3552 = vpop.f32.mrb[0].mxu0
  %v3553 = vadd.f32 %v2820, %v3552
  %v3554 = vpop.f32.mrb[0].mxu0
  %v3555 = vpop.f32.mrb[0].mxu0
  %v3556 = vadd.f32 %v2820, %v3555
  %v3557 = vpop.f32.mrb[0].mxu0
  %3558 = vmatprep.mubr.bf16.mxu0 0
  %3559 = vmatmul.mubr.bf16.gmra.mrb[0].mxu0 %v2958
  %v3560 = vpop.f32.mrb[0].mxu0
  %v3561 = vadd.f32 %v2820, %v3560
  %v3562 = vpop.f32.mrb[0].mxu0
  %v3563 = vpop.f32.mrb[0].mxu0
  %v3564 = vadd.f32 %v2820, %v3563
  %v3565 = vpop.f32.mrb[0].mxu0
  %3566 = vmatprep.mubr.bf16.mxu0 0
  %3567 = vmatmul.mubr.bf16.gmra.mrb[0].mxu0 %v2961
  %v3568 = vpop.f32.mrb[0].mxu0
  %v3569 = vadd.f32 %v2820, %v3568
  %v3570 = vpop.f32.mrb[0].mxu0
  %v3571 = vpop.f32.mrb[0].mxu0
  %v3572 = vadd.f32 %v2820, %v3571
  %v3573 = vpop.f32.mrb[0].mxu0
  %3574 = vmatprep.mubr.bf16.mxu0 0
  %3575 = vmatmul.mubr.bf16.gmra.mrb[0].mxu0 %v2964
  %v3576 = vpop.f32.mrb[0].mxu0
  %v3577 = vadd.f32 %v2820, %v3576
  %v3578 = vpop.f32.mrb[0].mxu0
  %v3579 = vpop.f32.mrb[0].mxu0
  %v3580 = vadd.f32 %v2820, %v3579
  %v3581 = vpop.f32.mrb[0].mxu0
  %3582 = vmatprep.mubr.bf16.mxu0 0
  %3583 = vmatmul.mubr.bf16.gmra.mrb[0].mxu0 %v2967
  %v3584 = vpop.f32.mrb[0].mxu0
  %v3585 = vadd.f32 %v2820, %v3584
  %v3586 = vpop.f32.mrb[0].mxu0
  %v3587 = vpop.f32.mrb[0].mxu0
  %v3588 = vadd.f32 %v2820, %v3587
  %v3589 = vpop.f32.mrb[0].mxu0
  %3590 = vmatprep.mubr.bf16.mxu0 0
  %3591 = vmatmul.mubr.bf16.gmra.mrb[0].mxu0 %v2970
  %v3592 = vpop.f32.mrb[0].mxu0
  %v3593 = vadd.f32 %v2820, %v3592
  %v3594 = vpop.f32.mrb[0].mxu0
  %v3595 = vpop.f32.mrb[0].mxu0
  %v3596 = vadd.f32 %v2820, %v3595
  %v3597 = vpop.f32.mrb[0].mxu0
  %3598 = vmatprep.mubr.bf16.mxu0 0
  %3599 = vmatmul.mubr.bf16.gmra.mrb[0].mxu0 %v2973
  %v3600 = vpop.f32.mrb[0].mxu0
  %v3601 = vadd.f32 %v2820, %v3600
  %v3602 = vpop.f32.mrb[0].mxu0
  %v3603 = vpop.f32.mrb[0].mxu0
  %v3604 = vadd.f32 %v2820, %v3603
  %v3605 = vpop.f32.mrb[0].mxu0
  %3606 = vmatprep.mubr.bf16.mxu0 0
  %3607 = vmatmul.mubr.bf16.gmra.mrb[0].mxu0 %v2976
  %v3608 = vpop.f32.mrb[0].mxu0
  %v3609 = vadd.f32 %v2820, %v3608
  %v3610 = vpop.f32.mrb[0].mxu0
  %v3611 = vpop.f32.mrb[0].mxu0
  %v3612 = vadd.f32 %v2820, %v3611
  %v3613 = vpop.f32.mrb[0].mxu0
  %3614 = vmatprep.mubr.bf16.mxu0 0
  %3615 = vmatmul.mubr.bf16.gmra.mrb[0].mxu0 %v2979
  %v3616 = vpop.f32.mrb[0].mxu0
  %v3617 = vadd.f32 %v2820, %v3616
  %v3618 = vpop.f32.mrb[0].mxu0
  %v3619 = vpop.f32.mrb[0].mxu0
  %v3620 = vadd.f32 %v2820, %v3619
  %v3621 = vpop.f32.mrb[0].mxu0
  %3622 = vmatprep.mubr.bf16.mxu0 0
  %3623 = vmatmul.mubr.bf16.gmra.mrb[0].mxu0 %v2982
  %v3624 = vpop.f32.mrb[0].mxu0
  %v3625 = vadd.f32 %v2820, %v3624
  %v3626 = vpop.f32.mrb[0].mxu0
  %v3627 = vpop.f32.mrb[0].mxu0
  %v3628 = vadd.f32 %v2820, %v3627
  %v3629 = vpop.f32.mrb[0].mxu0
  %3630 = vmatprep.mubr.bf16.mxu0 0
  %3631 = vmatmul.mubr.bf16.gmra.mrb[0].mxu0 %v2985
  %v3632 = vpop.f32.mrb[0].mxu0
  %v3633 = vadd.f32 %v2820, %v3632
  %v3634 = vpop.f32.mrb[0].mxu0
  %v3635 = vpop.f32.mrb[0].mxu0
  %v3636 = vadd.f32 %v2820, %v3635
  %v3637 = vpop.f32.mrb[0].mxu0
  %3638 = vmatprep.mubr.bf16.mxu0 0
  %3639 = vmatmul.mubr.bf16.gmra.mrb[0].mxu0 %v2988
  %v3640 = vpop.f32.mrb[0].mxu0
  %v3641 = vadd.f32 %v2820, %v3640
  %v3642 = vpop.f32.mrb[0].mxu0
  %v3643 = vpop.f32.mrb[0].mxu0
  %v3644 = vadd.f32 %v2820, %v3643
  %v3645 = vpop.f32.mrb[0].mxu0
  %3646 = vmatprep.mubr.bf16.mxu0 0
  %3647 = vmatmul.mubr.bf16.gmra.mrb[0].mxu0 %v2991
  %v3648 = vpop.f32.mrb[0].mxu0
  %v3649 = vadd.f32 %v2820, %v3648
  %v3650 = vpop.f32.mrb[0].mxu0
  %v3651 = vpop.f32.mrb[0].mxu0
  %v3652 = vadd.f32 %v2820, %v3651
  %v3653 = vpop.f32.mrb[0].mxu0
  %3654 = vmatprep.mubr.bf16.mxu0 0
  %3655 = vmatmul.mubr.bf16.gmra.mrb[0].mxu0 %v2994
  %v3656 = vpop.f32.mrb[0].mxu0
  %v3657 = vadd.f32 %v2820, %v3656
  %v3658 = vpop.f32.mrb[0].mxu0
  %v3659 = vpop.f32.mrb[0].mxu0
  %v3660 = vadd.f32 %v2820, %v3659
  %v3661 = vpop.f32.mrb[0].mxu0
  %3662 = vmatprep.mubr.bf16.mxu0 0
  %3663 = vmatmul.mubr.bf16.gmra.mrb[0].mxu0 %v2997
  %v3664 = vpop.f32.mrb[0].mxu0
  %v3665 = vadd.f32 %v2820, %v3664
  %v3666 = vpop.f32.mrb[0].mxu0
  %v3667 = vpop.f32.mrb[0].mxu0
  %v3668 = vadd.f32 %v2820, %v3667
  %v3669 = vpop.f32.mrb[0].mxu0
  %3670 = vmatprep.mubr.bf16.mxu0 0
  %3671 = vmatmul.mubr.bf16.gmra.mrb[0].mxu0 %v3000
  %v3672 = vpop.f32.mrb[0].mxu0
  %v3673 = vadd.f32 %v2820, %v3672
  %v3674 = vpop.f32.mrb[0].mxu0
  %v3675 = vpop.f32.mrb[0].mxu0
  %v3676 = vadd.f32 %v2820, %v3675
  %v3677 = vpop.f32.mrb[0].mxu0
  %3678 = vmatprep.mubr.bf16.mxu0 0
  %3679 = vmatmul.mubr.bf16.gmra.mrb[0].mxu0 %v3003
  %v3680 = vpop.f32.mrb[0].mxu0
  %v3681 = vadd.f32 %v2820, %v3680
  %v3682 = vpop.f32.mrb[0].mxu0
  %v3683 = vpop.f32.mrb[0].mxu0
  %v3684 = vadd.f32 %v2820, %v3683
  %v3685 = vpop.f32.mrb[0].mxu0
  %3686 = vmatprep.mubr.bf16.mxu0 0
  %3687 = vmatmul.mubr.bf16.gmra.mrb[0].mxu0 %v3006
  %v3688 = vpop.f32.mrb[0].mxu0
  %v3689 = vadd.f32 %v2820, %v3688
  %v3690 = vpop.f32.mrb[0].mxu0
  %v3691 = vpop.f32.mrb[0].mxu0
  %v3692 = vadd.f32 %v2820, %v3691
  %v3693 = vpop.f32.mrb[0].mxu0
  %3694 = vmatprep.mubr.bf16.mxu0 0
  %3695 = vmatmul.mubr.bf16.gmra.mrb[0].mxu0 %v3009
  %v3696 = vpop.f32.mrb[0].mxu0
  %v3697 = vadd.f32 %v2820, %v3696
  %v3698 = vpop.f32.mrb[0].mxu0
  %v3699 = vpop.f32.mrb[0].mxu0
  %v3700 = vadd.f32 %v2820, %v3699
  %v3701 = vpop.f32.mrb[0].mxu0
  %3702 = vmatprep.mubr.bf16.mxu0 0
  %3703 = vmatmul.mubr.bf16.gmra.mrb[0].mxu0 %v3012
  %v3704 = vpop.f32.mrb[0].mxu0
  %v3705 = vadd.f32 %v2820, %v3704
  %v3706 = vpop.f32.mrb[0].mxu0
  %v3707 = vpop.f32.mrb[0].mxu0
  %v3708 = vadd.f32 %v2820, %v3707
  %v3709 = vpop.f32.mrb[0].mxu0
  %3710 = vmatprep.mubr.bf16.mxu0 0
  %3711 = vmatmul.mubr.bf16.gmra.mrb[0].mxu0 %v3015
  %v3712 = vpop.f32.mrb[0].mxu0
  %v3713 = vadd.f32 %v2820, %v3712
  %v3714 = vpop.f32.mrb[0].mxu0
  %v3715 = vpop.f32.mrb[0].mxu0
  %v3716 = vadd.f32 %v2820, %v3715
  %v3717 = vpop.f32.mrb[0].mxu0
  %3718 = vmatprep.mubr.bf16.mxu0 0
  %3719 = vmatmul.mubr.bf16.gmra.mrb[0].mxu0 %v3018
  %v3720 = vpop.f32.mrb[0].mxu0
  %v3721 = vadd.f32 %v2820, %v3720
  %v3722 = vpop.f32.mrb[0].mxu0
  %v3723 = vpop.f32.mrb[0].mxu0
  %v3724 = vadd.f32 %v2820, %v3723
  %v3725 = vpop.f32.mrb[0].mxu0
  %3726 = vmatprep.mubr.bf16.mxu0 0
  %3727 = vmatmul.mubr.bf16.gmra.mrb[0].mxu0 %v3021
  %v3728 = vpop.f32.mrb[0].mxu0
  %v3729 = vadd.f32 %v2820, %v3728
  %v3730 = vpop.f32.mrb[0].mxu0
  %v3731 = vpop.f32.mrb[0].mxu0
  %v3732 = vadd.f32 %v2820, %v3731
  %v3733 = vpop.f32.mrb[0].mxu0
  %3734 = vmatprep.mubr.bf16.mxu0 0
  %3735 = vmatmul.mubr.bf16.gmra.mrb[0].mxu0 %v3024
  %v3736 = vpop.f32.mrb[0].mxu0
  %v3737 = vadd.f32 %v2820, %v3736
  %v3738 = vpop.f32.mrb[0].mxu0
  %v3739 = vpop.f32.mrb[0].mxu0
  %v3740 = vadd.f32 %v2820, %v3739
  %v3741 = vpop.f32.mrb[0].mxu0
  %3742 = vmatprep.mubr.bf16.mxu0 0
  %3743 = vmatmul.mubr.bf16.gmra.mrb[0].mxu0 %v3027
  %v3744 = vpop.f32.mrb[0].mxu0
  %v3745 = vadd.f32 %v2820, %v3744
  %v3746 = vpop.f32.mrb[0].mxu0
  %v3747 = vpop.f32.mrb[0].mxu0
  %v3748 = vadd.f32 %v2820, %v3747
  %v3749 = vpop.f32.mrb[0].mxu0
  %3750 = vmatprep.mubr.bf16.mxu0 0
  %3751 = vmatmul.mubr.bf16.gmra.mrb[0].mxu0 %v3030
  %v3752 = vpop.f32.mrb[0].mxu0
  %v3753 = vadd.f32 %v2820, %v3752
  %v3754 = vpop.f32.mrb[0].mxu0
  %v3755 = vpop.f32.mrb[0].mxu0
  %v3756 = vadd.f32 %v2820, %v3755
  %v3757 = vpop.f32.mrb[0].mxu0
  %3758 = vmatprep.mubr.bf16.mxu0 0
  %3759 = vmatmul.mubr.bf16.gmra.mrb[0].mxu0 %v3033
  %v3760 = vpop.f32.mrb[0].mxu0
  %v3761 = vadd.f32 %v2820, %v3760
  %v3762 = vpop.f32.mrb[0].mxu0
  %v3763 = vpop.f32.mrb[0].mxu0
  %v3764 = vadd.f32 %v2820, %v3763
  %v3765 = vpop.f32.mrb[0].mxu0
  %3766 = vmatprep.mubr.bf16.mxu0 0
  %3767 = vmatmul.mubr.bf16.gmra.mrb[0].mxu0 %v3036
  %v3768 = vpop.f32.mrb[0].mxu0
  %v3769 = vadd.f32 %v2820, %v3768
  %v3770 = vpop.f32.mrb[0].mxu0
  %v3771 = vpop.f32.mrb[0].mxu0
  %v3772 = vadd.f32 %v2820, %v3771
  %v3773 = vpop.f32.mrb[0].mxu0
  %3774 = vmatprep.mubr.bf16.mxu0 0
  %3775 = vmatmul.mubr.bf16.gmra.mrb[0].mxu0 %v3039
  %v3776 = vpop.f32.mrb[0].mxu0
  %v3777 = vadd.f32 %v2820, %v3776
  %v3778 = vpop.f32.mrb[0].mxu0
  %v3779 = vpop.f32.mrb[0].mxu0
  %v3780 = vadd.f32 %v2820, %v3779
  %v3781 = vpop.f32.mrb[0].mxu0
  %3782 = vmatprep.mubr.bf16.mxu0 0
  %3783 = vmatmul.mubr.bf16.gmra.mrb[0].mxu0 %v3042
  %v3784 = vpop.f32.mrb[0].mxu0
  %v3785 = vadd.f32 %v2820, %v3784
  %v3786 = vpop.f32.mrb[0].mxu0
  %v3787 = vpop.f32.mrb[0].mxu0
  %v3788 = vadd.f32 %v2820, %v3787
  %v3789 = vpop.f32.mrb[0].mxu0
  %3790 = vmatprep.mubr.bf16.mxu0 0
  %3791 = vmatmul.mubr.bf16.gmra.mrb[0].mxu0 %v3045
  %v3792 = vpop.f32.mrb[0].mxu0
  %v3793 = vadd.f32 %v2820, %v3792
  %v3794 = vpop.f32.mrb[0].mxu0
  %v3795 = vpop.f32.mrb[0].mxu0
  %v3796 = vadd.f32 %v2820, %v3795
  %v3797 = vpop.f32.mrb[0].mxu0
  %3798 = vmatprep.mubr.bf16.mxu0 0
  %3799 = vmatmul.mubr.bf16.gmra.mrb[0].mxu0 %v3048
  %v3800 = vpop.f32.mrb[0].mxu0
  %v3801 = vadd.f32 %v2820, %v3800
  %v3802 = vpop.f32.mrb[0].mxu0
  %v3803 = vpop.f32.mrb[0].mxu0
  %v3804 = vadd.f32 %v2820, %v3803
  %v3805 = vpop.f32.mrb[0].mxu0
  %3806 = vmatprep.mubr.bf16.mxu0 0
  %3807 = vmatmul.mubr.bf16.gmra.mrb[0].mxu0 %v3051
  %v3808 = vpop.f32.mrb[0].mxu0
  %v3809 = vadd.f32 %v2820, %v3808
  %v3810 = vpop.f32.mrb[0].mxu0
  %v3811 = vpop.f32.mrb[0].mxu0
  %v3812 = vadd.f32 %v2820, %v3811
  %v3813 = vpop.f32.mrb[0].mxu0
  %3814 = vmatprep.mubr.bf16.mxu0 0
  %3815 = vmatmul.mubr.bf16.gmra.mrb[0].mxu0 %v3054
  %v3816 = vpop.f32.mrb[0].mxu0
  %v3817 = vadd.f32 %v2820, %v3816
  %v3818 = vpop.f32.mrb[0].mxu0
  %v3819 = vpop.f32.mrb[0].mxu0
  %v3820 = vadd.f32 %v2820, %v3819
  %v3821 = vpop.f32.mrb[0].mxu0
  %3822 = vmatprep.mubr.bf16.mxu0 0
  %3823 = vmatmul.mubr.bf16.gmra.mrb[0].mxu0 %v3057
  %v3824 = vpop.f32.mrb[0].mxu0
  %v3825 = vadd.f32 %v2820, %v3824
  %v3826 = vpop.f32.mrb[0].mxu0
  %v3827 = vpop.f32.mrb[0].mxu0
  %v3828 = vadd.f32 %v2820, %v3827
  %v3829 = vpop.f32.mrb[0].mxu0
  %3830 = vmatprep.mubr.bf16.mxu0 0
  %3831 = vmatmul.mubr.bf16.gmra.mrb[0].mxu0 %v3060
  %v3832 = vpop.f32.mrb[0].mxu0
  %v3833 = vadd.f32 %v2820, %v3832
  %v3834 = vpop.f32.mrb[0].mxu0
  %v3835 = vpop.f32.mrb[0].mxu0
  %v3836 = vadd.f32 %v2820, %v3835
  %v3837 = vpop.f32.mrb[0].mxu0
  %3838 = vmatprep.mubr.bf16.mxu0 0
  %3839 = vmatmul.mubr.bf16.gmra.mrb[0].mxu0 %v3063
  %v3840 = vpop.f32.mrb[0].mxu0
  %v3841 = vadd.f32 %v2820, %v3840
  %v3842 = vpop.f32.mrb[0].mxu0
  %v3843 = vpop.f32.mrb[0].mxu0
  %v3844 = vadd.f32 %v2820, %v3843
  %v3845 = vpop.f32.mrb[0].mxu0
  %3846 = vmatprep.mubr.bf16.mxu0 0
  %3847 = vmatmul.mubr.bf16.gmra.mrb[0].mxu0 %v3066
  %v3848 = vpop.f32.mrb[0].mxu0
  %v3849 = vadd.f32 %v2820, %v3848
  %v3850 = vpop.f32.mrb[0].mxu0
  %v3851 = vpop.f32.mrb[0].mxu0
  %v3852 = vadd.f32 %v2820, %v3851
  %v3853 = vpop.f32.mrb[0].mxu0
  %3854 = vmatprep.mubr.bf16.mxu0 0
  %3855 = vmatmul.mubr.bf16.gmra.mrb[0].mxu0 %v3069
  %v3856 = vpop.f32.mrb[0].mxu0
  %v3857 = vadd.f32 %v2820, %v3856
  %v3858 = vpop.f32.mrb[0].mxu0
  %v3859 = vpop.f32.mrb[0].mxu0
  %v3860 = vadd.f32 %v2820, %v3859
  %v3861 = vpop.f32.mrb[0].mxu0
  %3862 = vmatprep.mubr.bf16.mxu0 0
  %3863 = vmatmul.mubr.bf16.gmra.mrb[0].mxu0 %v3072
  %v3864 = vpop.f32.mrb[0].mxu0
  %v3865 = vadd.f32 %v2820, %v3864
  %v3866 = vpop.f32.mrb[0].mxu0
  %v3867 = vpop.f32.mrb[0].mxu0
  %v3868 = vadd.f32 %v2820, %v3867
  %v3869 = vpop.f32.mrb[0].mxu0
  %3870 = vmatprep.mubr.bf16.mxu0 0
  %3871 = vmatmul.mubr.bf16.gmra.mrb[0].mxu0 %v3075
  %v3872 = vpop.f32.mrb[0].mxu0
  %v3873 = vadd.f32 %v2820, %v3872
  %v3874 = vpop.f32.mrb[0].mxu0
  %v3875 = vpop.f32.mrb[0].mxu0
  %v3876 = vadd.f32 %v2820, %v3875
  %v3877 = vpop.f32.mrb[0].mxu0
  %3878 = vmatprep.mubr.bf16.mxu0 0
  %3879 = vmatmul.mubr.bf16.gmra.mrb[0].mxu0 %v3078
  %v3880 = vpop.f32.mrb[0].mxu0
  %v3881 = vadd.f32 %v2820, %v3880
  %v3882 = vpop.f32.mrb[0].mxu0
  %v3883 = vpop.f32.mrb[0].mxu0
  %v3884 = vadd.f32 %v2820, %v3883
  %v3885 = vpop.f32.mrb[0].mxu0
  %3886 = vmatprep.mubr.bf16.mxu0 0
  %3887 = vmatmul.mubr.bf16.gmra.mrb[0].mxu0 %v3081
  %v3888 = vpop.f32.mrb[0].mxu0
  %v3889 = vadd.f32 %v2820, %v3888
  %v3890 = vpop.f32.mrb[0].mxu0
  %v3891 = vpop.f32.mrb[0].mxu0
  %v3892 = vadd.f32 %v2820, %v3891
  %v3893 = vpop.f32.mrb[0].mxu0
  %3894 = vmatprep.mubr.bf16.mxu0 0
  %3895 = vmatmul.mubr.bf16.gmra.mrb[0].mxu0 %v3084
  %v3896 = vpop.f32.mrb[0].mxu0
  %v3897 = vadd.f32 %v2820, %v3896
  %v3898 = vpop.f32.mrb[0].mxu0
  %v3899 = vpop.f32.mrb[0].mxu0
  %v3900 = vadd.f32 %v2820, %v3899
  %v3901 = vpop.f32.mrb[0].mxu0
  %3902 = vmatprep.mubr.bf16.mxu0 0
  %3903 = vmatmul.mubr.bf16.gmra.mrb[0].mxu0 %v3087
  %v3904 = vpop.f32.mrb[0].mxu0
  %v3905 = vadd.f32 %v2820, %v3904
  %v3906 = vpop.f32.mrb[0].mxu0
  %v3907 = vpop.f32.mrb[0].mxu0
  %v3908 = vadd.f32 %v2820, %v3907
  %v3909 = vpop.f32.mrb[0].mxu0
  %3910 = vmatprep.mubr.bf16.mxu0 0
  %3911 = vmatmul.mubr.bf16.gmra.mrb[0].mxu0 %v3090
  %v3912 = vpop.f32.mrb[0].mxu0
  %v3913 = vadd.f32 %v2820, %v3912
  %v3914 = vpop.f32.mrb[0].mxu0
  %v3915 = vpop.f32.mrb[0].mxu0
  %v3916 = vadd.f32 %v2820, %v3915
  %v3917 = vpop.f32.mrb[0].mxu0
  %3918 = vmatprep.mubr.bf16.mxu0 0
  %3919 = vmatmul.mubr.bf16.gmra.mrb[0].mxu0 %v3093
  %v3920 = vpop.f32.mrb[0].mxu0
  %v3921 = vadd.f32 %v2820, %v3920
  %v3922 = vpop.f32.mrb[0].mxu0
  %v3923 = vpop.f32.mrb[0].mxu0
  %v3924 = vadd.f32 %v2820, %v3923
  %v3925 = vpop.f32.mrb[0].mxu0
  %3926 = vmatprep.mubr.bf16.mxu0 0
  %3927 = vmatmul.mubr.bf16.gmra.mrb[0].mxu0 %v3096
  %v3928 = vpop.f32.mrb[0].mxu0
  %v3929 = vadd.f32 %v2820, %v3928
  %v3930 = vpop.f32.mrb[0].mxu0
  %v3931 = vpop.f32.mrb[0].mxu0
  %v3932 = vadd.f32 %v2820, %v3931
  %v3933 = vpop.f32.mrb[0].mxu0
  %3934 = vmatprep.mubr.bf16.mxu0 0
  %3935 = vmatmul.mubr.bf16.gmra.mrb[0].mxu0 %v3099
  %v3936 = vpop.f32.mrb[0].mxu0
  %v3937 = vadd.f32 %v2820, %v3936
  %v3938 = vpop.f32.mrb[0].mxu0
  %v3939 = vpop.f32.mrb[0].mxu0
  %v3940 = vadd.f32 %v2820, %v3939
  %v3941 = vpop.f32.mrb[0].mxu0
  %3942 = vmatprep.mubr.bf16.mxu0 0
  %3943 = vmatmul.mubr.bf16.gmra.mrb[0].mxu0 %v3102
  %v3944 = vpop.f32.mrb[0].mxu0
  %v3945 = vadd.f32 %v2820, %v3944
  %v3946 = vpop.f32.mrb[0].mxu0
  %v3947 = vpop.f32.mrb[0].mxu0
  %v3948 = vadd.f32 %v2820, %v3947
  %v3949 = vpop.f32.mrb[0].mxu0
  %3950 = vmatprep.mubr.bf16.mxu0 0
  %3951 = vmatmul.mubr.bf16.gmra.mrb[0].mxu0 %v3105
  %v3952 = vpop.f32.mrb[0].mxu0
  %v3953 = vadd.f32 %v2820, %v3952
  %v3954 = vpop.f32.mrb[0].mxu0
  %v3955 = vpop.f32.mrb[0].mxu0
  %v3956 = vadd.f32 %v2820, %v3955
  %v3957 = vpop.f32.mrb[0].mxu0
  %3958 = vmatprep.mubr.bf16.mxu0 0
  %3959 = vmatmul.mubr.bf16.gmra.mrb[0].mxu0 %v3108
  %v3960 = vpop.f32.mrb[0].mxu0
  %v3961 = vadd.f32 %v2820, %v3960
  %v3962 = vpop.f32.mrb[0].mxu0
  %v3963 = vpop.f32.mrb[0].mxu0
  %v3964 = vadd.f32 %v2820, %v3963
  %v3965 = vpop.f32.mrb[0].mxu0
  %3966 = vmatprep.mubr.bf16.mxu0 0
  %3967 = vmatmul.mubr.bf16.gmra.mrb[0].mxu0 %v3111
  %v3968 = vpop.f32.mrb[0].mxu0
  %v3969 = vadd.f32 %v2820, %v3968
  %v3970 = vpop.f32.mrb[0].mxu0
  %v3971 = vpop.f32.mrb[0].mxu0
  %v3972 = vadd.f32 %v2820, %v3971
  %v3973 = vpop.f32.mrb[0].mxu0
  %3974 = vmatprep.mubr.bf16.mxu0 0
  %3975 = vmatmul.mubr.bf16.gmra.mrb[0].mxu0 %v3114
  %v3976 = vpop.f32.mrb[0].mxu0
  %v3977 = vadd.f32 %v2820, %v3976
  %v3978 = vpop.f32.mrb[0].mxu0
  %v3979 = vpop.f32.mrb[0].mxu0
  %v3980 = vadd.f32 %v2820, %v3979
  %v3981 = vpop.f32.mrb[0].mxu0
  %3982 = vmatprep.mubr.bf16.mxu0 0
  %3983 = vmatmul.mubr.bf16.gmra.mrb[0].mxu0 %v3117
  %v3984 = vpop.f32.mrb[0].mxu0
  %v3985 = vadd.f32 %v2820, %v3984
  %v3986 = vpop.f32.mrb[0].mxu0
  %v3987 = vpop.f32.mrb[0].mxu0
  %v3988 = vadd.f32 %v2820, %v3987
  %v3989 = vpop.f32.mrb[0].mxu0
  %3990 = vmatprep.mubr.bf16.mxu0 0
  %3991 = vmatmul.mubr.bf16.gmra.mrb[0].mxu0 %v3120
  %v3992 = vpop.f32.mrb[0].mxu0
  %v3993 = vadd.f32 %v2820, %v3992
  %v3994 = vpop.f32.mrb[0].mxu0
  %v3995 = vpop.f32.mrb[0].mxu0
  %v3996 = vadd.f32 %v2820, %v3995
  %v3997 = vpop.f32.mrb[0].mxu0
  %3998 = vmatprep.mubr.bf16.mxu0 0
  %3999 = vmatmul.mubr.bf16.gmra.mrb[0].mxu0 %v3123
  %v4000 = vpop.f32.mrb[0].mxu0
  %v4001 = vadd.f32 %v2820, %v4000
  %v4002 = vpop.f32.mrb[0].mxu0
  %v4003 = vpop.f32.mrb[0].mxu0
  %v4004 = vadd.f32 %v2820, %v4003
  %v4005 = vpop.f32.mrb[0].mxu0
  %4006 = vmatprep.mubr.bf16.mxu0 0
  %4007 = vmatmul.mubr.bf16.gmra.mrb[0].mxu0 %v3126
  %v4008 = vpop.f32.mrb[0].mxu0
  %v4009 = vadd.f32 %v2820, %v4008
  %v4010 = vpop.f32.mrb[0].mxu0
  %v4011 = vpop.f32.mrb[0].mxu0
  %v4012 = vadd.f32 %v2820, %v4011
  %v4013 = vpop.f32.mrb[0].mxu0
  %4014 = vmatprep.mubr.bf16.mxu0 0
  %4015 = vmatmul.mubr.bf16.gmra.mrb[0].mxu0 %v3129
  %v4016 = vpop.f32.mrb[0].mxu0
  %v4017 = vadd.f32 %v2820, %v4016
  %v4018 = vpop.f32.mrb[0].mxu0
  %v4019 = vpop.f32.mrb[0].mxu0
  %v4020 = vadd.f32 %v2820, %v4019
  %v4021 = vpop.f32.mrb[0].mxu0
  %4022 = vmatprep.mubr.bf16.mxu0 0
  %4023 = vmatmul.mubr.bf16.gmra.mrb[0].mxu0 %v3132
  %v4024 = vpop.f32.mrb[0].mxu0
  %v4025 = vadd.f32 %v2820, %v4024
  %v4026 = vpop.f32.mrb[0].mxu0
  %v4027 = vpop.f32.mrb[0].mxu0
  %v4028 = vadd.f32 %v2820, %v4027
  %v4029 = vpop.f32.mrb[0].mxu0
  %4030 = vmatprep.mubr.bf16.mxu0 0
  %4031 = vmatmul.mubr.bf16.gmra.mrb[0].mxu0 %v3135
  %v4032 = vpop.f32.mrb[0].mxu0
  %v4033 = vadd.f32 %v2820, %v4032
  %v4034 = vpop.f32.mrb[0].mxu0
  %v4035 = vpop.f32.mrb[0].mxu0
  %v4036 = vadd.f32 %v2820, %v4035
  %v4037 = vpop.f32.mrb[0].mxu0
  %4038 = vmatprep.mubr.bf16.mxu0 0
  %4039 = vmatmul.mubr.bf16.gmra.mrb[0].mxu0 %v3138
  %v4040 = vpop.f32.mrb[0].mxu0
  %v4041 = vadd.f32 %v2820, %v4040
  %v4042 = vpop.f32.mrb[0].mxu0
  %v4043 = vpop.f32.mrb[0].mxu0
  %v4044 = vadd.f32 %v2820, %v4043
  %v4045 = vpop.f32.mrb[0].mxu0
  %4046 = vmatprep.mubr.bf16.mxu0 0
  %4047 = vmatmul.mubr.bf16.gmra.mrb[0].mxu0 %v3141
  %v4048 = vpop.f32.mrb[0].mxu0
  %v4049 = vadd.f32 %v2820, %v4048
  %v4050 = vpop.f32.mrb[0].mxu0
  %v4051 = vpop.f32.mrb[0].mxu0
  %v4052 = vadd.f32 %v2820, %v4051
  %v4053 = vpop.f32.mrb[0].mxu0
  %4054 = vmatprep.mubr.bf16.mxu0 0
  %4055 = vmatmul.mubr.bf16.gmra.mrb[0].mxu0 %v3144
  %v4056 = vpop.f32.mrb[0].mxu0
  %v4057 = vadd.f32 %v2820, %v4056
  %v4058 = vpop.f32.mrb[0].mxu0
  %v4059 = vpop.f32.mrb[0].mxu0
  %v4060 = vadd.f32 %v2820, %v4059
  %v4061 = vpop.f32.mrb[0].mxu0
  %4062 = vmatprep.mubr.bf16.mxu0 0
  %4063 = vmatmul.mubr.bf16.gmra.mrb[0].mxu0 %v3147
  %v4064 = vpop.f32.mrb[0].mxu0
  %v4065 = vadd.f32 %v2820, %v4064
  %v4066 = vpop.f32.mrb[0].mxu0
  %v4067 = vpop.f32.mrb[0].mxu0
  %v4068 = vadd.f32 %v2820, %v4067
  %v4069 = vpop.f32.mrb[0].mxu0
  %4070 = vmatprep.mubr.bf16.mxu0 0
  %4071 = vmatmul.mubr.bf16.gmra.mrb[0].mxu0 %v3150
  %v4072 = vpop.f32.mrb[0].mxu0
  %v4073 = vadd.f32 %v2820, %v4072
  %v4074 = vpop.f32.mrb[0].mxu0
  %v4075 = vpop.f32.mrb[0].mxu0
  %v4076 = vadd.f32 %v2820, %v4075
  %v4077 = vpop.f32.mrb[0].mxu0
  %4078 = vmatprep.mubr.bf16.mxu0 0
  %4079 = vmatmul.mubr.bf16.gmra.mrb[0].mxu0 %v3153
  %v4080 = vpop.f32.mrb[0].mxu0
  %v4081 = vadd.f32 %v2820, %v4080
  %v4082 = vpop.f32.mrb[0].mxu0
  %v4083 = vpop.f32.mrb[0].mxu0
  %v4084 = vadd.f32 %v2820, %v4083
  %v4085 = vpop.f32.mrb[0].mxu0
  %4086 = vmatprep.mubr.bf16.mxu0 0
  %4087 = vmatmul.mubr.bf16.gmra.mrb[0].mxu0 %v3156
  %v4088 = vpop.f32.mrb[0].mxu0
  %v4089 = vadd.f32 %v2820, %v4088
  %v4090 = vpop.f32.mrb[0].mxu0
  %v4091 = vpop.f32.mrb[0].mxu0
  %v4092 = vadd.f32 %v2820, %v4091
  %v4093 = vpop.f32.mrb[0].mxu0
  %4094 = vmatprep.mubr.bf16.mxu0 0
  %4095 = vmatmul.mubr.bf16.gmra.mrb[0].mxu0 %v3159
  %v4096 = vpop.f32.mrb[0].mxu0
  %v4097 = vadd.f32 %v2820, %v4096
  %v4098 = vpop.f32.mrb[0].mxu0
  %v4099 = vpop.f32.mrb[0].mxu0
  %v4100 = vadd.f32 %v2820, %v4099
  %v4101 = vpop.f32.mrb[0].mxu0
  %4102 = vmatprep.mubr.bf16.mxu0 0
  %4103 = vmatmul.mubr.bf16.gmra.mrb[0].mxu0 %v3162
  %v4104 = vpop.f32.mrb[0].mxu0
  %v4105 = vadd.f32 %v2820, %v4104
  %v4106 = vpop.f32.mrb[0].mxu0
  %v4107 = vpop.f32.mrb[0].mxu0
  %v4108 = vadd.f32 %v2820, %v4107
  %v4109 = vpop.f32.mrb[0].mxu0
  %4110 = vmatprep.mubr.bf16.mxu0 0
  %4111 = vmatmul.mubr.bf16.gmra.mrb[0].mxu0 %v3165
  %v4112 = vpop.f32.mrb[0].mxu0
  %v4113 = vadd.f32 %v2820, %v4112
  %v4114 = vpop.f32.mrb[0].mxu0
  %v4115 = vpop.f32.mrb[0].mxu0
  %v4116 = vadd.f32 %v2820, %v4115
  %v4117 = vpop.f32.mrb[0].mxu0
  %4118 = vmatprep.mubr.bf16.mxu0 0
  %4119 = vmatmul.mubr.bf16.gmra.mrb[0].mxu0 %v3168
  %v4120 = vpop.f32.mrb[0].mxu0
  %v4121 = vadd.f32 %v2820, %v4120
  %v4122 = vpop.f32.mrb[0].mxu0
  %v4123 = vpop.f32.mrb[0].mxu0
  %v4124 = vadd.f32 %v2820, %v4123
  %v4125 = vpop.f32.mrb[0].mxu0
  %4126 = vmatprep.mubr.bf16.mxu0 0
  %4127 = vmatmul.mubr.bf16.gmra.mrb[0].mxu0 %v3171
  %v4128 = vpop.f32.mrb[0].mxu0
  %v4129 = vadd.f32 %v2820, %v4128
  %v4130 = vpop.f32.mrb[0].mxu0
  %v4131 = vpop.f32.mrb[0].mxu0
  %v4132 = vadd.f32 %v2820, %v4131
  %v4133 = vpop.f32.mrb[0].mxu0
  %4134 = vmatprep.mubr.bf16.mxu0 0
  %4135 = vmatmul.mubr.bf16.gmra.mrb[0].mxu0 %v3174
  %v4136 = vpop.f32.mrb[0].mxu0
  %v4137 = vadd.f32 %v2820, %v4136
  %v4138 = vpop.f32.mrb[0].mxu0
  %v4139 = vpop.f32.mrb[0].mxu0
  %v4140 = vadd.f32 %v2820, %v4139
  %v4141 = vpop.f32.mrb[0].mxu0
  %4142 = vmatprep.mubr.bf16.mxu0 0
  %4143 = vmatmul.mubr.bf16.gmra.mrb[0].mxu0 %v3177
  %v4144 = vpop.f32.mrb[0].mxu0
  %v4145 = vadd.f32 %v2820, %v4144
  %v4146 = vpop.f32.mrb[0].mxu0
  %v4147 = vpop.f32.mrb[0].mxu0
  %v4148 = vadd.f32 %v2820, %v4147
  %v4149 = vpop.f32.mrb[0].mxu0
  %4150 = vmatprep.mubr.bf16.mxu0 0
  %4151 = vmatmul.mubr.bf16.gmra.mrb[0].mxu0 %v3180
  %v4152 = vpop.f32.mrb[0].mxu0
  %v4153 = vadd.f32 %v2820, %v4152
  %v4154 = vpop.f32.mrb[0].mxu0
  %v4155 = vpop.f32.mrb[0].mxu0
  %v4156 = vadd.f32 %v2820, %v4155
  %v4157 = vpop.f32.mrb[0].mxu0
  %4158 = vmatprep.mubr.bf16.mxu0 0
  %4159 = vmatmul.mubr.bf16.gmra.mrb[0].mxu0 %v3183
  %v4160 = vpop.f32.mrb[0].mxu0
  %v4161 = vadd.f32 %v2820, %v4160
  %v4162 = vpop.f32.mrb[0].mxu0
  %v4163 = vpop.f32.mrb[0].mxu0
  %v4164 = vadd.f32 %v2820, %v4163
  %v4165 = vpop.f32.mrb[0].mxu0
  %4166 = vmatprep.mubr.bf16.mxu0 0
  %4167 = vmatmul.mubr.bf16.gmra.mrb[0].mxu0 %v3186
  %v4168 = vpop.f32.mrb[0].mxu0
  %v4169 = vadd.f32 %v2820, %v4168
  %v4170 = vpop.f32.mrb[0].mxu0
  %v4171 = vpop.f32.mrb[0].mxu0
  %v4172 = vadd.f32 %v2820, %v4171
  %v4173 = vpop.f32.mrb[0].mxu0
  %4174 = vmatprep.mubr.bf16.mxu0 0
  %4175 = vmatmul.mubr.bf16.gmra.mrb[0].mxu0 %v3189
  %v4176 = vpop.f32.mrb[0].mxu0
  %v4177 = vadd.f32 %v2820, %v4176
  %v4178 = vpop.f32.mrb[0].mxu0
  %v4179 = vpop.f32.mrb[0].mxu0
  %v4180 = vadd.f32 %v2820, %v4179
  %v4181 = vpop.f32.mrb[0].mxu0
  %4182 = vmatprep.mubr.bf16.mxu0 0
  %4183 = vmatmul.mubr.bf16.gmra.mrb[0].mxu0 %v3192
  %v4184 = vpop.f32.mrb[0].mxu0
  %v4185 = vadd.f32 %v2820, %v4184
  %v4186 = vpop.f32.mrb[0].mxu0
  %v4187 = vpop.f32.mrb[0].mxu0
  %v4188 = vadd.f32 %v2820, %v4187
  %v4189 = vpop.f32.mrb[0].mxu0
  %4190 = vmatprep.mubr.bf16.mxu0 0
  %4191 = vmatmul.mubr.bf16.gmra.mrb[0].mxu0 %v3195
  %v4192 = vpop.f32.mrb[0].mxu0
  %v4193 = vadd.f32 %v2820, %v4192
  %v4194 = vpop.f32.mrb[0].mxu0
  %v4195 = vpop.f32.mrb[0].mxu0
  %v4196 = vadd.f32 %v2820, %v4195
  %v4197 = vpop.f32.mrb[0].mxu0
  %4198 = vmatprep.mubr.bf16.mxu0 0
  %4199 = vmatmul.mubr.bf16.gmra.mrb[0].mxu0 %v3198
  %v4200 = vpop.f32.mrb[0].mxu0
  %v4201 = vadd.f32 %v2820, %v4200
  %v4202 = vpop.f32.mrb[0].mxu0
  %v4203 = vpop.f32.mrb[0].mxu0
  %v4204 = vadd.f32 %v2820, %v4203
  %v4205 = vpop.f32.mrb[0].mxu0
  %4206 = vmatprep.mubr.bf16.mxu0 0
  %4207 = vmatmul.mubr.bf16.gmra.mrb[0].mxu0 %v3201
  %v4208 = vpop.f32.mrb[0].mxu0
  %v4209 = vadd.f32 %v2820, %v4208
  %v4210 = vpop.f32.mrb[0].mxu0
  %v4211 = vpop.f32.mrb[0].mxu0
  %v4212 = vadd.f32 %v2820, %v4211
  %v4213 = vpop.f32.mrb[0].mxu0
  %4214 = vmatprep.mubr.bf16.mxu0 0
  %4215 = vmatmul.mubr.bf16.gmra.mrb[0].mxu0 %v3204
  %v4216 = vpop.f32.mrb[0].mxu0
  %v4217 = vadd.f32 %v2820, %v4216
  %v4218 = vpop.f32.mrb[0].mxu0
  %v4219 = vpop.f32.mrb[0].mxu0
  %v4220 = vadd.f32 %v2820, %v4219
  %v4221 = vpop.f32.mrb[0].mxu0
  %4222 = vmatprep.mubr.bf16.mxu0 0
  %4223 = vmatmul.mubr.bf16.gmra.mrb[0].mxu0 %v3207
  %v4224 = vpop.f32.mrb[0].mxu0
  %v4225 = vadd.f32 %v2820, %v4224
  %v4226 = vpop.f32.mrb[0].mxu0
  %v4227 = vpop.f32.mrb[0].mxu0
  %v4228 = vadd.f32 %v2820, %v4227
  %v4229 = vpop.f32.mrb[0].mxu0
  %4230 = vmatprep.mubr.bf16.mxu0 0
  %4231 = vmatmul.mubr.bf16.gmra.mrb[0].mxu0 %v3210
  %v4232 = vpop.f32.mrb[0].mxu0
  %v4233 = vadd.f32 %v2820, %v4232
  %v4234 = vpop.f32.mrb[0].mxu0
  %v4235 = vpop.f32.mrb[0].mxu0
  %v4236 = vadd.f32 %v2820, %v4235
  %v4237 = vpop.f32.mrb[0].mxu0
  %4238 = vmatprep.mubr.bf16.mxu0 0
  %4239 = vmatmul.mubr.bf16.gmra.mrb[0].mxu0 %v3213
  %v4240 = vpop.f32.mrb[0].mxu0
  %v4241 = vadd.f32 %v2820, %v4240
  %v4242 = vpop.f32.mrb[0].mxu0
  %v4243 = vpop.f32.mrb[0].mxu0
  %v4244 = vadd.f32 %v2820, %v4243
  %v4245 = vpop.f32.mrb[0].mxu0
  %4246 = vmatprep.mubr.bf16.mxu0 0
  %4247 = vmatmul.mubr.bf16.gmra.mrb[0].mxu0 %v3216
  %v4248 = vpop.f32.mrb[0].mxu0
  %v4249 = vadd.f32 %v2820, %v4248
  %v4250 = vpop.f32.mrb[0].mxu0
  %v4251 = vpop.f32.mrb[0].mxu0
  %v4252 = vadd.f32 %v2820, %v4251
  %v4253 = vpop.f32.mrb[0].mxu0
  %4254 = vmatprep.mubr.bf16.mxu0 0
  %4255 = vmatmul.mubr.bf16.gmra.mrb[0].mxu0 %v3219
  %v4256 = vpop.f32.mrb[0].mxu0
  %v4257 = vadd.f32 %v2820, %v4256
  %v4258 = vpop.f32.mrb[0].mxu0
  %v4259 = vpop.f32.mrb[0].mxu0
  %v4260 = vadd.f32 %v2820, %v4259
  %v4261 = vpop.f32.mrb[0].mxu0
  %4262 = vmatprep.mubr.bf16.mxu0 0
  %4263 = vmatmul.mubr.bf16.gmra.mrb[0].mxu0 %v3222
  %v4264 = vpop.f32.mrb[0].mxu0
  %v4265 = vadd.f32 %v2820, %v4264
  %v4266 = vpop.f32.mrb[0].mxu0
  %v4267 = vpop.f32.mrb[0].mxu0
  %v4268 = vadd.f32 %v2820, %v4267
  %v4269 = vpop.f32.mrb[0].mxu0
  %4270 = vmatprep.mubr.bf16.mxu0 0
  %4271 = vmatmul.mubr.bf16.gmra.mrb[0].mxu0 %v3225
  %v4272 = vpop.f32.mrb[0].mxu0
  %v4273 = vadd.f32 %v2820, %v4272
  %v4274 = vpop.f32.mrb[0].mxu0
  %v4275 = vpop.f32.mrb[0].mxu0
  %v4276 = vadd.f32 %v2820, %v4275
  %v4277 = vpop.f32.mrb[0].mxu0
  %4278 = vmatprep.mubr.bf16.mxu0 0
  %4279 = vmatmul.mubr.bf16.gmra.mrb[0].mxu0 %v3228
  %v4280 = vpop.f32.mrb[0].mxu0
  %v4281 = vadd.f32 %v2820, %v4280
  %v4282 = vpop.f32.mrb[0].mxu0
  %v4283 = vpop.f32.mrb[0].mxu0
  %v4284 = vadd.f32 %v2820, %v4283
  %v4285 = vpop.f32.mrb[0].mxu0
  %4286 = vdwg.mxu0
  %v4287 = vmax.f32 %v3265, 0.0
  %v4288 = vmax.f32 %v3268, 0.0
  %v4289 = vmax.f32 %v3273, 0.0
  %v4290 = vmax.f32 %v3276, 0.0
  %v4291 = vmax.f32 %v3281, 0.0
  %v4292 = vmax.f32 %v3284, 0.0
  %v4293 = vmax.f32 %v3289, 0.0
  %v4294 = vmax.f32 %v3292, 0.0
  %v4295 = vmax.f32 %v3297, 0.0
  %v4296 = vmax.f32 %v3300, 0.0
  %v4297 = vmax.f32 %v3305, 0.0
  %v4298 = vmax.f32 %v3308, 0.0
  %v4299 = vmax.f32 %v3313, 0.0
  %v4300 = vmax.f32 %v3316, 0.0
  %v4301 = vmax.f32 %v3321, 0.0
  %v4302 = vmax.f32 %v3324, 0.0
  %v4303 = vmax.f32 %v3329, 0.0
  %v4304 = vmax.f32 %v3332, 0.0
  %v4305 = vmax.f32 %v3337, 0.0
  %v4306 = vmax.f32 %v3340, 0.0
  %v4307 = vmax.f32 %v3345, 0.0
  %v4308 = vmax.f32 %v3348, 0.0
  %v4309 = vmax.f32 %v3353, 0.0
  %v4310 = vmax.f32 %v3356, 0.0
  %v4311 = vmax.f32 %v3361, 0.0
  %v4312 = vmax.f32 %v3364, 0.0
  %v4313 = vmax.f32 %v3369, 0.0
  %v4314 = vmax.f32 %v3372, 0.0
  %v4315 = vmax.f32 %v3377, 0.0
  %v4316 = vmax.f32 %v3380, 0.0
  %v4317 = vmax.f32 %v3385, 0.0
  %v4318 = vmax.f32 %v3388, 0.0
  %v4319 = vmax.f32 %v3393, 0.0
  %v4320 = vmax.f32 %v3396, 0.0
  %v4321 = vmax.f32 %v3401, 0.0
  %v4322 = vmax.f32 %v3404, 0.0
  %v4323 = vmax.f32 %v3409, 0.0
  %v4324 = vmax.f32 %v3412, 0.0
  %v4325 = vmax.f32 %v3417, 0.0
  %v4326 = vmax.f32 %v3420, 0.0
  %v4327 = vmax.f32 %v3425, 0.0
  %v4328 = vmax.f32 %v3428, 0.0
  %v4329 = vmax.f32 %v3433, 0.0
  %v4330 = vmax.f32 %v3436, 0.0
  %v4331 = vmax.f32 %v3441, 0.0
  %v4332 = vmax.f32 %v3444, 0.0
  %v4333 = vmax.f32 %v3449, 0.0
  %v4334 = vmax.f32 %v3452, 0.0
  %v4335 = vmax.f32 %v3457, 0.0
  %v4336 = vmax.f32 %v3460, 0.0
  %v4337 = vmax.f32 %v3465, 0.0
  %v4338 = vmax.f32 %v3468, 0.0
  %v4339 = vmax.f32 %v3473, 0.0
  %v4340 = vmax.f32 %v3476, 0.0
  %v4341 = vmax.f32 %v3481, 0.0
  %v4342 = vmax.f32 %v3484, 0.0
  %v4343 = vmax.f32 %v3489, 0.0
  %v4344 = vmax.f32 %v3492, 0.0
  %v4345 = vmax.f32 %v3497, 0.0
  %v4346 = vmax.f32 %v3500, 0.0
  %v4347 = vmax.f32 %v3505, 0.0
  %v4348 = vmax.f32 %v3508, 0.0
  %v4349 = vmax.f32 %v3513, 0.0
  %v4350 = vmax.f32 %v3516, 0.0
  %v4351 = vmax.f32 %v3521, 0.0
  %v4352 = vmax.f32 %v3524, 0.0
  %v4353 = vmax.f32 %v3529, 0.0
  %v4354 = vmax.f32 %v3532, 0.0
  %v4355 = vmax.f32 %v3537, 0.0
  %v4356 = vmax.f32 %v3540, 0.0
  %v4357 = vmax.f32 %v3545, 0.0
  %v4358 = vmax.f32 %v3548, 0.0
  %v4359 = vmax.f32 %v3553, 0.0
  %v4360 = vmax.f32 %v3556, 0.0
  %v4361 = vmax.f32 %v3561, 0.0
  %v4362 = vmax.f32 %v3564, 0.0
  %v4363 = vmax.f32 %v3569, 0.0
  %v4364 = vmax.f32 %v3572, 0.0
  %v4365 = vmax.f32 %v3577, 0.0
  %v4366 = vmax.f32 %v3580, 0.0
  %v4367 = vmax.f32 %v3585, 0.0
  %v4368 = vmax.f32 %v3588, 0.0
  %v4369 = vmax.f32 %v3593, 0.0
  %v4370 = vmax.f32 %v3596, 0.0
  %v4371 = vmax.f32 %v3601, 0.0
  %v4372 = vmax.f32 %v3604, 0.0
  %v4373 = vmax.f32 %v3609, 0.0
  %v4374 = vmax.f32 %v3612, 0.0
  %v4375 = vmax.f32 %v3617, 0.0
  %v4376 = vmax.f32 %v3620, 0.0
  %v4377 = vmax.f32 %v3625, 0.0
  %v4378 = vmax.f32 %v3628, 0.0
  %v4379 = vmax.f32 %v3633, 0.0
  %v4380 = vmax.f32 %v3636, 0.0
  %v4381 = vmax.f32 %v3641, 0.0
  %v4382 = vmax.f32 %v3644, 0.0
  %v4383 = vmax.f32 %v3649, 0.0
  %v4384 = vmax.f32 %v3652, 0.0
  %v4385 = vmax.f32 %v3657, 0.0
  %v4386 = vmax.f32 %v3660, 0.0
  %v4387 = vmax.f32 %v3665, 0.0
  %v4388 = vmax.f32 %v3668, 0.0
  %v4389 = vmax.f32 %v3673, 0.0
  %v4390 = vmax.f32 %v3676, 0.0
  %v4391 = vmax.f32 %v3681, 0.0
  %v4392 = vmax.f32 %v3684, 0.0
  %v4393 = vmax.f32 %v3689, 0.0
  %v4394 = vmax.f32 %v3692, 0.0
  %v4395 = vmax.f32 %v3697, 0.0
  %v4396 = vmax.f32 %v3700, 0.0
  %v4397 = vmax.f32 %v3705, 0.0
  %v4398 = vmax.f32 %v3708, 0.0
  %v4399 = vmax.f32 %v3713, 0.0
  %v4400 = vmax.f32 %v3716, 0.0
  %v4401 = vmax.f32 %v3721, 0.0
  %v4402 = vmax.f32 %v3724, 0.0
  %v4403 = vmax.f32 %v3729, 0.0
  %v4404 = vmax.f32 %v3732, 0.0
  %v4405 = vmax.f32 %v3737, 0.0
  %v4406 = vmax.f32 %v3740, 0.0
  %v4407 = vmax.f32 %v3745, 0.0
  %v4408 = vmax.f32 %v3748, 0.0
  %v4409 = vmax.f32 %v3753, 0.0
  %v4410 = vmax.f32 %v3756, 0.0
  %v4411 = vmax.f32 %v3761, 0.0
  %v4412 = vmax.f32 %v3764, 0.0
  %v4413 = vmax.f32 %v3769, 0.0
  %v4414 = vmax.f32 %v3772, 0.0
  %v4415 = vmax.f32 %v3777, 0.0
  %v4416 = vmax.f32 %v3780, 0.0
  %v4417 = vmax.f32 %v3785, 0.0
  %v4418 = vmax.f32 %v3788, 0.0
  %v4419 = vmax.f32 %v3793, 0.0
  %v4420 = vmax.f32 %v3796, 0.0
  %v4421 = vmax.f32 %v3801, 0.0
  %v4422 = vmax.f32 %v3804, 0.0
  %v4423 = vmax.f32 %v3809, 0.0
  %v4424 = vmax.f32 %v3812, 0.0
  %v4425 = vmax.f32 %v3817, 0.0
  %v4426 = vmax.f32 %v3820, 0.0
  %v4427 = vmax.f32 %v3825, 0.0
  %v4428 = vmax.f32 %v3828, 0.0
  %v4429 = vmax.f32 %v3833, 0.0
  %v4430 = vmax.f32 %v3836, 0.0
  %v4431 = vmax.f32 %v3841, 0.0
  %v4432 = vmax.f32 %v3844, 0.0
  %v4433 = vmax.f32 %v3849, 0.0
  %v4434 = vmax.f32 %v3852, 0.0
  %v4435 = vmax.f32 %v3857, 0.0
  %v4436 = vmax.f32 %v3860, 0.0
  %v4437 = vmax.f32 %v3865, 0.0
  %v4438 = vmax.f32 %v3868, 0.0
  %v4439 = vmax.f32 %v3873, 0.0
  %v4440 = vmax.f32 %v3876, 0.0
  %v4441 = vmax.f32 %v3881, 0.0
  %v4442 = vmax.f32 %v3884, 0.0
  %v4443 = vmax.f32 %v3889, 0.0
  %v4444 = vmax.f32 %v3892, 0.0
  %v4445 = vmax.f32 %v3897, 0.0
  %v4446 = vmax.f32 %v3900, 0.0
  %v4447 = vmax.f32 %v3905, 0.0
  %v4448 = vmax.f32 %v3908, 0.0
  %v4449 = vmax.f32 %v3913, 0.0
  %v4450 = vmax.f32 %v3916, 0.0
  %v4451 = vmax.f32 %v3921, 0.0
  %v4452 = vmax.f32 %v3924, 0.0
  %v4453 = vmax.f32 %v3929, 0.0
  %v4454 = vmax.f32 %v3932, 0.0
  %v4455 = vmax.f32 %v3937, 0.0
  %v4456 = vmax.f32 %v3940, 0.0
  %v4457 = vmax.f32 %v3945, 0.0
  %v4458 = vmax.f32 %v3948, 0.0
  %v4459 = vmax.f32 %v3953, 0.0
  %v4460 = vmax.f32 %v3956, 0.0
  %v4461 = vmax.f32 %v3961, 0.0
  %v4462 = vmax.f32 %v3964, 0.0
  %v4463 = vmax.f32 %v3969, 0.0
  %v4464 = vmax.f32 %v3972, 0.0
  %v4465 = vmax.f32 %v3977, 0.0
  %v4466 = vmax.f32 %v3980, 0.0
  %v4467 = vmax.f32 %v3985, 0.0
  %v4468 = vmax.f32 %v3988, 0.0
  %v4469 = vmax.f32 %v3993, 0.0
  %v4470 = vmax.f32 %v3996, 0.0
  %v4471 = vmax.f32 %v4001, 0.0
  %v4472 = vmax.f32 %v4004, 0.0
  %v4473 = vmax.f32 %v4009, 0.0
  %v4474 = vmax.f32 %v4012, 0.0
  %v4475 = vmax.f32 %v4017, 0.0
  %v4476 = vmax.f32 %v4020, 0.0
  %v4477 = vmax.f32 %v4025, 0.0
  %v4478 = vmax.f32 %v4028, 0.0
  %v4479 = vmax.f32 %v4033, 0.0
  %v4480 = vmax.f32 %v4036, 0.0
  %v4481 = vmax.f32 %v4041, 0.0
  %v4482 = vmax.f32 %v4044, 0.0
  %v4483 = vmax.f32 %v4049, 0.0
  %v4484 = vmax.f32 %v4052, 0.0
  %v4485 = vmax.f32 %v4057, 0.0
  %v4486 = vmax.f32 %v4060, 0.0
  %v4487 = vmax.f32 %v4065, 0.0
  %v4488 = vmax.f32 %v4068, 0.0
  %v4489 = vmax.f32 %v4073, 0.0
  %v4490 = vmax.f32 %v4076, 0.0
  %v4491 = vmax.f32 %v4081, 0.0
  %v4492 = vmax.f32 %v4084, 0.0
  %v4493 = vmax.f32 %v4089, 0.0
  %v4494 = vmax.f32 %v4092, 0.0
  %v4495 = vmax.f32 %v4097, 0.0
  %v4496 = vmax.f32 %v4100, 0.0
  %v4497 = vmax.f32 %v4105, 0.0
  %v4498 = vmax.f32 %v4108, 0.0
  %v4499 = vmax.f32 %v4113, 0.0
  %v4500 = vmax.f32 %v4116, 0.0
  %v4501 = vmax.f32 %v4121, 0.0
  %v4502 = vmax.f32 %v4124, 0.0
  %v4503 = vmax.f32 %v4129, 0.0
  %v4504 = vmax.f32 %v4132, 0.0
  %v4505 = vmax.f32 %v4137, 0.0
  %v4506 = vmax.f32 %v4140, 0.0
  %v4507 = vmax.f32 %v4145, 0.0
  %v4508 = vmax.f32 %v4148, 0.0
  %v4509 = vmax.f32 %v4153, 0.0
  %v4510 = vmax.f32 %v4156, 0.0
  %v4511 = vmax.f32 %v4161, 0.0
  %v4512 = vmax.f32 %v4164, 0.0
  %v4513 = vmax.f32 %v4169, 0.0
  %v4514 = vmax.f32 %v4172, 0.0
  %v4515 = vmax.f32 %v4177, 0.0
  %v4516 = vmax.f32 %v4180, 0.0
  %v4517 = vmax.f32 %v4185, 0.0
  %v4518 = vmax.f32 %v4188, 0.0
  %v4519 = vmax.f32 %v4193, 0.0
  %v4520 = vmax.f32 %v4196, 0.0
  %v4521 = vmax.f32 %v4201, 0.0
  %v4522 = vmax.f32 %v4204, 0.0
  %v4523 = vmax.f32 %v4209, 0.0
  %v4524 = vmax.f32 %v4212, 0.0
  %v4525 = vmax.f32 %v4217, 0.0
  %v4526 = vmax.f32 %v4220, 0.0
  %v4527 = vmax.f32 %v4225, 0.0
  %v4528 = vmax.f32 %v4228, 0.0
  %v4529 = vmax.f32 %v4233, 0.0
  %v4530 = vmax.f32 %v4236, 0.0
  %v4531 = vmax.f32 %v4241, 0.0
  %v4532 = vmax.f32 %v4244, 0.0
  %v4533 = vmax.f32 %v4249, 0.0
  %v4534 = vmax.f32 %v4252, 0.0
  %v4535 = vmax.f32 %v4257, 0.0
  %v4536 = vmax.f32 %v4260, 0.0
  %v4537 = vmax.f32 %v4265, 0.0
  %v4538 = vmax.f32 %v4268, 0.0
  %v4539 = vmax.f32 %v4273, 0.0
  %v4540 = vmax.f32 %v4276, 0.0
  %v4541 = vmax.f32 %v4281, 0.0
  %v4542 = vmax.f32 %v4284, 0.0
  %v4543 = vpack.c.bf16 %v4288, %v4287
  %v4544 = vpack.c.bf16 %v4290, %v4289
  %v4545 = vpack.c.bf16 %v4292, %v4291
  %v4546 = vpack.c.bf16 %v4294, %v4293
  %v4547 = vpack.c.bf16 %v4296, %v4295
  %v4548 = vpack.c.bf16 %v4298, %v4297
  %v4549 = vpack.c.bf16 %v4300, %v4299
  %v4550 = vpack.c.bf16 %v4302, %v4301
  %v4551 = vpack.c.bf16 %v4304, %v4303
  %v4552 = vpack.c.bf16 %v4306, %v4305
  %v4553 = vpack.c.bf16 %v4308, %v4307
  %v4554 = vpack.c.bf16 %v4310, %v4309
  %v4555 = vpack.c.bf16 %v4312, %v4311
  %v4556 = vpack.c.bf16 %v4314, %v4313
  %v4557 = vpack.c.bf16 %v4316, %v4315
  %v4558 = vpack.c.bf16 %v4318, %v4317
  %v4559 = vpack.c.bf16 %v4320, %v4319
  %v4560 = vpack.c.bf16 %v4322, %v4321
  %v4561 = vpack.c.bf16 %v4324, %v4323
  %v4562 = vpack.c.bf16 %v4326, %v4325
  %v4563 = vpack.c.bf16 %v4328, %v4327
  %v4564 = vpack.c.bf16 %v4330, %v4329
  %v4565 = vpack.c.bf16 %v4332, %v4331
  %v4566 = vpack.c.bf16 %v4334, %v4333
  %v4567 = vpack.c.bf16 %v4336, %v4335
  %v4568 = vpack.c.bf16 %v4338, %v4337
  %v4569 = vpack.c.bf16 %v4340, %v4339
  %v4570 = vpack.c.bf16 %v4342, %v4341
  %v4571 = vpack.c.bf16 %v4344, %v4343
  %v4572 = vpack.c.bf16 %v4346, %v4345
  %v4573 = vpack.c.bf16 %v4348, %v4347
  %v4574 = vpack.c.bf16 %v4350, %v4349
  %v4575 = vpack.c.bf16 %v4352, %v4351
  %v4576 = vpack.c.bf16 %v4354, %v4353
  %v4577 = vpack.c.bf16 %v4356, %v4355
  %v4578 = vpack.c.bf16 %v4358, %v4357
  %v4579 = vpack.c.bf16 %v4360, %v4359
  %v4580 = vpack.c.bf16 %v4362, %v4361
  %v4581 = vpack.c.bf16 %v4364, %v4363
  %v4582 = vpack.c.bf16 %v4366, %v4365
  %v4583 = vpack.c.bf16 %v4368, %v4367
  %v4584 = vpack.c.bf16 %v4370, %v4369
  %v4585 = vpack.c.bf16 %v4372, %v4371
  %v4586 = vpack.c.bf16 %v4374, %v4373
  %v4587 = vpack.c.bf16 %v4376, %v4375
  %v4588 = vpack.c.bf16 %v4378, %v4377
  %v4589 = vpack.c.bf16 %v4380, %v4379
  %v4590 = vpack.c.bf16 %v4382, %v4381
  %v4591 = vpack.c.bf16 %v4384, %v4383
  %v4592 = vpack.c.bf16 %v4386, %v4385
  %v4593 = vpack.c.bf16 %v4388, %v4387
  %v4594 = vpack.c.bf16 %v4390, %v4389
  %v4595 = vpack.c.bf16 %v4392, %v4391
  %v4596 = vpack.c.bf16 %v4394, %v4393
  %v4597 = vpack.c.bf16 %v4396, %v4395
  %v4598 = vpack.c.bf16 %v4398, %v4397
  %v4599 = vpack.c.bf16 %v4400, %v4399
  %v4600 = vpack.c.bf16 %v4402, %v4401
  %v4601 = vpack.c.bf16 %v4404, %v4403
  %v4602 = vpack.c.bf16 %v4406, %v4405
  %v4603 = vpack.c.bf16 %v4408, %v4407
  %v4604 = vpack.c.bf16 %v4410, %v4409
  %v4605 = vpack.c.bf16 %v4412, %v4411
  %v4606 = vpack.c.bf16 %v4414, %v4413
  %v4607 = vpack.c.bf16 %v4416, %v4415
  %v4608 = vpack.c.bf16 %v4418, %v4417
  %v4609 = vpack.c.bf16 %v4420, %v4419
  %v4610 = vpack.c.bf16 %v4422, %v4421
  %v4611 = vpack.c.bf16 %v4424, %v4423
  %v4612 = vpack.c.bf16 %v4426, %v4425
  %v4613 = vpack.c.bf16 %v4428, %v4427
  %v4614 = vpack.c.bf16 %v4430, %v4429
  %v4615 = vpack.c.bf16 %v4432, %v4431
  %v4616 = vpack.c.bf16 %v4434, %v4433
  %v4617 = vpack.c.bf16 %v4436, %v4435
  %v4618 = vpack.c.bf16 %v4438, %v4437
  %v4619 = vpack.c.bf16 %v4440, %v4439
  %v4620 = vpack.c.bf16 %v4442, %v4441
  %v4621 = vpack.c.bf16 %v4444, %v4443
  %v4622 = vpack.c.bf16 %v4446, %v4445
  %v4623 = vpack.c.bf16 %v4448, %v4447
  %v4624 = vpack.c.bf16 %v4450, %v4449
  %v4625 = vpack.c.bf16 %v4452, %v4451
  %v4626 = vpack.c.bf16 %v4454, %v4453
  %v4627 = vpack.c.bf16 %v4456, %v4455
  %v4628 = vpack.c.bf16 %v4458, %v4457
  %v4629 = vpack.c.bf16 %v4460, %v4459
  %v4630 = vpack.c.bf16 %v4462, %v4461
  %v4631 = vpack.c.bf16 %v4464, %v4463
  %v4632 = vpack.c.bf16 %v4466, %v4465
  %v4633 = vpack.c.bf16 %v4468, %v4467
  %v4634 = vpack.c.bf16 %v4470, %v4469
  %v4635 = vpack.c.bf16 %v4472, %v4471
  %v4636 = vpack.c.bf16 %v4474, %v4473
  %v4637 = vpack.c.bf16 %v4476, %v4475
  %v4638 = vpack.c.bf16 %v4478, %v4477
  %v4639 = vpack.c.bf16 %v4480, %v4479
  %v4640 = vpack.c.bf16 %v4482, %v4481
  %v4641 = vpack.c.bf16 %v4484, %v4483
  %v4642 = vpack.c.bf16 %v4486, %v4485
  %v4643 = vpack.c.bf16 %v4488, %v4487
  %v4644 = vpack.c.bf16 %v4490, %v4489
  %v4645 = vpack.c.bf16 %v4492, %v4491
  %v4646 = vpack.c.bf16 %v4494, %v4493
  %v4647 = vpack.c.bf16 %v4496, %v4495
  %v4648 = vpack.c.bf16 %v4498, %v4497
  %v4649 = vpack.c.bf16 %v4500, %v4499
  %v4650 = vpack.c.bf16 %v4502, %v4501
  %v4651 = vpack.c.bf16 %v4504, %v4503
  %v4652 = vpack.c.bf16 %v4506, %v4505
  %v4653 = vpack.c.bf16 %v4508, %v4507
  %v4654 = vpack.c.bf16 %v4510, %v4509
  %v4655 = vpack.c.bf16 %v4512, %v4511
  %v4656 = vpack.c.bf16 %v4514, %v4513
  %v4657 = vpack.c.bf16 %v4516, %v4515
  %v4658 = vpack.c.bf16 %v4518, %v4517
  %v4659 = vpack.c.bf16 %v4520, %v4519
  %v4660 = vpack.c.bf16 %v4522, %v4521
  %v4661 = vpack.c.bf16 %v4524, %v4523
  %v4662 = vpack.c.bf16 %v4526, %v4525
  %v4663 = vpack.c.bf16 %v4528, %v4527
  %v4664 = vpack.c.bf16 %v4530, %v4529
  %v4665 = vpack.c.bf16 %v4532, %v4531
  %v4666 = vpack.c.bf16 %v4534, %v4533
  %v4667 = vpack.c.bf16 %v4536, %v4535
  %v4668 = vpack.c.bf16 %v4538, %v4537
  %v4669 = vpack.c.bf16 %v4540, %v4539
  %v4670 = vpack.c.bf16 %v4542, %v4541
  %v4671 = vld [vmem:[%s6] sm:$0xf]
  %v4672 = vld [vmem:[%s6 + $0x4] sm:$0xf]
  %v4673 = vld [vmem:[%s6 + $0x8] sm:$0xf]
  %v4674 = vld [vmem:[%s6 + $0xc] sm:$0xf]
  %v4675 = vld [vmem:[%s7] sm:$0x1]
  %v4677 = vlaneseq
  %v4678 = vshrl.u32 %v4677, 7
  %v4679 = vsub.s32 0, %v4678
  %v4680 = vrot.slane %v4675, %v4679
  %v4686 = vunpack.c.l.b16 %v4671
  %v4687 = vunpack.c.l.b16 %v4672
  %v4688 = vunpack.c.l.b16 %v4673
  %v4689 = vunpack.c.l.b16 %v4674
  %v4690 = vpack.c.b16 %v4687, %v4686
  %v4691 = vpack.c.b16 %v4689, %v4688
  %vm4694 = vcmask 261120
  %v4696 = vsel %vm4694, %v4543, 0
  %v4699 = vsel %vm4694, %v4544, 0
  %v4702 = vsel %vm4694, %v4545, 0
  %v4705 = vsel %vm4694, %v4546, 0
  %v4708 = vsel %vm4694, %v4547, 0
  %v4711 = vsel %vm4694, %v4548, 0
  %v4714 = vsel %vm4694, %v4549, 0
  %v4717 = vsel %vm4694, %v4550, 0
  %v4720 = vsel %vm4694, %v4551, 0
  %v4723 = vsel %vm4694, %v4552, 0
  %v4726 = vsel %vm4694, %v4553, 0
  %v4729 = vsel %vm4694, %v4554, 0
  %v4732 = vsel %vm4694, %v4555, 0
  %v4735 = vsel %vm4694, %v4556, 0
  %v4738 = vsel %vm4694, %v4557, 0
  %v4741 = vsel %vm4694, %v4558, 0
  %v4744 = vsel %vm4694, %v4559, 0
  %v4747 = vsel %vm4694, %v4560, 0
  %v4750 = vsel %vm4694, %v4561, 0
  %v4753 = vsel %vm4694, %v4562, 0
  %v4756 = vsel %vm4694, %v4563, 0
  %v4759 = vsel %vm4694, %v4564, 0
  %v4762 = vsel %vm4694, %v4565, 0
  %v4765 = vsel %vm4694, %v4566, 0
  %v4768 = vsel %vm4694, %v4567, 0
  %v4771 = vsel %vm4694, %v4568, 0
  %v4774 = vsel %vm4694, %v4569, 0
  %v4777 = vsel %vm4694, %v4570, 0
  %v4780 = vsel %vm4694, %v4571, 0
  %v4783 = vsel %vm4694, %v4572, 0
  %v4786 = vsel %vm4694, %v4573, 0
  %v4789 = vsel %vm4694, %v4574, 0
  %v4792 = vsel %vm4694, %v4575, 0
  %v4795 = vsel %vm4694, %v4576, 0
  %v4798 = vsel %vm4694, %v4577, 0
  %v4801 = vsel %vm4694, %v4578, 0
  %v4804 = vsel %vm4694, %v4579, 0
  %v4807 = vsel %vm4694, %v4580, 0
  %v4810 = vsel %vm4694, %v4581, 0
  %v4813 = vsel %vm4694, %v4582, 0
  %v4816 = vsel %vm4694, %v4583, 0
  %v4819 = vsel %vm4694, %v4584, 0
  %v4822 = vsel %vm4694, %v4585, 0
  %v4825 = vsel %vm4694, %v4586, 0
  %v4828 = vsel %vm4694, %v4587, 0
  %v4831 = vsel %vm4694, %v4588, 0
  %v4834 = vsel %vm4694, %v4589, 0
  %v4837 = vsel %vm4694, %v4590, 0
  %v4840 = vsel %vm4694, %v4591, 0
  %v4843 = vsel %vm4694, %v4592, 0
  %v4846 = vsel %vm4694, %v4593, 0
  %v4849 = vsel %vm4694, %v4594, 0
  %v4852 = vsel %vm4694, %v4595, 0
  %v4855 = vsel %vm4694, %v4596, 0
  %v4858 = vsel %vm4694, %v4597, 0
  %v4861 = vsel %vm4694, %v4598, 0
  %v4864 = vsel %vm4694, %v4599, 0
  %v4867 = vsel %vm4694, %v4600, 0
  %v4870 = vsel %vm4694, %v4601, 0
  %v4873 = vsel %vm4694, %v4602, 0
  %v4876 = vsel %vm4694, %v4603, 0
  %v4879 = vsel %vm4694, %v4604, 0
  %v4882 = vsel %vm4694, %v4605, 0
  %v4885 = vsel %vm4694, %v4606, 0
  %v4888 = vsel %vm4694, %v4607, 0
  %v4891 = vsel %vm4694, %v4608, 0
  %v4894 = vsel %vm4694, %v4609, 0
  %v4897 = vsel %vm4694, %v4610, 0
  %v4900 = vsel %vm4694, %v4611, 0
  %v4903 = vsel %vm4694, %v4612, 0
  %v4906 = vsel %vm4694, %v4613, 0
  %v4909 = vsel %vm4694, %v4614, 0
  %v4912 = vsel %vm4694, %v4615, 0
  %v4915 = vsel %vm4694, %v4616, 0
  %v4918 = vsel %vm4694, %v4617, 0
  %v4921 = vsel %vm4694, %v4618, 0
  %v4924 = vsel %vm4694, %v4619, 0
  %v4927 = vsel %vm4694, %v4620, 0
  %v4930 = vsel %vm4694, %v4621, 0
  %v4933 = vsel %vm4694, %v4622, 0
  %v4936 = vsel %vm4694, %v4623, 0
  %v4939 = vsel %vm4694, %v4624, 0
  %v4942 = vsel %vm4694, %v4625, 0
  %v4945 = vsel %vm4694, %v4626, 0
  %v4948 = vsel %vm4694, %v4627, 0
  %v4951 = vsel %vm4694, %v4628, 0
  %v4954 = vsel %vm4694, %v4629, 0
  %v4957 = vsel %vm4694, %v4630, 0
  %v4960 = vsel %vm4694, %v4631, 0
  %v4963 = vsel %vm4694, %v4632, 0
  %v4966 = vsel %vm4694, %v4633, 0
  %v4969 = vsel %vm4694, %v4634, 0
  %v4972 = vsel %vm4694, %v4635, 0
  %v4975 = vsel %vm4694, %v4636, 0
  %v4978 = vsel %vm4694, %v4637, 0
  %v4981 = vsel %vm4694, %v4638, 0
  %v4984 = vsel %vm4694, %v4639, 0
  %v4987 = vsel %vm4694, %v4640, 0
  %v4990 = vsel %vm4694, %v4641, 0
  %v4993 = vsel %vm4694, %v4642, 0
  %v4996 = vsel %vm4694, %v4643, 0
  %v4999 = vsel %vm4694, %v4644, 0
  %v5002 = vsel %vm4694, %v4645, 0
  %v5005 = vsel %vm4694, %v4646, 0
  %v5008 = vsel %vm4694, %v4647, 0
  %v5011 = vsel %vm4694, %v4648, 0
  %v5014 = vsel %vm4694, %v4649, 0
  %v5017 = vsel %vm4694, %v4650, 0
  %v5020 = vsel %vm4694, %v4651, 0
  %v5023 = vsel %vm4694, %v4652, 0
  %v5026 = vsel %vm4694, %v4653, 0
  %v5029 = vsel %vm4694, %v4654, 0
  %v5032 = vsel %vm4694, %v4655, 0
  %v5035 = vsel %vm4694, %v4656, 0
  %v5038 = vsel %vm4694, %v4657, 0
  %v5041 = vsel %vm4694, %v4658, 0
  %v5044 = vsel %vm4694, %v4659, 0
  %v5047 = vsel %vm4694, %v4660, 0
  %v5050 = vsel %vm4694, %v4661, 0
  %v5053 = vsel %vm4694, %v4662, 0
  %v5056 = vsel %vm4694, %v4663, 0
  %v5059 = vsel %vm4694, %v4664, 0
  %v5062 = vsel %vm4694, %v4665, 0
  %v5065 = vsel %vm4694, %v4666, 0
  %v5068 = vsel %vm4694, %v4667, 0
  %v5071 = vsel %vm4694, %v4668, 0
  %v5074 = vsel %vm4694, %v4669, 0
  %v5077 = vsel %vm4694, %v4670, 0
  %5079 = vmatprep.subr.bf16.mxu0 0
  %5080 = vmatpush1.bf16.msra.mxu0 %v4690
  %5081 = vmatprep.subr.bf16.mxu0 0
  %5082 = vmatpush1.bf16.msra.mxu0 %v4691
  %5083 = vmatprep.subr.bf16.mxu0 0
  %5084 = vmatpush1.bf16.msra.mxu0 0
  %5085 = vmatprep.subr.bf16.mxu0 0
  %5086 = vmatpush1.bf16.msra.mxu0 0
  %5087 = vmatprep.subr.bf16.mxu0 0
  %5088 = vmatpush1.bf16.msra.mxu0 0
  %5089 = vmatprep.subr.bf16.mxu0 0
  %5090 = vmatpush1.bf16.msra.mxu0 0
  %5091 = vmatprep.subr.bf16.mxu0 0
  %5092 = vmatpush1.bf16.msra.mxu0 0
  %5093 = vmatprep.subr.bf16.mxu0 0
  %5094 = vmatpush1.bf16.msra.mxu0 0
  %5095 = vmatprep.subr.bf16.mxu0 0
  %5096 = vmatpush1.bf16.msra.mxu0 0
  %5097 = vmatprep.subr.bf16.mxu0 0
  %5098 = vmatpush1.bf16.msra.mxu0 0
  %5099 = vmatprep.subr.bf16.mxu0 0
  %5100 = vmatpush1.bf16.msra.mxu0 0
  %5101 = vmatprep.subr.bf16.mxu0 0
  %5102 = vmatpush1.bf16.msra.mxu0 0
  %5103 = vmatprep.subr.bf16.mxu0 0
  %5104 = vmatpush1.bf16.msra.mxu0 0
  %5105 = vmatprep.subr.bf16.mxu0 0
  %5106 = vmatpush1.bf16.msra.mxu0 0
  %5107 = vmatprep.subr.bf16.mxu0 0
  %5108 = vmatpush1.bf16.msra.mxu0 0
  %5109 = vmatprep.subr.bf16.mxu0 0
  %5110 = vmatpush1.bf16.msra.mxu0 0
  %5111 = vmatprep.mubr.bf16.mxu0 0
  %5112 = vmatmul.mubr.bf16.gmra.mrb[0].mxu0 %v4696
  %v5113 = vpop.f32.mrb[0].mxu0
  %v5114 = vadd.f32 %v4680, %v5113
  %v5115 = vpop.f32.mrb[0].mxu0
  %v5116 = vpop.f32.mrb[0].mxu0
  %v5117 = vadd.f32 %v4680, %v5116
  %v5118 = vpop.f32.mrb[0].mxu0
  %5119 = vmatprep.mubr.bf16.mxu0 0
  %5120 = vmatmul.mubr.bf16.gmra.mrb[0].mxu0 %v4699
  %v5121 = vpop.f32.mrb[0].mxu0
  %v5122 = vadd.f32 %v4680, %v5121
  %v5123 = vpop.f32.mrb[0].mxu0
  %v5124 = vpop.f32.mrb[0].mxu0
  %v5125 = vadd.f32 %v4680, %v5124
  %v5126 = vpop.f32.mrb[0].mxu0
  %5127 = vmatprep.mubr.bf16.mxu0 0
  %5128 = vmatmul.mubr.bf16.gmra.mrb[0].mxu0 %v4702
  %v5129 = vpop.f32.mrb[0].mxu0
  %v5130 = vadd.f32 %v4680, %v5129
  %v5131 = vpop.f32.mrb[0].mxu0
  %v5132 = vpop.f32.mrb[0].mxu0
  %v5133 = vadd.f32 %v4680, %v5132
  %v5134 = vpop.f32.mrb[0].mxu0
  %5135 = vmatprep.mubr.bf16.mxu0 0
  %5136 = vmatmul.mubr.bf16.gmra.mrb[0].mxu0 %v4705
  %v5137 = vpop.f32.mrb[0].mxu0
  %v5138 = vadd.f32 %v4680, %v5137
  %v5139 = vpop.f32.mrb[0].mxu0
  %v5140 = vpop.f32.mrb[0].mxu0
  %v5141 = vadd.f32 %v4680, %v5140
  %v5142 = vpop.f32.mrb[0].mxu0
  %5143 = vmatprep.mubr.bf16.mxu0 0
  %5144 = vmatmul.mubr.bf16.gmra.mrb[0].mxu0 %v4708
  %v5145 = vpop.f32.mrb[0].mxu0
  %v5146 = vadd.f32 %v4680, %v5145
  %v5147 = vpop.f32.mrb[0].mxu0
  %v5148 = vpop.f32.mrb[0].mxu0
  %v5149 = vadd.f32 %v4680, %v5148
  %v5150 = vpop.f32.mrb[0].mxu0
  %5151 = vmatprep.mubr.bf16.mxu0 0
  %5152 = vmatmul.mubr.bf16.gmra.mrb[0].mxu0 %v4711
  %v5153 = vpop.f32.mrb[0].mxu0
  %v5154 = vadd.f32 %v4680, %v5153
  %v5155 = vpop.f32.mrb[0].mxu0
  %v5156 = vpop.f32.mrb[0].mxu0
  %v5157 = vadd.f32 %v4680, %v5156
  %v5158 = vpop.f32.mrb[0].mxu0
  %5159 = vmatprep.mubr.bf16.mxu0 0
  %5160 = vmatmul.mubr.bf16.gmra.mrb[0].mxu0 %v4714
  %v5161 = vpop.f32.mrb[0].mxu0
  %v5162 = vadd.f32 %v4680, %v5161
  %v5163 = vpop.f32.mrb[0].mxu0
  %v5164 = vpop.f32.mrb[0].mxu0
  %v5165 = vadd.f32 %v4680, %v5164
  %v5166 = vpop.f32.mrb[0].mxu0
  %5167 = vmatprep.mubr.bf16.mxu0 0
  %5168 = vmatmul.mubr.bf16.gmra.mrb[0].mxu0 %v4717
  %v5169 = vpop.f32.mrb[0].mxu0
  %v5170 = vadd.f32 %v4680, %v5169
  %v5171 = vpop.f32.mrb[0].mxu0
  %v5172 = vpop.f32.mrb[0].mxu0
  %v5173 = vadd.f32 %v4680, %v5172
  %v5174 = vpop.f32.mrb[0].mxu0
  %5175 = vmatprep.mubr.bf16.mxu0 0
  %5176 = vmatmul.mubr.bf16.gmra.mrb[0].mxu0 %v4720
  %v5177 = vpop.f32.mrb[0].mxu0
  %v5178 = vadd.f32 %v4680, %v5177
  %v5179 = vpop.f32.mrb[0].mxu0
  %v5180 = vpop.f32.mrb[0].mxu0
  %v5181 = vadd.f32 %v4680, %v5180
  %v5182 = vpop.f32.mrb[0].mxu0
  %5183 = vmatprep.mubr.bf16.mxu0 0
  %5184 = vmatmul.mubr.bf16.gmra.mrb[0].mxu0 %v4723
  %v5185 = vpop.f32.mrb[0].mxu0
  %v5186 = vadd.f32 %v4680, %v5185
  %v5187 = vpop.f32.mrb[0].mxu0
  %v5188 = vpop.f32.mrb[0].mxu0
  %v5189 = vadd.f32 %v4680, %v5188
  %v5190 = vpop.f32.mrb[0].mxu0
  %5191 = vmatprep.mubr.bf16.mxu0 0
  %5192 = vmatmul.mubr.bf16.gmra.mrb[0].mxu0 %v4726
  %v5193 = vpop.f32.mrb[0].mxu0
  %v5194 = vadd.f32 %v4680, %v5193
  %v5195 = vpop.f32.mrb[0].mxu0
  %v5196 = vpop.f32.mrb[0].mxu0
  %v5197 = vadd.f32 %v4680, %v5196
  %v5198 = vpop.f32.mrb[0].mxu0
  %5199 = vmatprep.mubr.bf16.mxu0 0
  %5200 = vmatmul.mubr.bf16.gmra.mrb[0].mxu0 %v4729
  %v5201 = vpop.f32.mrb[0].mxu0
  %v5202 = vadd.f32 %v4680, %v5201
  %v5203 = vpop.f32.mrb[0].mxu0
  %v5204 = vpop.f32.mrb[0].mxu0
  %v5205 = vadd.f32 %v4680, %v5204
  %v5206 = vpop.f32.mrb[0].mxu0
  %5207 = vmatprep.mubr.bf16.mxu0 0
  %5208 = vmatmul.mubr.bf16.gmra.mrb[0].mxu0 %v4732
  %v5209 = vpop.f32.mrb[0].mxu0
  %v5210 = vadd.f32 %v4680, %v5209
  %v5211 = vpop.f32.mrb[0].mxu0
  %v5212 = vpop.f32.mrb[0].mxu0
  %v5213 = vadd.f32 %v4680, %v5212
  %v5214 = vpop.f32.mrb[0].mxu0
  %5215 = vmatprep.mubr.bf16.mxu0 0
  %5216 = vmatmul.mubr.bf16.gmra.mrb[0].mxu0 %v4735
  %v5217 = vpop.f32.mrb[0].mxu0
  %v5218 = vadd.f32 %v4680, %v5217
  %v5219 = vpop.f32.mrb[0].mxu0
  %v5220 = vpop.f32.mrb[0].mxu0
  %v5221 = vadd.f32 %v4680, %v5220
  %v5222 = vpop.f32.mrb[0].mxu0
  %5223 = vmatprep.mubr.bf16.mxu0 0
  %5224 = vmatmul.mubr.bf16.gmra.mrb[0].mxu0 %v4738
  %v5225 = vpop.f32.mrb[0].mxu0
  %v5226 = vadd.f32 %v4680, %v5225
  %v5227 = vpop.f32.mrb[0].mxu0
  %v5228 = vpop.f32.mrb[0].mxu0
  %v5229 = vadd.f32 %v4680, %v5228
  %v5230 = vpop.f32.mrb[0].mxu0
  %5231 = vmatprep.mubr.bf16.mxu0 0
  %5232 = vmatmul.mubr.bf16.gmra.mrb[0].mxu0 %v4741
  %v5233 = vpop.f32.mrb[0].mxu0
  %v5234 = vadd.f32 %v4680, %v5233
  %v5235 = vpop.f32.mrb[0].mxu0
  %v5236 = vpop.f32.mrb[0].mxu0
  %v5237 = vadd.f32 %v4680, %v5236
  %v5238 = vpop.f32.mrb[0].mxu0
  %5239 = vmatprep.mubr.bf16.mxu0 0
  %5240 = vmatmul.mubr.bf16.gmra.mrb[0].mxu0 %v4744
  %v5241 = vpop.f32.mrb[0].mxu0
  %v5242 = vadd.f32 %v4680, %v5241
  %v5243 = vpop.f32.mrb[0].mxu0
  %v5244 = vpop.f32.mrb[0].mxu0
  %v5245 = vadd.f32 %v4680, %v5244
  %v5246 = vpop.f32.mrb[0].mxu0
  %5247 = vmatprep.mubr.bf16.mxu0 0
  %5248 = vmatmul.mubr.bf16.gmra.mrb[0].mxu0 %v4747
  %v5249 = vpop.f32.mrb[0].mxu0
  %v5250 = vadd.f32 %v4680, %v5249
  %v5251 = vpop.f32.mrb[0].mxu0
  %v5252 = vpop.f32.mrb[0].mxu0
  %v5253 = vadd.f32 %v4680, %v5252
  %v5254 = vpop.f32.mrb[0].mxu0
  %5255 = vmatprep.mubr.bf16.mxu0 0
  %5256 = vmatmul.mubr.bf16.gmra.mrb[0].mxu0 %v4750
  %v5257 = vpop.f32.mrb[0].mxu0
  %v5258 = vadd.f32 %v4680, %v5257
  %v5259 = vpop.f32.mrb[0].mxu0
  %v5260 = vpop.f32.mrb[0].mxu0
  %v5261 = vadd.f32 %v4680, %v5260
  %v5262 = vpop.f32.mrb[0].mxu0
  %5263 = vmatprep.mubr.bf16.mxu0 0
  %5264 = vmatmul.mubr.bf16.gmra.mrb[0].mxu0 %v4753
  %v5265 = vpop.f32.mrb[0].mxu0
  %v5266 = vadd.f32 %v4680, %v5265
  %v5267 = vpop.f32.mrb[0].mxu0
  %v5268 = vpop.f32.mrb[0].mxu0
  %v5269 = vadd.f32 %v4680, %v5268
  %v5270 = vpop.f32.mrb[0].mxu0
  %5271 = vmatprep.mubr.bf16.mxu0 0
  %5272 = vmatmul.mubr.bf16.gmra.mrb[0].mxu0 %v4756
  %v5273 = vpop.f32.mrb[0].mxu0
  %v5274 = vadd.f32 %v4680, %v5273
  %v5275 = vpop.f32.mrb[0].mxu0
  %v5276 = vpop.f32.mrb[0].mxu0
  %v5277 = vadd.f32 %v4680, %v5276
  %v5278 = vpop.f32.mrb[0].mxu0
  %5279 = vmatprep.mubr.bf16.mxu0 0
  %5280 = vmatmul.mubr.bf16.gmra.mrb[0].mxu0 %v4759
  %v5281 = vpop.f32.mrb[0].mxu0
  %v5282 = vadd.f32 %v4680, %v5281
  %v5283 = vpop.f32.mrb[0].mxu0
  %v5284 = vpop.f32.mrb[0].mxu0
  %v5285 = vadd.f32 %v4680, %v5284
  %v5286 = vpop.f32.mrb[0].mxu0
  %5287 = vmatprep.mubr.bf16.mxu0 0
  %5288 = vmatmul.mubr.bf16.gmra.mrb[0].mxu0 %v4762
  %v5289 = vpop.f32.mrb[0].mxu0
  %v5290 = vadd.f32 %v4680, %v5289
  %v5291 = vpop.f32.mrb[0].mxu0
  %v5292 = vpop.f32.mrb[0].mxu0
  %v5293 = vadd.f32 %v4680, %v5292
  %v5294 = vpop.f32.mrb[0].mxu0
  %5295 = vmatprep.mubr.bf16.mxu0 0
  %5296 = vmatmul.mubr.bf16.gmra.mrb[0].mxu0 %v4765
  %v5297 = vpop.f32.mrb[0].mxu0
  %v5298 = vadd.f32 %v4680, %v5297
  %v5299 = vpop.f32.mrb[0].mxu0
  %v5300 = vpop.f32.mrb[0].mxu0
  %v5301 = vadd.f32 %v4680, %v5300
  %v5302 = vpop.f32.mrb[0].mxu0
  %5303 = vmatprep.mubr.bf16.mxu0 0
  %5304 = vmatmul.mubr.bf16.gmra.mrb[0].mxu0 %v4768
  %v5305 = vpop.f32.mrb[0].mxu0
  %v5306 = vadd.f32 %v4680, %v5305
  %v5307 = vpop.f32.mrb[0].mxu0
  %v5308 = vpop.f32.mrb[0].mxu0
  %v5309 = vadd.f32 %v4680, %v5308
  %v5310 = vpop.f32.mrb[0].mxu0
  %5311 = vmatprep.mubr.bf16.mxu0 0
  %5312 = vmatmul.mubr.bf16.gmra.mrb[0].mxu0 %v4771
  %v5313 = vpop.f32.mrb[0].mxu0
  %v5314 = vadd.f32 %v4680, %v5313
  %v5315 = vpop.f32.mrb[0].mxu0
  %v5316 = vpop.f32.mrb[0].mxu0
  %v5317 = vadd.f32 %v4680, %v5316
  %v5318 = vpop.f32.mrb[0].mxu0
  %5319 = vmatprep.mubr.bf16.mxu0 0
  %5320 = vmatmul.mubr.bf16.gmra.mrb[0].mxu0 %v4774
  %v5321 = vpop.f32.mrb[0].mxu0
  %v5322 = vadd.f32 %v4680, %v5321
  %v5323 = vpop.f32.mrb[0].mxu0
  %v5324 = vpop.f32.mrb[0].mxu0
  %v5325 = vadd.f32 %v4680, %v5324
  %v5326 = vpop.f32.mrb[0].mxu0
  %5327 = vmatprep.mubr.bf16.mxu0 0
  %5328 = vmatmul.mubr.bf16.gmra.mrb[0].mxu0 %v4777
  %v5329 = vpop.f32.mrb[0].mxu0
  %v5330 = vadd.f32 %v4680, %v5329
  %v5331 = vpop.f32.mrb[0].mxu0
  %v5332 = vpop.f32.mrb[0].mxu0
  %v5333 = vadd.f32 %v4680, %v5332
  %v5334 = vpop.f32.mrb[0].mxu0
  %5335 = vmatprep.mubr.bf16.mxu0 0
  %5336 = vmatmul.mubr.bf16.gmra.mrb[0].mxu0 %v4780
  %v5337 = vpop.f32.mrb[0].mxu0
  %v5338 = vadd.f32 %v4680, %v5337
  %v5339 = vpop.f32.mrb[0].mxu0
  %v5340 = vpop.f32.mrb[0].mxu0
  %v5341 = vadd.f32 %v4680, %v5340
  %v5342 = vpop.f32.mrb[0].mxu0
  %5343 = vmatprep.mubr.bf16.mxu0 0
  %5344 = vmatmul.mubr.bf16.gmra.mrb[0].mxu0 %v4783
  %v5345 = vpop.f32.mrb[0].mxu0
  %v5346 = vadd.f32 %v4680, %v5345
  %v5347 = vpop.f32.mrb[0].mxu0
  %v5348 = vpop.f32.mrb[0].mxu0
  %v5349 = vadd.f32 %v4680, %v5348
  %v5350 = vpop.f32.mrb[0].mxu0
  %5351 = vmatprep.mubr.bf16.mxu0 0
  %5352 = vmatmul.mubr.bf16.gmra.mrb[0].mxu0 %v4786
  %v5353 = vpop.f32.mrb[0].mxu0
  %v5354 = vadd.f32 %v4680, %v5353
  %v5355 = vpop.f32.mrb[0].mxu0
  %v5356 = vpop.f32.mrb[0].mxu0
  %v5357 = vadd.f32 %v4680, %v5356
  %v5358 = vpop.f32.mrb[0].mxu0
  %5359 = vmatprep.mubr.bf16.mxu0 0
  %5360 = vmatmul.mubr.bf16.gmra.mrb[0].mxu0 %v4789
  %v5361 = vpop.f32.mrb[0].mxu0
  %v5362 = vadd.f32 %v4680, %v5361
  %v5363 = vpop.f32.mrb[0].mxu0
  %v5364 = vpop.f32.mrb[0].mxu0
  %v5365 = vadd.f32 %v4680, %v5364
  %v5366 = vpop.f32.mrb[0].mxu0
  %5367 = vmatprep.mubr.bf16.mxu0 0
  %5368 = vmatmul.mubr.bf16.gmra.mrb[0].mxu0 %v4792
  %v5369 = vpop.f32.mrb[0].mxu0
  %v5370 = vadd.f32 %v4680, %v5369
  %v5371 = vpop.f32.mrb[0].mxu0
  %v5372 = vpop.f32.mrb[0].mxu0
  %v5373 = vadd.f32 %v4680, %v5372
  %v5374 = vpop.f32.mrb[0].mxu0
  %5375 = vmatprep.mubr.bf16.mxu0 0
  %5376 = vmatmul.mubr.bf16.gmra.mrb[0].mxu0 %v4795
  %v5377 = vpop.f32.mrb[0].mxu0
  %v5378 = vadd.f32 %v4680, %v5377
  %v5379 = vpop.f32.mrb[0].mxu0
  %v5380 = vpop.f32.mrb[0].mxu0
  %v5381 = vadd.f32 %v4680, %v5380
  %v5382 = vpop.f32.mrb[0].mxu0
  %5383 = vmatprep.mubr.bf16.mxu0 0
  %5384 = vmatmul.mubr.bf16.gmra.mrb[0].mxu0 %v4798
  %v5385 = vpop.f32.mrb[0].mxu0
  %v5386 = vadd.f32 %v4680, %v5385
  %v5387 = vpop.f32.mrb[0].mxu0
  %v5388 = vpop.f32.mrb[0].mxu0
  %v5389 = vadd.f32 %v4680, %v5388
  %v5390 = vpop.f32.mrb[0].mxu0
  %5391 = vmatprep.mubr.bf16.mxu0 0
  %5392 = vmatmul.mubr.bf16.gmra.mrb[0].mxu0 %v4801
  %v5393 = vpop.f32.mrb[0].mxu0
  %v5394 = vadd.f32 %v4680, %v5393
  %v5395 = vpop.f32.mrb[0].mxu0
  %v5396 = vpop.f32.mrb[0].mxu0
  %v5397 = vadd.f32 %v4680, %v5396
  %v5398 = vpop.f32.mrb[0].mxu0
  %5399 = vmatprep.mubr.bf16.mxu0 0
  %5400 = vmatmul.mubr.bf16.gmra.mrb[0].mxu0 %v4804
  %v5401 = vpop.f32.mrb[0].mxu0
  %v5402 = vadd.f32 %v4680, %v5401
  %v5403 = vpop.f32.mrb[0].mxu0
  %v5404 = vpop.f32.mrb[0].mxu0
  %v5405 = vadd.f32 %v4680, %v5404
  %v5406 = vpop.f32.mrb[0].mxu0
  %5407 = vmatprep.mubr.bf16.mxu0 0
  %5408 = vmatmul.mubr.bf16.gmra.mrb[0].mxu0 %v4807
  %v5409 = vpop.f32.mrb[0].mxu0
  %v5410 = vadd.f32 %v4680, %v5409
  %v5411 = vpop.f32.mrb[0].mxu0
  %v5412 = vpop.f32.mrb[0].mxu0
  %v5413 = vadd.f32 %v4680, %v5412
  %v5414 = vpop.f32.mrb[0].mxu0
  %5415 = vmatprep.mubr.bf16.mxu0 0
  %5416 = vmatmul.mubr.bf16.gmra.mrb[0].mxu0 %v4810
  %v5417 = vpop.f32.mrb[0].mxu0
  %v5418 = vadd.f32 %v4680, %v5417
  %v5419 = vpop.f32.mrb[0].mxu0
  %v5420 = vpop.f32.mrb[0].mxu0
  %v5421 = vadd.f32 %v4680, %v5420
  %v5422 = vpop.f32.mrb[0].mxu0
  %5423 = vmatprep.mubr.bf16.mxu0 0
  %5424 = vmatmul.mubr.bf16.gmra.mrb[0].mxu0 %v4813
  %v5425 = vpop.f32.mrb[0].mxu0
  %v5426 = vadd.f32 %v4680, %v5425
  %v5427 = vpop.f32.mrb[0].mxu0
  %v5428 = vpop.f32.mrb[0].mxu0
  %v5429 = vadd.f32 %v4680, %v5428
  %v5430 = vpop.f32.mrb[0].mxu0
  %5431 = vmatprep.mubr.bf16.mxu0 0
  %5432 = vmatmul.mubr.bf16.gmra.mrb[0].mxu0 %v4816
  %v5433 = vpop.f32.mrb[0].mxu0
  %v5434 = vadd.f32 %v4680, %v5433
  %v5435 = vpop.f32.mrb[0].mxu0
  %v5436 = vpop.f32.mrb[0].mxu0
  %v5437 = vadd.f32 %v4680, %v5436
  %v5438 = vpop.f32.mrb[0].mxu0
  %5439 = vmatprep.mubr.bf16.mxu0 0
  %5440 = vmatmul.mubr.bf16.gmra.mrb[0].mxu0 %v4819
  %v5441 = vpop.f32.mrb[0].mxu0
  %v5442 = vadd.f32 %v4680, %v5441
  %v5443 = vpop.f32.mrb[0].mxu0
  %v5444 = vpop.f32.mrb[0].mxu0
  %v5445 = vadd.f32 %v4680, %v5444
  %v5446 = vpop.f32.mrb[0].mxu0
  %5447 = vmatprep.mubr.bf16.mxu0 0
  %5448 = vmatmul.mubr.bf16.gmra.mrb[0].mxu0 %v4822
  %v5449 = vpop.f32.mrb[0].mxu0
  %v5450 = vadd.f32 %v4680, %v5449
  %v5451 = vpop.f32.mrb[0].mxu0
  %v5452 = vpop.f32.mrb[0].mxu0
  %v5453 = vadd.f32 %v4680, %v5452
  %v5454 = vpop.f32.mrb[0].mxu0
  %5455 = vmatprep.mubr.bf16.mxu0 0
  %5456 = vmatmul.mubr.bf16.gmra.mrb[0].mxu0 %v4825
  %v5457 = vpop.f32.mrb[0].mxu0
  %v5458 = vadd.f32 %v4680, %v5457
  %v5459 = vpop.f32.mrb[0].mxu0
  %v5460 = vpop.f32.mrb[0].mxu0
  %v5461 = vadd.f32 %v4680, %v5460
  %v5462 = vpop.f32.mrb[0].mxu0
  %5463 = vmatprep.mubr.bf16.mxu0 0
  %5464 = vmatmul.mubr.bf16.gmra.mrb[0].mxu0 %v4828
  %v5465 = vpop.f32.mrb[0].mxu0
  %v5466 = vadd.f32 %v4680, %v5465
  %v5467 = vpop.f32.mrb[0].mxu0
  %v5468 = vpop.f32.mrb[0].mxu0
  %v5469 = vadd.f32 %v4680, %v5468
  %v5470 = vpop.f32.mrb[0].mxu0
  %5471 = vmatprep.mubr.bf16.mxu0 0
  %5472 = vmatmul.mubr.bf16.gmra.mrb[0].mxu0 %v4831
  %v5473 = vpop.f32.mrb[0].mxu0
  %v5474 = vadd.f32 %v4680, %v5473
  %v5475 = vpop.f32.mrb[0].mxu0
  %v5476 = vpop.f32.mrb[0].mxu0
  %v5477 = vadd.f32 %v4680, %v5476
  %v5478 = vpop.f32.mrb[0].mxu0
  %5479 = vmatprep.mubr.bf16.mxu0 0
  %5480 = vmatmul.mubr.bf16.gmra.mrb[0].mxu0 %v4834
  %v5481 = vpop.f32.mrb[0].mxu0
  %v5482 = vadd.f32 %v4680, %v5481
  %v5483 = vpop.f32.mrb[0].mxu0
  %v5484 = vpop.f32.mrb[0].mxu0
  %v5485 = vadd.f32 %v4680, %v5484
  %v5486 = vpop.f32.mrb[0].mxu0
  %5487 = vmatprep.mubr.bf16.mxu0 0
  %5488 = vmatmul.mubr.bf16.gmra.mrb[0].mxu0 %v4837
  %v5489 = vpop.f32.mrb[0].mxu0
  %v5490 = vadd.f32 %v4680, %v5489
  %v5491 = vpop.f32.mrb[0].mxu0
  %v5492 = vpop.f32.mrb[0].mxu0
  %v5493 = vadd.f32 %v4680, %v5492
  %v5494 = vpop.f32.mrb[0].mxu0
  %5495 = vmatprep.mubr.bf16.mxu0 0
  %5496 = vmatmul.mubr.bf16.gmra.mrb[0].mxu0 %v4840
  %v5497 = vpop.f32.mrb[0].mxu0
  %v5498 = vadd.f32 %v4680, %v5497
  %v5499 = vpop.f32.mrb[0].mxu0
  %v5500 = vpop.f32.mrb[0].mxu0
  %v5501 = vadd.f32 %v4680, %v5500
  %v5502 = vpop.f32.mrb[0].mxu0
  %5503 = vmatprep.mubr.bf16.mxu0 0
  %5504 = vmatmul.mubr.bf16.gmra.mrb[0].mxu0 %v4843
  %v5505 = vpop.f32.mrb[0].mxu0
  %v5506 = vadd.f32 %v4680, %v5505
  %v5507 = vpop.f32.mrb[0].mxu0
  %v5508 = vpop.f32.mrb[0].mxu0
  %v5509 = vadd.f32 %v4680, %v5508
  %v5510 = vpop.f32.mrb[0].mxu0
  %5511 = vmatprep.mubr.bf16.mxu0 0
  %5512 = vmatmul.mubr.bf16.gmra.mrb[0].mxu0 %v4846
  %v5513 = vpop.f32.mrb[0].mxu0
  %v5514 = vadd.f32 %v4680, %v5513
  %v5515 = vpop.f32.mrb[0].mxu0
  %v5516 = vpop.f32.mrb[0].mxu0
  %v5517 = vadd.f32 %v4680, %v5516
  %v5518 = vpop.f32.mrb[0].mxu0
  %5519 = vmatprep.mubr.bf16.mxu0 0
  %5520 = vmatmul.mubr.bf16.gmra.mrb[0].mxu0 %v4849
  %v5521 = vpop.f32.mrb[0].mxu0
  %v5522 = vadd.f32 %v4680, %v5521
  %v5523 = vpop.f32.mrb[0].mxu0
  %v5524 = vpop.f32.mrb[0].mxu0
  %v5525 = vadd.f32 %v4680, %v5524
  %v5526 = vpop.f32.mrb[0].mxu0
  %5527 = vmatprep.mubr.bf16.mxu0 0
  %5528 = vmatmul.mubr.bf16.gmra.mrb[0].mxu0 %v4852
  %v5529 = vpop.f32.mrb[0].mxu0
  %v5530 = vadd.f32 %v4680, %v5529
  %v5531 = vpop.f32.mrb[0].mxu0
  %v5532 = vpop.f32.mrb[0].mxu0
  %v5533 = vadd.f32 %v4680, %v5532
  %v5534 = vpop.f32.mrb[0].mxu0
  %5535 = vmatprep.mubr.bf16.mxu0 0
  %5536 = vmatmul.mubr.bf16.gmra.mrb[0].mxu0 %v4855
  %v5537 = vpop.f32.mrb[0].mxu0
  %v5538 = vadd.f32 %v4680, %v5537
  %v5539 = vpop.f32.mrb[0].mxu0
  %v5540 = vpop.f32.mrb[0].mxu0
  %v5541 = vadd.f32 %v4680, %v5540
  %v5542 = vpop.f32.mrb[0].mxu0
  %5543 = vmatprep.mubr.bf16.mxu0 0
  %5544 = vmatmul.mubr.bf16.gmra.mrb[0].mxu0 %v4858
  %v5545 = vpop.f32.mrb[0].mxu0
  %v5546 = vadd.f32 %v4680, %v5545
  %v5547 = vpop.f32.mrb[0].mxu0
  %v5548 = vpop.f32.mrb[0].mxu0
  %v5549 = vadd.f32 %v4680, %v5548
  %v5550 = vpop.f32.mrb[0].mxu0
  %5551 = vmatprep.mubr.bf16.mxu0 0
  %5552 = vmatmul.mubr.bf16.gmra.mrb[0].mxu0 %v4861
  %v5553 = vpop.f32.mrb[0].mxu0
  %v5554 = vadd.f32 %v4680, %v5553
  %v5555 = vpop.f32.mrb[0].mxu0
  %v5556 = vpop.f32.mrb[0].mxu0
  %v5557 = vadd.f32 %v4680, %v5556
  %v5558 = vpop.f32.mrb[0].mxu0
  %5559 = vmatprep.mubr.bf16.mxu0 0
  %5560 = vmatmul.mubr.bf16.gmra.mrb[0].mxu0 %v4864
  %v5561 = vpop.f32.mrb[0].mxu0
  %v5562 = vadd.f32 %v4680, %v5561
  %v5563 = vpop.f32.mrb[0].mxu0
  %v5564 = vpop.f32.mrb[0].mxu0
  %v5565 = vadd.f32 %v4680, %v5564
  %v5566 = vpop.f32.mrb[0].mxu0
  %5567 = vmatprep.mubr.bf16.mxu0 0
  %5568 = vmatmul.mubr.bf16.gmra.mrb[0].mxu0 %v4867
  %v5569 = vpop.f32.mrb[0].mxu0
  %v5570 = vadd.f32 %v4680, %v5569
  %v5571 = vpop.f32.mrb[0].mxu0
  %v5572 = vpop.f32.mrb[0].mxu0
  %v5573 = vadd.f32 %v4680, %v5572
  %v5574 = vpop.f32.mrb[0].mxu0
  %5575 = vmatprep.mubr.bf16.mxu0 0
  %5576 = vmatmul.mubr.bf16.gmra.mrb[0].mxu0 %v4870
  %v5577 = vpop.f32.mrb[0].mxu0
  %v5578 = vadd.f32 %v4680, %v5577
  %v5579 = vpop.f32.mrb[0].mxu0
  %v5580 = vpop.f32.mrb[0].mxu0
  %v5581 = vadd.f32 %v4680, %v5580
  %v5582 = vpop.f32.mrb[0].mxu0
  %5583 = vmatprep.mubr.bf16.mxu0 0
  %5584 = vmatmul.mubr.bf16.gmra.mrb[0].mxu0 %v4873
  %v5585 = vpop.f32.mrb[0].mxu0
  %v5586 = vadd.f32 %v4680, %v5585
  %v5587 = vpop.f32.mrb[0].mxu0
  %v5588 = vpop.f32.mrb[0].mxu0
  %v5589 = vadd.f32 %v4680, %v5588
  %v5590 = vpop.f32.mrb[0].mxu0
  %5591 = vmatprep.mubr.bf16.mxu0 0
  %5592 = vmatmul.mubr.bf16.gmra.mrb[0].mxu0 %v4876
  %v5593 = vpop.f32.mrb[0].mxu0
  %v5594 = vadd.f32 %v4680, %v5593
  %v5595 = vpop.f32.mrb[0].mxu0
  %v5596 = vpop.f32.mrb[0].mxu0
  %v5597 = vadd.f32 %v4680, %v5596
  %v5598 = vpop.f32.mrb[0].mxu0
  %5599 = vmatprep.mubr.bf16.mxu0 0
  %5600 = vmatmul.mubr.bf16.gmra.mrb[0].mxu0 %v4879
  %v5601 = vpop.f32.mrb[0].mxu0
  %v5602 = vadd.f32 %v4680, %v5601
  %v5603 = vpop.f32.mrb[0].mxu0
  %v5604 = vpop.f32.mrb[0].mxu0
  %v5605 = vadd.f32 %v4680, %v5604
  %v5606 = vpop.f32.mrb[0].mxu0
  %5607 = vmatprep.mubr.bf16.mxu0 0
  %5608 = vmatmul.mubr.bf16.gmra.mrb[0].mxu0 %v4882
  %v5609 = vpop.f32.mrb[0].mxu0
  %v5610 = vadd.f32 %v4680, %v5609
  %v5611 = vpop.f32.mrb[0].mxu0
  %v5612 = vpop.f32.mrb[0].mxu0
  %v5613 = vadd.f32 %v4680, %v5612
  %v5614 = vpop.f32.mrb[0].mxu0
  %5615 = vmatprep.mubr.bf16.mxu0 0
  %5616 = vmatmul.mubr.bf16.gmra.mrb[0].mxu0 %v4885
  %v5617 = vpop.f32.mrb[0].mxu0
  %v5618 = vadd.f32 %v4680, %v5617
  %v5619 = vpop.f32.mrb[0].mxu0
  %v5620 = vpop.f32.mrb[0].mxu0
  %v5621 = vadd.f32 %v4680, %v5620
  %v5622 = vpop.f32.mrb[0].mxu0
  %5623 = vmatprep.mubr.bf16.mxu0 0
  %5624 = vmatmul.mubr.bf16.gmra.mrb[0].mxu0 %v4888
  %v5625 = vpop.f32.mrb[0].mxu0
  %v5626 = vadd.f32 %v4680, %v5625
  %v5627 = vpop.f32.mrb[0].mxu0
  %v5628 = vpop.f32.mrb[0].mxu0
  %v5629 = vadd.f32 %v4680, %v5628
  %v5630 = vpop.f32.mrb[0].mxu0
  %5631 = vmatprep.mubr.bf16.mxu0 0
  %5632 = vmatmul.mubr.bf16.gmra.mrb[0].mxu0 %v4891
  %v5633 = vpop.f32.mrb[0].mxu0
  %v5634 = vadd.f32 %v4680, %v5633
  %v5635 = vpop.f32.mrb[0].mxu0
  %v5636 = vpop.f32.mrb[0].mxu0
  %v5637 = vadd.f32 %v4680, %v5636
  %v5638 = vpop.f32.mrb[0].mxu0
  %5639 = vmatprep.mubr.bf16.mxu0 0
  %5640 = vmatmul.mubr.bf16.gmra.mrb[0].mxu0 %v4894
  %v5641 = vpop.f32.mrb[0].mxu0
  %v5642 = vadd.f32 %v4680, %v5641
  %v5643 = vpop.f32.mrb[0].mxu0
  %v5644 = vpop.f32.mrb[0].mxu0
  %v5645 = vadd.f32 %v4680, %v5644
  %v5646 = vpop.f32.mrb[0].mxu0
  %5647 = vmatprep.mubr.bf16.mxu0 0
  %5648 = vmatmul.mubr.bf16.gmra.mrb[0].mxu0 %v4897
  %v5649 = vpop.f32.mrb[0].mxu0
  %v5650 = vadd.f32 %v4680, %v5649
  %v5651 = vpop.f32.mrb[0].mxu0
  %v5652 = vpop.f32.mrb[0].mxu0
  %v5653 = vadd.f32 %v4680, %v5652
  %v5654 = vpop.f32.mrb[0].mxu0
  %5655 = vmatprep.mubr.bf16.mxu0 0
  %5656 = vmatmul.mubr.bf16.gmra.mrb[0].mxu0 %v4900
  %v5657 = vpop.f32.mrb[0].mxu0
  %v5658 = vadd.f32 %v4680, %v5657
  %v5659 = vpop.f32.mrb[0].mxu0
  %v5660 = vpop.f32.mrb[0].mxu0
  %v5661 = vadd.f32 %v4680, %v5660
  %v5662 = vpop.f32.mrb[0].mxu0
  %5663 = vmatprep.mubr.bf16.mxu0 0
  %5664 = vmatmul.mubr.bf16.gmra.mrb[0].mxu0 %v4903
  %v5665 = vpop.f32.mrb[0].mxu0
  %v5666 = vadd.f32 %v4680, %v5665
  %v5667 = vpop.f32.mrb[0].mxu0
  %v5668 = vpop.f32.mrb[0].mxu0
  %v5669 = vadd.f32 %v4680, %v5668
  %v5670 = vpop.f32.mrb[0].mxu0
  %5671 = vmatprep.mubr.bf16.mxu0 0
  %5672 = vmatmul.mubr.bf16.gmra.mrb[0].mxu0 %v4906
  %v5673 = vpop.f32.mrb[0].mxu0
  %v5674 = vadd.f32 %v4680, %v5673
  %v5675 = vpop.f32.mrb[0].mxu0
  %v5676 = vpop.f32.mrb[0].mxu0
  %v5677 = vadd.f32 %v4680, %v5676
  %v5678 = vpop.f32.mrb[0].mxu0
  %5679 = vmatprep.mubr.bf16.mxu0 0
  %5680 = vmatmul.mubr.bf16.gmra.mrb[0].mxu0 %v4909
  %v5681 = vpop.f32.mrb[0].mxu0
  %v5682 = vadd.f32 %v4680, %v5681
  %v5683 = vpop.f32.mrb[0].mxu0
  %v5684 = vpop.f32.mrb[0].mxu0
  %v5685 = vadd.f32 %v4680, %v5684
  %v5686 = vpop.f32.mrb[0].mxu0
  %5687 = vmatprep.mubr.bf16.mxu0 0
  %5688 = vmatmul.mubr.bf16.gmra.mrb[0].mxu0 %v4912
  %v5689 = vpop.f32.mrb[0].mxu0
  %v5690 = vadd.f32 %v4680, %v5689
  %v5691 = vpop.f32.mrb[0].mxu0
  %v5692 = vpop.f32.mrb[0].mxu0
  %v5693 = vadd.f32 %v4680, %v5692
  %v5694 = vpop.f32.mrb[0].mxu0
  %5695 = vmatprep.mubr.bf16.mxu0 0
  %5696 = vmatmul.mubr.bf16.gmra.mrb[0].mxu0 %v4915
  %v5697 = vpop.f32.mrb[0].mxu0
  %v5698 = vadd.f32 %v4680, %v5697
  %v5699 = vpop.f32.mrb[0].mxu0
  %v5700 = vpop.f32.mrb[0].mxu0
  %v5701 = vadd.f32 %v4680, %v5700
  %v5702 = vpop.f32.mrb[0].mxu0
  %5703 = vmatprep.mubr.bf16.mxu0 0
  %5704 = vmatmul.mubr.bf16.gmra.mrb[0].mxu0 %v4918
  %v5705 = vpop.f32.mrb[0].mxu0
  %v5706 = vadd.f32 %v4680, %v5705
  %v5707 = vpop.f32.mrb[0].mxu0
  %v5708 = vpop.f32.mrb[0].mxu0
  %v5709 = vadd.f32 %v4680, %v5708
  %v5710 = vpop.f32.mrb[0].mxu0
  %5711 = vmatprep.mubr.bf16.mxu0 0
  %5712 = vmatmul.mubr.bf16.gmra.mrb[0].mxu0 %v4921
  %v5713 = vpop.f32.mrb[0].mxu0
  %v5714 = vadd.f32 %v4680, %v5713
  %v5715 = vpop.f32.mrb[0].mxu0
  %v5716 = vpop.f32.mrb[0].mxu0
  %v5717 = vadd.f32 %v4680, %v5716
  %v5718 = vpop.f32.mrb[0].mxu0
  %5719 = vmatprep.mubr.bf16.mxu0 0
  %5720 = vmatmul.mubr.bf16.gmra.mrb[0].mxu0 %v4924
  %v5721 = vpop.f32.mrb[0].mxu0
  %v5722 = vadd.f32 %v4680, %v5721
  %v5723 = vpop.f32.mrb[0].mxu0
  %v5724 = vpop.f32.mrb[0].mxu0
  %v5725 = vadd.f32 %v4680, %v5724
  %v5726 = vpop.f32.mrb[0].mxu0
  %5727 = vmatprep.mubr.bf16.mxu0 0
  %5728 = vmatmul.mubr.bf16.gmra.mrb[0].mxu0 %v4927
  %v5729 = vpop.f32.mrb[0].mxu0
  %v5730 = vadd.f32 %v4680, %v5729
  %v5731 = vpop.f32.mrb[0].mxu0
  %v5732 = vpop.f32.mrb[0].mxu0
  %v5733 = vadd.f32 %v4680, %v5732
  %v5734 = vpop.f32.mrb[0].mxu0
  %5735 = vmatprep.mubr.bf16.mxu0 0
  %5736 = vmatmul.mubr.bf16.gmra.mrb[0].mxu0 %v4930
  %v5737 = vpop.f32.mrb[0].mxu0
  %v5738 = vadd.f32 %v4680, %v5737
  %v5739 = vpop.f32.mrb[0].mxu0
  %v5740 = vpop.f32.mrb[0].mxu0
  %v5741 = vadd.f32 %v4680, %v5740
  %v5742 = vpop.f32.mrb[0].mxu0
  %5743 = vmatprep.mubr.bf16.mxu0 0
  %5744 = vmatmul.mubr.bf16.gmra.mrb[0].mxu0 %v4933
  %v5745 = vpop.f32.mrb[0].mxu0
  %v5746 = vadd.f32 %v4680, %v5745
  %v5747 = vpop.f32.mrb[0].mxu0
  %v5748 = vpop.f32.mrb[0].mxu0
  %v5749 = vadd.f32 %v4680, %v5748
  %v5750 = vpop.f32.mrb[0].mxu0
  %5751 = vmatprep.mubr.bf16.mxu0 0
  %5752 = vmatmul.mubr.bf16.gmra.mrb[0].mxu0 %v4936
  %v5753 = vpop.f32.mrb[0].mxu0
  %v5754 = vadd.f32 %v4680, %v5753
  %v5755 = vpop.f32.mrb[0].mxu0
  %v5756 = vpop.f32.mrb[0].mxu0
  %v5757 = vadd.f32 %v4680, %v5756
  %v5758 = vpop.f32.mrb[0].mxu0
  %5759 = vmatprep.mubr.bf16.mxu0 0
  %5760 = vmatmul.mubr.bf16.gmra.mrb[0].mxu0 %v4939
  %v5761 = vpop.f32.mrb[0].mxu0
  %v5762 = vadd.f32 %v4680, %v5761
  %v5763 = vpop.f32.mrb[0].mxu0
  %v5764 = vpop.f32.mrb[0].mxu0
  %v5765 = vadd.f32 %v4680, %v5764
  %v5766 = vpop.f32.mrb[0].mxu0
  %5767 = vmatprep.mubr.bf16.mxu0 0
  %5768 = vmatmul.mubr.bf16.gmra.mrb[0].mxu0 %v4942
  %v5769 = vpop.f32.mrb[0].mxu0
  %v5770 = vadd.f32 %v4680, %v5769
  %v5771 = vpop.f32.mrb[0].mxu0
  %v5772 = vpop.f32.mrb[0].mxu0
  %v5773 = vadd.f32 %v4680, %v5772
  %v5774 = vpop.f32.mrb[0].mxu0
  %5775 = vmatprep.mubr.bf16.mxu0 0
  %5776 = vmatmul.mubr.bf16.gmra.mrb[0].mxu0 %v4945
  %v5777 = vpop.f32.mrb[0].mxu0
  %v5778 = vadd.f32 %v4680, %v5777
  %v5779 = vpop.f32.mrb[0].mxu0
  %v5780 = vpop.f32.mrb[0].mxu0
  %v5781 = vadd.f32 %v4680, %v5780
  %v5782 = vpop.f32.mrb[0].mxu0
  %5783 = vmatprep.mubr.bf16.mxu0 0
  %5784 = vmatmul.mubr.bf16.gmra.mrb[0].mxu0 %v4948
  %v5785 = vpop.f32.mrb[0].mxu0
  %v5786 = vadd.f32 %v4680, %v5785
  %v5787 = vpop.f32.mrb[0].mxu0
  %v5788 = vpop.f32.mrb[0].mxu0
  %v5789 = vadd.f32 %v4680, %v5788
  %v5790 = vpop.f32.mrb[0].mxu0
  %5791 = vmatprep.mubr.bf16.mxu0 0
  %5792 = vmatmul.mubr.bf16.gmra.mrb[0].mxu0 %v4951
  %v5793 = vpop.f32.mrb[0].mxu0
  %v5794 = vadd.f32 %v4680, %v5793
  %v5795 = vpop.f32.mrb[0].mxu0
  %v5796 = vpop.f32.mrb[0].mxu0
  %v5797 = vadd.f32 %v4680, %v5796
  %v5798 = vpop.f32.mrb[0].mxu0
  %5799 = vmatprep.mubr.bf16.mxu0 0
  %5800 = vmatmul.mubr.bf16.gmra.mrb[0].mxu0 %v4954
  %v5801 = vpop.f32.mrb[0].mxu0
  %v5802 = vadd.f32 %v4680, %v5801
  %v5803 = vpop.f32.mrb[0].mxu0
  %v5804 = vpop.f32.mrb[0].mxu0
  %v5805 = vadd.f32 %v4680, %v5804
  %v5806 = vpop.f32.mrb[0].mxu0
  %5807 = vmatprep.mubr.bf16.mxu0 0
  %5808 = vmatmul.mubr.bf16.gmra.mrb[0].mxu0 %v4957
  %v5809 = vpop.f32.mrb[0].mxu0
  %v5810 = vadd.f32 %v4680, %v5809
  %v5811 = vpop.f32.mrb[0].mxu0
  %v5812 = vpop.f32.mrb[0].mxu0
  %v5813 = vadd.f32 %v4680, %v5812
  %v5814 = vpop.f32.mrb[0].mxu0
  %5815 = vmatprep.mubr.bf16.mxu0 0
  %5816 = vmatmul.mubr.bf16.gmra.mrb[0].mxu0 %v4960
  %v5817 = vpop.f32.mrb[0].mxu0
  %v5818 = vadd.f32 %v4680, %v5817
  %v5819 = vpop.f32.mrb[0].mxu0
  %v5820 = vpop.f32.mrb[0].mxu0
  %v5821 = vadd.f32 %v4680, %v5820
  %v5822 = vpop.f32.mrb[0].mxu0
  %5823 = vmatprep.mubr.bf16.mxu0 0
  %5824 = vmatmul.mubr.bf16.gmra.mrb[0].mxu0 %v4963
  %v5825 = vpop.f32.mrb[0].mxu0
  %v5826 = vadd.f32 %v4680, %v5825
  %v5827 = vpop.f32.mrb[0].mxu0
  %v5828 = vpop.f32.mrb[0].mxu0
  %v5829 = vadd.f32 %v4680, %v5828
  %v5830 = vpop.f32.mrb[0].mxu0
  %5831 = vmatprep.mubr.bf16.mxu0 0
  %5832 = vmatmul.mubr.bf16.gmra.mrb[0].mxu0 %v4966
  %v5833 = vpop.f32.mrb[0].mxu0
  %v5834 = vadd.f32 %v4680, %v5833
  %v5835 = vpop.f32.mrb[0].mxu0
  %v5836 = vpop.f32.mrb[0].mxu0
  %v5837 = vadd.f32 %v4680, %v5836
  %v5838 = vpop.f32.mrb[0].mxu0
  %5839 = vmatprep.mubr.bf16.mxu0 0
  %5840 = vmatmul.mubr.bf16.gmra.mrb[0].mxu0 %v4969
  %v5841 = vpop.f32.mrb[0].mxu0
  %v5842 = vadd.f32 %v4680, %v5841
  %v5843 = vpop.f32.mrb[0].mxu0
  %v5844 = vpop.f32.mrb[0].mxu0
  %v5845 = vadd.f32 %v4680, %v5844
  %v5846 = vpop.f32.mrb[0].mxu0
  %5847 = vmatprep.mubr.bf16.mxu0 0
  %5848 = vmatmul.mubr.bf16.gmra.mrb[0].mxu0 %v4972
  %v5849 = vpop.f32.mrb[0].mxu0
  %v5850 = vadd.f32 %v4680, %v5849
  %v5851 = vpop.f32.mrb[0].mxu0
  %v5852 = vpop.f32.mrb[0].mxu0
  %v5853 = vadd.f32 %v4680, %v5852
  %v5854 = vpop.f32.mrb[0].mxu0
  %5855 = vmatprep.mubr.bf16.mxu0 0
  %5856 = vmatmul.mubr.bf16.gmra.mrb[0].mxu0 %v4975
  %v5857 = vpop.f32.mrb[0].mxu0
  %v5858 = vadd.f32 %v4680, %v5857
  %v5859 = vpop.f32.mrb[0].mxu0
  %v5860 = vpop.f32.mrb[0].mxu0
  %v5861 = vadd.f32 %v4680, %v5860
  %v5862 = vpop.f32.mrb[0].mxu0
  %5863 = vmatprep.mubr.bf16.mxu0 0
  %5864 = vmatmul.mubr.bf16.gmra.mrb[0].mxu0 %v4978
  %v5865 = vpop.f32.mrb[0].mxu0
  %v5866 = vadd.f32 %v4680, %v5865
  %v5867 = vpop.f32.mrb[0].mxu0
  %v5868 = vpop.f32.mrb[0].mxu0
  %v5869 = vadd.f32 %v4680, %v5868
  %v5870 = vpop.f32.mrb[0].mxu0
  %5871 = vmatprep.mubr.bf16.mxu0 0
  %5872 = vmatmul.mubr.bf16.gmra.mrb[0].mxu0 %v4981
  %v5873 = vpop.f32.mrb[0].mxu0
  %v5874 = vadd.f32 %v4680, %v5873
  %v5875 = vpop.f32.mrb[0].mxu0
  %v5876 = vpop.f32.mrb[0].mxu0
  %v5877 = vadd.f32 %v4680, %v5876
  %v5878 = vpop.f32.mrb[0].mxu0
  %5879 = vmatprep.mubr.bf16.mxu0 0
  %5880 = vmatmul.mubr.bf16.gmra.mrb[0].mxu0 %v4984
  %v5881 = vpop.f32.mrb[0].mxu0
  %v5882 = vadd.f32 %v4680, %v5881
  %v5883 = vpop.f32.mrb[0].mxu0
  %v5884 = vpop.f32.mrb[0].mxu0
  %v5885 = vadd.f32 %v4680, %v5884
  %v5886 = vpop.f32.mrb[0].mxu0
  %5887 = vmatprep.mubr.bf16.mxu0 0
  %5888 = vmatmul.mubr.bf16.gmra.mrb[0].mxu0 %v4987
  %v5889 = vpop.f32.mrb[0].mxu0
  %v5890 = vadd.f32 %v4680, %v5889
  %v5891 = vpop.f32.mrb[0].mxu0
  %v5892 = vpop.f32.mrb[0].mxu0
  %v5893 = vadd.f32 %v4680, %v5892
  %v5894 = vpop.f32.mrb[0].mxu0
  %5895 = vmatprep.mubr.bf16.mxu0 0
  %5896 = vmatmul.mubr.bf16.gmra.mrb[0].mxu0 %v4990
  %v5897 = vpop.f32.mrb[0].mxu0
  %v5898 = vadd.f32 %v4680, %v5897
  %v5899 = vpop.f32.mrb[0].mxu0
  %v5900 = vpop.f32.mrb[0].mxu0
  %v5901 = vadd.f32 %v4680, %v5900
  %v5902 = vpop.f32.mrb[0].mxu0
  %5903 = vmatprep.mubr.bf16.mxu0 0
  %5904 = vmatmul.mubr.bf16.gmra.mrb[0].mxu0 %v4993
  %v5905 = vpop.f32.mrb[0].mxu0
  %v5906 = vadd.f32 %v4680, %v5905
  %v5907 = vpop.f32.mrb[0].mxu0
  %v5908 = vpop.f32.mrb[0].mxu0
  %v5909 = vadd.f32 %v4680, %v5908
  %v5910 = vpop.f32.mrb[0].mxu0
  %5911 = vmatprep.mubr.bf16.mxu0 0
  %5912 = vmatmul.mubr.bf16.gmra.mrb[0].mxu0 %v4996
  %v5913 = vpop.f32.mrb[0].mxu0
  %v5914 = vadd.f32 %v4680, %v5913
  %v5915 = vpop.f32.mrb[0].mxu0
  %v5916 = vpop.f32.mrb[0].mxu0
  %v5917 = vadd.f32 %v4680, %v5916
  %v5918 = vpop.f32.mrb[0].mxu0
  %5919 = vmatprep.mubr.bf16.mxu0 0
  %5920 = vmatmul.mubr.bf16.gmra.mrb[0].mxu0 %v4999
  %v5921 = vpop.f32.mrb[0].mxu0
  %v5922 = vadd.f32 %v4680, %v5921
  %v5923 = vpop.f32.mrb[0].mxu0
  %v5924 = vpop.f32.mrb[0].mxu0
  %v5925 = vadd.f32 %v4680, %v5924
  %v5926 = vpop.f32.mrb[0].mxu0
  %5927 = vmatprep.mubr.bf16.mxu0 0
  %5928 = vmatmul.mubr.bf16.gmra.mrb[0].mxu0 %v5002
  %v5929 = vpop.f32.mrb[0].mxu0
  %v5930 = vadd.f32 %v4680, %v5929
  %v5931 = vpop.f32.mrb[0].mxu0
  %v5932 = vpop.f32.mrb[0].mxu0
  %v5933 = vadd.f32 %v4680, %v5932
  %v5934 = vpop.f32.mrb[0].mxu0
  %5935 = vmatprep.mubr.bf16.mxu0 0
  %5936 = vmatmul.mubr.bf16.gmra.mrb[0].mxu0 %v5005
  %v5937 = vpop.f32.mrb[0].mxu0
  %v5938 = vadd.f32 %v4680, %v5937
  %v5939 = vpop.f32.mrb[0].mxu0
  %v5940 = vpop.f32.mrb[0].mxu0
  %v5941 = vadd.f32 %v4680, %v5940
  %v5942 = vpop.f32.mrb[0].mxu0
  %5943 = vmatprep.mubr.bf16.mxu0 0
  %5944 = vmatmul.mubr.bf16.gmra.mrb[0].mxu0 %v5008
  %v5945 = vpop.f32.mrb[0].mxu0
  %v5946 = vadd.f32 %v4680, %v5945
  %v5947 = vpop.f32.mrb[0].mxu0
  %v5948 = vpop.f32.mrb[0].mxu0
  %v5949 = vadd.f32 %v4680, %v5948
  %v5950 = vpop.f32.mrb[0].mxu0
  %5951 = vmatprep.mubr.bf16.mxu0 0
  %5952 = vmatmul.mubr.bf16.gmra.mrb[0].mxu0 %v5011
  %v5953 = vpop.f32.mrb[0].mxu0
  %v5954 = vadd.f32 %v4680, %v5953
  %v5955 = vpop.f32.mrb[0].mxu0
  %v5956 = vpop.f32.mrb[0].mxu0
  %v5957 = vadd.f32 %v4680, %v5956
  %v5958 = vpop.f32.mrb[0].mxu0
  %5959 = vmatprep.mubr.bf16.mxu0 0
  %5960 = vmatmul.mubr.bf16.gmra.mrb[0].mxu0 %v5014
  %v5961 = vpop.f32.mrb[0].mxu0
  %v5962 = vadd.f32 %v4680, %v5961
  %v5963 = vpop.f32.mrb[0].mxu0
  %v5964 = vpop.f32.mrb[0].mxu0
  %v5965 = vadd.f32 %v4680, %v5964
  %v5966 = vpop.f32.mrb[0].mxu0
  %5967 = vmatprep.mubr.bf16.mxu0 0
  %5968 = vmatmul.mubr.bf16.gmra.mrb[0].mxu0 %v5017
  %v5969 = vpop.f32.mrb[0].mxu0
  %v5970 = vadd.f32 %v4680, %v5969
  %v5971 = vpop.f32.mrb[0].mxu0
  %v5972 = vpop.f32.mrb[0].mxu0
  %v5973 = vadd.f32 %v4680, %v5972
  %v5974 = vpop.f32.mrb[0].mxu0
  %5975 = vmatprep.mubr.bf16.mxu0 0
  %5976 = vmatmul.mubr.bf16.gmra.mrb[0].mxu0 %v5020
  %v5977 = vpop.f32.mrb[0].mxu0
  %v5978 = vadd.f32 %v4680, %v5977
  %v5979 = vpop.f32.mrb[0].mxu0
  %v5980 = vpop.f32.mrb[0].mxu0
  %v5981 = vadd.f32 %v4680, %v5980
  %v5982 = vpop.f32.mrb[0].mxu0
  %5983 = vmatprep.mubr.bf16.mxu0 0
  %5984 = vmatmul.mubr.bf16.gmra.mrb[0].mxu0 %v5023
  %v5985 = vpop.f32.mrb[0].mxu0
  %v5986 = vadd.f32 %v4680, %v5985
  %v5987 = vpop.f32.mrb[0].mxu0
  %v5988 = vpop.f32.mrb[0].mxu0
  %v5989 = vadd.f32 %v4680, %v5988
  %v5990 = vpop.f32.mrb[0].mxu0
  %5991 = vmatprep.mubr.bf16.mxu0 0
  %5992 = vmatmul.mubr.bf16.gmra.mrb[0].mxu0 %v5026
  %v5993 = vpop.f32.mrb[0].mxu0
  %v5994 = vadd.f32 %v4680, %v5993
  %v5995 = vpop.f32.mrb[0].mxu0
  %v5996 = vpop.f32.mrb[0].mxu0
  %v5997 = vadd.f32 %v4680, %v5996
  %v5998 = vpop.f32.mrb[0].mxu0
  %5999 = vmatprep.mubr.bf16.mxu0 0
  %6000 = vmatmul.mubr.bf16.gmra.mrb[0].mxu0 %v5029
  %v6001 = vpop.f32.mrb[0].mxu0
  %v6002 = vadd.f32 %v4680, %v6001
  %v6003 = vpop.f32.mrb[0].mxu0
  %v6004 = vpop.f32.mrb[0].mxu0
  %v6005 = vadd.f32 %v4680, %v6004
  %v6006 = vpop.f32.mrb[0].mxu0
  %6007 = vmatprep.mubr.bf16.mxu0 0
  %6008 = vmatmul.mubr.bf16.gmra.mrb[0].mxu0 %v5032
  %v6009 = vpop.f32.mrb[0].mxu0
  %v6010 = vadd.f32 %v4680, %v6009
  %v6011 = vpop.f32.mrb[0].mxu0
  %v6012 = vpop.f32.mrb[0].mxu0
  %v6013 = vadd.f32 %v4680, %v6012
  %v6014 = vpop.f32.mrb[0].mxu0
  %6015 = vmatprep.mubr.bf16.mxu0 0
  %6016 = vmatmul.mubr.bf16.gmra.mrb[0].mxu0 %v5035
  %v6017 = vpop.f32.mrb[0].mxu0
  %v6018 = vadd.f32 %v4680, %v6017
  %v6019 = vpop.f32.mrb[0].mxu0
  %v6020 = vpop.f32.mrb[0].mxu0
  %v6021 = vadd.f32 %v4680, %v6020
  %v6022 = vpop.f32.mrb[0].mxu0
  %6023 = vmatprep.mubr.bf16.mxu0 0
  %6024 = vmatmul.mubr.bf16.gmra.mrb[0].mxu0 %v5038
  %v6025 = vpop.f32.mrb[0].mxu0
  %v6026 = vadd.f32 %v4680, %v6025
  %v6027 = vpop.f32.mrb[0].mxu0
  %v6028 = vpop.f32.mrb[0].mxu0
  %v6029 = vadd.f32 %v4680, %v6028
  %v6030 = vpop.f32.mrb[0].mxu0
  %6031 = vmatprep.mubr.bf16.mxu0 0
  %6032 = vmatmul.mubr.bf16.gmra.mrb[0].mxu0 %v5041
  %v6033 = vpop.f32.mrb[0].mxu0
  %v6034 = vadd.f32 %v4680, %v6033
  %v6035 = vpop.f32.mrb[0].mxu0
  %v6036 = vpop.f32.mrb[0].mxu0
  %v6037 = vadd.f32 %v4680, %v6036
  %v6038 = vpop.f32.mrb[0].mxu0
  %6039 = vmatprep.mubr.bf16.mxu0 0
  %6040 = vmatmul.mubr.bf16.gmra.mrb[0].mxu0 %v5044
  %v6041 = vpop.f32.mrb[0].mxu0
  %v6042 = vadd.f32 %v4680, %v6041
  %v6043 = vpop.f32.mrb[0].mxu0
  %v6044 = vpop.f32.mrb[0].mxu0
  %v6045 = vadd.f32 %v4680, %v6044
  %v6046 = vpop.f32.mrb[0].mxu0
  %6047 = vmatprep.mubr.bf16.mxu0 0
  %6048 = vmatmul.mubr.bf16.gmra.mrb[0].mxu0 %v5047
  %v6049 = vpop.f32.mrb[0].mxu0
  %v6050 = vadd.f32 %v4680, %v6049
  %v6051 = vpop.f32.mrb[0].mxu0
  %v6052 = vpop.f32.mrb[0].mxu0
  %v6053 = vadd.f32 %v4680, %v6052
  %v6054 = vpop.f32.mrb[0].mxu0
  %6055 = vmatprep.mubr.bf16.mxu0 0
  %6056 = vmatmul.mubr.bf16.gmra.mrb[0].mxu0 %v5050
  %v6057 = vpop.f32.mrb[0].mxu0
  %v6058 = vadd.f32 %v4680, %v6057
  %v6059 = vpop.f32.mrb[0].mxu0
  %v6060 = vpop.f32.mrb[0].mxu0
  %v6061 = vadd.f32 %v4680, %v6060
  %v6062 = vpop.f32.mrb[0].mxu0
  %6063 = vmatprep.mubr.bf16.mxu0 0
  %6064 = vmatmul.mubr.bf16.gmra.mrb[0].mxu0 %v5053
  %v6065 = vpop.f32.mrb[0].mxu0
  %v6066 = vadd.f32 %v4680, %v6065
  %v6067 = vpop.f32.mrb[0].mxu0
  %v6068 = vpop.f32.mrb[0].mxu0
  %v6069 = vadd.f32 %v4680, %v6068
  %v6070 = vpop.f32.mrb[0].mxu0
  %6071 = vmatprep.mubr.bf16.mxu0 0
  %6072 = vmatmul.mubr.bf16.gmra.mrb[0].mxu0 %v5056
  %v6073 = vpop.f32.mrb[0].mxu0
  %v6074 = vadd.f32 %v4680, %v6073
  %v6075 = vpop.f32.mrb[0].mxu0
  %v6076 = vpop.f32.mrb[0].mxu0
  %v6077 = vadd.f32 %v4680, %v6076
  %v6078 = vpop.f32.mrb[0].mxu0
  %6079 = vmatprep.mubr.bf16.mxu0 0
  %6080 = vmatmul.mubr.bf16.gmra.mrb[0].mxu0 %v5059
  %v6081 = vpop.f32.mrb[0].mxu0
  %v6082 = vadd.f32 %v4680, %v6081
  %v6083 = vpop.f32.mrb[0].mxu0
  %v6084 = vpop.f32.mrb[0].mxu0
  %v6085 = vadd.f32 %v4680, %v6084
  %v6086 = vpop.f32.mrb[0].mxu0
  %6087 = vmatprep.mubr.bf16.mxu0 0
  %6088 = vmatmul.mubr.bf16.gmra.mrb[0].mxu0 %v5062
  %v6089 = vpop.f32.mrb[0].mxu0
  %v6090 = vadd.f32 %v4680, %v6089
  %v6091 = vpop.f32.mrb[0].mxu0
  %v6092 = vpop.f32.mrb[0].mxu0
  %v6093 = vadd.f32 %v4680, %v6092
  %v6094 = vpop.f32.mrb[0].mxu0
  %6095 = vmatprep.mubr.bf16.mxu0 0
  %6096 = vmatmul.mubr.bf16.gmra.mrb[0].mxu0 %v5065
  %v6097 = vpop.f32.mrb[0].mxu0
  %v6098 = vadd.f32 %v4680, %v6097
  %v6099 = vpop.f32.mrb[0].mxu0
  %v6100 = vpop.f32.mrb[0].mxu0
  %v6101 = vadd.f32 %v4680, %v6100
  %v6102 = vpop.f32.mrb[0].mxu0
  %6103 = vmatprep.mubr.bf16.mxu0 0
  %6104 = vmatmul.mubr.bf16.gmra.mrb[0].mxu0 %v5068
  %v6105 = vpop.f32.mrb[0].mxu0
  %v6106 = vadd.f32 %v4680, %v6105
  %v6107 = vpop.f32.mrb[0].mxu0
  %v6108 = vpop.f32.mrb[0].mxu0
  %v6109 = vadd.f32 %v4680, %v6108
  %v6110 = vpop.f32.mrb[0].mxu0
  %6111 = vmatprep.mubr.bf16.mxu0 0
  %6112 = vmatmul.mubr.bf16.gmra.mrb[0].mxu0 %v5071
  %v6113 = vpop.f32.mrb[0].mxu0
  %v6114 = vadd.f32 %v4680, %v6113
  %v6115 = vpop.f32.mrb[0].mxu0
  %v6116 = vpop.f32.mrb[0].mxu0
  %v6117 = vadd.f32 %v4680, %v6116
  %v6118 = vpop.f32.mrb[0].mxu0
  %6119 = vmatprep.mubr.bf16.mxu0 0
  %6120 = vmatmul.mubr.bf16.gmra.mrb[0].mxu0 %v5074
  %v6121 = vpop.f32.mrb[0].mxu0
  %v6122 = vadd.f32 %v4680, %v6121
  %v6123 = vpop.f32.mrb[0].mxu0
  %v6124 = vpop.f32.mrb[0].mxu0
  %v6125 = vadd.f32 %v4680, %v6124
  %v6126 = vpop.f32.mrb[0].mxu0
  %6127 = vmatprep.mubr.bf16.mxu0 0
  %6128 = vmatmul.mubr.bf16.gmra.mrb[0].mxu0 %v5077
  %v6129 = vpop.f32.mrb[0].mxu0
  %v6130 = vadd.f32 %v4680, %v6129
  %v6131 = vpop.f32.mrb[0].mxu0
  %v6132 = vpop.f32.mrb[0].mxu0
  %v6133 = vadd.f32 %v4680, %v6132
  %v6134 = vpop.f32.mrb[0].mxu0
  %6135 = vdwg.mxu0
  %v6136 = vmax.f32 %v5114, 0.0
  %v6137 = vmax.f32 %v5117, 0.0
  %v6138 = vmax.f32 %v5122, 0.0
  %v6139 = vmax.f32 %v5125, 0.0
  %v6140 = vmax.f32 %v5130, 0.0
  %v6141 = vmax.f32 %v5133, 0.0
  %v6142 = vmax.f32 %v5138, 0.0
  %v6143 = vmax.f32 %v5141, 0.0
  %v6144 = vmax.f32 %v5146, 0.0
  %v6145 = vmax.f32 %v5149, 0.0
  %v6146 = vmax.f32 %v5154, 0.0
  %v6147 = vmax.f32 %v5157, 0.0
  %v6148 = vmax.f32 %v5162, 0.0
  %v6149 = vmax.f32 %v5165, 0.0
  %v6150 = vmax.f32 %v5170, 0.0
  %v6151 = vmax.f32 %v5173, 0.0
  %v6152 = vmax.f32 %v5178, 0.0
  %v6153 = vmax.f32 %v5181, 0.0
  %v6154 = vmax.f32 %v5186, 0.0
  %v6155 = vmax.f32 %v5189, 0.0
  %v6156 = vmax.f32 %v5194, 0.0
  %v6157 = vmax.f32 %v5197, 0.0
  %v6158 = vmax.f32 %v5202, 0.0
  %v6159 = vmax.f32 %v5205, 0.0
  %v6160 = vmax.f32 %v5210, 0.0
  %v6161 = vmax.f32 %v5213, 0.0
  %v6162 = vmax.f32 %v5218, 0.0
  %v6163 = vmax.f32 %v5221, 0.0
  %v6164 = vmax.f32 %v5226, 0.0
  %v6165 = vmax.f32 %v5229, 0.0
  %v6166 = vmax.f32 %v5234, 0.0
  %v6167 = vmax.f32 %v5237, 0.0
  %v6168 = vmax.f32 %v5242, 0.0
  %v6169 = vmax.f32 %v5245, 0.0
  %v6170 = vmax.f32 %v5250, 0.0
  %v6171 = vmax.f32 %v5253, 0.0
  %v6172 = vmax.f32 %v5258, 0.0
  %v6173 = vmax.f32 %v5261, 0.0
  %v6174 = vmax.f32 %v5266, 0.0
  %v6175 = vmax.f32 %v5269, 0.0
  %v6176 = vmax.f32 %v5274, 0.0
  %v6177 = vmax.f32 %v5277, 0.0
  %v6178 = vmax.f32 %v5282, 0.0
  %v6179 = vmax.f32 %v5285, 0.0
  %v6180 = vmax.f32 %v5290, 0.0
  %v6181 = vmax.f32 %v5293, 0.0
  %v6182 = vmax.f32 %v5298, 0.0
  %v6183 = vmax.f32 %v5301, 0.0
  %v6184 = vmax.f32 %v5306, 0.0
  %v6185 = vmax.f32 %v5309, 0.0
  %v6186 = vmax.f32 %v5314, 0.0
  %v6187 = vmax.f32 %v5317, 0.0
  %v6188 = vmax.f32 %v5322, 0.0
  %v6189 = vmax.f32 %v5325, 0.0
  %v6190 = vmax.f32 %v5330, 0.0
  %v6191 = vmax.f32 %v5333, 0.0
  %v6192 = vmax.f32 %v5338, 0.0
  %v6193 = vmax.f32 %v5341, 0.0
  %v6194 = vmax.f32 %v5346, 0.0
  %v6195 = vmax.f32 %v5349, 0.0
  %v6196 = vmax.f32 %v5354, 0.0
  %v6197 = vmax.f32 %v5357, 0.0
  %v6198 = vmax.f32 %v5362, 0.0
  %v6199 = vmax.f32 %v5365, 0.0
  %v6200 = vmax.f32 %v5370, 0.0
  %v6201 = vmax.f32 %v5373, 0.0
  %v6202 = vmax.f32 %v5378, 0.0
  %v6203 = vmax.f32 %v5381, 0.0
  %v6204 = vmax.f32 %v5386, 0.0
  %v6205 = vmax.f32 %v5389, 0.0
  %v6206 = vmax.f32 %v5394, 0.0
  %v6207 = vmax.f32 %v5397, 0.0
  %v6208 = vmax.f32 %v5402, 0.0
  %v6209 = vmax.f32 %v5405, 0.0
  %v6210 = vmax.f32 %v5410, 0.0
  %v6211 = vmax.f32 %v5413, 0.0
  %v6212 = vmax.f32 %v5418, 0.0
  %v6213 = vmax.f32 %v5421, 0.0
  %v6214 = vmax.f32 %v5426, 0.0
  %v6215 = vmax.f32 %v5429, 0.0
  %v6216 = vmax.f32 %v5434, 0.0
  %v6217 = vmax.f32 %v5437, 0.0
  %v6218 = vmax.f32 %v5442, 0.0
  %v6219 = vmax.f32 %v5445, 0.0
  %v6220 = vmax.f32 %v5450, 0.0
  %v6221 = vmax.f32 %v5453, 0.0
  %v6222 = vmax.f32 %v5458, 0.0
  %v6223 = vmax.f32 %v5461, 0.0
  %v6224 = vmax.f32 %v5466, 0.0
  %v6225 = vmax.f32 %v5469, 0.0
  %v6226 = vmax.f32 %v5474, 0.0
  %v6227 = vmax.f32 %v5477, 0.0
  %v6228 = vmax.f32 %v5482, 0.0
  %v6229 = vmax.f32 %v5485, 0.0
  %v6230 = vmax.f32 %v5490, 0.0
  %v6231 = vmax.f32 %v5493, 0.0
  %v6232 = vmax.f32 %v5498, 0.0
  %v6233 = vmax.f32 %v5501, 0.0
  %v6234 = vmax.f32 %v5506, 0.0
  %v6235 = vmax.f32 %v5509, 0.0
  %v6236 = vmax.f32 %v5514, 0.0
  %v6237 = vmax.f32 %v5517, 0.0
  %v6238 = vmax.f32 %v5522, 0.0
  %v6239 = vmax.f32 %v5525, 0.0
  %v6240 = vmax.f32 %v5530, 0.0
  %v6241 = vmax.f32 %v5533, 0.0
  %v6242 = vmax.f32 %v5538, 0.0
  %v6243 = vmax.f32 %v5541, 0.0
  %v6244 = vmax.f32 %v5546, 0.0
  %v6245 = vmax.f32 %v5549, 0.0
  %v6246 = vmax.f32 %v5554, 0.0
  %v6247 = vmax.f32 %v5557, 0.0
  %v6248 = vmax.f32 %v5562, 0.0
  %v6249 = vmax.f32 %v5565, 0.0
  %v6250 = vmax.f32 %v5570, 0.0
  %v6251 = vmax.f32 %v5573, 0.0
  %v6252 = vmax.f32 %v5578, 0.0
  %v6253 = vmax.f32 %v5581, 0.0
  %v6254 = vmax.f32 %v5586, 0.0
  %v6255 = vmax.f32 %v5589, 0.0
  %v6256 = vmax.f32 %v5594, 0.0
  %v6257 = vmax.f32 %v5597, 0.0
  %v6258 = vmax.f32 %v5602, 0.0
  %v6259 = vmax.f32 %v5605, 0.0
  %v6260 = vmax.f32 %v5610, 0.0
  %v6261 = vmax.f32 %v5613, 0.0
  %v6262 = vmax.f32 %v5618, 0.0
  %v6263 = vmax.f32 %v5621, 0.0
  %v6264 = vmax.f32 %v5626, 0.0
  %v6265 = vmax.f32 %v5629, 0.0
  %v6266 = vmax.f32 %v5634, 0.0
  %v6267 = vmax.f32 %v5637, 0.0
  %v6268 = vmax.f32 %v5642, 0.0
  %v6269 = vmax.f32 %v5645, 0.0
  %v6270 = vmax.f32 %v5650, 0.0
  %v6271 = vmax.f32 %v5653, 0.0
  %v6272 = vmax.f32 %v5658, 0.0
  %v6273 = vmax.f32 %v5661, 0.0
  %v6274 = vmax.f32 %v5666, 0.0
  %v6275 = vmax.f32 %v5669, 0.0
  %v6276 = vmax.f32 %v5674, 0.0
  %v6277 = vmax.f32 %v5677, 0.0
  %v6278 = vmax.f32 %v5682, 0.0
  %v6279 = vmax.f32 %v5685, 0.0
  %v6280 = vmax.f32 %v5690, 0.0
  %v6281 = vmax.f32 %v5693, 0.0
  %v6282 = vmax.f32 %v5698, 0.0
  %v6283 = vmax.f32 %v5701, 0.0
  %v6284 = vmax.f32 %v5706, 0.0
  %v6285 = vmax.f32 %v5709, 0.0
  %v6286 = vmax.f32 %v5714, 0.0
  %v6287 = vmax.f32 %v5717, 0.0
  %v6288 = vmax.f32 %v5722, 0.0
  %v6289 = vmax.f32 %v5725, 0.0
  %v6290 = vmax.f32 %v5730, 0.0
  %v6291 = vmax.f32 %v5733, 0.0
  %v6292 = vmax.f32 %v5738, 0.0
  %v6293 = vmax.f32 %v5741, 0.0
  %v6294 = vmax.f32 %v5746, 0.0
  %v6295 = vmax.f32 %v5749, 0.0
  %v6296 = vmax.f32 %v5754, 0.0
  %v6297 = vmax.f32 %v5757, 0.0
  %v6298 = vmax.f32 %v5762, 0.0
  %v6299 = vmax.f32 %v5765, 0.0
  %v6300 = vmax.f32 %v5770, 0.0
  %v6301 = vmax.f32 %v5773, 0.0
  %v6302 = vmax.f32 %v5778, 0.0
  %v6303 = vmax.f32 %v5781, 0.0
  %v6304 = vmax.f32 %v5786, 0.0
  %v6305 = vmax.f32 %v5789, 0.0
  %v6306 = vmax.f32 %v5794, 0.0
  %v6307 = vmax.f32 %v5797, 0.0
  %v6308 = vmax.f32 %v5802, 0.0
  %v6309 = vmax.f32 %v5805, 0.0
  %v6310 = vmax.f32 %v5810, 0.0
  %v6311 = vmax.f32 %v5813, 0.0
  %v6312 = vmax.f32 %v5818, 0.0
  %v6313 = vmax.f32 %v5821, 0.0
  %v6314 = vmax.f32 %v5826, 0.0
  %v6315 = vmax.f32 %v5829, 0.0
  %v6316 = vmax.f32 %v5834, 0.0
  %v6317 = vmax.f32 %v5837, 0.0
  %v6318 = vmax.f32 %v5842, 0.0
  %v6319 = vmax.f32 %v5845, 0.0
  %v6320 = vmax.f32 %v5850, 0.0
  %v6321 = vmax.f32 %v5853, 0.0
  %v6322 = vmax.f32 %v5858, 0.0
  %v6323 = vmax.f32 %v5861, 0.0
  %v6324 = vmax.f32 %v5866, 0.0
  %v6325 = vmax.f32 %v5869, 0.0
  %v6326 = vmax.f32 %v5874, 0.0
  %v6327 = vmax.f32 %v5877, 0.0
  %v6328 = vmax.f32 %v5882, 0.0
  %v6329 = vmax.f32 %v5885, 0.0
  %v6330 = vmax.f32 %v5890, 0.0
  %v6331 = vmax.f32 %v5893, 0.0
  %v6332 = vmax.f32 %v5898, 0.0
  %v6333 = vmax.f32 %v5901, 0.0
  %v6334 = vmax.f32 %v5906, 0.0
  %v6335 = vmax.f32 %v5909, 0.0
  %v6336 = vmax.f32 %v5914, 0.0
  %v6337 = vmax.f32 %v5917, 0.0
  %v6338 = vmax.f32 %v5922, 0.0
  %v6339 = vmax.f32 %v5925, 0.0
  %v6340 = vmax.f32 %v5930, 0.0
  %v6341 = vmax.f32 %v5933, 0.0
  %v6342 = vmax.f32 %v5938, 0.0
  %v6343 = vmax.f32 %v5941, 0.0
  %v6344 = vmax.f32 %v5946, 0.0
  %v6345 = vmax.f32 %v5949, 0.0
  %v6346 = vmax.f32 %v5954, 0.0
  %v6347 = vmax.f32 %v5957, 0.0
  %v6348 = vmax.f32 %v5962, 0.0
  %v6349 = vmax.f32 %v5965, 0.0
  %v6350 = vmax.f32 %v5970, 0.0
  %v6351 = vmax.f32 %v5973, 0.0
  %v6352 = vmax.f32 %v5978, 0.0
  %v6353 = vmax.f32 %v5981, 0.0
  %v6354 = vmax.f32 %v5986, 0.0
  %v6355 = vmax.f32 %v5989, 0.0
  %v6356 = vmax.f32 %v5994, 0.0
  %v6357 = vmax.f32 %v5997, 0.0
  %v6358 = vmax.f32 %v6002, 0.0
  %v6359 = vmax.f32 %v6005, 0.0
  %v6360 = vmax.f32 %v6010, 0.0
  %v6361 = vmax.f32 %v6013, 0.0
  %v6362 = vmax.f32 %v6018, 0.0
  %v6363 = vmax.f32 %v6021, 0.0
  %v6364 = vmax.f32 %v6026, 0.0
  %v6365 = vmax.f32 %v6029, 0.0
  %v6366 = vmax.f32 %v6034, 0.0
  %v6367 = vmax.f32 %v6037, 0.0
  %v6368 = vmax.f32 %v6042, 0.0
  %v6369 = vmax.f32 %v6045, 0.0
  %v6370 = vmax.f32 %v6050, 0.0
  %v6371 = vmax.f32 %v6053, 0.0
  %v6372 = vmax.f32 %v6058, 0.0
  %v6373 = vmax.f32 %v6061, 0.0
  %v6374 = vmax.f32 %v6066, 0.0
  %v6375 = vmax.f32 %v6069, 0.0
  %v6376 = vmax.f32 %v6074, 0.0
  %v6377 = vmax.f32 %v6077, 0.0
  %v6378 = vmax.f32 %v6082, 0.0
  %v6379 = vmax.f32 %v6085, 0.0
  %v6380 = vmax.f32 %v6090, 0.0
  %v6381 = vmax.f32 %v6093, 0.0
  %v6382 = vmax.f32 %v6098, 0.0
  %v6383 = vmax.f32 %v6101, 0.0
  %v6384 = vmax.f32 %v6106, 0.0
  %v6385 = vmax.f32 %v6109, 0.0
  %v6386 = vmax.f32 %v6114, 0.0
  %v6387 = vmax.f32 %v6117, 0.0
  %v6388 = vmax.f32 %v6122, 0.0
  %v6389 = vmax.f32 %v6125, 0.0
  %v6390 = vmax.f32 %v6130, 0.0
  %v6391 = vmax.f32 %v6133, 0.0
  %v6392 = vpack.c.bf16 %v6137, %v6136
  %v6393 = vpack.c.bf16 %v6139, %v6138
  %v6394 = vpack.c.bf16 %v6141, %v6140
  %v6395 = vpack.c.bf16 %v6143, %v6142
  %v6396 = vpack.c.bf16 %v6145, %v6144
  %v6397 = vpack.c.bf16 %v6147, %v6146
  %v6398 = vpack.c.bf16 %v6149, %v6148
  %v6399 = vpack.c.bf16 %v6151, %v6150
  %v6400 = vpack.c.bf16 %v6153, %v6152
  %v6401 = vpack.c.bf16 %v6155, %v6154
  %v6402 = vpack.c.bf16 %v6157, %v6156
  %v6403 = vpack.c.bf16 %v6159, %v6158
  %v6404 = vpack.c.bf16 %v6161, %v6160
  %v6405 = vpack.c.bf16 %v6163, %v6162
  %v6406 = vpack.c.bf16 %v6165, %v6164
  %v6407 = vpack.c.bf16 %v6167, %v6166
  %v6408 = vpack.c.bf16 %v6169, %v6168
  %v6409 = vpack.c.bf16 %v6171, %v6170
  %v6410 = vpack.c.bf16 %v6173, %v6172
  %v6411 = vpack.c.bf16 %v6175, %v6174
  %v6412 = vpack.c.bf16 %v6177, %v6176
  %v6413 = vpack.c.bf16 %v6179, %v6178
  %v6414 = vpack.c.bf16 %v6181, %v6180
  %v6415 = vpack.c.bf16 %v6183, %v6182
  %v6416 = vpack.c.bf16 %v6185, %v6184
  %v6417 = vpack.c.bf16 %v6187, %v6186
  %v6418 = vpack.c.bf16 %v6189, %v6188
  %v6419 = vpack.c.bf16 %v6191, %v6190
  %v6420 = vpack.c.bf16 %v6193, %v6192
  %v6421 = vpack.c.bf16 %v6195, %v6194
  %v6422 = vpack.c.bf16 %v6197, %v6196
  %v6423 = vpack.c.bf16 %v6199, %v6198
  %v6424 = vpack.c.bf16 %v6201, %v6200
  %v6425 = vpack.c.bf16 %v6203, %v6202
  %v6426 = vpack.c.bf16 %v6205, %v6204
  %v6427 = vpack.c.bf16 %v6207, %v6206
  %v6428 = vpack.c.bf16 %v6209, %v6208
  %v6429 = vpack.c.bf16 %v6211, %v6210
  %v6430 = vpack.c.bf16 %v6213, %v6212
  %v6431 = vpack.c.bf16 %v6215, %v6214
  %v6432 = vpack.c.bf16 %v6217, %v6216
  %v6433 = vpack.c.bf16 %v6219, %v6218
  %v6434 = vpack.c.bf16 %v6221, %v6220
  %v6435 = vpack.c.bf16 %v6223, %v6222
  %v6436 = vpack.c.bf16 %v6225, %v6224
  %v6437 = vpack.c.bf16 %v6227, %v6226
  %v6438 = vpack.c.bf16 %v6229, %v6228
  %v6439 = vpack.c.bf16 %v6231, %v6230
  %v6440 = vpack.c.bf16 %v6233, %v6232
  %v6441 = vpack.c.bf16 %v6235, %v6234
  %v6442 = vpack.c.bf16 %v6237, %v6236
  %v6443 = vpack.c.bf16 %v6239, %v6238
  %v6444 = vpack.c.bf16 %v6241, %v6240
  %v6445 = vpack.c.bf16 %v6243, %v6242
  %v6446 = vpack.c.bf16 %v6245, %v6244
  %v6447 = vpack.c.bf16 %v6247, %v6246
  %v6448 = vpack.c.bf16 %v6249, %v6248
  %v6449 = vpack.c.bf16 %v6251, %v6250
  %v6450 = vpack.c.bf16 %v6253, %v6252
  %v6451 = vpack.c.bf16 %v6255, %v6254
  %v6452 = vpack.c.bf16 %v6257, %v6256
  %v6453 = vpack.c.bf16 %v6259, %v6258
  %v6454 = vpack.c.bf16 %v6261, %v6260
  %v6455 = vpack.c.bf16 %v6263, %v6262
  %v6456 = vpack.c.bf16 %v6265, %v6264
  %v6457 = vpack.c.bf16 %v6267, %v6266
  %v6458 = vpack.c.bf16 %v6269, %v6268
  %v6459 = vpack.c.bf16 %v6271, %v6270
  %v6460 = vpack.c.bf16 %v6273, %v6272
  %v6461 = vpack.c.bf16 %v6275, %v6274
  %v6462 = vpack.c.bf16 %v6277, %v6276
  %v6463 = vpack.c.bf16 %v6279, %v6278
  %v6464 = vpack.c.bf16 %v6281, %v6280
  %v6465 = vpack.c.bf16 %v6283, %v6282
  %v6466 = vpack.c.bf16 %v6285, %v6284
  %v6467 = vpack.c.bf16 %v6287, %v6286
  %v6468 = vpack.c.bf16 %v6289, %v6288
  %v6469 = vpack.c.bf16 %v6291, %v6290
  %v6470 = vpack.c.bf16 %v6293, %v6292
  %v6471 = vpack.c.bf16 %v6295, %v6294
  %v6472 = vpack.c.bf16 %v6297, %v6296
  %v6473 = vpack.c.bf16 %v6299, %v6298
  %v6474 = vpack.c.bf16 %v6301, %v6300
  %v6475 = vpack.c.bf16 %v6303, %v6302
  %v6476 = vpack.c.bf16 %v6305, %v6304
  %v6477 = vpack.c.bf16 %v6307, %v6306
  %v6478 = vpack.c.bf16 %v6309, %v6308
  %v6479 = vpack.c.bf16 %v6311, %v6310
  %v6480 = vpack.c.bf16 %v6313, %v6312
  %v6481 = vpack.c.bf16 %v6315, %v6314
  %v6482 = vpack.c.bf16 %v6317, %v6316
  %v6483 = vpack.c.bf16 %v6319, %v6318
  %v6484 = vpack.c.bf16 %v6321, %v6320
  %v6485 = vpack.c.bf16 %v6323, %v6322
  %v6486 = vpack.c.bf16 %v6325, %v6324
  %v6487 = vpack.c.bf16 %v6327, %v6326
  %v6488 = vpack.c.bf16 %v6329, %v6328
  %v6489 = vpack.c.bf16 %v6331, %v6330
  %v6490 = vpack.c.bf16 %v6333, %v6332
  %v6491 = vpack.c.bf16 %v6335, %v6334
  %v6492 = vpack.c.bf16 %v6337, %v6336
  %v6493 = vpack.c.bf16 %v6339, %v6338
  %v6494 = vpack.c.bf16 %v6341, %v6340
  %v6495 = vpack.c.bf16 %v6343, %v6342
  %v6496 = vpack.c.bf16 %v6345, %v6344
  %v6497 = vpack.c.bf16 %v6347, %v6346
  %v6498 = vpack.c.bf16 %v6349, %v6348
  %v6499 = vpack.c.bf16 %v6351, %v6350
  %v6500 = vpack.c.bf16 %v6353, %v6352
  %v6501 = vpack.c.bf16 %v6355, %v6354
  %v6502 = vpack.c.bf16 %v6357, %v6356
  %v6503 = vpack.c.bf16 %v6359, %v6358
  %v6504 = vpack.c.bf16 %v6361, %v6360
  %v6505 = vpack.c.bf16 %v6363, %v6362
  %v6506 = vpack.c.bf16 %v6365, %v6364
  %v6507 = vpack.c.bf16 %v6367, %v6366
  %v6508 = vpack.c.bf16 %v6369, %v6368
  %v6509 = vpack.c.bf16 %v6371, %v6370
  %v6510 = vpack.c.bf16 %v6373, %v6372
  %v6511 = vpack.c.bf16 %v6375, %v6374
  %v6512 = vpack.c.bf16 %v6377, %v6376
  %v6513 = vpack.c.bf16 %v6379, %v6378
  %v6514 = vpack.c.bf16 %v6381, %v6380
  %v6515 = vpack.c.bf16 %v6383, %v6382
  %v6516 = vpack.c.bf16 %v6385, %v6384
  %v6517 = vpack.c.bf16 %v6387, %v6386
  %v6518 = vpack.c.bf16 %v6389, %v6388
  %v6519 = vpack.c.bf16 %v6391, %v6390
  %v6520 = vld [vmem:[%s8] sm:$0xf]
  %v6521 = vld [vmem:[%s8 + $0x4] sm:$0xf]
  %v6522 = vld [vmem:[%s9] sm:$0x1]
  %v6524 = vlaneseq
  %v6525 = vshrl.u32 %v6524, 7
  %v6526 = vsub.s32 0, %v6525
  %v6527 = vrot.slane %v6522, %v6526
  %v6531 = vunpack.c.l.b16 %v6520
  %v6532 = vunpack.c.l.b16 %v6521
  %v6533 = vpack.c.b16 %v6532, %v6531
  %vm6535 = vcmask 130048
  %v6537 = vsel %vm6535, %v6392, 0
  %v6540 = vsel %vm6535, %v6393, 0
  %v6543 = vsel %vm6535, %v6394, 0
  %v6546 = vsel %vm6535, %v6395, 0
  %v6549 = vsel %vm6535, %v6396, 0
  %v6552 = vsel %vm6535, %v6397, 0
  %v6555 = vsel %vm6535, %v6398, 0
  %v6558 = vsel %vm6535, %v6399, 0
  %v6561 = vsel %vm6535, %v6400, 0
  %v6564 = vsel %vm6535, %v6401, 0
  %v6567 = vsel %vm6535, %v6402, 0
  %v6570 = vsel %vm6535, %v6403, 0
  %v6573 = vsel %vm6535, %v6404, 0
  %v6576 = vsel %vm6535, %v6405, 0
  %v6579 = vsel %vm6535, %v6406, 0
  %v6582 = vsel %vm6535, %v6407, 0
  %v6585 = vsel %vm6535, %v6408, 0
  %v6588 = vsel %vm6535, %v6409, 0
  %v6591 = vsel %vm6535, %v6410, 0
  %v6594 = vsel %vm6535, %v6411, 0
  %v6597 = vsel %vm6535, %v6412, 0
  %v6600 = vsel %vm6535, %v6413, 0
  %v6603 = vsel %vm6535, %v6414, 0
  %v6606 = vsel %vm6535, %v6415, 0
  %v6609 = vsel %vm6535, %v6416, 0
  %v6612 = vsel %vm6535, %v6417, 0
  %v6615 = vsel %vm6535, %v6418, 0
  %v6618 = vsel %vm6535, %v6419, 0
  %v6621 = vsel %vm6535, %v6420, 0
  %v6624 = vsel %vm6535, %v6421, 0
  %v6627 = vsel %vm6535, %v6422, 0
  %v6630 = vsel %vm6535, %v6423, 0
  %v6633 = vsel %vm6535, %v6424, 0
  %v6636 = vsel %vm6535, %v6425, 0
  %v6639 = vsel %vm6535, %v6426, 0
  %v6642 = vsel %vm6535, %v6427, 0
  %v6645 = vsel %vm6535, %v6428, 0
  %v6648 = vsel %vm6535, %v6429, 0
  %v6651 = vsel %vm6535, %v6430, 0
  %v6654 = vsel %vm6535, %v6431, 0
  %v6657 = vsel %vm6535, %v6432, 0
  %v6660 = vsel %vm6535, %v6433, 0
  %v6663 = vsel %vm6535, %v6434, 0
  %v6666 = vsel %vm6535, %v6435, 0
  %v6669 = vsel %vm6535, %v6436, 0
  %v6672 = vsel %vm6535, %v6437, 0
  %v6675 = vsel %vm6535, %v6438, 0
  %v6678 = vsel %vm6535, %v6439, 0
  %v6681 = vsel %vm6535, %v6440, 0
  %v6684 = vsel %vm6535, %v6441, 0
  %v6687 = vsel %vm6535, %v6442, 0
  %v6690 = vsel %vm6535, %v6443, 0
  %v6693 = vsel %vm6535, %v6444, 0
  %v6696 = vsel %vm6535, %v6445, 0
  %v6699 = vsel %vm6535, %v6446, 0
  %v6702 = vsel %vm6535, %v6447, 0
  %v6705 = vsel %vm6535, %v6448, 0
  %v6708 = vsel %vm6535, %v6449, 0
  %v6711 = vsel %vm6535, %v6450, 0
  %v6714 = vsel %vm6535, %v6451, 0
  %v6717 = vsel %vm6535, %v6452, 0
  %v6720 = vsel %vm6535, %v6453, 0
  %v6723 = vsel %vm6535, %v6454, 0
  %v6726 = vsel %vm6535, %v6455, 0
  %v6729 = vsel %vm6535, %v6456, 0
  %v6732 = vsel %vm6535, %v6457, 0
  %v6735 = vsel %vm6535, %v6458, 0
  %v6738 = vsel %vm6535, %v6459, 0
  %v6741 = vsel %vm6535, %v6460, 0
  %v6744 = vsel %vm6535, %v6461, 0
  %v6747 = vsel %vm6535, %v6462, 0
  %v6750 = vsel %vm6535, %v6463, 0
  %v6753 = vsel %vm6535, %v6464, 0
  %v6756 = vsel %vm6535, %v6465, 0
  %v6759 = vsel %vm6535, %v6466, 0
  %v6762 = vsel %vm6535, %v6467, 0
  %v6765 = vsel %vm6535, %v6468, 0
  %v6768 = vsel %vm6535, %v6469, 0
  %v6771 = vsel %vm6535, %v6470, 0
  %v6774 = vsel %vm6535, %v6471, 0
  %v6777 = vsel %vm6535, %v6472, 0
  %v6780 = vsel %vm6535, %v6473, 0
  %v6783 = vsel %vm6535, %v6474, 0
  %v6786 = vsel %vm6535, %v6475, 0
  %v6789 = vsel %vm6535, %v6476, 0
  %v6792 = vsel %vm6535, %v6477, 0
  %v6795 = vsel %vm6535, %v6478, 0
  %v6798 = vsel %vm6535, %v6479, 0
  %v6801 = vsel %vm6535, %v6480, 0
  %v6804 = vsel %vm6535, %v6481, 0
  %v6807 = vsel %vm6535, %v6482, 0
  %v6810 = vsel %vm6535, %v6483, 0
  %v6813 = vsel %vm6535, %v6484, 0
  %v6816 = vsel %vm6535, %v6485, 0
  %v6819 = vsel %vm6535, %v6486, 0
  %v6822 = vsel %vm6535, %v6487, 0
  %v6825 = vsel %vm6535, %v6488, 0
  %v6828 = vsel %vm6535, %v6489, 0
  %v6831 = vsel %vm6535, %v6490, 0
  %v6834 = vsel %vm6535, %v6491, 0
  %v6837 = vsel %vm6535, %v6492, 0
  %v6840 = vsel %vm6535, %v6493, 0
  %v6843 = vsel %vm6535, %v6494, 0
  %v6846 = vsel %vm6535, %v6495, 0
  %v6849 = vsel %vm6535, %v6496, 0
  %v6852 = vsel %vm6535, %v6497, 0
  %v6855 = vsel %vm6535, %v6498, 0
  %v6858 = vsel %vm6535, %v6499, 0
  %v6861 = vsel %vm6535, %v6500, 0
  %v6864 = vsel %vm6535, %v6501, 0
  %v6867 = vsel %vm6535, %v6502, 0
  %v6870 = vsel %vm6535, %v6503, 0
  %v6873 = vsel %vm6535, %v6504, 0
  %v6876 = vsel %vm6535, %v6505, 0
  %v6879 = vsel %vm6535, %v6506, 0
  %v6882 = vsel %vm6535, %v6507, 0
  %v6885 = vsel %vm6535, %v6508, 0
  %v6888 = vsel %vm6535, %v6509, 0
  %v6891 = vsel %vm6535, %v6510, 0
  %v6894 = vsel %vm6535, %v6511, 0
  %v6897 = vsel %vm6535, %v6512, 0
  %v6900 = vsel %vm6535, %v6513, 0
  %v6903 = vsel %vm6535, %v6514, 0
  %v6906 = vsel %vm6535, %v6515, 0
  %v6909 = vsel %vm6535, %v6516, 0
  %v6912 = vsel %vm6535, %v6517, 0
  %v6915 = vsel %vm6535, %v6518, 0
  %v6918 = vsel %vm6535, %v6519, 0
  %6920 = vmatprep.subr.bf16.mxu0 0
  %6921 = vmatpush1.bf16.msra.mxu0 %v6533
  %6922 = vmatprep.subr.bf16.mxu0 0
  %6923 = vmatpush1.bf16.msra.mxu0 0
  %6924 = vmatprep.subr.bf16.mxu0 0
  %6925 = vmatpush1.bf16.msra.mxu0 0
  %6926 = vmatprep.subr.bf16.mxu0 0
  %6927 = vmatpush1.bf16.msra.mxu0 0
  %6928 = vmatprep.subr.bf16.mxu0 0
  %6929 = vmatpush1.bf16.msra.mxu0 0
  %6930 = vmatprep.subr.bf16.mxu0 0
  %6931 = vmatpush1.bf16.msra.mxu0 0
  %6932 = vmatprep.subr.bf16.mxu0 0
  %6933 = vmatpush1.bf16.msra.mxu0 0
  %6934 = vmatprep.subr.bf16.mxu0 0
  %6935 = vmatpush1.bf16.msra.mxu0 0
  %6936 = vmatprep.subr.bf16.mxu0 0
  %6937 = vmatpush1.bf16.msra.mxu0 0
  %6938 = vmatprep.subr.bf16.mxu0 0
  %6939 = vmatpush1.bf16.msra.mxu0 0
  %6940 = vmatprep.subr.bf16.mxu0 0
  %6941 = vmatpush1.bf16.msra.mxu0 0
  %6942 = vmatprep.subr.bf16.mxu0 0
  %6943 = vmatpush1.bf16.msra.mxu0 0
  %6944 = vmatprep.subr.bf16.mxu0 0
  %6945 = vmatpush1.bf16.msra.mxu0 0
  %6946 = vmatprep.subr.bf16.mxu0 0
  %6947 = vmatpush1.bf16.msra.mxu0 0
  %6948 = vmatprep.subr.bf16.mxu0 0
  %6949 = vmatpush1.bf16.msra.mxu0 0
  %6950 = vmatprep.subr.bf16.mxu0 0
  %6951 = vmatpush1.bf16.msra.mxu0 0
  %6952 = vmatprep.mubr.bf16.mxu0 0
  %6953 = vmatmul.mubr.bf16.gmra.mrb[0].mxu0 %v6537
  %v6954 = vpop.f32.mrb[0].mxu0
  %v6955 = vadd.f32 %v6527, %v6954
  %v6956 = vpop.f32.mrb[0].mxu0
  %v6957 = vpop.f32.mrb[0].mxu0
  %v6958 = vadd.f32 %v6527, %v6957
  %v6959 = vpop.f32.mrb[0].mxu0
  %6960 = vmatprep.mubr.bf16.mxu0 0
  %6961 = vmatmul.mubr.bf16.gmra.mrb[0].mxu0 %v6540
  %v6962 = vpop.f32.mrb[0].mxu0
  %v6963 = vadd.f32 %v6527, %v6962
  %v6964 = vpop.f32.mrb[0].mxu0
  %v6965 = vpop.f32.mrb[0].mxu0
  %v6966 = vadd.f32 %v6527, %v6965
  %v6967 = vpop.f32.mrb[0].mxu0
  %6968 = vmatprep.mubr.bf16.mxu0 0
  %6969 = vmatmul.mubr.bf16.gmra.mrb[0].mxu0 %v6543
  %v6970 = vpop.f32.mrb[0].mxu0
  %v6971 = vadd.f32 %v6527, %v6970
  %v6972 = vpop.f32.mrb[0].mxu0
  %v6973 = vpop.f32.mrb[0].mxu0
  %v6974 = vadd.f32 %v6527, %v6973
  %v6975 = vpop.f32.mrb[0].mxu0
  %6976 = vmatprep.mubr.bf16.mxu0 0
  %6977 = vmatmul.mubr.bf16.gmra.mrb[0].mxu0 %v6546
  %v6978 = vpop.f32.mrb[0].mxu0
  %v6979 = vadd.f32 %v6527, %v6978
  %v6980 = vpop.f32.mrb[0].mxu0
  %v6981 = vpop.f32.mrb[0].mxu0
  %v6982 = vadd.f32 %v6527, %v6981
  %v6983 = vpop.f32.mrb[0].mxu0
  %6984 = vmatprep.mubr.bf16.mxu0 0
  %6985 = vmatmul.mubr.bf16.gmra.mrb[0].mxu0 %v6549
  %v6986 = vpop.f32.mrb[0].mxu0
  %v6987 = vadd.f32 %v6527, %v6986
  %v6988 = vpop.f32.mrb[0].mxu0
  %v6989 = vpop.f32.mrb[0].mxu0
  %v6990 = vadd.f32 %v6527, %v6989
  %v6991 = vpop.f32.mrb[0].mxu0
  %6992 = vmatprep.mubr.bf16.mxu0 0
  %6993 = vmatmul.mubr.bf16.gmra.mrb[0].mxu0 %v6552
  %v6994 = vpop.f32.mrb[0].mxu0
  %v6995 = vadd.f32 %v6527, %v6994
  %v6996 = vpop.f32.mrb[0].mxu0
  %v6997 = vpop.f32.mrb[0].mxu0
  %v6998 = vadd.f32 %v6527, %v6997
  %v6999 = vpop.f32.mrb[0].mxu0
  %7000 = vmatprep.mubr.bf16.mxu0 0
  %7001 = vmatmul.mubr.bf16.gmra.mrb[0].mxu0 %v6555
  %v7002 = vpop.f32.mrb[0].mxu0
  %v7003 = vadd.f32 %v6527, %v7002
  %v7004 = vpop.f32.mrb[0].mxu0
  %v7005 = vpop.f32.mrb[0].mxu0
  %v7006 = vadd.f32 %v6527, %v7005
  %v7007 = vpop.f32.mrb[0].mxu0
  %7008 = vmatprep.mubr.bf16.mxu0 0
  %7009 = vmatmul.mubr.bf16.gmra.mrb[0].mxu0 %v6558
  %v7010 = vpop.f32.mrb[0].mxu0
  %v7011 = vadd.f32 %v6527, %v7010
  %v7012 = vpop.f32.mrb[0].mxu0
  %v7013 = vpop.f32.mrb[0].mxu0
  %v7014 = vadd.f32 %v6527, %v7013
  %v7015 = vpop.f32.mrb[0].mxu0
  %7016 = vmatprep.mubr.bf16.mxu0 0
  %7017 = vmatmul.mubr.bf16.gmra.mrb[0].mxu0 %v6561
  %v7018 = vpop.f32.mrb[0].mxu0
  %v7019 = vadd.f32 %v6527, %v7018
  %v7020 = vpop.f32.mrb[0].mxu0
  %v7021 = vpop.f32.mrb[0].mxu0
  %v7022 = vadd.f32 %v6527, %v7021
  %v7023 = vpop.f32.mrb[0].mxu0
  %7024 = vmatprep.mubr.bf16.mxu0 0
  %7025 = vmatmul.mubr.bf16.gmra.mrb[0].mxu0 %v6564
  %v7026 = vpop.f32.mrb[0].mxu0
  %v7027 = vadd.f32 %v6527, %v7026
  %v7028 = vpop.f32.mrb[0].mxu0
  %v7029 = vpop.f32.mrb[0].mxu0
  %v7030 = vadd.f32 %v6527, %v7029
  %v7031 = vpop.f32.mrb[0].mxu0
  %7032 = vmatprep.mubr.bf16.mxu0 0
  %7033 = vmatmul.mubr.bf16.gmra.mrb[0].mxu0 %v6567
  %v7034 = vpop.f32.mrb[0].mxu0
  %v7035 = vadd.f32 %v6527, %v7034
  %v7036 = vpop.f32.mrb[0].mxu0
  %v7037 = vpop.f32.mrb[0].mxu0
  %v7038 = vadd.f32 %v6527, %v7037
  %v7039 = vpop.f32.mrb[0].mxu0
  %7040 = vmatprep.mubr.bf16.mxu0 0
  %7041 = vmatmul.mubr.bf16.gmra.mrb[0].mxu0 %v6570
  %v7042 = vpop.f32.mrb[0].mxu0
  %v7043 = vadd.f32 %v6527, %v7042
  %v7044 = vpop.f32.mrb[0].mxu0
  %v7045 = vpop.f32.mrb[0].mxu0
  %v7046 = vadd.f32 %v6527, %v7045
  %v7047 = vpop.f32.mrb[0].mxu0
  %7048 = vmatprep.mubr.bf16.mxu0 0
  %7049 = vmatmul.mubr.bf16.gmra.mrb[0].mxu0 %v6573
  %v7050 = vpop.f32.mrb[0].mxu0
  %v7051 = vadd.f32 %v6527, %v7050
  %v7052 = vpop.f32.mrb[0].mxu0
  %v7053 = vpop.f32.mrb[0].mxu0
  %v7054 = vadd.f32 %v6527, %v7053
  %v7055 = vpop.f32.mrb[0].mxu0
  %7056 = vmatprep.mubr.bf16.mxu0 0
  %7057 = vmatmul.mubr.bf16.gmra.mrb[0].mxu0 %v6576
  %v7058 = vpop.f32.mrb[0].mxu0
  %v7059 = vadd.f32 %v6527, %v7058
  %v7060 = vpop.f32.mrb[0].mxu0
  %v7061 = vpop.f32.mrb[0].mxu0
  %v7062 = vadd.f32 %v6527, %v7061
  %v7063 = vpop.f32.mrb[0].mxu0
  %7064 = vmatprep.mubr.bf16.mxu0 0
  %7065 = vmatmul.mubr.bf16.gmra.mrb[0].mxu0 %v6579
  %v7066 = vpop.f32.mrb[0].mxu0
  %v7067 = vadd.f32 %v6527, %v7066
  %v7068 = vpop.f32.mrb[0].mxu0
  %v7069 = vpop.f32.mrb[0].mxu0
  %v7070 = vadd.f32 %v6527, %v7069
  %v7071 = vpop.f32.mrb[0].mxu0
  %7072 = vmatprep.mubr.bf16.mxu0 0
  %7073 = vmatmul.mubr.bf16.gmra.mrb[0].mxu0 %v6582
  %v7074 = vpop.f32.mrb[0].mxu0
  %v7075 = vadd.f32 %v6527, %v7074
  %v7076 = vpop.f32.mrb[0].mxu0
  %v7077 = vpop.f32.mrb[0].mxu0
  %v7078 = vadd.f32 %v6527, %v7077
  %v7079 = vpop.f32.mrb[0].mxu0
  %7080 = vmatprep.mubr.bf16.mxu0 0
  %7081 = vmatmul.mubr.bf16.gmra.mrb[0].mxu0 %v6585
  %v7082 = vpop.f32.mrb[0].mxu0
  %v7083 = vadd.f32 %v6527, %v7082
  %v7084 = vpop.f32.mrb[0].mxu0
  %v7085 = vpop.f32.mrb[0].mxu0
  %v7086 = vadd.f32 %v6527, %v7085
  %v7087 = vpop.f32.mrb[0].mxu0
  %7088 = vmatprep.mubr.bf16.mxu0 0
  %7089 = vmatmul.mubr.bf16.gmra.mrb[0].mxu0 %v6588
  %v7090 = vpop.f32.mrb[0].mxu0
  %v7091 = vadd.f32 %v6527, %v7090
  %v7092 = vpop.f32.mrb[0].mxu0
  %v7093 = vpop.f32.mrb[0].mxu0
  %v7094 = vadd.f32 %v6527, %v7093
  %v7095 = vpop.f32.mrb[0].mxu0
  %7096 = vmatprep.mubr.bf16.mxu0 0
  %7097 = vmatmul.mubr.bf16.gmra.mrb[0].mxu0 %v6591
  %v7098 = vpop.f32.mrb[0].mxu0
  %v7099 = vadd.f32 %v6527, %v7098
  %v7100 = vpop.f32.mrb[0].mxu0
  %v7101 = vpop.f32.mrb[0].mxu0
  %v7102 = vadd.f32 %v6527, %v7101
  %v7103 = vpop.f32.mrb[0].mxu0
  %7104 = vmatprep.mubr.bf16.mxu0 0
  %7105 = vmatmul.mubr.bf16.gmra.mrb[0].mxu0 %v6594
  %v7106 = vpop.f32.mrb[0].mxu0
  %v7107 = vadd.f32 %v6527, %v7106
  %v7108 = vpop.f32.mrb[0].mxu0
  %v7109 = vpop.f32.mrb[0].mxu0
  %v7110 = vadd.f32 %v6527, %v7109
  %v7111 = vpop.f32.mrb[0].mxu0
  %7112 = vmatprep.mubr.bf16.mxu0 0
  %7113 = vmatmul.mubr.bf16.gmra.mrb[0].mxu0 %v6597
  %v7114 = vpop.f32.mrb[0].mxu0
  %v7115 = vadd.f32 %v6527, %v7114
  %v7116 = vpop.f32.mrb[0].mxu0
  %v7117 = vpop.f32.mrb[0].mxu0
  %v7118 = vadd.f32 %v6527, %v7117
  %v7119 = vpop.f32.mrb[0].mxu0
  %7120 = vmatprep.mubr.bf16.mxu0 0
  %7121 = vmatmul.mubr.bf16.gmra.mrb[0].mxu0 %v6600
  %v7122 = vpop.f32.mrb[0].mxu0
  %v7123 = vadd.f32 %v6527, %v7122
  %v7124 = vpop.f32.mrb[0].mxu0
  %v7125 = vpop.f32.mrb[0].mxu0
  %v7126 = vadd.f32 %v6527, %v7125
  %v7127 = vpop.f32.mrb[0].mxu0
  %7128 = vmatprep.mubr.bf16.mxu0 0
  %7129 = vmatmul.mubr.bf16.gmra.mrb[0].mxu0 %v6603
  %v7130 = vpop.f32.mrb[0].mxu0
  %v7131 = vadd.f32 %v6527, %v7130
  %v7132 = vpop.f32.mrb[0].mxu0
  %v7133 = vpop.f32.mrb[0].mxu0
  %v7134 = vadd.f32 %v6527, %v7133
  %v7135 = vpop.f32.mrb[0].mxu0
  %7136 = vmatprep.mubr.bf16.mxu0 0
  %7137 = vmatmul.mubr.bf16.gmra.mrb[0].mxu0 %v6606
  %v7138 = vpop.f32.mrb[0].mxu0
  %v7139 = vadd.f32 %v6527, %v7138
  %v7140 = vpop.f32.mrb[0].mxu0
  %v7141 = vpop.f32.mrb[0].mxu0
  %v7142 = vadd.f32 %v6527, %v7141
  %v7143 = vpop.f32.mrb[0].mxu0
  %7144 = vmatprep.mubr.bf16.mxu0 0
  %7145 = vmatmul.mubr.bf16.gmra.mrb[0].mxu0 %v6609
  %v7146 = vpop.f32.mrb[0].mxu0
  %v7147 = vadd.f32 %v6527, %v7146
  %v7148 = vpop.f32.mrb[0].mxu0
  %v7149 = vpop.f32.mrb[0].mxu0
  %v7150 = vadd.f32 %v6527, %v7149
  %v7151 = vpop.f32.mrb[0].mxu0
  %7152 = vmatprep.mubr.bf16.mxu0 0
  %7153 = vmatmul.mubr.bf16.gmra.mrb[0].mxu0 %v6612
  %v7154 = vpop.f32.mrb[0].mxu0
  %v7155 = vadd.f32 %v6527, %v7154
  %v7156 = vpop.f32.mrb[0].mxu0
  %v7157 = vpop.f32.mrb[0].mxu0
  %v7158 = vadd.f32 %v6527, %v7157
  %v7159 = vpop.f32.mrb[0].mxu0
  %7160 = vmatprep.mubr.bf16.mxu0 0
  %7161 = vmatmul.mubr.bf16.gmra.mrb[0].mxu0 %v6615
  %v7162 = vpop.f32.mrb[0].mxu0
  %v7163 = vadd.f32 %v6527, %v7162
  %v7164 = vpop.f32.mrb[0].mxu0
  %v7165 = vpop.f32.mrb[0].mxu0
  %v7166 = vadd.f32 %v6527, %v7165
  %v7167 = vpop.f32.mrb[0].mxu0
  %7168 = vmatprep.mubr.bf16.mxu0 0
  %7169 = vmatmul.mubr.bf16.gmra.mrb[0].mxu0 %v6618
  %v7170 = vpop.f32.mrb[0].mxu0
  %v7171 = vadd.f32 %v6527, %v7170
  %v7172 = vpop.f32.mrb[0].mxu0
  %v7173 = vpop.f32.mrb[0].mxu0
  %v7174 = vadd.f32 %v6527, %v7173
  %v7175 = vpop.f32.mrb[0].mxu0
  %7176 = vmatprep.mubr.bf16.mxu0 0
  %7177 = vmatmul.mubr.bf16.gmra.mrb[0].mxu0 %v6621
  %v7178 = vpop.f32.mrb[0].mxu0
  %v7179 = vadd.f32 %v6527, %v7178
  %v7180 = vpop.f32.mrb[0].mxu0
  %v7181 = vpop.f32.mrb[0].mxu0
  %v7182 = vadd.f32 %v6527, %v7181
  %v7183 = vpop.f32.mrb[0].mxu0
  %7184 = vmatprep.mubr.bf16.mxu0 0
  %7185 = vmatmul.mubr.bf16.gmra.mrb[0].mxu0 %v6624
  %v7186 = vpop.f32.mrb[0].mxu0
  %v7187 = vadd.f32 %v6527, %v7186
  %v7188 = vpop.f32.mrb[0].mxu0
  %v7189 = vpop.f32.mrb[0].mxu0
  %v7190 = vadd.f32 %v6527, %v7189
  %v7191 = vpop.f32.mrb[0].mxu0
  %7192 = vmatprep.mubr.bf16.mxu0 0
  %7193 = vmatmul.mubr.bf16.gmra.mrb[0].mxu0 %v6627
  %v7194 = vpop.f32.mrb[0].mxu0
  %v7195 = vadd.f32 %v6527, %v7194
  %v7196 = vpop.f32.mrb[0].mxu0
  %v7197 = vpop.f32.mrb[0].mxu0
  %v7198 = vadd.f32 %v6527, %v7197
  %v7199 = vpop.f32.mrb[0].mxu0
  %7200 = vmatprep.mubr.bf16.mxu0 0
  %7201 = vmatmul.mubr.bf16.gmra.mrb[0].mxu0 %v6630
  %v7202 = vpop.f32.mrb[0].mxu0
  %v7203 = vadd.f32 %v6527, %v7202
  %v7204 = vpop.f32.mrb[0].mxu0
  %v7205 = vpop.f32.mrb[0].mxu0
  %v7206 = vadd.f32 %v6527, %v7205
  %v7207 = vpop.f32.mrb[0].mxu0
  %7208 = vmatprep.mubr.bf16.mxu0 0
  %7209 = vmatmul.mubr.bf16.gmra.mrb[0].mxu0 %v6633
  %v7210 = vpop.f32.mrb[0].mxu0
  %v7211 = vadd.f32 %v6527, %v7210
  %v7212 = vpop.f32.mrb[0].mxu0
  %v7213 = vpop.f32.mrb[0].mxu0
  %v7214 = vadd.f32 %v6527, %v7213
  %v7215 = vpop.f32.mrb[0].mxu0
  %7216 = vmatprep.mubr.bf16.mxu0 0
  %7217 = vmatmul.mubr.bf16.gmra.mrb[0].mxu0 %v6636
  %v7218 = vpop.f32.mrb[0].mxu0
  %v7219 = vadd.f32 %v6527, %v7218
  %v7220 = vpop.f32.mrb[0].mxu0
  %v7221 = vpop.f32.mrb[0].mxu0
  %v7222 = vadd.f32 %v6527, %v7221
  %v7223 = vpop.f32.mrb[0].mxu0
  %7224 = vmatprep.mubr.bf16.mxu0 0
  %7225 = vmatmul.mubr.bf16.gmra.mrb[0].mxu0 %v6639
  %v7226 = vpop.f32.mrb[0].mxu0
  %v7227 = vadd.f32 %v6527, %v7226
  %v7228 = vpop.f32.mrb[0].mxu0
  %v7229 = vpop.f32.mrb[0].mxu0
  %v7230 = vadd.f32 %v6527, %v7229
  %v7231 = vpop.f32.mrb[0].mxu0
  %7232 = vmatprep.mubr.bf16.mxu0 0
  %7233 = vmatmul.mubr.bf16.gmra.mrb[0].mxu0 %v6642
  %v7234 = vpop.f32.mrb[0].mxu0
  %v7235 = vadd.f32 %v6527, %v7234
  %v7236 = vpop.f32.mrb[0].mxu0
  %v7237 = vpop.f32.mrb[0].mxu0
  %v7238 = vadd.f32 %v6527, %v7237
  %v7239 = vpop.f32.mrb[0].mxu0
  %7240 = vmatprep.mubr.bf16.mxu0 0
  %7241 = vmatmul.mubr.bf16.gmra.mrb[0].mxu0 %v6645
  %v7242 = vpop.f32.mrb[0].mxu0
  %v7243 = vadd.f32 %v6527, %v7242
  %v7244 = vpop.f32.mrb[0].mxu0
  %v7245 = vpop.f32.mrb[0].mxu0
  %v7246 = vadd.f32 %v6527, %v7245
  %v7247 = vpop.f32.mrb[0].mxu0
  %7248 = vmatprep.mubr.bf16.mxu0 0
  %7249 = vmatmul.mubr.bf16.gmra.mrb[0].mxu0 %v6648
  %v7250 = vpop.f32.mrb[0].mxu0
  %v7251 = vadd.f32 %v6527, %v7250
  %v7252 = vpop.f32.mrb[0].mxu0
  %v7253 = vpop.f32.mrb[0].mxu0
  %v7254 = vadd.f32 %v6527, %v7253
  %v7255 = vpop.f32.mrb[0].mxu0
  %7256 = vmatprep.mubr.bf16.mxu0 0
  %7257 = vmatmul.mubr.bf16.gmra.mrb[0].mxu0 %v6651
  %v7258 = vpop.f32.mrb[0].mxu0
  %v7259 = vadd.f32 %v6527, %v7258
  %v7260 = vpop.f32.mrb[0].mxu0
  %v7261 = vpop.f32.mrb[0].mxu0
  %v7262 = vadd.f32 %v6527, %v7261
  %v7263 = vpop.f32.mrb[0].mxu0
  %7264 = vmatprep.mubr.bf16.mxu0 0
  %7265 = vmatmul.mubr.bf16.gmra.mrb[0].mxu0 %v6654
  %v7266 = vpop.f32.mrb[0].mxu0
  %v7267 = vadd.f32 %v6527, %v7266
  %v7268 = vpop.f32.mrb[0].mxu0
  %v7269 = vpop.f32.mrb[0].mxu0
  %v7270 = vadd.f32 %v6527, %v7269
  %v7271 = vpop.f32.mrb[0].mxu0
  %7272 = vmatprep.mubr.bf16.mxu0 0
  %7273 = vmatmul.mubr.bf16.gmra.mrb[0].mxu0 %v6657
  %v7274 = vpop.f32.mrb[0].mxu0
  %v7275 = vadd.f32 %v6527, %v7274
  %v7276 = vpop.f32.mrb[0].mxu0
  %v7277 = vpop.f32.mrb[0].mxu0
  %v7278 = vadd.f32 %v6527, %v7277
  %v7279 = vpop.f32.mrb[0].mxu0
  %7280 = vmatprep.mubr.bf16.mxu0 0
  %7281 = vmatmul.mubr.bf16.gmra.mrb[0].mxu0 %v6660
  %v7282 = vpop.f32.mrb[0].mxu0
  %v7283 = vadd.f32 %v6527, %v7282
  %v7284 = vpop.f32.mrb[0].mxu0
  %v7285 = vpop.f32.mrb[0].mxu0
  %v7286 = vadd.f32 %v6527, %v7285
  %v7287 = vpop.f32.mrb[0].mxu0
  %7288 = vmatprep.mubr.bf16.mxu0 0
  %7289 = vmatmul.mubr.bf16.gmra.mrb[0].mxu0 %v6663
  %v7290 = vpop.f32.mrb[0].mxu0
  %v7291 = vadd.f32 %v6527, %v7290
  %v7292 = vpop.f32.mrb[0].mxu0
  %v7293 = vpop.f32.mrb[0].mxu0
  %v7294 = vadd.f32 %v6527, %v7293
  %v7295 = vpop.f32.mrb[0].mxu0
  %7296 = vmatprep.mubr.bf16.mxu0 0
  %7297 = vmatmul.mubr.bf16.gmra.mrb[0].mxu0 %v6666
  %v7298 = vpop.f32.mrb[0].mxu0
  %v7299 = vadd.f32 %v6527, %v7298
  %v7300 = vpop.f32.mrb[0].mxu0
  %v7301 = vpop.f32.mrb[0].mxu0
  %v7302 = vadd.f32 %v6527, %v7301
  %v7303 = vpop.f32.mrb[0].mxu0
  %7304 = vmatprep.mubr.bf16.mxu0 0
  %7305 = vmatmul.mubr.bf16.gmra.mrb[0].mxu0 %v6669
  %v7306 = vpop.f32.mrb[0].mxu0
  %v7307 = vadd.f32 %v6527, %v7306
  %v7308 = vpop.f32.mrb[0].mxu0
  %v7309 = vpop.f32.mrb[0].mxu0
  %v7310 = vadd.f32 %v6527, %v7309
  %v7311 = vpop.f32.mrb[0].mxu0
  %7312 = vmatprep.mubr.bf16.mxu0 0
  %7313 = vmatmul.mubr.bf16.gmra.mrb[0].mxu0 %v6672
  %v7314 = vpop.f32.mrb[0].mxu0
  %v7315 = vadd.f32 %v6527, %v7314
  %v7316 = vpop.f32.mrb[0].mxu0
  %v7317 = vpop.f32.mrb[0].mxu0
  %v7318 = vadd.f32 %v6527, %v7317
  %v7319 = vpop.f32.mrb[0].mxu0
  %7320 = vmatprep.mubr.bf16.mxu0 0
  %7321 = vmatmul.mubr.bf16.gmra.mrb[0].mxu0 %v6675
  %v7322 = vpop.f32.mrb[0].mxu0
  %v7323 = vadd.f32 %v6527, %v7322
  %v7324 = vpop.f32.mrb[0].mxu0
  %v7325 = vpop.f32.mrb[0].mxu0
  %v7326 = vadd.f32 %v6527, %v7325
  %v7327 = vpop.f32.mrb[0].mxu0
  %7328 = vmatprep.mubr.bf16.mxu0 0
  %7329 = vmatmul.mubr.bf16.gmra.mrb[0].mxu0 %v6678
  %v7330 = vpop.f32.mrb[0].mxu0
  %v7331 = vadd.f32 %v6527, %v7330
  %v7332 = vpop.f32.mrb[0].mxu0
  %v7333 = vpop.f32.mrb[0].mxu0
  %v7334 = vadd.f32 %v6527, %v7333
  %v7335 = vpop.f32.mrb[0].mxu0
  %7336 = vmatprep.mubr.bf16.mxu0 0
  %7337 = vmatmul.mubr.bf16.gmra.mrb[0].mxu0 %v6681
  %v7338 = vpop.f32.mrb[0].mxu0
  %v7339 = vadd.f32 %v6527, %v7338
  %v7340 = vpop.f32.mrb[0].mxu0
  %v7341 = vpop.f32.mrb[0].mxu0
  %v7342 = vadd.f32 %v6527, %v7341
  %v7343 = vpop.f32.mrb[0].mxu0
  %7344 = vmatprep.mubr.bf16.mxu0 0
  %7345 = vmatmul.mubr.bf16.gmra.mrb[0].mxu0 %v6684
  %v7346 = vpop.f32.mrb[0].mxu0
  %v7347 = vadd.f32 %v6527, %v7346
  %v7348 = vpop.f32.mrb[0].mxu0
  %v7349 = vpop.f32.mrb[0].mxu0
  %v7350 = vadd.f32 %v6527, %v7349
  %v7351 = vpop.f32.mrb[0].mxu0
  %7352 = vmatprep.mubr.bf16.mxu0 0
  %7353 = vmatmul.mubr.bf16.gmra.mrb[0].mxu0 %v6687
  %v7354 = vpop.f32.mrb[0].mxu0
  %v7355 = vadd.f32 %v6527, %v7354
  %v7356 = vpop.f32.mrb[0].mxu0
  %v7357 = vpop.f32.mrb[0].mxu0
  %v7358 = vadd.f32 %v6527, %v7357
  %v7359 = vpop.f32.mrb[0].mxu0
  %7360 = vmatprep.mubr.bf16.mxu0 0
  %7361 = vmatmul.mubr.bf16.gmra.mrb[0].mxu0 %v6690
  %v7362 = vpop.f32.mrb[0].mxu0
  %v7363 = vadd.f32 %v6527, %v7362
  %v7364 = vpop.f32.mrb[0].mxu0
  %v7365 = vpop.f32.mrb[0].mxu0
  %v7366 = vadd.f32 %v6527, %v7365
  %v7367 = vpop.f32.mrb[0].mxu0
  %7368 = vmatprep.mubr.bf16.mxu0 0
  %7369 = vmatmul.mubr.bf16.gmra.mrb[0].mxu0 %v6693
  %v7370 = vpop.f32.mrb[0].mxu0
  %v7371 = vadd.f32 %v6527, %v7370
  %v7372 = vpop.f32.mrb[0].mxu0
  %v7373 = vpop.f32.mrb[0].mxu0
  %v7374 = vadd.f32 %v6527, %v7373
  %v7375 = vpop.f32.mrb[0].mxu0
  %7376 = vmatprep.mubr.bf16.mxu0 0
  %7377 = vmatmul.mubr.bf16.gmra.mrb[0].mxu0 %v6696
  %v7378 = vpop.f32.mrb[0].mxu0
  %v7379 = vadd.f32 %v6527, %v7378
  %v7380 = vpop.f32.mrb[0].mxu0
  %v7381 = vpop.f32.mrb[0].mxu0
  %v7382 = vadd.f32 %v6527, %v7381
  %v7383 = vpop.f32.mrb[0].mxu0
  %7384 = vmatprep.mubr.bf16.mxu0 0
  %7385 = vmatmul.mubr.bf16.gmra.mrb[0].mxu0 %v6699
  %v7386 = vpop.f32.mrb[0].mxu0
  %v7387 = vadd.f32 %v6527, %v7386
  %v7388 = vpop.f32.mrb[0].mxu0
  %v7389 = vpop.f32.mrb[0].mxu0
  %v7390 = vadd.f32 %v6527, %v7389
  %v7391 = vpop.f32.mrb[0].mxu0
  %7392 = vmatprep.mubr.bf16.mxu0 0
  %7393 = vmatmul.mubr.bf16.gmra.mrb[0].mxu0 %v6702
  %v7394 = vpop.f32.mrb[0].mxu0
  %v7395 = vadd.f32 %v6527, %v7394
  %v7396 = vpop.f32.mrb[0].mxu0
  %v7397 = vpop.f32.mrb[0].mxu0
  %v7398 = vadd.f32 %v6527, %v7397
  %v7399 = vpop.f32.mrb[0].mxu0
  %7400 = vmatprep.mubr.bf16.mxu0 0
  %7401 = vmatmul.mubr.bf16.gmra.mrb[0].mxu0 %v6705
  %v7402 = vpop.f32.mrb[0].mxu0
  %v7403 = vadd.f32 %v6527, %v7402
  %v7404 = vpop.f32.mrb[0].mxu0
  %v7405 = vpop.f32.mrb[0].mxu0
  %v7406 = vadd.f32 %v6527, %v7405
  %v7407 = vpop.f32.mrb[0].mxu0
  %7408 = vmatprep.mubr.bf16.mxu0 0
  %7409 = vmatmul.mubr.bf16.gmra.mrb[0].mxu0 %v6708
  %v7410 = vpop.f32.mrb[0].mxu0
  %v7411 = vadd.f32 %v6527, %v7410
  %v7412 = vpop.f32.mrb[0].mxu0
  %v7413 = vpop.f32.mrb[0].mxu0
  %v7414 = vadd.f32 %v6527, %v7413
  %v7415 = vpop.f32.mrb[0].mxu0
  %7416 = vmatprep.mubr.bf16.mxu0 0
  %7417 = vmatmul.mubr.bf16.gmra.mrb[0].mxu0 %v6711
  %v7418 = vpop.f32.mrb[0].mxu0
  %v7419 = vadd.f32 %v6527, %v7418
  %v7420 = vpop.f32.mrb[0].mxu0
  %v7421 = vpop.f32.mrb[0].mxu0
  %v7422 = vadd.f32 %v6527, %v7421
  %v7423 = vpop.f32.mrb[0].mxu0
  %7424 = vmatprep.mubr.bf16.mxu0 0
  %7425 = vmatmul.mubr.bf16.gmra.mrb[0].mxu0 %v6714
  %v7426 = vpop.f32.mrb[0].mxu0
  %v7427 = vadd.f32 %v6527, %v7426
  %v7428 = vpop.f32.mrb[0].mxu0
  %v7429 = vpop.f32.mrb[0].mxu0
  %v7430 = vadd.f32 %v6527, %v7429
  %v7431 = vpop.f32.mrb[0].mxu0
  %7432 = vmatprep.mubr.bf16.mxu0 0
  %7433 = vmatmul.mubr.bf16.gmra.mrb[0].mxu0 %v6717
  %v7434 = vpop.f32.mrb[0].mxu0
  %v7435 = vadd.f32 %v6527, %v7434
  %v7436 = vpop.f32.mrb[0].mxu0
  %v7437 = vpop.f32.mrb[0].mxu0
  %v7438 = vadd.f32 %v6527, %v7437
  %v7439 = vpop.f32.mrb[0].mxu0
  %7440 = vmatprep.mubr.bf16.mxu0 0
  %7441 = vmatmul.mubr.bf16.gmra.mrb[0].mxu0 %v6720
  %v7442 = vpop.f32.mrb[0].mxu0
  %v7443 = vadd.f32 %v6527, %v7442
  %v7444 = vpop.f32.mrb[0].mxu0
  %v7445 = vpop.f32.mrb[0].mxu0
  %v7446 = vadd.f32 %v6527, %v7445
  %v7447 = vpop.f32.mrb[0].mxu0
  %7448 = vmatprep.mubr.bf16.mxu0 0
  %7449 = vmatmul.mubr.bf16.gmra.mrb[0].mxu0 %v6723
  %v7450 = vpop.f32.mrb[0].mxu0
  %v7451 = vadd.f32 %v6527, %v7450
  %v7452 = vpop.f32.mrb[0].mxu0
  %v7453 = vpop.f32.mrb[0].mxu0
  %v7454 = vadd.f32 %v6527, %v7453
  %v7455 = vpop.f32.mrb[0].mxu0
  %7456 = vmatprep.mubr.bf16.mxu0 0
  %7457 = vmatmul.mubr.bf16.gmra.mrb[0].mxu0 %v6726
  %v7458 = vpop.f32.mrb[0].mxu0
  %v7459 = vadd.f32 %v6527, %v7458
  %v7460 = vpop.f32.mrb[0].mxu0
  %v7461 = vpop.f32.mrb[0].mxu0
  %v7462 = vadd.f32 %v6527, %v7461
  %v7463 = vpop.f32.mrb[0].mxu0
  %7464 = vmatprep.mubr.bf16.mxu0 0
  %7465 = vmatmul.mubr.bf16.gmra.mrb[0].mxu0 %v6729
  %v7466 = vpop.f32.mrb[0].mxu0
  %v7467 = vadd.f32 %v6527, %v7466
  %v7468 = vpop.f32.mrb[0].mxu0
  %v7469 = vpop.f32.mrb[0].mxu0
  %v7470 = vadd.f32 %v6527, %v7469
  %v7471 = vpop.f32.mrb[0].mxu0
  %7472 = vmatprep.mubr.bf16.mxu0 0
  %7473 = vmatmul.mubr.bf16.gmra.mrb[0].mxu0 %v6732
  %v7474 = vpop.f32.mrb[0].mxu0
  %v7475 = vadd.f32 %v6527, %v7474
  %v7476 = vpop.f32.mrb[0].mxu0
  %v7477 = vpop.f32.mrb[0].mxu0
  %v7478 = vadd.f32 %v6527, %v7477
  %v7479 = vpop.f32.mrb[0].mxu0
  %7480 = vmatprep.mubr.bf16.mxu0 0
  %7481 = vmatmul.mubr.bf16.gmra.mrb[0].mxu0 %v6735
  %v7482 = vpop.f32.mrb[0].mxu0
  %v7483 = vadd.f32 %v6527, %v7482
  %v7484 = vpop.f32.mrb[0].mxu0
  %v7485 = vpop.f32.mrb[0].mxu0
  %v7486 = vadd.f32 %v6527, %v7485
  %v7487 = vpop.f32.mrb[0].mxu0
  %7488 = vmatprep.mubr.bf16.mxu0 0
  %7489 = vmatmul.mubr.bf16.gmra.mrb[0].mxu0 %v6738
  %v7490 = vpop.f32.mrb[0].mxu0
  %v7491 = vadd.f32 %v6527, %v7490
  %v7492 = vpop.f32.mrb[0].mxu0
  %v7493 = vpop.f32.mrb[0].mxu0
  %v7494 = vadd.f32 %v6527, %v7493
  %v7495 = vpop.f32.mrb[0].mxu0
  %7496 = vmatprep.mubr.bf16.mxu0 0
  %7497 = vmatmul.mubr.bf16.gmra.mrb[0].mxu0 %v6741
  %v7498 = vpop.f32.mrb[0].mxu0
  %v7499 = vadd.f32 %v6527, %v7498
  %v7500 = vpop.f32.mrb[0].mxu0
  %v7501 = vpop.f32.mrb[0].mxu0
  %v7502 = vadd.f32 %v6527, %v7501
  %v7503 = vpop.f32.mrb[0].mxu0
  %7504 = vmatprep.mubr.bf16.mxu0 0
  %7505 = vmatmul.mubr.bf16.gmra.mrb[0].mxu0 %v6744
  %v7506 = vpop.f32.mrb[0].mxu0
  %v7507 = vadd.f32 %v6527, %v7506
  %v7508 = vpop.f32.mrb[0].mxu0
  %v7509 = vpop.f32.mrb[0].mxu0
  %v7510 = vadd.f32 %v6527, %v7509
  %v7511 = vpop.f32.mrb[0].mxu0
  %7512 = vmatprep.mubr.bf16.mxu0 0
  %7513 = vmatmul.mubr.bf16.gmra.mrb[0].mxu0 %v6747
  %v7514 = vpop.f32.mrb[0].mxu0
  %v7515 = vadd.f32 %v6527, %v7514
  %v7516 = vpop.f32.mrb[0].mxu0
  %v7517 = vpop.f32.mrb[0].mxu0
  %v7518 = vadd.f32 %v6527, %v7517
  %v7519 = vpop.f32.mrb[0].mxu0
  %7520 = vmatprep.mubr.bf16.mxu0 0
  %7521 = vmatmul.mubr.bf16.gmra.mrb[0].mxu0 %v6750
  %v7522 = vpop.f32.mrb[0].mxu0
  %v7523 = vadd.f32 %v6527, %v7522
  %v7524 = vpop.f32.mrb[0].mxu0
  %v7525 = vpop.f32.mrb[0].mxu0
  %v7526 = vadd.f32 %v6527, %v7525
  %v7527 = vpop.f32.mrb[0].mxu0
  %7528 = vmatprep.mubr.bf16.mxu0 0
  %7529 = vmatmul.mubr.bf16.gmra.mrb[0].mxu0 %v6753
  %v7530 = vpop.f32.mrb[0].mxu0
  %v7531 = vadd.f32 %v6527, %v7530
  %v7532 = vpop.f32.mrb[0].mxu0
  %v7533 = vpop.f32.mrb[0].mxu0
  %v7534 = vadd.f32 %v6527, %v7533
  %v7535 = vpop.f32.mrb[0].mxu0
  %7536 = vmatprep.mubr.bf16.mxu0 0
  %7537 = vmatmul.mubr.bf16.gmra.mrb[0].mxu0 %v6756
  %v7538 = vpop.f32.mrb[0].mxu0
  %v7539 = vadd.f32 %v6527, %v7538
  %v7540 = vpop.f32.mrb[0].mxu0
  %v7541 = vpop.f32.mrb[0].mxu0
  %v7542 = vadd.f32 %v6527, %v7541
  %v7543 = vpop.f32.mrb[0].mxu0
  %7544 = vmatprep.mubr.bf16.mxu0 0
  %7545 = vmatmul.mubr.bf16.gmra.mrb[0].mxu0 %v6759
  %v7546 = vpop.f32.mrb[0].mxu0
  %v7547 = vadd.f32 %v6527, %v7546
  %v7548 = vpop.f32.mrb[0].mxu0
  %v7549 = vpop.f32.mrb[0].mxu0
  %v7550 = vadd.f32 %v6527, %v7549
  %v7551 = vpop.f32.mrb[0].mxu0
  %7552 = vmatprep.mubr.bf16.mxu0 0
  %7553 = vmatmul.mubr.bf16.gmra.mrb[0].mxu0 %v6762
  %v7554 = vpop.f32.mrb[0].mxu0
  %v7555 = vadd.f32 %v6527, %v7554
  %v7556 = vpop.f32.mrb[0].mxu0
  %v7557 = vpop.f32.mrb[0].mxu0
  %v7558 = vadd.f32 %v6527, %v7557
  %v7559 = vpop.f32.mrb[0].mxu0
  %7560 = vmatprep.mubr.bf16.mxu0 0
  %7561 = vmatmul.mubr.bf16.gmra.mrb[0].mxu0 %v6765
  %v7562 = vpop.f32.mrb[0].mxu0
  %v7563 = vadd.f32 %v6527, %v7562
  %v7564 = vpop.f32.mrb[0].mxu0
  %v7565 = vpop.f32.mrb[0].mxu0
  %v7566 = vadd.f32 %v6527, %v7565
  %v7567 = vpop.f32.mrb[0].mxu0
  %7568 = vmatprep.mubr.bf16.mxu0 0
  %7569 = vmatmul.mubr.bf16.gmra.mrb[0].mxu0 %v6768
  %v7570 = vpop.f32.mrb[0].mxu0
  %v7571 = vadd.f32 %v6527, %v7570
  %v7572 = vpop.f32.mrb[0].mxu0
  %v7573 = vpop.f32.mrb[0].mxu0
  %v7574 = vadd.f32 %v6527, %v7573
  %v7575 = vpop.f32.mrb[0].mxu0
  %7576 = vmatprep.mubr.bf16.mxu0 0
  %7577 = vmatmul.mubr.bf16.gmra.mrb[0].mxu0 %v6771
  %v7578 = vpop.f32.mrb[0].mxu0
  %v7579 = vadd.f32 %v6527, %v7578
  %v7580 = vpop.f32.mrb[0].mxu0
  %v7581 = vpop.f32.mrb[0].mxu0
  %v7582 = vadd.f32 %v6527, %v7581
  %v7583 = vpop.f32.mrb[0].mxu0
  %7584 = vmatprep.mubr.bf16.mxu0 0
  %7585 = vmatmul.mubr.bf16.gmra.mrb[0].mxu0 %v6774
  %v7586 = vpop.f32.mrb[0].mxu0
  %v7587 = vadd.f32 %v6527, %v7586
  %v7588 = vpop.f32.mrb[0].mxu0
  %v7589 = vpop.f32.mrb[0].mxu0
  %v7590 = vadd.f32 %v6527, %v7589
  %v7591 = vpop.f32.mrb[0].mxu0
  %7592 = vmatprep.mubr.bf16.mxu0 0
  %7593 = vmatmul.mubr.bf16.gmra.mrb[0].mxu0 %v6777
  %v7594 = vpop.f32.mrb[0].mxu0
  %v7595 = vadd.f32 %v6527, %v7594
  %v7596 = vpop.f32.mrb[0].mxu0
  %v7597 = vpop.f32.mrb[0].mxu0
  %v7598 = vadd.f32 %v6527, %v7597
  %v7599 = vpop.f32.mrb[0].mxu0
  %7600 = vmatprep.mubr.bf16.mxu0 0
  %7601 = vmatmul.mubr.bf16.gmra.mrb[0].mxu0 %v6780
  %v7602 = vpop.f32.mrb[0].mxu0
  %v7603 = vadd.f32 %v6527, %v7602
  %v7604 = vpop.f32.mrb[0].mxu0
  %v7605 = vpop.f32.mrb[0].mxu0
  %v7606 = vadd.f32 %v6527, %v7605
  %v7607 = vpop.f32.mrb[0].mxu0
  %7608 = vmatprep.mubr.bf16.mxu0 0
  %7609 = vmatmul.mubr.bf16.gmra.mrb[0].mxu0 %v6783
  %v7610 = vpop.f32.mrb[0].mxu0
  %v7611 = vadd.f32 %v6527, %v7610
  %v7612 = vpop.f32.mrb[0].mxu0
  %v7613 = vpop.f32.mrb[0].mxu0
  %v7614 = vadd.f32 %v6527, %v7613
  %v7615 = vpop.f32.mrb[0].mxu0
  %7616 = vmatprep.mubr.bf16.mxu0 0
  %7617 = vmatmul.mubr.bf16.gmra.mrb[0].mxu0 %v6786
  %v7618 = vpop.f32.mrb[0].mxu0
  %v7619 = vadd.f32 %v6527, %v7618
  %v7620 = vpop.f32.mrb[0].mxu0
  %v7621 = vpop.f32.mrb[0].mxu0
  %v7622 = vadd.f32 %v6527, %v7621
  %v7623 = vpop.f32.mrb[0].mxu0
  %7624 = vmatprep.mubr.bf16.mxu0 0
  %7625 = vmatmul.mubr.bf16.gmra.mrb[0].mxu0 %v6789
  %v7626 = vpop.f32.mrb[0].mxu0
  %v7627 = vadd.f32 %v6527, %v7626
  %v7628 = vpop.f32.mrb[0].mxu0
  %v7629 = vpop.f32.mrb[0].mxu0
  %v7630 = vadd.f32 %v6527, %v7629
  %v7631 = vpop.f32.mrb[0].mxu0
  %7632 = vmatprep.mubr.bf16.mxu0 0
  %7633 = vmatmul.mubr.bf16.gmra.mrb[0].mxu0 %v6792
  %v7634 = vpop.f32.mrb[0].mxu0
  %v7635 = vadd.f32 %v6527, %v7634
  %v7636 = vpop.f32.mrb[0].mxu0
  %v7637 = vpop.f32.mrb[0].mxu0
  %v7638 = vadd.f32 %v6527, %v7637
  %v7639 = vpop.f32.mrb[0].mxu0
  %7640 = vmatprep.mubr.bf16.mxu0 0
  %7641 = vmatmul.mubr.bf16.gmra.mrb[0].mxu0 %v6795
  %v7642 = vpop.f32.mrb[0].mxu0
  %v7643 = vadd.f32 %v6527, %v7642
  %v7644 = vpop.f32.mrb[0].mxu0
  %v7645 = vpop.f32.mrb[0].mxu0
  %v7646 = vadd.f32 %v6527, %v7645
  %v7647 = vpop.f32.mrb[0].mxu0
  %7648 = vmatprep.mubr.bf16.mxu0 0
  %7649 = vmatmul.mubr.bf16.gmra.mrb[0].mxu0 %v6798
  %v7650 = vpop.f32.mrb[0].mxu0
  %v7651 = vadd.f32 %v6527, %v7650
  %v7652 = vpop.f32.mrb[0].mxu0
  %v7653 = vpop.f32.mrb[0].mxu0
  %v7654 = vadd.f32 %v6527, %v7653
  %v7655 = vpop.f32.mrb[0].mxu0
  %7656 = vmatprep.mubr.bf16.mxu0 0
  %7657 = vmatmul.mubr.bf16.gmra.mrb[0].mxu0 %v6801
  %v7658 = vpop.f32.mrb[0].mxu0
  %v7659 = vadd.f32 %v6527, %v7658
  %v7660 = vpop.f32.mrb[0].mxu0
  %v7661 = vpop.f32.mrb[0].mxu0
  %v7662 = vadd.f32 %v6527, %v7661
  %v7663 = vpop.f32.mrb[0].mxu0
  %7664 = vmatprep.mubr.bf16.mxu0 0
  %7665 = vmatmul.mubr.bf16.gmra.mrb[0].mxu0 %v6804
  %v7666 = vpop.f32.mrb[0].mxu0
  %v7667 = vadd.f32 %v6527, %v7666
  %v7668 = vpop.f32.mrb[0].mxu0
  %v7669 = vpop.f32.mrb[0].mxu0
  %v7670 = vadd.f32 %v6527, %v7669
  %v7671 = vpop.f32.mrb[0].mxu0
  %7672 = vmatprep.mubr.bf16.mxu0 0
  %7673 = vmatmul.mubr.bf16.gmra.mrb[0].mxu0 %v6807
  %v7674 = vpop.f32.mrb[0].mxu0
  %v7675 = vadd.f32 %v6527, %v7674
  %v7676 = vpop.f32.mrb[0].mxu0
  %v7677 = vpop.f32.mrb[0].mxu0
  %v7678 = vadd.f32 %v6527, %v7677
  %v7679 = vpop.f32.mrb[0].mxu0
  %7680 = vmatprep.mubr.bf16.mxu0 0
  %7681 = vmatmul.mubr.bf16.gmra.mrb[0].mxu0 %v6810
  %v7682 = vpop.f32.mrb[0].mxu0
  %v7683 = vadd.f32 %v6527, %v7682
  %v7684 = vpop.f32.mrb[0].mxu0
  %v7685 = vpop.f32.mrb[0].mxu0
  %v7686 = vadd.f32 %v6527, %v7685
  %v7687 = vpop.f32.mrb[0].mxu0
  %7688 = vmatprep.mubr.bf16.mxu0 0
  %7689 = vmatmul.mubr.bf16.gmra.mrb[0].mxu0 %v6813
  %v7690 = vpop.f32.mrb[0].mxu0
  %v7691 = vadd.f32 %v6527, %v7690
  %v7692 = vpop.f32.mrb[0].mxu0
  %v7693 = vpop.f32.mrb[0].mxu0
  %v7694 = vadd.f32 %v6527, %v7693
  %v7695 = vpop.f32.mrb[0].mxu0
  %7696 = vmatprep.mubr.bf16.mxu0 0
  %7697 = vmatmul.mubr.bf16.gmra.mrb[0].mxu0 %v6816
  %v7698 = vpop.f32.mrb[0].mxu0
  %v7699 = vadd.f32 %v6527, %v7698
  %v7700 = vpop.f32.mrb[0].mxu0
  %v7701 = vpop.f32.mrb[0].mxu0
  %v7702 = vadd.f32 %v6527, %v7701
  %v7703 = vpop.f32.mrb[0].mxu0
  %7704 = vmatprep.mubr.bf16.mxu0 0
  %7705 = vmatmul.mubr.bf16.gmra.mrb[0].mxu0 %v6819
  %v7706 = vpop.f32.mrb[0].mxu0
  %v7707 = vadd.f32 %v6527, %v7706
  %v7708 = vpop.f32.mrb[0].mxu0
  %v7709 = vpop.f32.mrb[0].mxu0
  %v7710 = vadd.f32 %v6527, %v7709
  %v7711 = vpop.f32.mrb[0].mxu0
  %7712 = vmatprep.mubr.bf16.mxu0 0
  %7713 = vmatmul.mubr.bf16.gmra.mrb[0].mxu0 %v6822
  %v7714 = vpop.f32.mrb[0].mxu0
  %v7715 = vadd.f32 %v6527, %v7714
  %v7716 = vpop.f32.mrb[0].mxu0
  %v7717 = vpop.f32.mrb[0].mxu0
  %v7718 = vadd.f32 %v6527, %v7717
  %v7719 = vpop.f32.mrb[0].mxu0
  %7720 = vmatprep.mubr.bf16.mxu0 0
  %7721 = vmatmul.mubr.bf16.gmra.mrb[0].mxu0 %v6825
  %v7722 = vpop.f32.mrb[0].mxu0
  %v7723 = vadd.f32 %v6527, %v7722
  %v7724 = vpop.f32.mrb[0].mxu0
  %v7725 = vpop.f32.mrb[0].mxu0
  %v7726 = vadd.f32 %v6527, %v7725
  %v7727 = vpop.f32.mrb[0].mxu0
  %7728 = vmatprep.mubr.bf16.mxu0 0
  %7729 = vmatmul.mubr.bf16.gmra.mrb[0].mxu0 %v6828
  %v7730 = vpop.f32.mrb[0].mxu0
  %v7731 = vadd.f32 %v6527, %v7730
  %v7732 = vpop.f32.mrb[0].mxu0
  %v7733 = vpop.f32.mrb[0].mxu0
  %v7734 = vadd.f32 %v6527, %v7733
  %v7735 = vpop.f32.mrb[0].mxu0
  %7736 = vmatprep.mubr.bf16.mxu0 0
  %7737 = vmatmul.mubr.bf16.gmra.mrb[0].mxu0 %v6831
  %v7738 = vpop.f32.mrb[0].mxu0
  %v7739 = vadd.f32 %v6527, %v7738
  %v7740 = vpop.f32.mrb[0].mxu0
  %v7741 = vpop.f32.mrb[0].mxu0
  %v7742 = vadd.f32 %v6527, %v7741
  %v7743 = vpop.f32.mrb[0].mxu0
  %7744 = vmatprep.mubr.bf16.mxu0 0
  %7745 = vmatmul.mubr.bf16.gmra.mrb[0].mxu0 %v6834
  %v7746 = vpop.f32.mrb[0].mxu0
  %v7747 = vadd.f32 %v6527, %v7746
  %v7748 = vpop.f32.mrb[0].mxu0
  %v7749 = vpop.f32.mrb[0].mxu0
  %v7750 = vadd.f32 %v6527, %v7749
  %v7751 = vpop.f32.mrb[0].mxu0
  %7752 = vmatprep.mubr.bf16.mxu0 0
  %7753 = vmatmul.mubr.bf16.gmra.mrb[0].mxu0 %v6837
  %v7754 = vpop.f32.mrb[0].mxu0
  %v7755 = vadd.f32 %v6527, %v7754
  %v7756 = vpop.f32.mrb[0].mxu0
  %v7757 = vpop.f32.mrb[0].mxu0
  %v7758 = vadd.f32 %v6527, %v7757
  %v7759 = vpop.f32.mrb[0].mxu0
  %7760 = vmatprep.mubr.bf16.mxu0 0
  %7761 = vmatmul.mubr.bf16.gmra.mrb[0].mxu0 %v6840
  %v7762 = vpop.f32.mrb[0].mxu0
  %v7763 = vadd.f32 %v6527, %v7762
  %v7764 = vpop.f32.mrb[0].mxu0
  %v7765 = vpop.f32.mrb[0].mxu0
  %v7766 = vadd.f32 %v6527, %v7765
  %v7767 = vpop.f32.mrb[0].mxu0
  %7768 = vmatprep.mubr.bf16.mxu0 0
  %7769 = vmatmul.mubr.bf16.gmra.mrb[0].mxu0 %v6843
  %v7770 = vpop.f32.mrb[0].mxu0
  %v7771 = vadd.f32 %v6527, %v7770
  %v7772 = vpop.f32.mrb[0].mxu0
  %v7773 = vpop.f32.mrb[0].mxu0
  %v7774 = vadd.f32 %v6527, %v7773
  %v7775 = vpop.f32.mrb[0].mxu0
  %7776 = vmatprep.mubr.bf16.mxu0 0
  %7777 = vmatmul.mubr.bf16.gmra.mrb[0].mxu0 %v6846
  %v7778 = vpop.f32.mrb[0].mxu0
  %v7779 = vadd.f32 %v6527, %v7778
  %v7780 = vpop.f32.mrb[0].mxu0
  %v7781 = vpop.f32.mrb[0].mxu0
  %v7782 = vadd.f32 %v6527, %v7781
  %v7783 = vpop.f32.mrb[0].mxu0
  %7784 = vmatprep.mubr.bf16.mxu0 0
  %7785 = vmatmul.mubr.bf16.gmra.mrb[0].mxu0 %v6849
  %v7786 = vpop.f32.mrb[0].mxu0
  %v7787 = vadd.f32 %v6527, %v7786
  %v7788 = vpop.f32.mrb[0].mxu0
  %v7789 = vpop.f32.mrb[0].mxu0
  %v7790 = vadd.f32 %v6527, %v7789
  %v7791 = vpop.f32.mrb[0].mxu0
  %7792 = vmatprep.mubr.bf16.mxu0 0
  %7793 = vmatmul.mubr.bf16.gmra.mrb[0].mxu0 %v6852
  %v7794 = vpop.f32.mrb[0].mxu0
  %v7795 = vadd.f32 %v6527, %v7794
  %v7796 = vpop.f32.mrb[0].mxu0
  %v7797 = vpop.f32.mrb[0].mxu0
  %v7798 = vadd.f32 %v6527, %v7797
  %v7799 = vpop.f32.mrb[0].mxu0
  %7800 = vmatprep.mubr.bf16.mxu0 0
  %7801 = vmatmul.mubr.bf16.gmra.mrb[0].mxu0 %v6855
  %v7802 = vpop.f32.mrb[0].mxu0
  %v7803 = vadd.f32 %v6527, %v7802
  %v7804 = vpop.f32.mrb[0].mxu0
  %v7805 = vpop.f32.mrb[0].mxu0
  %v7806 = vadd.f32 %v6527, %v7805
  %v7807 = vpop.f32.mrb[0].mxu0
  %7808 = vmatprep.mubr.bf16.mxu0 0
  %7809 = vmatmul.mubr.bf16.gmra.mrb[0].mxu0 %v6858
  %v7810 = vpop.f32.mrb[0].mxu0
  %v7811 = vadd.f32 %v6527, %v7810
  %v7812 = vpop.f32.mrb[0].mxu0
  %v7813 = vpop.f32.mrb[0].mxu0
  %v7814 = vadd.f32 %v6527, %v7813
  %v7815 = vpop.f32.mrb[0].mxu0
  %7816 = vmatprep.mubr.bf16.mxu0 0
  %7817 = vmatmul.mubr.bf16.gmra.mrb[0].mxu0 %v6861
  %v7818 = vpop.f32.mrb[0].mxu0
  %v7819 = vadd.f32 %v6527, %v7818
  %v7820 = vpop.f32.mrb[0].mxu0
  %v7821 = vpop.f32.mrb[0].mxu0
  %v7822 = vadd.f32 %v6527, %v7821
  %v7823 = vpop.f32.mrb[0].mxu0
  %7824 = vmatprep.mubr.bf16.mxu0 0
  %7825 = vmatmul.mubr.bf16.gmra.mrb[0].mxu0 %v6864
  %v7826 = vpop.f32.mrb[0].mxu0
  %v7827 = vadd.f32 %v6527, %v7826
  %v7828 = vpop.f32.mrb[0].mxu0
  %v7829 = vpop.f32.mrb[0].mxu0
  %v7830 = vadd.f32 %v6527, %v7829
  %v7831 = vpop.f32.mrb[0].mxu0
  %7832 = vmatprep.mubr.bf16.mxu0 0
  %7833 = vmatmul.mubr.bf16.gmra.mrb[0].mxu0 %v6867
  %v7834 = vpop.f32.mrb[0].mxu0
  %v7835 = vadd.f32 %v6527, %v7834
  %v7836 = vpop.f32.mrb[0].mxu0
  %v7837 = vpop.f32.mrb[0].mxu0
  %v7838 = vadd.f32 %v6527, %v7837
  %v7839 = vpop.f32.mrb[0].mxu0
  %7840 = vmatprep.mubr.bf16.mxu0 0
  %7841 = vmatmul.mubr.bf16.gmra.mrb[0].mxu0 %v6870
  %v7842 = vpop.f32.mrb[0].mxu0
  %v7843 = vadd.f32 %v6527, %v7842
  %v7844 = vpop.f32.mrb[0].mxu0
  %v7845 = vpop.f32.mrb[0].mxu0
  %v7846 = vadd.f32 %v6527, %v7845
  %v7847 = vpop.f32.mrb[0].mxu0
  %7848 = vmatprep.mubr.bf16.mxu0 0
  %7849 = vmatmul.mubr.bf16.gmra.mrb[0].mxu0 %v6873
  %v7850 = vpop.f32.mrb[0].mxu0
  %v7851 = vadd.f32 %v6527, %v7850
  %v7852 = vpop.f32.mrb[0].mxu0
  %v7853 = vpop.f32.mrb[0].mxu0
  %v7854 = vadd.f32 %v6527, %v7853
  %v7855 = vpop.f32.mrb[0].mxu0
  %7856 = vmatprep.mubr.bf16.mxu0 0
  %7857 = vmatmul.mubr.bf16.gmra.mrb[0].mxu0 %v6876
  %v7858 = vpop.f32.mrb[0].mxu0
  %v7859 = vadd.f32 %v6527, %v7858
  %v7860 = vpop.f32.mrb[0].mxu0
  %v7861 = vpop.f32.mrb[0].mxu0
  %v7862 = vadd.f32 %v6527, %v7861
  %v7863 = vpop.f32.mrb[0].mxu0
  %7864 = vmatprep.mubr.bf16.mxu0 0
  %7865 = vmatmul.mubr.bf16.gmra.mrb[0].mxu0 %v6879
  %v7866 = vpop.f32.mrb[0].mxu0
  %v7867 = vadd.f32 %v6527, %v7866
  %v7868 = vpop.f32.mrb[0].mxu0
  %v7869 = vpop.f32.mrb[0].mxu0
  %v7870 = vadd.f32 %v6527, %v7869
  %v7871 = vpop.f32.mrb[0].mxu0
  %7872 = vmatprep.mubr.bf16.mxu0 0
  %7873 = vmatmul.mubr.bf16.gmra.mrb[0].mxu0 %v6882
  %v7874 = vpop.f32.mrb[0].mxu0
  %v7875 = vadd.f32 %v6527, %v7874
  %v7876 = vpop.f32.mrb[0].mxu0
  %v7877 = vpop.f32.mrb[0].mxu0
  %v7878 = vadd.f32 %v6527, %v7877
  %v7879 = vpop.f32.mrb[0].mxu0
  %7880 = vmatprep.mubr.bf16.mxu0 0
  %7881 = vmatmul.mubr.bf16.gmra.mrb[0].mxu0 %v6885
  %v7882 = vpop.f32.mrb[0].mxu0
  %v7883 = vadd.f32 %v6527, %v7882
  %v7884 = vpop.f32.mrb[0].mxu0
  %v7885 = vpop.f32.mrb[0].mxu0
  %v7886 = vadd.f32 %v6527, %v7885
  %v7887 = vpop.f32.mrb[0].mxu0
  %7888 = vmatprep.mubr.bf16.mxu0 0
  %7889 = vmatmul.mubr.bf16.gmra.mrb[0].mxu0 %v6888
  %v7890 = vpop.f32.mrb[0].mxu0
  %v7891 = vadd.f32 %v6527, %v7890
  %v7892 = vpop.f32.mrb[0].mxu0
  %v7893 = vpop.f32.mrb[0].mxu0
  %v7894 = vadd.f32 %v6527, %v7893
  %v7895 = vpop.f32.mrb[0].mxu0
  %7896 = vmatprep.mubr.bf16.mxu0 0
  %7897 = vmatmul.mubr.bf16.gmra.mrb[0].mxu0 %v6891
  %v7898 = vpop.f32.mrb[0].mxu0
  %v7899 = vadd.f32 %v6527, %v7898
  %v7900 = vpop.f32.mrb[0].mxu0
  %v7901 = vpop.f32.mrb[0].mxu0
  %v7902 = vadd.f32 %v6527, %v7901
  %v7903 = vpop.f32.mrb[0].mxu0
  %7904 = vmatprep.mubr.bf16.mxu0 0
  %7905 = vmatmul.mubr.bf16.gmra.mrb[0].mxu0 %v6894
  %v7906 = vpop.f32.mrb[0].mxu0
  %v7907 = vadd.f32 %v6527, %v7906
  %v7908 = vpop.f32.mrb[0].mxu0
  %v7909 = vpop.f32.mrb[0].mxu0
  %v7910 = vadd.f32 %v6527, %v7909
  %v7911 = vpop.f32.mrb[0].mxu0
  %7912 = vmatprep.mubr.bf16.mxu0 0
  %7913 = vmatmul.mubr.bf16.gmra.mrb[0].mxu0 %v6897
  %v7914 = vpop.f32.mrb[0].mxu0
  %v7915 = vadd.f32 %v6527, %v7914
  %v7916 = vpop.f32.mrb[0].mxu0
  %v7917 = vpop.f32.mrb[0].mxu0
  %v7918 = vadd.f32 %v6527, %v7917
  %v7919 = vpop.f32.mrb[0].mxu0
  %7920 = vmatprep.mubr.bf16.mxu0 0
  %7921 = vmatmul.mubr.bf16.gmra.mrb[0].mxu0 %v6900
  %v7922 = vpop.f32.mrb[0].mxu0
  %v7923 = vadd.f32 %v6527, %v7922
  %v7924 = vpop.f32.mrb[0].mxu0
  %v7925 = vpop.f32.mrb[0].mxu0
  %v7926 = vadd.f32 %v6527, %v7925
  %v7927 = vpop.f32.mrb[0].mxu0
  %7928 = vmatprep.mubr.bf16.mxu0 0
  %7929 = vmatmul.mubr.bf16.gmra.mrb[0].mxu0 %v6903
  %v7930 = vpop.f32.mrb[0].mxu0
  %v7931 = vadd.f32 %v6527, %v7930
  %v7932 = vpop.f32.mrb[0].mxu0
  %v7933 = vpop.f32.mrb[0].mxu0
  %v7934 = vadd.f32 %v6527, %v7933
  %v7935 = vpop.f32.mrb[0].mxu0
  %7936 = vmatprep.mubr.bf16.mxu0 0
  %7937 = vmatmul.mubr.bf16.gmra.mrb[0].mxu0 %v6906
  %v7938 = vpop.f32.mrb[0].mxu0
  %v7939 = vadd.f32 %v6527, %v7938
  %v7940 = vpop.f32.mrb[0].mxu0
  %v7941 = vpop.f32.mrb[0].mxu0
  %v7942 = vadd.f32 %v6527, %v7941
  %v7943 = vpop.f32.mrb[0].mxu0
  %7944 = vmatprep.mubr.bf16.mxu0 0
  %7945 = vmatmul.mubr.bf16.gmra.mrb[0].mxu0 %v6909
  %v7946 = vpop.f32.mrb[0].mxu0
  %v7947 = vadd.f32 %v6527, %v7946
  %v7948 = vpop.f32.mrb[0].mxu0
  %v7949 = vpop.f32.mrb[0].mxu0
  %v7950 = vadd.f32 %v6527, %v7949
  %v7951 = vpop.f32.mrb[0].mxu0
  %7952 = vmatprep.mubr.bf16.mxu0 0
  %7953 = vmatmul.mubr.bf16.gmra.mrb[0].mxu0 %v6912
  %v7954 = vpop.f32.mrb[0].mxu0
  %v7955 = vadd.f32 %v6527, %v7954
  %v7956 = vpop.f32.mrb[0].mxu0
  %v7957 = vpop.f32.mrb[0].mxu0
  %v7958 = vadd.f32 %v6527, %v7957
  %v7959 = vpop.f32.mrb[0].mxu0
  %7960 = vmatprep.mubr.bf16.mxu0 0
  %7961 = vmatmul.mubr.bf16.gmra.mrb[0].mxu0 %v6915
  %v7962 = vpop.f32.mrb[0].mxu0
  %v7963 = vadd.f32 %v6527, %v7962
  %v7964 = vpop.f32.mrb[0].mxu0
  %v7965 = vpop.f32.mrb[0].mxu0
  %v7966 = vadd.f32 %v6527, %v7965
  %v7967 = vpop.f32.mrb[0].mxu0
  %7968 = vmatprep.mubr.bf16.mxu0 0
  %7969 = vmatmul.mubr.bf16.gmra.mrb[0].mxu0 %v6918
  %v7970 = vpop.f32.mrb[0].mxu0
  %v7971 = vadd.f32 %v6527, %v7970
  %v7972 = vpop.f32.mrb[0].mxu0
  %v7973 = vpop.f32.mrb[0].mxu0
  %v7974 = vadd.f32 %v6527, %v7973
  %v7975 = vpop.f32.mrb[0].mxu0
  %7976 = vdwg.mxu0
  %v7977 = vmax.f32 %v6955, 0.0
  %v7978 = vmax.f32 %v6958, 0.0
  %v7979 = vmax.f32 %v6963, 0.0
  %v7980 = vmax.f32 %v6966, 0.0
  %v7981 = vmax.f32 %v6971, 0.0
  %v7982 = vmax.f32 %v6974, 0.0
  %v7983 = vmax.f32 %v6979, 0.0
  %v7984 = vmax.f32 %v6982, 0.0
  %v7985 = vmax.f32 %v6987, 0.0
  %v7986 = vmax.f32 %v6990, 0.0
  %v7987 = vmax.f32 %v6995, 0.0
  %v7988 = vmax.f32 %v6998, 0.0
  %v7989 = vmax.f32 %v7003, 0.0
  %v7990 = vmax.f32 %v7006, 0.0
  %v7991 = vmax.f32 %v7011, 0.0
  %v7992 = vmax.f32 %v7014, 0.0
  %v7993 = vmax.f32 %v7019, 0.0
  %v7994 = vmax.f32 %v7022, 0.0
  %v7995 = vmax.f32 %v7027, 0.0
  %v7996 = vmax.f32 %v7030, 0.0
  %v7997 = vmax.f32 %v7035, 0.0
  %v7998 = vmax.f32 %v7038, 0.0
  %v7999 = vmax.f32 %v7043, 0.0
  %v8000 = vmax.f32 %v7046, 0.0
  %v8001 = vmax.f32 %v7051, 0.0
  %v8002 = vmax.f32 %v7054, 0.0
  %v8003 = vmax.f32 %v7059, 0.0
  %v8004 = vmax.f32 %v7062, 0.0
  %v8005 = vmax.f32 %v7067, 0.0
  %v8006 = vmax.f32 %v7070, 0.0
  %v8007 = vmax.f32 %v7075, 0.0
  %v8008 = vmax.f32 %v7078, 0.0
  %v8009 = vmax.f32 %v7083, 0.0
  %v8010 = vmax.f32 %v7086, 0.0
  %v8011 = vmax.f32 %v7091, 0.0
  %v8012 = vmax.f32 %v7094, 0.0
  %v8013 = vmax.f32 %v7099, 0.0
  %v8014 = vmax.f32 %v7102, 0.0
  %v8015 = vmax.f32 %v7107, 0.0
  %v8016 = vmax.f32 %v7110, 0.0
  %v8017 = vmax.f32 %v7115, 0.0
  %v8018 = vmax.f32 %v7118, 0.0
  %v8019 = vmax.f32 %v7123, 0.0
  %v8020 = vmax.f32 %v7126, 0.0
  %v8021 = vmax.f32 %v7131, 0.0
  %v8022 = vmax.f32 %v7134, 0.0
  %v8023 = vmax.f32 %v7139, 0.0
  %v8024 = vmax.f32 %v7142, 0.0
  %v8025 = vmax.f32 %v7147, 0.0
  %v8026 = vmax.f32 %v7150, 0.0
  %v8027 = vmax.f32 %v7155, 0.0
  %v8028 = vmax.f32 %v7158, 0.0
  %v8029 = vmax.f32 %v7163, 0.0
  %v8030 = vmax.f32 %v7166, 0.0
  %v8031 = vmax.f32 %v7171, 0.0
  %v8032 = vmax.f32 %v7174, 0.0
  %v8033 = vmax.f32 %v7179, 0.0
  %v8034 = vmax.f32 %v7182, 0.0
  %v8035 = vmax.f32 %v7187, 0.0
  %v8036 = vmax.f32 %v7190, 0.0
  %v8037 = vmax.f32 %v7195, 0.0
  %v8038 = vmax.f32 %v7198, 0.0
  %v8039 = vmax.f32 %v7203, 0.0
  %v8040 = vmax.f32 %v7206, 0.0
  %v8041 = vmax.f32 %v7211, 0.0
  %v8042 = vmax.f32 %v7214, 0.0
  %v8043 = vmax.f32 %v7219, 0.0
  %v8044 = vmax.f32 %v7222, 0.0
  %v8045 = vmax.f32 %v7227, 0.0
  %v8046 = vmax.f32 %v7230, 0.0
  %v8047 = vmax.f32 %v7235, 0.0
  %v8048 = vmax.f32 %v7238, 0.0
  %v8049 = vmax.f32 %v7243, 0.0
  %v8050 = vmax.f32 %v7246, 0.0
  %v8051 = vmax.f32 %v7251, 0.0
  %v8052 = vmax.f32 %v7254, 0.0
  %v8053 = vmax.f32 %v7259, 0.0
  %v8054 = vmax.f32 %v7262, 0.0
  %v8055 = vmax.f32 %v7267, 0.0
  %v8056 = vmax.f32 %v7270, 0.0
  %v8057 = vmax.f32 %v7275, 0.0
  %v8058 = vmax.f32 %v7278, 0.0
  %v8059 = vmax.f32 %v7283, 0.0
  %v8060 = vmax.f32 %v7286, 0.0
  %v8061 = vmax.f32 %v7291, 0.0
  %v8062 = vmax.f32 %v7294, 0.0
  %v8063 = vmax.f32 %v7299, 0.0
  %v8064 = vmax.f32 %v7302, 0.0
  %v8065 = vmax.f32 %v7307, 0.0
  %v8066 = vmax.f32 %v7310, 0.0
  %v8067 = vmax.f32 %v7315, 0.0
  %v8068 = vmax.f32 %v7318, 0.0
  %v8069 = vmax.f32 %v7323, 0.0
  %v8070 = vmax.f32 %v7326, 0.0
  %v8071 = vmax.f32 %v7331, 0.0
  %v8072 = vmax.f32 %v7334, 0.0
  %v8073 = vmax.f32 %v7339, 0.0
  %v8074 = vmax.f32 %v7342, 0.0
  %v8075 = vmax.f32 %v7347, 0.0
  %v8076 = vmax.f32 %v7350, 0.0
  %v8077 = vmax.f32 %v7355, 0.0
  %v8078 = vmax.f32 %v7358, 0.0
  %v8079 = vmax.f32 %v7363, 0.0
  %v8080 = vmax.f32 %v7366, 0.0
  %v8081 = vmax.f32 %v7371, 0.0
  %v8082 = vmax.f32 %v7374, 0.0
  %v8083 = vmax.f32 %v7379, 0.0
  %v8084 = vmax.f32 %v7382, 0.0
  %v8085 = vmax.f32 %v7387, 0.0
  %v8086 = vmax.f32 %v7390, 0.0
  %v8087 = vmax.f32 %v7395, 0.0
  %v8088 = vmax.f32 %v7398, 0.0
  %v8089 = vmax.f32 %v7403, 0.0
  %v8090 = vmax.f32 %v7406, 0.0
  %v8091 = vmax.f32 %v7411, 0.0
  %v8092 = vmax.f32 %v7414, 0.0
  %v8093 = vmax.f32 %v7419, 0.0
  %v8094 = vmax.f32 %v7422, 0.0
  %v8095 = vmax.f32 %v7427, 0.0
  %v8096 = vmax.f32 %v7430, 0.0
  %v8097 = vmax.f32 %v7435, 0.0
  %v8098 = vmax.f32 %v7438, 0.0
  %v8099 = vmax.f32 %v7443, 0.0
  %v8100 = vmax.f32 %v7446, 0.0
  %v8101 = vmax.f32 %v7451, 0.0
  %v8102 = vmax.f32 %v7454, 0.0
  %v8103 = vmax.f32 %v7459, 0.0
  %v8104 = vmax.f32 %v7462, 0.0
  %v8105 = vmax.f32 %v7467, 0.0
  %v8106 = vmax.f32 %v7470, 0.0
  %v8107 = vmax.f32 %v7475, 0.0
  %v8108 = vmax.f32 %v7478, 0.0
  %v8109 = vmax.f32 %v7483, 0.0
  %v8110 = vmax.f32 %v7486, 0.0
  %v8111 = vmax.f32 %v7491, 0.0
  %v8112 = vmax.f32 %v7494, 0.0
  %v8113 = vmax.f32 %v7499, 0.0
  %v8114 = vmax.f32 %v7502, 0.0
  %v8115 = vmax.f32 %v7507, 0.0
  %v8116 = vmax.f32 %v7510, 0.0
  %v8117 = vmax.f32 %v7515, 0.0
  %v8118 = vmax.f32 %v7518, 0.0
  %v8119 = vmax.f32 %v7523, 0.0
  %v8120 = vmax.f32 %v7526, 0.0
  %v8121 = vmax.f32 %v7531, 0.0
  %v8122 = vmax.f32 %v7534, 0.0
  %v8123 = vmax.f32 %v7539, 0.0
  %v8124 = vmax.f32 %v7542, 0.0
  %v8125 = vmax.f32 %v7547, 0.0
  %v8126 = vmax.f32 %v7550, 0.0
  %v8127 = vmax.f32 %v7555, 0.0
  %v8128 = vmax.f32 %v7558, 0.0
  %v8129 = vmax.f32 %v7563, 0.0
  %v8130 = vmax.f32 %v7566, 0.0
  %v8131 = vmax.f32 %v7571, 0.0
  %v8132 = vmax.f32 %v7574, 0.0
  %v8133 = vmax.f32 %v7579, 0.0
  %v8134 = vmax.f32 %v7582, 0.0
  %v8135 = vmax.f32 %v7587, 0.0
  %v8136 = vmax.f32 %v7590, 0.0
  %v8137 = vmax.f32 %v7595, 0.0
  %v8138 = vmax.f32 %v7598, 0.0
  %v8139 = vmax.f32 %v7603, 0.0
  %v8140 = vmax.f32 %v7606, 0.0
  %v8141 = vmax.f32 %v7611, 0.0
  %v8142 = vmax.f32 %v7614, 0.0
  %v8143 = vmax.f32 %v7619, 0.0
  %v8144 = vmax.f32 %v7622, 0.0
  %v8145 = vmax.f32 %v7627, 0.0
  %v8146 = vmax.f32 %v7630, 0.0
  %v8147 = vmax.f32 %v7635, 0.0
  %v8148 = vmax.f32 %v7638, 0.0
  %v8149 = vmax.f32 %v7643, 0.0
  %v8150 = vmax.f32 %v7646, 0.0
  %v8151 = vmax.f32 %v7651, 0.0
  %v8152 = vmax.f32 %v7654, 0.0
  %v8153 = vmax.f32 %v7659, 0.0
  %v8154 = vmax.f32 %v7662, 0.0
  %v8155 = vmax.f32 %v7667, 0.0
  %v8156 = vmax.f32 %v7670, 0.0
  %v8157 = vmax.f32 %v7675, 0.0
  %v8158 = vmax.f32 %v7678, 0.0
  %v8159 = vmax.f32 %v7683, 0.0
  %v8160 = vmax.f32 %v7686, 0.0
  %v8161 = vmax.f32 %v7691, 0.0
  %v8162 = vmax.f32 %v7694, 0.0
  %v8163 = vmax.f32 %v7699, 0.0
  %v8164 = vmax.f32 %v7702, 0.0
  %v8165 = vmax.f32 %v7707, 0.0
  %v8166 = vmax.f32 %v7710, 0.0
  %v8167 = vmax.f32 %v7715, 0.0
  %v8168 = vmax.f32 %v7718, 0.0
  %v8169 = vmax.f32 %v7723, 0.0
  %v8170 = vmax.f32 %v7726, 0.0
  %v8171 = vmax.f32 %v7731, 0.0
  %v8172 = vmax.f32 %v7734, 0.0
  %v8173 = vmax.f32 %v7739, 0.0
  %v8174 = vmax.f32 %v7742, 0.0
  %v8175 = vmax.f32 %v7747, 0.0
  %v8176 = vmax.f32 %v7750, 0.0
  %v8177 = vmax.f32 %v7755, 0.0
  %v8178 = vmax.f32 %v7758, 0.0
  %v8179 = vmax.f32 %v7763, 0.0
  %v8180 = vmax.f32 %v7766, 0.0
  %v8181 = vmax.f32 %v7771, 0.0
  %v8182 = vmax.f32 %v7774, 0.0
  %v8183 = vmax.f32 %v7779, 0.0
  %v8184 = vmax.f32 %v7782, 0.0
  %v8185 = vmax.f32 %v7787, 0.0
  %v8186 = vmax.f32 %v7790, 0.0
  %v8187 = vmax.f32 %v7795, 0.0
  %v8188 = vmax.f32 %v7798, 0.0
  %v8189 = vmax.f32 %v7803, 0.0
  %v8190 = vmax.f32 %v7806, 0.0
  %v8191 = vmax.f32 %v7811, 0.0
  %v8192 = vmax.f32 %v7814, 0.0
  %v8193 = vmax.f32 %v7819, 0.0
  %v8194 = vmax.f32 %v7822, 0.0
  %v8195 = vmax.f32 %v7827, 0.0
  %v8196 = vmax.f32 %v7830, 0.0
  %v8197 = vmax.f32 %v7835, 0.0
  %v8198 = vmax.f32 %v7838, 0.0
  %v8199 = vmax.f32 %v7843, 0.0
  %v8200 = vmax.f32 %v7846, 0.0
  %v8201 = vmax.f32 %v7851, 0.0
  %v8202 = vmax.f32 %v7854, 0.0
  %v8203 = vmax.f32 %v7859, 0.0
  %v8204 = vmax.f32 %v7862, 0.0
  %v8205 = vmax.f32 %v7867, 0.0
  %v8206 = vmax.f32 %v7870, 0.0
  %v8207 = vmax.f32 %v7875, 0.0
  %v8208 = vmax.f32 %v7878, 0.0
  %v8209 = vmax.f32 %v7883, 0.0
  %v8210 = vmax.f32 %v7886, 0.0
  %v8211 = vmax.f32 %v7891, 0.0
  %v8212 = vmax.f32 %v7894, 0.0
  %v8213 = vmax.f32 %v7899, 0.0
  %v8214 = vmax.f32 %v7902, 0.0
  %v8215 = vmax.f32 %v7907, 0.0
  %v8216 = vmax.f32 %v7910, 0.0
  %v8217 = vmax.f32 %v7915, 0.0
  %v8218 = vmax.f32 %v7918, 0.0
  %v8219 = vmax.f32 %v7923, 0.0
  %v8220 = vmax.f32 %v7926, 0.0
  %v8221 = vmax.f32 %v7931, 0.0
  %v8222 = vmax.f32 %v7934, 0.0
  %v8223 = vmax.f32 %v7939, 0.0
  %v8224 = vmax.f32 %v7942, 0.0
  %v8225 = vmax.f32 %v7947, 0.0
  %v8226 = vmax.f32 %v7950, 0.0
  %v8227 = vmax.f32 %v7955, 0.0
  %v8228 = vmax.f32 %v7958, 0.0
  %v8229 = vmax.f32 %v7963, 0.0
  %v8230 = vmax.f32 %v7966, 0.0
  %v8231 = vmax.f32 %v7971, 0.0
  %v8232 = vmax.f32 %v7974, 0.0
  %v8233 = vld [vmem:[%s0] sm:$0xff]
  %v8234 = vld [vmem:[%s0 + $0x8] sm:$0xff]
  %v8235 = vld [vmem:[%s0 + $0x10] sm:$0xff]
  %v8236 = vld [vmem:[%s0 + $0x18] sm:$0xff]
  %v8237 = vld [vmem:[%s0 + $0x20] sm:$0xff]
  %v8238 = vld [vmem:[%s0 + $0x28] sm:$0xff]
  %v8239 = vld [vmem:[%s0 + $0x30] sm:$0xff]
  %v8240 = vld [vmem:[%s0 + $0x38] sm:$0xff]
  %v8241 = vld [vmem:[%s0 + $0x40] sm:$0xff]
  %v8242 = vld [vmem:[%s0 + $0x48] sm:$0xff]
  %v8243 = vld [vmem:[%s0 + $0x50] sm:$0xff]
  %v8244 = vld [vmem:[%s0 + $0x58] sm:$0xff]
  %v8245 = vld [vmem:[%s0 + $0x60] sm:$0xff]
  %v8246 = vld [vmem:[%s0 + $0x68] sm:$0xff]
  %v8247 = vld [vmem:[%s0 + $0x70] sm:$0xff]
  %v8248 = vld [vmem:[%s0 + $0x78] sm:$0xff]
  %v8249 = vld [vmem:[%s0 + $0x80] sm:$0xff]
  %v8250 = vld [vmem:[%s0 + $0x88] sm:$0xff]
  %v8251 = vld [vmem:[%s0 + $0x90] sm:$0xff]
  %v8252 = vld [vmem:[%s0 + $0x98] sm:$0xff]
  %v8253 = vld [vmem:[%s0 + $0xa0] sm:$0xff]
  %v8254 = vld [vmem:[%s0 + $0xa8] sm:$0xff]
  %v8255 = vld [vmem:[%s0 + $0xb0] sm:$0xff]
  %v8256 = vld [vmem:[%s0 + $0xb8] sm:$0xff]
  %v8257 = vld [vmem:[%s0 + $0xc0] sm:$0xff]
  %v8258 = vld [vmem:[%s0 + $0xc8] sm:$0xff]
  %v8259 = vld [vmem:[%s0 + $0xd0] sm:$0xff]
  %v8260 = vld [vmem:[%s0 + $0xd8] sm:$0xff]
  %v8261 = vld [vmem:[%s0 + $0xe0] sm:$0xff]
  %v8262 = vld [vmem:[%s0 + $0xe8] sm:$0xff]
  %v8263 = vld [vmem:[%s0 + $0xf0] sm:$0xff]
  %v8264 = vld [vmem:[%s0 + $0xf8] sm:$0xff]
  %v8265 = vld [vmem:[%s0 + $0x100] sm:$0xff]
  %v8266 = vld [vmem:[%s0 + $0x108] sm:$0xff]
  %v8267 = vld [vmem:[%s0 + $0x110] sm:$0xff]
  %v8268 = vld [vmem:[%s0 + $0x118] sm:$0xff]
  %v8269 = vld [vmem:[%s0 + $0x120] sm:$0xff]
  %v8270 = vld [vmem:[%s0 + $0x128] sm:$0xff]
  %v8271 = vld [vmem:[%s0 + $0x130] sm:$0xff]
  %v8272 = vld [vmem:[%s0 + $0x138] sm:$0xff]
  %v8273 = vld [vmem:[%s0 + $0x140] sm:$0xff]
  %v8274 = vld [vmem:[%s0 + $0x148] sm:$0xff]
  %v8275 = vld [vmem:[%s0 + $0x150] sm:$0xff]
  %v8276 = vld [vmem:[%s0 + $0x158] sm:$0xff]
  %v8277 = vld [vmem:[%s0 + $0x160] sm:$0xff]
  %v8278 = vld [vmem:[%s0 + $0x168] sm:$0xff]
  %v8279 = vld [vmem:[%s0 + $0x170] sm:$0xff]
  %v8280 = vld [vmem:[%s0 + $0x178] sm:$0xff]
  %v8281 = vld [vmem:[%s0 + $0x180] sm:$0xff]
  %v8282 = vld [vmem:[%s0 + $0x188] sm:$0xff]
  %v8283 = vld [vmem:[%s0 + $0x190] sm:$0xff]
  %v8284 = vld [vmem:[%s0 + $0x198] sm:$0xff]
  %v8285 = vld [vmem:[%s0 + $0x1a0] sm:$0xff]
  %v8286 = vld [vmem:[%s0 + $0x1a8] sm:$0xff]
  %v8287 = vld [vmem:[%s0 + $0x1b0] sm:$0xff]
  %v8288 = vld [vmem:[%s0 + $0x1b8] sm:$0xff]
  %v8289 = vld [vmem:[%s0 + $0x1c0] sm:$0xff]
  %v8290 = vld [vmem:[%s0 + $0x1c8] sm:$0xff]
  %v8291 = vld [vmem:[%s0 + $0x1d0] sm:$0xff]
  %v8292 = vld [vmem:[%s0 + $0x1d8] sm:$0xff]
  %v8293 = vld [vmem:[%s0 + $0x1e0] sm:$0xff]
  %v8294 = vld [vmem:[%s0 + $0x1e8] sm:$0xff]
  %v8295 = vld [vmem:[%s0 + $0x1f0] sm:$0xff]
  %v8296 = vld [vmem:[%s0 + $0x1f8] sm:$0xff]
  %v8297 = vld [vmem:[%s0 + $0x200] sm:$0xff]
  %v8298 = vld [vmem:[%s0 + $0x208] sm:$0xff]
  %v8299 = vld [vmem:[%s0 + $0x210] sm:$0xff]
  %v8300 = vld [vmem:[%s0 + $0x218] sm:$0xff]
  %v8301 = vld [vmem:[%s0 + $0x220] sm:$0xff]
  %v8302 = vld [vmem:[%s0 + $0x228] sm:$0xff]
  %v8303 = vld [vmem:[%s0 + $0x230] sm:$0xff]
  %v8304 = vld [vmem:[%s0 + $0x238] sm:$0xff]
  %v8305 = vld [vmem:[%s0 + $0x240] sm:$0xff]
  %v8306 = vld [vmem:[%s0 + $0x248] sm:$0xff]
  %v8307 = vld [vmem:[%s0 + $0x250] sm:$0xff]
  %v8308 = vld [vmem:[%s0 + $0x258] sm:$0xff]
  %v8309 = vld [vmem:[%s0 + $0x260] sm:$0xff]
  %v8310 = vld [vmem:[%s0 + $0x268] sm:$0xff]
  %v8311 = vld [vmem:[%s0 + $0x270] sm:$0xff]
  %v8312 = vld [vmem:[%s0 + $0x278] sm:$0xff]
  %v8313 = vld [vmem:[%s0 + $0x280] sm:$0xff]
  %v8314 = vld [vmem:[%s0 + $0x288] sm:$0xff]
  %v8315 = vld [vmem:[%s0 + $0x290] sm:$0xff]
  %v8316 = vld [vmem:[%s0 + $0x298] sm:$0xff]
  %v8317 = vld [vmem:[%s0 + $0x2a0] sm:$0xff]
  %v8318 = vld [vmem:[%s0 + $0x2a8] sm:$0xff]
  %v8319 = vld [vmem:[%s0 + $0x2b0] sm:$0xff]
  %v8320 = vld [vmem:[%s0 + $0x2b8] sm:$0xff]
  %v8321 = vld [vmem:[%s0 + $0x2c0] sm:$0xff]
  %v8322 = vld [vmem:[%s0 + $0x2c8] sm:$0xff]
  %v8323 = vld [vmem:[%s0 + $0x2d0] sm:$0xff]
  %v8324 = vld [vmem:[%s0 + $0x2d8] sm:$0xff]
  %v8325 = vld [vmem:[%s0 + $0x2e0] sm:$0xff]
  %v8326 = vld [vmem:[%s0 + $0x2e8] sm:$0xff]
  %v8327 = vld [vmem:[%s0 + $0x2f0] sm:$0xff]
  %v8328 = vld [vmem:[%s0 + $0x2f8] sm:$0xff]
  %v8329 = vld [vmem:[%s0 + $0x300] sm:$0xff]
  %v8330 = vld [vmem:[%s0 + $0x308] sm:$0xff]
  %v8331 = vld [vmem:[%s0 + $0x310] sm:$0xff]
  %v8332 = vld [vmem:[%s0 + $0x318] sm:$0xff]
  %v8333 = vld [vmem:[%s0 + $0x320] sm:$0xff]
  %v8334 = vld [vmem:[%s0 + $0x328] sm:$0xff]
  %v8335 = vld [vmem:[%s0 + $0x330] sm:$0xff]
  %v8336 = vld [vmem:[%s0 + $0x338] sm:$0xff]
  %v8337 = vld [vmem:[%s0 + $0x340] sm:$0xff]
  %v8338 = vld [vmem:[%s0 + $0x348] sm:$0xff]
  %v8339 = vld [vmem:[%s0 + $0x350] sm:$0xff]
  %v8340 = vld [vmem:[%s0 + $0x358] sm:$0xff]
  %v8341 = vld [vmem:[%s0 + $0x360] sm:$0xff]
  %v8342 = vld [vmem:[%s0 + $0x368] sm:$0xff]
  %v8343 = vld [vmem:[%s0 + $0x370] sm:$0xff]
  %v8344 = vld [vmem:[%s0 + $0x378] sm:$0xff]
  %v8345 = vld [vmem:[%s0 + $0x380] sm:$0xff]
  %v8346 = vld [vmem:[%s0 + $0x388] sm:$0xff]
  %v8347 = vld [vmem:[%s0 + $0x390] sm:$0xff]
  %v8348 = vld [vmem:[%s0 + $0x398] sm:$0xff]
  %v8349 = vld [vmem:[%s0 + $0x3a0] sm:$0xff]
  %v8350 = vld [vmem:[%s0 + $0x3a8] sm:$0xff]
  %v8351 = vld [vmem:[%s0 + $0x3b0] sm:$0xff]
  %v8352 = vld [vmem:[%s0 + $0x3b8] sm:$0xff]
  %v8353 = vld [vmem:[%s0 + $0x3c0] sm:$0xff]
  %v8354 = vld [vmem:[%s0 + $0x3c8] sm:$0xff]
  %v8355 = vld [vmem:[%s0 + $0x3d0] sm:$0xff]
  %v8356 = vld [vmem:[%s0 + $0x3d8] sm:$0xff]
  %v8357 = vld [vmem:[%s0 + $0x3e0] sm:$0xff]
  %v8358 = vld [vmem:[%s0 + $0x3e8] sm:$0xff]
  %v8359 = vld [vmem:[%s0 + $0x3f0] sm:$0xff]
  %v8360 = vld [vmem:[%s0 + $0x3f8] sm:$0xff]
  %v8361 = vld [vmem:[%s0 + $0x400] sm:$0xff]
  %v8362 = vld [vmem:[%s0 + $0x408] sm:$0xff]
  %v8363 = vld [vmem:[%s0 + $0x410] sm:$0xff]
  %v8364 = vld [vmem:[%s0 + $0x418] sm:$0xff]
  %v8365 = vld [vmem:[%s0 + $0x420] sm:$0xff]
  %v8366 = vld [vmem:[%s0 + $0x428] sm:$0xff]
  %v8367 = vld [vmem:[%s0 + $0x430] sm:$0xff]
  %v8368 = vld [vmem:[%s0 + $0x438] sm:$0xff]
  %v8369 = vld [vmem:[%s0 + $0x440] sm:$0xff]
  %v8370 = vld [vmem:[%s0 + $0x448] sm:$0xff]
  %v8371 = vld [vmem:[%s0 + $0x450] sm:$0xff]
  %v8372 = vld [vmem:[%s0 + $0x458] sm:$0xff]
  %v8373 = vld [vmem:[%s0 + $0x460] sm:$0xff]
  %v8374 = vld [vmem:[%s0 + $0x468] sm:$0xff]
  %v8375 = vld [vmem:[%s0 + $0x470] sm:$0xff]
  %v8376 = vld [vmem:[%s0 + $0x478] sm:$0xff]
  %v8377 = vld [vmem:[%s0 + $0x480] sm:$0xff]
  %v8378 = vld [vmem:[%s0 + $0x488] sm:$0xff]
  %v8379 = vld [vmem:[%s0 + $0x490] sm:$0xff]
  %v8380 = vld [vmem:[%s0 + $0x498] sm:$0xff]
  %v8381 = vld [vmem:[%s0 + $0x4a0] sm:$0xff]
  %v8382 = vld [vmem:[%s0 + $0x4a8] sm:$0xff]
  %v8383 = vld [vmem:[%s0 + $0x4b0] sm:$0xff]
  %v8384 = vld [vmem:[%s0 + $0x4b8] sm:$0xff]
  %v8385 = vld [vmem:[%s0 + $0x4c0] sm:$0xff]
  %v8386 = vld [vmem:[%s0 + $0x4c8] sm:$0xff]
  %v8387 = vld [vmem:[%s0 + $0x4d0] sm:$0xff]
  %v8388 = vld [vmem:[%s0 + $0x4d8] sm:$0xff]
  %v8389 = vld [vmem:[%s0 + $0x4e0] sm:$0xff]
  %v8390 = vld [vmem:[%s0 + $0x4e8] sm:$0xff]
  %v8391 = vld [vmem:[%s0 + $0x4f0] sm:$0xff]
  %v8392 = vld [vmem:[%s0 + $0x4f8] sm:$0xff]
  %v8393 = vld [vmem:[%s0 + $0x500] sm:$0xff]
  %v8394 = vld [vmem:[%s0 + $0x508] sm:$0xff]
  %v8395 = vld [vmem:[%s0 + $0x510] sm:$0xff]
  %v8396 = vld [vmem:[%s0 + $0x518] sm:$0xff]
  %v8397 = vld [vmem:[%s0 + $0x520] sm:$0xff]
  %v8398 = vld [vmem:[%s0 + $0x528] sm:$0xff]
  %v8399 = vld [vmem:[%s0 + $0x530] sm:$0xff]
  %v8400 = vld [vmem:[%s0 + $0x538] sm:$0xff]
  %v8401 = vld [vmem:[%s0 + $0x540] sm:$0xff]
  %v8402 = vld [vmem:[%s0 + $0x548] sm:$0xff]
  %v8403 = vld [vmem:[%s0 + $0x550] sm:$0xff]
  %v8404 = vld [vmem:[%s0 + $0x558] sm:$0xff]
  %v8405 = vld [vmem:[%s0 + $0x560] sm:$0xff]
  %v8406 = vld [vmem:[%s0 + $0x568] sm:$0xff]
  %v8407 = vld [vmem:[%s0 + $0x570] sm:$0xff]
  %v8408 = vld [vmem:[%s0 + $0x578] sm:$0xff]
  %v8409 = vld [vmem:[%s0 + $0x580] sm:$0xff]
  %v8410 = vld [vmem:[%s0 + $0x588] sm:$0xff]
  %v8411 = vld [vmem:[%s0 + $0x590] sm:$0xff]
  %v8412 = vld [vmem:[%s0 + $0x598] sm:$0xff]
  %v8413 = vld [vmem:[%s0 + $0x5a0] sm:$0xff]
  %v8414 = vld [vmem:[%s0 + $0x5a8] sm:$0xff]
  %v8415 = vld [vmem:[%s0 + $0x5b0] sm:$0xff]
  %v8416 = vld [vmem:[%s0 + $0x5b8] sm:$0xff]
  %v8417 = vld [vmem:[%s0 + $0x5c0] sm:$0xff]
  %v8418 = vld [vmem:[%s0 + $0x5c8] sm:$0xff]
  %v8419 = vld [vmem:[%s0 + $0x5d0] sm:$0xff]
  %v8420 = vld [vmem:[%s0 + $0x5d8] sm:$0xff]
  %v8421 = vld [vmem:[%s0 + $0x5e0] sm:$0xff]
  %v8422 = vld [vmem:[%s0 + $0x5e8] sm:$0xff]
  %v8423 = vld [vmem:[%s0 + $0x5f0] sm:$0xff]
  %v8424 = vld [vmem:[%s0 + $0x5f8] sm:$0xff]
  %v8425 = vld [vmem:[%s0 + $0x600] sm:$0xff]
  %v8426 = vld [vmem:[%s0 + $0x608] sm:$0xff]
  %v8427 = vld [vmem:[%s0 + $0x610] sm:$0xff]
  %v8428 = vld [vmem:[%s0 + $0x618] sm:$0xff]
  %v8429 = vld [vmem:[%s0 + $0x620] sm:$0xff]
  %v8430 = vld [vmem:[%s0 + $0x628] sm:$0xff]
  %v8431 = vld [vmem:[%s0 + $0x630] sm:$0xff]
  %v8432 = vld [vmem:[%s0 + $0x638] sm:$0xff]
  %v8433 = vld [vmem:[%s0 + $0x640] sm:$0xff]
  %v8434 = vld [vmem:[%s0 + $0x648] sm:$0xff]
  %v8435 = vld [vmem:[%s0 + $0x650] sm:$0xff]
  %v8436 = vld [vmem:[%s0 + $0x658] sm:$0xff]
  %v8437 = vld [vmem:[%s0 + $0x660] sm:$0xff]
  %v8438 = vld [vmem:[%s0 + $0x668] sm:$0xff]
  %v8439 = vld [vmem:[%s0 + $0x670] sm:$0xff]
  %v8440 = vld [vmem:[%s0 + $0x678] sm:$0xff]
  %v8441 = vld [vmem:[%s0 + $0x680] sm:$0xff]
  %v8442 = vld [vmem:[%s0 + $0x688] sm:$0xff]
  %v8443 = vld [vmem:[%s0 + $0x690] sm:$0xff]
  %v8444 = vld [vmem:[%s0 + $0x698] sm:$0xff]
  %v8445 = vld [vmem:[%s0 + $0x6a0] sm:$0xff]
  %v8446 = vld [vmem:[%s0 + $0x6a8] sm:$0xff]
  %v8447 = vld [vmem:[%s0 + $0x6b0] sm:$0xff]
  %v8448 = vld [vmem:[%s0 + $0x6b8] sm:$0xff]
  %v8449 = vld [vmem:[%s0 + $0x6c0] sm:$0xff]
  %v8450 = vld [vmem:[%s0 + $0x6c8] sm:$0xff]
  %v8451 = vld [vmem:[%s0 + $0x6d0] sm:$0xff]
  %v8452 = vld [vmem:[%s0 + $0x6d8] sm:$0xff]
  %v8453 = vld [vmem:[%s0 + $0x6e0] sm:$0xff]
  %v8454 = vld [vmem:[%s0 + $0x6e8] sm:$0xff]
  %v8455 = vld [vmem:[%s0 + $0x6f0] sm:$0xff]
  %v8456 = vld [vmem:[%s0 + $0x6f8] sm:$0xff]
  %v8457 = vld [vmem:[%s0 + $0x700] sm:$0xff]
  %v8458 = vld [vmem:[%s0 + $0x708] sm:$0xff]
  %v8459 = vld [vmem:[%s0 + $0x710] sm:$0xff]
  %v8460 = vld [vmem:[%s0 + $0x718] sm:$0xff]
  %v8461 = vld [vmem:[%s0 + $0x720] sm:$0xff]
  %v8462 = vld [vmem:[%s0 + $0x728] sm:$0xff]
  %v8463 = vld [vmem:[%s0 + $0x730] sm:$0xff]
  %v8464 = vld [vmem:[%s0 + $0x738] sm:$0xff]
  %v8465 = vld [vmem:[%s0 + $0x740] sm:$0xff]
  %v8466 = vld [vmem:[%s0 + $0x748] sm:$0xff]
  %v8467 = vld [vmem:[%s0 + $0x750] sm:$0xff]
  %v8468 = vld [vmem:[%s0 + $0x758] sm:$0xff]
  %v8469 = vld [vmem:[%s0 + $0x760] sm:$0xff]
  %v8470 = vld [vmem:[%s0 + $0x768] sm:$0xff]
  %v8471 = vld [vmem:[%s0 + $0x770] sm:$0xff]
  %v8472 = vld [vmem:[%s0 + $0x778] sm:$0xff]
  %v8473 = vld [vmem:[%s0 + $0x780] sm:$0xff]
  %v8474 = vld [vmem:[%s0 + $0x788] sm:$0xff]
  %v8475 = vld [vmem:[%s0 + $0x790] sm:$0xff]
  %v8476 = vld [vmem:[%s0 + $0x798] sm:$0xff]
  %v8477 = vld [vmem:[%s0 + $0x7a0] sm:$0xff]
  %v8478 = vld [vmem:[%s0 + $0x7a8] sm:$0xff]
  %v8479 = vld [vmem:[%s0 + $0x7b0] sm:$0xff]
  %v8480 = vld [vmem:[%s0 + $0x7b8] sm:$0xff]
  %v8481 = vld [vmem:[%s0 + $0x7c0] sm:$0xff]
  %v8482 = vld [vmem:[%s0 + $0x7c8] sm:$0xff]
  %v8483 = vld [vmem:[%s0 + $0x7d0] sm:$0xff]
  %v8484 = vld [vmem:[%s0 + $0x7d8] sm:$0xff]
  %v8485 = vld [vmem:[%s0 + $0x7e0] sm:$0xff]
  %v8486 = vld [vmem:[%s0 + $0x7e8] sm:$0xff]
  %v8487 = vld [vmem:[%s0 + $0x7f0] sm:$0xff]
  %v8488 = vld [vmem:[%s0 + $0x7f8] sm:$0xff]
  %v8489 = vld [vmem:[%s10] sm:$0x1]
  %v8491 = vlaneseq
  %v8492 = vshrl.u32 %v8491, 7
  %v8493 = vsub.s32 0, %v8492
  %v8494 = vrot.slane %v8489, %v8493
  %v8496 = vmul.f32 %v8233, %v8494
  %v8497 = vmul.f32 %v8234, %v8494
  %v8498 = vmul.f32 %v8235, %v8494
  %v8499 = vmul.f32 %v8236, %v8494
  %v8500 = vmul.f32 %v8237, %v8494
  %v8501 = vmul.f32 %v8238, %v8494
  %v8502 = vmul.f32 %v8239, %v8494
  %v8503 = vmul.f32 %v8240, %v8494
  %v8504 = vmul.f32 %v8241, %v8494
  %v8505 = vmul.f32 %v8242, %v8494
  %v8506 = vmul.f32 %v8243, %v8494
  %v8507 = vmul.f32 %v8244, %v8494
  %v8508 = vmul.f32 %v8245, %v8494
  %v8509 = vmul.f32 %v8246, %v8494
  %v8510 = vmul.f32 %v8247, %v8494
  %v8511 = vmul.f32 %v8248, %v8494
  %v8512 = vmul.f32 %v8249, %v8494
  %v8513 = vmul.f32 %v8250, %v8494
  %v8514 = vmul.f32 %v8251, %v8494
  %v8515 = vmul.f32 %v8252, %v8494
  %v8516 = vmul.f32 %v8253, %v8494
  %v8517 = vmul.f32 %v8254, %v8494
  %v8518 = vmul.f32 %v8255, %v8494
  %v8519 = vmul.f32 %v8256, %v8494
  %v8520 = vmul.f32 %v8257, %v8494
  %v8521 = vmul.f32 %v8258, %v8494
  %v8522 = vmul.f32 %v8259, %v8494
  %v8523 = vmul.f32 %v8260, %v8494
  %v8524 = vmul.f32 %v8261, %v8494
  %v8525 = vmul.f32 %v8262, %v8494
  %v8526 = vmul.f32 %v8263, %v8494
  %v8527 = vmul.f32 %v8264, %v8494
  %v8528 = vmul.f32 %v8265, %v8494
  %v8529 = vmul.f32 %v8266, %v8494
  %v8530 = vmul.f32 %v8267, %v8494
  %v8531 = vmul.f32 %v8268, %v8494
  %v8532 = vmul.f32 %v8269, %v8494
  %v8533 = vmul.f32 %v8270, %v8494
  %v8534 = vmul.f32 %v8271, %v8494
  %v8535 = vmul.f32 %v8272, %v8494
  %v8536 = vmul.f32 %v8273, %v8494
  %v8537 = vmul.f32 %v8274, %v8494
  %v8538 = vmul.f32 %v8275, %v8494
  %v8539 = vmul.f32 %v8276, %v8494
  %v8540 = vmul.f32 %v8277, %v8494
  %v8541 = vmul.f32 %v8278, %v8494
  %v8542 = vmul.f32 %v8279, %v8494
  %v8543 = vmul.f32 %v8280, %v8494
  %v8544 = vmul.f32 %v8281, %v8494
  %v8545 = vmul.f32 %v8282, %v8494
  %v8546 = vmul.f32 %v8283, %v8494
  %v8547 = vmul.f32 %v8284, %v8494
  %v8548 = vmul.f32 %v8285, %v8494
  %v8549 = vmul.f32 %v8286, %v8494
  %v8550 = vmul.f32 %v8287, %v8494
  %v8551 = vmul.f32 %v8288, %v8494
  %v8552 = vmul.f32 %v8289, %v8494
  %v8553 = vmul.f32 %v8290, %v8494
  %v8554 = vmul.f32 %v8291, %v8494
  %v8555 = vmul.f32 %v8292, %v8494
  %v8556 = vmul.f32 %v8293, %v8494
  %v8557 = vmul.f32 %v8294, %v8494
  %v8558 = vmul.f32 %v8295, %v8494
  %v8559 = vmul.f32 %v8296, %v8494
  %v8560 = vmul.f32 %v8297, %v8494
  %v8561 = vmul.f32 %v8298, %v8494
  %v8562 = vmul.f32 %v8299, %v8494
  %v8563 = vmul.f32 %v8300, %v8494
  %v8564 = vmul.f32 %v8301, %v8494
  %v8565 = vmul.f32 %v8302, %v8494
  %v8566 = vmul.f32 %v8303, %v8494
  %v8567 = vmul.f32 %v8304, %v8494
  %v8568 = vmul.f32 %v8305, %v8494
  %v8569 = vmul.f32 %v8306, %v8494
  %v8570 = vmul.f32 %v8307, %v8494
  %v8571 = vmul.f32 %v8308, %v8494
  %v8572 = vmul.f32 %v8309, %v8494
  %v8573 = vmul.f32 %v8310, %v8494
  %v8574 = vmul.f32 %v8311, %v8494
  %v8575 = vmul.f32 %v8312, %v8494
  %v8576 = vmul.f32 %v8313, %v8494
  %v8577 = vmul.f32 %v8314, %v8494
  %v8578 = vmul.f32 %v8315, %v8494
  %v8579 = vmul.f32 %v8316, %v8494
  %v8580 = vmul.f32 %v8317, %v8494
  %v8581 = vmul.f32 %v8318, %v8494
  %v8582 = vmul.f32 %v8319, %v8494
  %v8583 = vmul.f32 %v8320, %v8494
  %v8584 = vmul.f32 %v8321, %v8494
  %v8585 = vmul.f32 %v8322, %v8494
  %v8586 = vmul.f32 %v8323, %v8494
  %v8587 = vmul.f32 %v8324, %v8494
  %v8588 = vmul.f32 %v8325, %v8494
  %v8589 = vmul.f32 %v8326, %v8494
  %v8590 = vmul.f32 %v8327, %v8494
  %v8591 = vmul.f32 %v8328, %v8494
  %v8592 = vmul.f32 %v8329, %v8494
  %v8593 = vmul.f32 %v8330, %v8494
  %v8594 = vmul.f32 %v8331, %v8494
  %v8595 = vmul.f32 %v8332, %v8494
  %v8596 = vmul.f32 %v8333, %v8494
  %v8597 = vmul.f32 %v8334, %v8494
  %v8598 = vmul.f32 %v8335, %v8494
  %v8599 = vmul.f32 %v8336, %v8494
  %v8600 = vmul.f32 %v8337, %v8494
  %v8601 = vmul.f32 %v8338, %v8494
  %v8602 = vmul.f32 %v8339, %v8494
  %v8603 = vmul.f32 %v8340, %v8494
  %v8604 = vmul.f32 %v8341, %v8494
  %v8605 = vmul.f32 %v8342, %v8494
  %v8606 = vmul.f32 %v8343, %v8494
  %v8607 = vmul.f32 %v8344, %v8494
  %v8608 = vmul.f32 %v8345, %v8494
  %v8609 = vmul.f32 %v8346, %v8494
  %v8610 = vmul.f32 %v8347, %v8494
  %v8611 = vmul.f32 %v8348, %v8494
  %v8612 = vmul.f32 %v8349, %v8494
  %v8613 = vmul.f32 %v8350, %v8494
  %v8614 = vmul.f32 %v8351, %v8494
  %v8615 = vmul.f32 %v8352, %v8494
  %v8616 = vmul.f32 %v8353, %v8494
  %v8617 = vmul.f32 %v8354, %v8494
  %v8618 = vmul.f32 %v8355, %v8494
  %v8619 = vmul.f32 %v8356, %v8494
  %v8620 = vmul.f32 %v8357, %v8494
  %v8621 = vmul.f32 %v8358, %v8494
  %v8622 = vmul.f32 %v8359, %v8494
  %v8623 = vmul.f32 %v8360, %v8494
  %v8624 = vmul.f32 %v8361, %v8494
  %v8625 = vmul.f32 %v8362, %v8494
  %v8626 = vmul.f32 %v8363, %v8494
  %v8627 = vmul.f32 %v8364, %v8494
  %v8628 = vmul.f32 %v8365, %v8494
  %v8629 = vmul.f32 %v8366, %v8494
  %v8630 = vmul.f32 %v8367, %v8494
  %v8631 = vmul.f32 %v8368, %v8494
  %v8632 = vmul.f32 %v8369, %v8494
  %v8633 = vmul.f32 %v8370, %v8494
  %v8634 = vmul.f32 %v8371, %v8494
  %v8635 = vmul.f32 %v8372, %v8494
  %v8636 = vmul.f32 %v8373, %v8494
  %v8637 = vmul.f32 %v8374, %v8494
  %v8638 = vmul.f32 %v8375, %v8494
  %v8639 = vmul.f32 %v8376, %v8494
  %v8640 = vmul.f32 %v8377, %v8494
  %v8641 = vmul.f32 %v8378, %v8494
  %v8642 = vmul.f32 %v8379, %v8494
  %v8643 = vmul.f32 %v8380, %v8494
  %v8644 = vmul.f32 %v8381, %v8494
  %v8645 = vmul.f32 %v8382, %v8494
  %v8646 = vmul.f32 %v8383, %v8494
  %v8647 = vmul.f32 %v8384, %v8494
  %v8648 = vmul.f32 %v8385, %v8494
  %v8649 = vmul.f32 %v8386, %v8494
  %v8650 = vmul.f32 %v8387, %v8494
  %v8651 = vmul.f32 %v8388, %v8494
  %v8652 = vmul.f32 %v8389, %v8494
  %v8653 = vmul.f32 %v8390, %v8494
  %v8654 = vmul.f32 %v8391, %v8494
  %v8655 = vmul.f32 %v8392, %v8494
  %v8656 = vmul.f32 %v8393, %v8494
  %v8657 = vmul.f32 %v8394, %v8494
  %v8658 = vmul.f32 %v8395, %v8494
  %v8659 = vmul.f32 %v8396, %v8494
  %v8660 = vmul.f32 %v8397, %v8494
  %v8661 = vmul.f32 %v8398, %v8494
  %v8662 = vmul.f32 %v8399, %v8494
  %v8663 = vmul.f32 %v8400, %v8494
  %v8664 = vmul.f32 %v8401, %v8494
  %v8665 = vmul.f32 %v8402, %v8494
  %v8666 = vmul.f32 %v8403, %v8494
  %v8667 = vmul.f32 %v8404, %v8494
  %v8668 = vmul.f32 %v8405, %v8494
  %v8669 = vmul.f32 %v8406, %v8494
  %v8670 = vmul.f32 %v8407, %v8494
  %v8671 = vmul.f32 %v8408, %v8494
  %v8672 = vmul.f32 %v8409, %v8494
  %v8673 = vmul.f32 %v8410, %v8494
  %v8674 = vmul.f32 %v8411, %v8494
  %v8675 = vmul.f32 %v8412, %v8494
  %v8676 = vmul.f32 %v8413, %v8494
  %v8677 = vmul.f32 %v8414, %v8494
  %v8678 = vmul.f32 %v8415, %v8494
  %v8679 = vmul.f32 %v8416, %v8494
  %v8680 = vmul.f32 %v8417, %v8494
  %v8681 = vmul.f32 %v8418, %v8494
  %v8682 = vmul.f32 %v8419, %v8494
  %v8683 = vmul.f32 %v8420, %v8494
  %v8684 = vmul.f32 %v8421, %v8494
  %v8685 = vmul.f32 %v8422, %v8494
  %v8686 = vmul.f32 %v8423, %v8494
  %v8687 = vmul.f32 %v8424, %v8494
  %v8688 = vmul.f32 %v8425, %v8494
  %v8689 = vmul.f32 %v8426, %v8494
  %v8690 = vmul.f32 %v8427, %v8494
  %v8691 = vmul.f32 %v8428, %v8494
  %v8692 = vmul.f32 %v8429, %v8494
  %v8693 = vmul.f32 %v8430, %v8494
  %v8694 = vmul.f32 %v8431, %v8494
  %v8695 = vmul.f32 %v8432, %v8494
  %v8696 = vmul.f32 %v8433, %v8494
  %v8697 = vmul.f32 %v8434, %v8494
  %v8698 = vmul.f32 %v8435, %v8494
  %v8699 = vmul.f32 %v8436, %v8494
  %v8700 = vmul.f32 %v8437, %v8494
  %v8701 = vmul.f32 %v8438, %v8494
  %v8702 = vmul.f32 %v8439, %v8494
  %v8703 = vmul.f32 %v8440, %v8494
  %v8704 = vmul.f32 %v8441, %v8494
  %v8705 = vmul.f32 %v8442, %v8494
  %v8706 = vmul.f32 %v8443, %v8494
  %v8707 = vmul.f32 %v8444, %v8494
  %v8708 = vmul.f32 %v8445, %v8494
  %v8709 = vmul.f32 %v8446, %v8494
  %v8710 = vmul.f32 %v8447, %v8494
  %v8711 = vmul.f32 %v8448, %v8494
  %v8712 = vmul.f32 %v8449, %v8494
  %v8713 = vmul.f32 %v8450, %v8494
  %v8714 = vmul.f32 %v8451, %v8494
  %v8715 = vmul.f32 %v8452, %v8494
  %v8716 = vmul.f32 %v8453, %v8494
  %v8717 = vmul.f32 %v8454, %v8494
  %v8718 = vmul.f32 %v8455, %v8494
  %v8719 = vmul.f32 %v8456, %v8494
  %v8720 = vmul.f32 %v8457, %v8494
  %v8721 = vmul.f32 %v8458, %v8494
  %v8722 = vmul.f32 %v8459, %v8494
  %v8723 = vmul.f32 %v8460, %v8494
  %v8724 = vmul.f32 %v8461, %v8494
  %v8725 = vmul.f32 %v8462, %v8494
  %v8726 = vmul.f32 %v8463, %v8494
  %v8727 = vmul.f32 %v8464, %v8494
  %v8728 = vmul.f32 %v8465, %v8494
  %v8729 = vmul.f32 %v8466, %v8494
  %v8730 = vmul.f32 %v8467, %v8494
  %v8731 = vmul.f32 %v8468, %v8494
  %v8732 = vmul.f32 %v8469, %v8494
  %v8733 = vmul.f32 %v8470, %v8494
  %v8734 = vmul.f32 %v8471, %v8494
  %v8735 = vmul.f32 %v8472, %v8494
  %v8736 = vmul.f32 %v8473, %v8494
  %v8737 = vmul.f32 %v8474, %v8494
  %v8738 = vmul.f32 %v8475, %v8494
  %v8739 = vmul.f32 %v8476, %v8494
  %v8740 = vmul.f32 %v8477, %v8494
  %v8741 = vmul.f32 %v8478, %v8494
  %v8742 = vmul.f32 %v8479, %v8494
  %v8743 = vmul.f32 %v8480, %v8494
  %v8744 = vmul.f32 %v8481, %v8494
  %v8745 = vmul.f32 %v8482, %v8494
  %v8746 = vmul.f32 %v8483, %v8494
  %v8747 = vmul.f32 %v8484, %v8494
  %v8748 = vmul.f32 %v8485, %v8494
  %v8749 = vmul.f32 %v8486, %v8494
  %v8750 = vmul.f32 %v8487, %v8494
  %v8751 = vmul.f32 %v8488, %v8494
  %v8752 = vsel %vm4694, %v8496, 0.0
  %8753 = vadd.xlane.f32.xlu0 %v8752
  %v8754 = vpop.xlane.xlu0 %8753
  %v8755 = vsel %vm4694, %v8497, 0.0
  %8756 = vadd.xlane.f32.xlu0 %v8755
  %v8757 = vpop.xlane.xlu0 %8756
  %v8758 = vsel %vm4694, %v8498, 0.0
  %8759 = vadd.xlane.f32.xlu0 %v8758
  %v8760 = vpop.xlane.xlu0 %8759
  %v8761 = vsel %vm4694, %v8499, 0.0
  %8762 = vadd.xlane.f32.xlu0 %v8761
  %v8763 = vpop.xlane.xlu0 %8762
  %v8764 = vsel %vm4694, %v8500, 0.0
  %8765 = vadd.xlane.f32.xlu0 %v8764
  %v8766 = vpop.xlane.xlu0 %8765
  %v8767 = vsel %vm4694, %v8501, 0.0
  %8768 = vadd.xlane.f32.xlu0 %v8767
  %v8769 = vpop.xlane.xlu0 %8768
  %v8770 = vsel %vm4694, %v8502, 0.0
  %8771 = vadd.xlane.f32.xlu0 %v8770
  %v8772 = vpop.xlane.xlu0 %8771
  %v8773 = vsel %vm4694, %v8503, 0.0
  %8774 = vadd.xlane.f32.xlu0 %v8773
  %v8775 = vpop.xlane.xlu0 %8774
  %v8776 = vsel %vm4694, %v8504, 0.0
  %8777 = vadd.xlane.f32.xlu0 %v8776
  %v8778 = vpop.xlane.xlu0 %8777
  %v8779 = vsel %vm4694, %v8505, 0.0
  %8780 = vadd.xlane.f32.xlu0 %v8779
  %v8781 = vpop.xlane.xlu0 %8780
  %v8782 = vsel %vm4694, %v8506, 0.0
  %8783 = vadd.xlane.f32.xlu0 %v8782
  %v8784 = vpop.xlane.xlu0 %8783
  %v8785 = vsel %vm4694, %v8507, 0.0
  %8786 = vadd.xlane.f32.xlu0 %v8785
  %v8787 = vpop.xlane.xlu0 %8786
  %v8788 = vsel %vm4694, %v8508, 0.0
  %8789 = vadd.xlane.f32.xlu0 %v8788
  %v8790 = vpop.xlane.xlu0 %8789
  %v8791 = vsel %vm4694, %v8509, 0.0
  %8792 = vadd.xlane.f32.xlu0 %v8791
  %v8793 = vpop.xlane.xlu0 %8792
  %v8794 = vsel %vm4694, %v8510, 0.0
  %8795 = vadd.xlane.f32.xlu0 %v8794
  %v8796 = vpop.xlane.xlu0 %8795
  %v8797 = vsel %vm4694, %v8511, 0.0
  %8798 = vadd.xlane.f32.xlu0 %v8797
  %v8799 = vpop.xlane.xlu0 %8798
  %v8800 = vsel %vm4694, %v8512, 0.0
  %8801 = vadd.xlane.f32.xlu0 %v8800
  %v8802 = vpop.xlane.xlu0 %8801
  %v8803 = vsel %vm4694, %v8513, 0.0
  %8804 = vadd.xlane.f32.xlu0 %v8803
  %v8805 = vpop.xlane.xlu0 %8804
  %v8806 = vsel %vm4694, %v8514, 0.0
  %8807 = vadd.xlane.f32.xlu0 %v8806
  %v8808 = vpop.xlane.xlu0 %8807
  %v8809 = vsel %vm4694, %v8515, 0.0
  %8810 = vadd.xlane.f32.xlu0 %v8809
  %v8811 = vpop.xlane.xlu0 %8810
  %v8812 = vsel %vm4694, %v8516, 0.0
  %8813 = vadd.xlane.f32.xlu0 %v8812
  %v8814 = vpop.xlane.xlu0 %8813
  %v8815 = vsel %vm4694, %v8517, 0.0
  %8816 = vadd.xlane.f32.xlu0 %v8815
  %v8817 = vpop.xlane.xlu0 %8816
  %v8818 = vsel %vm4694, %v8518, 0.0
  %8819 = vadd.xlane.f32.xlu0 %v8818
  %v8820 = vpop.xlane.xlu0 %8819
  %v8821 = vsel %vm4694, %v8519, 0.0
  %8822 = vadd.xlane.f32.xlu0 %v8821
  %v8823 = vpop.xlane.xlu0 %8822
  %v8824 = vsel %vm4694, %v8520, 0.0
  %8825 = vadd.xlane.f32.xlu0 %v8824
  %v8826 = vpop.xlane.xlu0 %8825
  %v8827 = vsel %vm4694, %v8521, 0.0
  %8828 = vadd.xlane.f32.xlu0 %v8827
  %v8829 = vpop.xlane.xlu0 %8828
  %v8830 = vsel %vm4694, %v8522, 0.0
  %8831 = vadd.xlane.f32.xlu0 %v8830
  %v8832 = vpop.xlane.xlu0 %8831
  %v8833 = vsel %vm4694, %v8523, 0.0
  %8834 = vadd.xlane.f32.xlu0 %v8833
  %v8835 = vpop.xlane.xlu0 %8834
  %v8836 = vsel %vm4694, %v8524, 0.0
  %8837 = vadd.xlane.f32.xlu0 %v8836
  %v8838 = vpop.xlane.xlu0 %8837
  %v8839 = vsel %vm4694, %v8525, 0.0
  %8840 = vadd.xlane.f32.xlu0 %v8839
  %v8841 = vpop.xlane.xlu0 %8840
  %v8842 = vsel %vm4694, %v8526, 0.0
  %8843 = vadd.xlane.f32.xlu0 %v8842
  %v8844 = vpop.xlane.xlu0 %8843
  %v8845 = vsel %vm4694, %v8527, 0.0
  %8846 = vadd.xlane.f32.xlu0 %v8845
  %v8847 = vpop.xlane.xlu0 %8846
  %v8848 = vsel %vm4694, %v8528, 0.0
  %8849 = vadd.xlane.f32.xlu0 %v8848
  %v8850 = vpop.xlane.xlu0 %8849
  %v8851 = vsel %vm4694, %v8529, 0.0
  %8852 = vadd.xlane.f32.xlu0 %v8851
  %v8853 = vpop.xlane.xlu0 %8852
  %v8854 = vsel %vm4694, %v8530, 0.0
  %8855 = vadd.xlane.f32.xlu0 %v8854
  %v8856 = vpop.xlane.xlu0 %8855
  %v8857 = vsel %vm4694, %v8531, 0.0
  %8858 = vadd.xlane.f32.xlu0 %v8857
  %v8859 = vpop.xlane.xlu0 %8858
  %v8860 = vsel %vm4694, %v8532, 0.0
  %8861 = vadd.xlane.f32.xlu0 %v8860
  %v8862 = vpop.xlane.xlu0 %8861
  %v8863 = vsel %vm4694, %v8533, 0.0
  %8864 = vadd.xlane.f32.xlu0 %v8863
  %v8865 = vpop.xlane.xlu0 %8864
  %v8866 = vsel %vm4694, %v8534, 0.0
  %8867 = vadd.xlane.f32.xlu0 %v8866
  %v8868 = vpop.xlane.xlu0 %8867
  %v8869 = vsel %vm4694, %v8535, 0.0
  %8870 = vadd.xlane.f32.xlu0 %v8869
  %v8871 = vpop.xlane.xlu0 %8870
  %v8872 = vsel %vm4694, %v8536, 0.0
  %8873 = vadd.xlane.f32.xlu0 %v8872
  %v8874 = vpop.xlane.xlu0 %8873
  %v8875 = vsel %vm4694, %v8537, 0.0
  %8876 = vadd.xlane.f32.xlu0 %v8875
  %v8877 = vpop.xlane.xlu0 %8876
  %v8878 = vsel %vm4694, %v8538, 0.0
  %8879 = vadd.xlane.f32.xlu0 %v8878
  %v8880 = vpop.xlane.xlu0 %8879
  %v8881 = vsel %vm4694, %v8539, 0.0
  %8882 = vadd.xlane.f32.xlu0 %v8881
  %v8883 = vpop.xlane.xlu0 %8882
  %v8884 = vsel %vm4694, %v8540, 0.0
  %8885 = vadd.xlane.f32.xlu0 %v8884
  %v8886 = vpop.xlane.xlu0 %8885
  %v8887 = vsel %vm4694, %v8541, 0.0
  %8888 = vadd.xlane.f32.xlu0 %v8887
  %v8889 = vpop.xlane.xlu0 %8888
  %v8890 = vsel %vm4694, %v8542, 0.0
  %8891 = vadd.xlane.f32.xlu0 %v8890
  %v8892 = vpop.xlane.xlu0 %8891
  %v8893 = vsel %vm4694, %v8543, 0.0
  %8894 = vadd.xlane.f32.xlu0 %v8893
  %v8895 = vpop.xlane.xlu0 %8894
  %v8896 = vsel %vm4694, %v8544, 0.0
  %8897 = vadd.xlane.f32.xlu0 %v8896
  %v8898 = vpop.xlane.xlu0 %8897
  %v8899 = vsel %vm4694, %v8545, 0.0
  %8900 = vadd.xlane.f32.xlu0 %v8899
  %v8901 = vpop.xlane.xlu0 %8900
  %v8902 = vsel %vm4694, %v8546, 0.0
  %8903 = vadd.xlane.f32.xlu0 %v8902
  %v8904 = vpop.xlane.xlu0 %8903
  %v8905 = vsel %vm4694, %v8547, 0.0
  %8906 = vadd.xlane.f32.xlu0 %v8905
  %v8907 = vpop.xlane.xlu0 %8906
  %v8908 = vsel %vm4694, %v8548, 0.0
  %8909 = vadd.xlane.f32.xlu0 %v8908
  %v8910 = vpop.xlane.xlu0 %8909
  %v8911 = vsel %vm4694, %v8549, 0.0
  %8912 = vadd.xlane.f32.xlu0 %v8911
  %v8913 = vpop.xlane.xlu0 %8912
  %v8914 = vsel %vm4694, %v8550, 0.0
  %8915 = vadd.xlane.f32.xlu0 %v8914
  %v8916 = vpop.xlane.xlu0 %8915
  %v8917 = vsel %vm4694, %v8551, 0.0
  %8918 = vadd.xlane.f32.xlu0 %v8917
  %v8919 = vpop.xlane.xlu0 %8918
  %v8920 = vsel %vm4694, %v8552, 0.0
  %8921 = vadd.xlane.f32.xlu0 %v8920
  %v8922 = vpop.xlane.xlu0 %8921
  %v8923 = vsel %vm4694, %v8553, 0.0
  %8924 = vadd.xlane.f32.xlu0 %v8923
  %v8925 = vpop.xlane.xlu0 %8924
  %v8926 = vsel %vm4694, %v8554, 0.0
  %8927 = vadd.xlane.f32.xlu0 %v8926
  %v8928 = vpop.xlane.xlu0 %8927
  %v8929 = vsel %vm4694, %v8555, 0.0
  %8930 = vadd.xlane.f32.xlu0 %v8929
  %v8931 = vpop.xlane.xlu0 %8930
  %v8932 = vsel %vm4694, %v8556, 0.0
  %8933 = vadd.xlane.f32.xlu0 %v8932
  %v8934 = vpop.xlane.xlu0 %8933
  %v8935 = vsel %vm4694, %v8557, 0.0
  %8936 = vadd.xlane.f32.xlu0 %v8935
  %v8937 = vpop.xlane.xlu0 %8936
  %v8938 = vsel %vm4694, %v8558, 0.0
  %8939 = vadd.xlane.f32.xlu0 %v8938
  %v8940 = vpop.xlane.xlu0 %8939
  %v8941 = vsel %vm4694, %v8559, 0.0
  %8942 = vadd.xlane.f32.xlu0 %v8941
  %v8943 = vpop.xlane.xlu0 %8942
  %v8944 = vsel %vm4694, %v8560, 0.0
  %8945 = vadd.xlane.f32.xlu0 %v8944
  %v8946 = vpop.xlane.xlu0 %8945
  %v8947 = vsel %vm4694, %v8561, 0.0
  %8948 = vadd.xlane.f32.xlu0 %v8947
  %v8949 = vpop.xlane.xlu0 %8948
  %v8950 = vsel %vm4694, %v8562, 0.0
  %8951 = vadd.xlane.f32.xlu0 %v8950
  %v8952 = vpop.xlane.xlu0 %8951
  %v8953 = vsel %vm4694, %v8563, 0.0
  %8954 = vadd.xlane.f32.xlu0 %v8953
  %v8955 = vpop.xlane.xlu0 %8954
  %v8956 = vsel %vm4694, %v8564, 0.0
  %8957 = vadd.xlane.f32.xlu0 %v8956
  %v8958 = vpop.xlane.xlu0 %8957
  %v8959 = vsel %vm4694, %v8565, 0.0
  %8960 = vadd.xlane.f32.xlu0 %v8959
  %v8961 = vpop.xlane.xlu0 %8960
  %v8962 = vsel %vm4694, %v8566, 0.0
  %8963 = vadd.xlane.f32.xlu0 %v8962
  %v8964 = vpop.xlane.xlu0 %8963
  %v8965 = vsel %vm4694, %v8567, 0.0
  %8966 = vadd.xlane.f32.xlu0 %v8965
  %v8967 = vpop.xlane.xlu0 %8966
  %v8968 = vsel %vm4694, %v8568, 0.0
  %8969 = vadd.xlane.f32.xlu0 %v8968
  %v8970 = vpop.xlane.xlu0 %8969
  %v8971 = vsel %vm4694, %v8569, 0.0
  %8972 = vadd.xlane.f32.xlu0 %v8971
  %v8973 = vpop.xlane.xlu0 %8972
  %v8974 = vsel %vm4694, %v8570, 0.0
  %8975 = vadd.xlane.f32.xlu0 %v8974
  %v8976 = vpop.xlane.xlu0 %8975
  %v8977 = vsel %vm4694, %v8571, 0.0
  %8978 = vadd.xlane.f32.xlu0 %v8977
  %v8979 = vpop.xlane.xlu0 %8978
  %v8980 = vsel %vm4694, %v8572, 0.0
  %8981 = vadd.xlane.f32.xlu0 %v8980
  %v8982 = vpop.xlane.xlu0 %8981
  %v8983 = vsel %vm4694, %v8573, 0.0
  %8984 = vadd.xlane.f32.xlu0 %v8983
  %v8985 = vpop.xlane.xlu0 %8984
  %v8986 = vsel %vm4694, %v8574, 0.0
  %8987 = vadd.xlane.f32.xlu0 %v8986
  %v8988 = vpop.xlane.xlu0 %8987
  %v8989 = vsel %vm4694, %v8575, 0.0
  %8990 = vadd.xlane.f32.xlu0 %v8989
  %v8991 = vpop.xlane.xlu0 %8990
  %v8992 = vsel %vm4694, %v8576, 0.0
  %8993 = vadd.xlane.f32.xlu0 %v8992
  %v8994 = vpop.xlane.xlu0 %8993
  %v8995 = vsel %vm4694, %v8577, 0.0
  %8996 = vadd.xlane.f32.xlu0 %v8995
  %v8997 = vpop.xlane.xlu0 %8996
  %v8998 = vsel %vm4694, %v8578, 0.0
  %8999 = vadd.xlane.f32.xlu0 %v8998
  %v9000 = vpop.xlane.xlu0 %8999
  %v9001 = vsel %vm4694, %v8579, 0.0
  %9002 = vadd.xlane.f32.xlu0 %v9001
  %v9003 = vpop.xlane.xlu0 %9002
  %v9004 = vsel %vm4694, %v8580, 0.0
  %9005 = vadd.xlane.f32.xlu0 %v9004
  %v9006 = vpop.xlane.xlu0 %9005
  %v9007 = vsel %vm4694, %v8581, 0.0
  %9008 = vadd.xlane.f32.xlu0 %v9007
  %v9009 = vpop.xlane.xlu0 %9008
  %v9010 = vsel %vm4694, %v8582, 0.0
  %9011 = vadd.xlane.f32.xlu0 %v9010
  %v9012 = vpop.xlane.xlu0 %9011
  %v9013 = vsel %vm4694, %v8583, 0.0
  %9014 = vadd.xlane.f32.xlu0 %v9013
  %v9015 = vpop.xlane.xlu0 %9014
  %v9016 = vsel %vm4694, %v8584, 0.0
  %9017 = vadd.xlane.f32.xlu0 %v9016
  %v9018 = vpop.xlane.xlu0 %9017
  %v9019 = vsel %vm4694, %v8585, 0.0
  %9020 = vadd.xlane.f32.xlu0 %v9019
  %v9021 = vpop.xlane.xlu0 %9020
  %v9022 = vsel %vm4694, %v8586, 0.0
  %9023 = vadd.xlane.f32.xlu0 %v9022
  %v9024 = vpop.xlane.xlu0 %9023
  %v9025 = vsel %vm4694, %v8587, 0.0
  %9026 = vadd.xlane.f32.xlu0 %v9025
  %v9027 = vpop.xlane.xlu0 %9026
  %v9028 = vsel %vm4694, %v8588, 0.0
  %9029 = vadd.xlane.f32.xlu0 %v9028
  %v9030 = vpop.xlane.xlu0 %9029
  %v9031 = vsel %vm4694, %v8589, 0.0
  %9032 = vadd.xlane.f32.xlu0 %v9031
  %v9033 = vpop.xlane.xlu0 %9032
  %v9034 = vsel %vm4694, %v8590, 0.0
  %9035 = vadd.xlane.f32.xlu0 %v9034
  %v9036 = vpop.xlane.xlu0 %9035
  %v9037 = vsel %vm4694, %v8591, 0.0
  %9038 = vadd.xlane.f32.xlu0 %v9037
  %v9039 = vpop.xlane.xlu0 %9038
  %v9040 = vsel %vm4694, %v8592, 0.0
  %9041 = vadd.xlane.f32.xlu0 %v9040
  %v9042 = vpop.xlane.xlu0 %9041
  %v9043 = vsel %vm4694, %v8593, 0.0
  %9044 = vadd.xlane.f32.xlu0 %v9043
  %v9045 = vpop.xlane.xlu0 %9044
  %v9046 = vsel %vm4694, %v8594, 0.0
  %9047 = vadd.xlane.f32.xlu0 %v9046
  %v9048 = vpop.xlane.xlu0 %9047
  %v9049 = vsel %vm4694, %v8595, 0.0
  %9050 = vadd.xlane.f32.xlu0 %v9049
  %v9051 = vpop.xlane.xlu0 %9050
  %v9052 = vsel %vm4694, %v8596, 0.0
  %9053 = vadd.xlane.f32.xlu0 %v9052
  %v9054 = vpop.xlane.xlu0 %9053
  %v9055 = vsel %vm4694, %v8597, 0.0
  %9056 = vadd.xlane.f32.xlu0 %v9055
  %v9057 = vpop.xlane.xlu0 %9056
  %v9058 = vsel %vm4694, %v8598, 0.0
  %9059 = vadd.xlane.f32.xlu0 %v9058
  %v9060 = vpop.xlane.xlu0 %9059
  %v9061 = vsel %vm4694, %v8599, 0.0
  %9062 = vadd.xlane.f32.xlu0 %v9061
  %v9063 = vpop.xlane.xlu0 %9062
  %v9064 = vsel %vm4694, %v8600, 0.0
  %9065 = vadd.xlane.f32.xlu0 %v9064
  %v9066 = vpop.xlane.xlu0 %9065
  %v9067 = vsel %vm4694, %v8601, 0.0
  %9068 = vadd.xlane.f32.xlu0 %v9067
  %v9069 = vpop.xlane.xlu0 %9068
  %v9070 = vsel %vm4694, %v8602, 0.0
  %9071 = vadd.xlane.f32.xlu0 %v9070
  %v9072 = vpop.xlane.xlu0 %9071
  %v9073 = vsel %vm4694, %v8603, 0.0
  %9074 = vadd.xlane.f32.xlu0 %v9073
  %v9075 = vpop.xlane.xlu0 %9074
  %v9076 = vsel %vm4694, %v8604, 0.0
  %9077 = vadd.xlane.f32.xlu0 %v9076
  %v9078 = vpop.xlane.xlu0 %9077
  %v9079 = vsel %vm4694, %v8605, 0.0
  %9080 = vadd.xlane.f32.xlu0 %v9079
  %v9081 = vpop.xlane.xlu0 %9080
  %v9082 = vsel %vm4694, %v8606, 0.0
  %9083 = vadd.xlane.f32.xlu0 %v9082
  %v9084 = vpop.xlane.xlu0 %9083
  %v9085 = vsel %vm4694, %v8607, 0.0
  %9086 = vadd.xlane.f32.xlu0 %v9085
  %v9087 = vpop.xlane.xlu0 %9086
  %v9088 = vsel %vm4694, %v8608, 0.0
  %9089 = vadd.xlane.f32.xlu0 %v9088
  %v9090 = vpop.xlane.xlu0 %9089
  %v9091 = vsel %vm4694, %v8609, 0.0
  %9092 = vadd.xlane.f32.xlu0 %v9091
  %v9093 = vpop.xlane.xlu0 %9092
  %v9094 = vsel %vm4694, %v8610, 0.0
  %9095 = vadd.xlane.f32.xlu0 %v9094
  %v9096 = vpop.xlane.xlu0 %9095
  %v9097 = vsel %vm4694, %v8611, 0.0
  %9098 = vadd.xlane.f32.xlu0 %v9097
  %v9099 = vpop.xlane.xlu0 %9098
  %v9100 = vsel %vm4694, %v8612, 0.0
  %9101 = vadd.xlane.f32.xlu0 %v9100
  %v9102 = vpop.xlane.xlu0 %9101
  %v9103 = vsel %vm4694, %v8613, 0.0
  %9104 = vadd.xlane.f32.xlu0 %v9103
  %v9105 = vpop.xlane.xlu0 %9104
  %v9106 = vsel %vm4694, %v8614, 0.0
  %9107 = vadd.xlane.f32.xlu0 %v9106
  %v9108 = vpop.xlane.xlu0 %9107
  %v9109 = vsel %vm4694, %v8615, 0.0
  %9110 = vadd.xlane.f32.xlu0 %v9109
  %v9111 = vpop.xlane.xlu0 %9110
  %v9112 = vsel %vm4694, %v8616, 0.0
  %9113 = vadd.xlane.f32.xlu0 %v9112
  %v9114 = vpop.xlane.xlu0 %9113
  %v9115 = vsel %vm4694, %v8617, 0.0
  %9116 = vadd.xlane.f32.xlu0 %v9115
  %v9117 = vpop.xlane.xlu0 %9116
  %v9118 = vsel %vm4694, %v8618, 0.0
  %9119 = vadd.xlane.f32.xlu0 %v9118
  %v9120 = vpop.xlane.xlu0 %9119
  %v9121 = vsel %vm4694, %v8619, 0.0
  %9122 = vadd.xlane.f32.xlu0 %v9121
  %v9123 = vpop.xlane.xlu0 %9122
  %v9124 = vsel %vm4694, %v8620, 0.0
  %9125 = vadd.xlane.f32.xlu0 %v9124
  %v9126 = vpop.xlane.xlu0 %9125
  %v9127 = vsel %vm4694, %v8621, 0.0
  %9128 = vadd.xlane.f32.xlu0 %v9127
  %v9129 = vpop.xlane.xlu0 %9128
  %v9130 = vsel %vm4694, %v8622, 0.0
  %9131 = vadd.xlane.f32.xlu0 %v9130
  %v9132 = vpop.xlane.xlu0 %9131
  %v9133 = vsel %vm4694, %v8623, 0.0
  %9134 = vadd.xlane.f32.xlu0 %v9133
  %v9135 = vpop.xlane.xlu0 %9134
  %v9136 = vsel %vm4694, %v8624, 0.0
  %9137 = vadd.xlane.f32.xlu0 %v9136
  %v9138 = vpop.xlane.xlu0 %9137
  %v9139 = vsel %vm4694, %v8625, 0.0
  %9140 = vadd.xlane.f32.xlu0 %v9139
  %v9141 = vpop.xlane.xlu0 %9140
  %v9142 = vsel %vm4694, %v8626, 0.0
  %9143 = vadd.xlane.f32.xlu0 %v9142
  %v9144 = vpop.xlane.xlu0 %9143
  %v9145 = vsel %vm4694, %v8627, 0.0
  %9146 = vadd.xlane.f32.xlu0 %v9145
  %v9147 = vpop.xlane.xlu0 %9146
  %v9148 = vsel %vm4694, %v8628, 0.0
  %9149 = vadd.xlane.f32.xlu0 %v9148
  %v9150 = vpop.xlane.xlu0 %9149
  %v9151 = vsel %vm4694, %v8629, 0.0
  %9152 = vadd.xlane.f32.xlu0 %v9151
  %v9153 = vpop.xlane.xlu0 %9152
  %v9154 = vsel %vm4694, %v8630, 0.0
  %9155 = vadd.xlane.f32.xlu0 %v9154
  %v9156 = vpop.xlane.xlu0 %9155
  %v9157 = vsel %vm4694, %v8631, 0.0
  %9158 = vadd.xlane.f32.xlu0 %v9157
  %v9159 = vpop.xlane.xlu0 %9158
  %v9160 = vsel %vm4694, %v8632, 0.0
  %9161 = vadd.xlane.f32.xlu0 %v9160
  %v9162 = vpop.xlane.xlu0 %9161
  %v9163 = vsel %vm4694, %v8633, 0.0
  %9164 = vadd.xlane.f32.xlu0 %v9163
  %v9165 = vpop.xlane.xlu0 %9164
  %v9166 = vsel %vm4694, %v8634, 0.0
  %9167 = vadd.xlane.f32.xlu0 %v9166
  %v9168 = vpop.xlane.xlu0 %9167
  %v9169 = vsel %vm4694, %v8635, 0.0
  %9170 = vadd.xlane.f32.xlu0 %v9169
  %v9171 = vpop.xlane.xlu0 %9170
  %v9172 = vsel %vm4694, %v8636, 0.0
  %9173 = vadd.xlane.f32.xlu0 %v9172
  %v9174 = vpop.xlane.xlu0 %9173
  %v9175 = vsel %vm4694, %v8637, 0.0
  %9176 = vadd.xlane.f32.xlu0 %v9175
  %v9177 = vpop.xlane.xlu0 %9176
  %v9178 = vsel %vm4694, %v8638, 0.0
  %9179 = vadd.xlane.f32.xlu0 %v9178
  %v9180 = vpop.xlane.xlu0 %9179
  %v9181 = vsel %vm4694, %v8639, 0.0
  %9182 = vadd.xlane.f32.xlu0 %v9181
  %v9183 = vpop.xlane.xlu0 %9182
  %v9184 = vsel %vm4694, %v8640, 0.0
  %9185 = vadd.xlane.f32.xlu0 %v9184
  %v9186 = vpop.xlane.xlu0 %9185
  %v9187 = vsel %vm4694, %v8641, 0.0
  %9188 = vadd.xlane.f32.xlu0 %v9187
  %v9189 = vpop.xlane.xlu0 %9188
  %v9190 = vsel %vm4694, %v8642, 0.0
  %9191 = vadd.xlane.f32.xlu0 %v9190
  %v9192 = vpop.xlane.xlu0 %9191
  %v9193 = vsel %vm4694, %v8643, 0.0
  %9194 = vadd.xlane.f32.xlu0 %v9193
  %v9195 = vpop.xlane.xlu0 %9194
  %v9196 = vsel %vm4694, %v8644, 0.0
  %9197 = vadd.xlane.f32.xlu0 %v9196
  %v9198 = vpop.xlane.xlu0 %9197
  %v9199 = vsel %vm4694, %v8645, 0.0
  %9200 = vadd.xlane.f32.xlu0 %v9199
  %v9201 = vpop.xlane.xlu0 %9200
  %v9202 = vsel %vm4694, %v8646, 0.0
  %9203 = vadd.xlane.f32.xlu0 %v9202
  %v9204 = vpop.xlane.xlu0 %9203
  %v9205 = vsel %vm4694, %v8647, 0.0
  %9206 = vadd.xlane.f32.xlu0 %v9205
  %v9207 = vpop.xlane.xlu0 %9206
  %v9208 = vsel %vm4694, %v8648, 0.0
  %9209 = vadd.xlane.f32.xlu0 %v9208
  %v9210 = vpop.xlane.xlu0 %9209
  %v9211 = vsel %vm4694, %v8649, 0.0
  %9212 = vadd.xlane.f32.xlu0 %v9211
  %v9213 = vpop.xlane.xlu0 %9212
  %v9214 = vsel %vm4694, %v8650, 0.0
  %9215 = vadd.xlane.f32.xlu0 %v9214
  %v9216 = vpop.xlane.xlu0 %9215
  %v9217 = vsel %vm4694, %v8651, 0.0
  %9218 = vadd.xlane.f32.xlu0 %v9217
  %v9219 = vpop.xlane.xlu0 %9218
  %v9220 = vsel %vm4694, %v8652, 0.0
  %9221 = vadd.xlane.f32.xlu0 %v9220
  %v9222 = vpop.xlane.xlu0 %9221
  %v9223 = vsel %vm4694, %v8653, 0.0
  %9224 = vadd.xlane.f32.xlu0 %v9223
  %v9225 = vpop.xlane.xlu0 %9224
  %v9226 = vsel %vm4694, %v8654, 0.0
  %9227 = vadd.xlane.f32.xlu0 %v9226
  %v9228 = vpop.xlane.xlu0 %9227
  %v9229 = vsel %vm4694, %v8655, 0.0
  %9230 = vadd.xlane.f32.xlu0 %v9229
  %v9231 = vpop.xlane.xlu0 %9230
  %v9232 = vsel %vm4694, %v8656, 0.0
  %9233 = vadd.xlane.f32.xlu0 %v9232
  %v9234 = vpop.xlane.xlu0 %9233
  %v9235 = vsel %vm4694, %v8657, 0.0
  %9236 = vadd.xlane.f32.xlu0 %v9235
  %v9237 = vpop.xlane.xlu0 %9236
  %v9238 = vsel %vm4694, %v8658, 0.0
  %9239 = vadd.xlane.f32.xlu0 %v9238
  %v9240 = vpop.xlane.xlu0 %9239
  %v9241 = vsel %vm4694, %v8659, 0.0
  %9242 = vadd.xlane.f32.xlu0 %v9241
  %v9243 = vpop.xlane.xlu0 %9242
  %v9244 = vsel %vm4694, %v8660, 0.0
  %9245 = vadd.xlane.f32.xlu0 %v9244
  %v9246 = vpop.xlane.xlu0 %9245
  %v9247 = vsel %vm4694, %v8661, 0.0
  %9248 = vadd.xlane.f32.xlu0 %v9247
  %v9249 = vpop.xlane.xlu0 %9248
  %v9250 = vsel %vm4694, %v8662, 0.0
  %9251 = vadd.xlane.f32.xlu0 %v9250
  %v9252 = vpop.xlane.xlu0 %9251
  %v9253 = vsel %vm4694, %v8663, 0.0
  %9254 = vadd.xlane.f32.xlu0 %v9253
  %v9255 = vpop.xlane.xlu0 %9254
  %v9256 = vsel %vm4694, %v8664, 0.0
  %9257 = vadd.xlane.f32.xlu0 %v9256
  %v9258 = vpop.xlane.xlu0 %9257
  %v9259 = vsel %vm4694, %v8665, 0.0
  %9260 = vadd.xlane.f32.xlu0 %v9259
  %v9261 = vpop.xlane.xlu0 %9260
  %v9262 = vsel %vm4694, %v8666, 0.0
  %9263 = vadd.xlane.f32.xlu0 %v9262
  %v9264 = vpop.xlane.xlu0 %9263
  %v9265 = vsel %vm4694, %v8667, 0.0
  %9266 = vadd.xlane.f32.xlu0 %v9265
  %v9267 = vpop.xlane.xlu0 %9266
  %v9268 = vsel %vm4694, %v8668, 0.0
  %9269 = vadd.xlane.f32.xlu0 %v9268
  %v9270 = vpop.xlane.xlu0 %9269
  %v9271 = vsel %vm4694, %v8669, 0.0
  %9272 = vadd.xlane.f32.xlu0 %v9271
  %v9273 = vpop.xlane.xlu0 %9272
  %v9274 = vsel %vm4694, %v8670, 0.0
  %9275 = vadd.xlane.f32.xlu0 %v9274
  %v9276 = vpop.xlane.xlu0 %9275
  %v9277 = vsel %vm4694, %v8671, 0.0
  %9278 = vadd.xlane.f32.xlu0 %v9277
  %v9279 = vpop.xlane.xlu0 %9278
  %v9280 = vsel %vm4694, %v8672, 0.0
  %9281 = vadd.xlane.f32.xlu0 %v9280
  %v9282 = vpop.xlane.xlu0 %9281
  %v9283 = vsel %vm4694, %v8673, 0.0
  %9284 = vadd.xlane.f32.xlu0 %v9283
  %v9285 = vpop.xlane.xlu0 %9284
  %v9286 = vsel %vm4694, %v8674, 0.0
  %9287 = vadd.xlane.f32.xlu0 %v9286
  %v9288 = vpop.xlane.xlu0 %9287
  %v9289 = vsel %vm4694, %v8675, 0.0
  %9290 = vadd.xlane.f32.xlu0 %v9289
  %v9291 = vpop.xlane.xlu0 %9290
  %v9292 = vsel %vm4694, %v8676, 0.0
  %9293 = vadd.xlane.f32.xlu0 %v9292
  %v9294 = vpop.xlane.xlu0 %9293
  %v9295 = vsel %vm4694, %v8677, 0.0
  %9296 = vadd.xlane.f32.xlu0 %v9295
  %v9297 = vpop.xlane.xlu0 %9296
  %v9298 = vsel %vm4694, %v8678, 0.0
  %9299 = vadd.xlane.f32.xlu0 %v9298
  %v9300 = vpop.xlane.xlu0 %9299
  %v9301 = vsel %vm4694, %v8679, 0.0
  %9302 = vadd.xlane.f32.xlu0 %v9301
  %v9303 = vpop.xlane.xlu0 %9302
  %v9304 = vsel %vm4694, %v8680, 0.0
  %9305 = vadd.xlane.f32.xlu0 %v9304
  %v9306 = vpop.xlane.xlu0 %9305
  %v9307 = vsel %vm4694, %v8681, 0.0
  %9308 = vadd.xlane.f32.xlu0 %v9307
  %v9309 = vpop.xlane.xlu0 %9308
  %v9310 = vsel %vm4694, %v8682, 0.0
  %9311 = vadd.xlane.f32.xlu0 %v9310
  %v9312 = vpop.xlane.xlu0 %9311
  %v9313 = vsel %vm4694, %v8683, 0.0
  %9314 = vadd.xlane.f32.xlu0 %v9313
  %v9315 = vpop.xlane.xlu0 %9314
  %v9316 = vsel %vm4694, %v8684, 0.0
  %9317 = vadd.xlane.f32.xlu0 %v9316
  %v9318 = vpop.xlane.xlu0 %9317
  %v9319 = vsel %vm4694, %v8685, 0.0
  %9320 = vadd.xlane.f32.xlu0 %v9319
  %v9321 = vpop.xlane.xlu0 %9320
  %v9322 = vsel %vm4694, %v8686, 0.0
  %9323 = vadd.xlane.f32.xlu0 %v9322
  %v9324 = vpop.xlane.xlu0 %9323
  %v9325 = vsel %vm4694, %v8687, 0.0
  %9326 = vadd.xlane.f32.xlu0 %v9325
  %v9327 = vpop.xlane.xlu0 %9326
  %v9328 = vsel %vm4694, %v8688, 0.0
  %9329 = vadd.xlane.f32.xlu0 %v9328
  %v9330 = vpop.xlane.xlu0 %9329
  %v9331 = vsel %vm4694, %v8689, 0.0
  %9332 = vadd.xlane.f32.xlu0 %v9331
  %v9333 = vpop.xlane.xlu0 %9332
  %v9334 = vsel %vm4694, %v8690, 0.0
  %9335 = vadd.xlane.f32.xlu0 %v9334
  %v9336 = vpop.xlane.xlu0 %9335
  %v9337 = vsel %vm4694, %v8691, 0.0
  %9338 = vadd.xlane.f32.xlu0 %v9337
  %v9339 = vpop.xlane.xlu0 %9338
  %v9340 = vsel %vm4694, %v8692, 0.0
  %9341 = vadd.xlane.f32.xlu0 %v9340
  %v9342 = vpop.xlane.xlu0 %9341
  %v9343 = vsel %vm4694, %v8693, 0.0
  %9344 = vadd.xlane.f32.xlu0 %v9343
  %v9345 = vpop.xlane.xlu0 %9344
  %v9346 = vsel %vm4694, %v8694, 0.0
  %9347 = vadd.xlane.f32.xlu0 %v9346
  %v9348 = vpop.xlane.xlu0 %9347
  %v9349 = vsel %vm4694, %v8695, 0.0
  %9350 = vadd.xlane.f32.xlu0 %v9349
  %v9351 = vpop.xlane.xlu0 %9350
  %v9352 = vsel %vm4694, %v8696, 0.0
  %9353 = vadd.xlane.f32.xlu0 %v9352
  %v9354 = vpop.xlane.xlu0 %9353
  %v9355 = vsel %vm4694, %v8697, 0.0
  %9356 = vadd.xlane.f32.xlu0 %v9355
  %v9357 = vpop.xlane.xlu0 %9356
  %v9358 = vsel %vm4694, %v8698, 0.0
  %9359 = vadd.xlane.f32.xlu0 %v9358
  %v9360 = vpop.xlane.xlu0 %9359
  %v9361 = vsel %vm4694, %v8699, 0.0
  %9362 = vadd.xlane.f32.xlu0 %v9361
  %v9363 = vpop.xlane.xlu0 %9362
  %v9364 = vsel %vm4694, %v8700, 0.0
  %9365 = vadd.xlane.f32.xlu0 %v9364
  %v9366 = vpop.xlane.xlu0 %9365
  %v9367 = vsel %vm4694, %v8701, 0.0
  %9368 = vadd.xlane.f32.xlu0 %v9367
  %v9369 = vpop.xlane.xlu0 %9368
  %v9370 = vsel %vm4694, %v8702, 0.0
  %9371 = vadd.xlane.f32.xlu0 %v9370
  %v9372 = vpop.xlane.xlu0 %9371
  %v9373 = vsel %vm4694, %v8703, 0.0
  %9374 = vadd.xlane.f32.xlu0 %v9373
  %v9375 = vpop.xlane.xlu0 %9374
  %v9376 = vsel %vm4694, %v8704, 0.0
  %9377 = vadd.xlane.f32.xlu0 %v9376
  %v9378 = vpop.xlane.xlu0 %9377
  %v9379 = vsel %vm4694, %v8705, 0.0
  %9380 = vadd.xlane.f32.xlu0 %v9379
  %v9381 = vpop.xlane.xlu0 %9380
  %v9382 = vsel %vm4694, %v8706, 0.0
  %9383 = vadd.xlane.f32.xlu0 %v9382
  %v9384 = vpop.xlane.xlu0 %9383
  %v9385 = vsel %vm4694, %v8707, 0.0
  %9386 = vadd.xlane.f32.xlu0 %v9385
  %v9387 = vpop.xlane.xlu0 %9386
  %v9388 = vsel %vm4694, %v8708, 0.0
  %9389 = vadd.xlane.f32.xlu0 %v9388
  %v9390 = vpop.xlane.xlu0 %9389
  %v9391 = vsel %vm4694, %v8709, 0.0
  %9392 = vadd.xlane.f32.xlu0 %v9391
  %v9393 = vpop.xlane.xlu0 %9392
  %v9394 = vsel %vm4694, %v8710, 0.0
  %9395 = vadd.xlane.f32.xlu0 %v9394
  %v9396 = vpop.xlane.xlu0 %9395
  %v9397 = vsel %vm4694, %v8711, 0.0
  %9398 = vadd.xlane.f32.xlu0 %v9397
  %v9399 = vpop.xlane.xlu0 %9398
  %v9400 = vsel %vm4694, %v8712, 0.0
  %9401 = vadd.xlane.f32.xlu0 %v9400
  %v9402 = vpop.xlane.xlu0 %9401
  %v9403 = vsel %vm4694, %v8713, 0.0
  %9404 = vadd.xlane.f32.xlu0 %v9403
  %v9405 = vpop.xlane.xlu0 %9404
  %v9406 = vsel %vm4694, %v8714, 0.0
  %9407 = vadd.xlane.f32.xlu0 %v9406
  %v9408 = vpop.xlane.xlu0 %9407
  %v9409 = vsel %vm4694, %v8715, 0.0
  %9410 = vadd.xlane.f32.xlu0 %v9409
  %v9411 = vpop.xlane.xlu0 %9410
  %v9412 = vsel %vm4694, %v8716, 0.0
  %9413 = vadd.xlane.f32.xlu0 %v9412
  %v9414 = vpop.xlane.xlu0 %9413
  %v9415 = vsel %vm4694, %v8717, 0.0
  %9416 = vadd.xlane.f32.xlu0 %v9415
  %v9417 = vpop.xlane.xlu0 %9416
  %v9418 = vsel %vm4694, %v8718, 0.0
  %9419 = vadd.xlane.f32.xlu0 %v9418
  %v9420 = vpop.xlane.xlu0 %9419
  %v9421 = vsel %vm4694, %v8719, 0.0
  %9422 = vadd.xlane.f32.xlu0 %v9421
  %v9423 = vpop.xlane.xlu0 %9422
  %v9424 = vsel %vm4694, %v8720, 0.0
  %9425 = vadd.xlane.f32.xlu0 %v9424
  %v9426 = vpop.xlane.xlu0 %9425
  %v9427 = vsel %vm4694, %v8721, 0.0
  %9428 = vadd.xlane.f32.xlu0 %v9427
  %v9429 = vpop.xlane.xlu0 %9428
  %v9430 = vsel %vm4694, %v8722, 0.0
  %9431 = vadd.xlane.f32.xlu0 %v9430
  %v9432 = vpop.xlane.xlu0 %9431
  %v9433 = vsel %vm4694, %v8723, 0.0
  %9434 = vadd.xlane.f32.xlu0 %v9433
  %v9435 = vpop.xlane.xlu0 %9434
  %v9436 = vsel %vm4694, %v8724, 0.0
  %9437 = vadd.xlane.f32.xlu0 %v9436
  %v9438 = vpop.xlane.xlu0 %9437
  %v9439 = vsel %vm4694, %v8725, 0.0
  %9440 = vadd.xlane.f32.xlu0 %v9439
  %v9441 = vpop.xlane.xlu0 %9440
  %v9442 = vsel %vm4694, %v8726, 0.0
  %9443 = vadd.xlane.f32.xlu0 %v9442
  %v9444 = vpop.xlane.xlu0 %9443
  %v9445 = vsel %vm4694, %v8727, 0.0
  %9446 = vadd.xlane.f32.xlu0 %v9445
  %v9447 = vpop.xlane.xlu0 %9446
  %v9448 = vsel %vm4694, %v8728, 0.0
  %9449 = vadd.xlane.f32.xlu0 %v9448
  %v9450 = vpop.xlane.xlu0 %9449
  %v9451 = vsel %vm4694, %v8729, 0.0
  %9452 = vadd.xlane.f32.xlu0 %v9451
  %v9453 = vpop.xlane.xlu0 %9452
  %v9454 = vsel %vm4694, %v8730, 0.0
  %9455 = vadd.xlane.f32.xlu0 %v9454
  %v9456 = vpop.xlane.xlu0 %9455
  %v9457 = vsel %vm4694, %v8731, 0.0
  %9458 = vadd.xlane.f32.xlu0 %v9457
  %v9459 = vpop.xlane.xlu0 %9458
  %v9460 = vsel %vm4694, %v8732, 0.0
  %9461 = vadd.xlane.f32.xlu0 %v9460
  %v9462 = vpop.xlane.xlu0 %9461
  %v9463 = vsel %vm4694, %v8733, 0.0
  %9464 = vadd.xlane.f32.xlu0 %v9463
  %v9465 = vpop.xlane.xlu0 %9464
  %v9466 = vsel %vm4694, %v8734, 0.0
  %9467 = vadd.xlane.f32.xlu0 %v9466
  %v9468 = vpop.xlane.xlu0 %9467
  %v9469 = vsel %vm4694, %v8735, 0.0
  %9470 = vadd.xlane.f32.xlu0 %v9469
  %v9471 = vpop.xlane.xlu0 %9470
  %v9472 = vsel %vm4694, %v8736, 0.0
  %9473 = vadd.xlane.f32.xlu0 %v9472
  %v9474 = vpop.xlane.xlu0 %9473
  %v9475 = vsel %vm4694, %v8737, 0.0
  %9476 = vadd.xlane.f32.xlu0 %v9475
  %v9477 = vpop.xlane.xlu0 %9476
  %v9478 = vsel %vm4694, %v8738, 0.0
  %9479 = vadd.xlane.f32.xlu0 %v9478
  %v9480 = vpop.xlane.xlu0 %9479
  %v9481 = vsel %vm4694, %v8739, 0.0
  %9482 = vadd.xlane.f32.xlu0 %v9481
  %v9483 = vpop.xlane.xlu0 %9482
  %v9484 = vsel %vm4694, %v8740, 0.0
  %9485 = vadd.xlane.f32.xlu0 %v9484
  %v9486 = vpop.xlane.xlu0 %9485
  %v9487 = vsel %vm4694, %v8741, 0.0
  %9488 = vadd.xlane.f32.xlu0 %v9487
  %v9489 = vpop.xlane.xlu0 %9488
  %v9490 = vsel %vm4694, %v8742, 0.0
  %9491 = vadd.xlane.f32.xlu0 %v9490
  %v9492 = vpop.xlane.xlu0 %9491
  %v9493 = vsel %vm4694, %v8743, 0.0
  %9494 = vadd.xlane.f32.xlu0 %v9493
  %v9495 = vpop.xlane.xlu0 %9494
  %v9496 = vsel %vm4694, %v8744, 0.0
  %9497 = vadd.xlane.f32.xlu0 %v9496
  %v9498 = vpop.xlane.xlu0 %9497
  %v9499 = vsel %vm4694, %v8745, 0.0
  %9500 = vadd.xlane.f32.xlu0 %v9499
  %v9501 = vpop.xlane.xlu0 %9500
  %v9502 = vsel %vm4694, %v8746, 0.0
  %9503 = vadd.xlane.f32.xlu0 %v9502
  %v9504 = vpop.xlane.xlu0 %9503
  %v9505 = vsel %vm4694, %v8747, 0.0
  %9506 = vadd.xlane.f32.xlu0 %v9505
  %v9507 = vpop.xlane.xlu0 %9506
  %v9508 = vsel %vm4694, %v8748, 0.0
  %9509 = vadd.xlane.f32.xlu0 %v9508
  %v9510 = vpop.xlane.xlu0 %9509
  %v9511 = vsel %vm4694, %v8749, 0.0
  %9512 = vadd.xlane.f32.xlu0 %v9511
  %v9513 = vpop.xlane.xlu0 %9512
  %v9514 = vsel %vm4694, %v8750, 0.0
  %9515 = vadd.xlane.f32.xlu0 %v9514
  %v9516 = vpop.xlane.xlu0 %9515
  %v9517 = vsel %vm4694, %v8751, 0.0
  %9518 = vadd.xlane.f32.xlu0 %v9517
  %v9519 = vpop.xlane.xlu0 %9518
  %v9520 = vld [vmem:[%s11] sm:$0x1]
  %v9522 = vlaneseq
  %v9523 = vshrl.u32 %v9522, 7
  %v9524 = vsub.s32 0, %v9523
  %v9525 = vrot.slane %v9520, %v9524
  %v9527 = vmul.f32 %v7977, %v9525
  %v9528 = vmul.f32 %v7978, %v9525
  %v9529 = vmul.f32 %v7979, %v9525
  %v9530 = vmul.f32 %v7980, %v9525
  %v9531 = vmul.f32 %v7981, %v9525
  %v9532 = vmul.f32 %v7982, %v9525
  %v9533 = vmul.f32 %v7983, %v9525
  %v9534 = vmul.f32 %v7984, %v9525
  %v9535 = vmul.f32 %v7985, %v9525
  %v9536 = vmul.f32 %v7986, %v9525
  %v9537 = vmul.f32 %v7987, %v9525
  %v9538 = vmul.f32 %v7988, %v9525
  %v9539 = vmul.f32 %v7989, %v9525
  %v9540 = vmul.f32 %v7990, %v9525
  %v9541 = vmul.f32 %v7991, %v9525
  %v9542 = vmul.f32 %v7992, %v9525
  %v9543 = vmul.f32 %v7993, %v9525
  %v9544 = vmul.f32 %v7994, %v9525
  %v9545 = vmul.f32 %v7995, %v9525
  %v9546 = vmul.f32 %v7996, %v9525
  %v9547 = vmul.f32 %v7997, %v9525
  %v9548 = vmul.f32 %v7998, %v9525
  %v9549 = vmul.f32 %v7999, %v9525
  %v9550 = vmul.f32 %v8000, %v9525
  %v9551 = vmul.f32 %v8001, %v9525
  %v9552 = vmul.f32 %v8002, %v9525
  %v9553 = vmul.f32 %v8003, %v9525
  %v9554 = vmul.f32 %v8004, %v9525
  %v9555 = vmul.f32 %v8005, %v9525
  %v9556 = vmul.f32 %v8006, %v9525
  %v9557 = vmul.f32 %v8007, %v9525
  %v9558 = vmul.f32 %v8008, %v9525
  %v9559 = vmul.f32 %v8009, %v9525
  %v9560 = vmul.f32 %v8010, %v9525
  %v9561 = vmul.f32 %v8011, %v9525
  %v9562 = vmul.f32 %v8012, %v9525
  %v9563 = vmul.f32 %v8013, %v9525
  %v9564 = vmul.f32 %v8014, %v9525
  %v9565 = vmul.f32 %v8015, %v9525
  %v9566 = vmul.f32 %v8016, %v9525
  %v9567 = vmul.f32 %v8017, %v9525
  %v9568 = vmul.f32 %v8018, %v9525
  %v9569 = vmul.f32 %v8019, %v9525
  %v9570 = vmul.f32 %v8020, %v9525
  %v9571 = vmul.f32 %v8021, %v9525
  %v9572 = vmul.f32 %v8022, %v9525
  %v9573 = vmul.f32 %v8023, %v9525
  %v9574 = vmul.f32 %v8024, %v9525
  %v9575 = vmul.f32 %v8025, %v9525
  %v9576 = vmul.f32 %v8026, %v9525
  %v9577 = vmul.f32 %v8027, %v9525
  %v9578 = vmul.f32 %v8028, %v9525
  %v9579 = vmul.f32 %v8029, %v9525
  %v9580 = vmul.f32 %v8030, %v9525
  %v9581 = vmul.f32 %v8031, %v9525
  %v9582 = vmul.f32 %v8032, %v9525
  %v9583 = vmul.f32 %v8033, %v9525
  %v9584 = vmul.f32 %v8034, %v9525
  %v9585 = vmul.f32 %v8035, %v9525
  %v9586 = vmul.f32 %v8036, %v9525
  %v9587 = vmul.f32 %v8037, %v9525
  %v9588 = vmul.f32 %v8038, %v9525
  %v9589 = vmul.f32 %v8039, %v9525
  %v9590 = vmul.f32 %v8040, %v9525
  %v9591 = vmul.f32 %v8041, %v9525
  %v9592 = vmul.f32 %v8042, %v9525
  %v9593 = vmul.f32 %v8043, %v9525
  %v9594 = vmul.f32 %v8044, %v9525
  %v9595 = vmul.f32 %v8045, %v9525
  %v9596 = vmul.f32 %v8046, %v9525
  %v9597 = vmul.f32 %v8047, %v9525
  %v9598 = vmul.f32 %v8048, %v9525
  %v9599 = vmul.f32 %v8049, %v9525
  %v9600 = vmul.f32 %v8050, %v9525
  %v9601 = vmul.f32 %v8051, %v9525
  %v9602 = vmul.f32 %v8052, %v9525
  %v9603 = vmul.f32 %v8053, %v9525
  %v9604 = vmul.f32 %v8054, %v9525
  %v9605 = vmul.f32 %v8055, %v9525
  %v9606 = vmul.f32 %v8056, %v9525
  %v9607 = vmul.f32 %v8057, %v9525
  %v9608 = vmul.f32 %v8058, %v9525
  %v9609 = vmul.f32 %v8059, %v9525
  %v9610 = vmul.f32 %v8060, %v9525
  %v9611 = vmul.f32 %v8061, %v9525
  %v9612 = vmul.f32 %v8062, %v9525
  %v9613 = vmul.f32 %v8063, %v9525
  %v9614 = vmul.f32 %v8064, %v9525
  %v9615 = vmul.f32 %v8065, %v9525
  %v9616 = vmul.f32 %v8066, %v9525
  %v9617 = vmul.f32 %v8067, %v9525
  %v9618 = vmul.f32 %v8068, %v9525
  %v9619 = vmul.f32 %v8069, %v9525
  %v9620 = vmul.f32 %v8070, %v9525
  %v9621 = vmul.f32 %v8071, %v9525
  %v9622 = vmul.f32 %v8072, %v9525
  %v9623 = vmul.f32 %v8073, %v9525
  %v9624 = vmul.f32 %v8074, %v9525
  %v9625 = vmul.f32 %v8075, %v9525
  %v9626 = vmul.f32 %v8076, %v9525
  %v9627 = vmul.f32 %v8077, %v9525
  %v9628 = vmul.f32 %v8078, %v9525
  %v9629 = vmul.f32 %v8079, %v9525
  %v9630 = vmul.f32 %v8080, %v9525
  %v9631 = vmul.f32 %v8081, %v9525
  %v9632 = vmul.f32 %v8082, %v9525
  %v9633 = vmul.f32 %v8083, %v9525
  %v9634 = vmul.f32 %v8084, %v9525
  %v9635 = vmul.f32 %v8085, %v9525
  %v9636 = vmul.f32 %v8086, %v9525
  %v9637 = vmul.f32 %v8087, %v9525
  %v9638 = vmul.f32 %v8088, %v9525
  %v9639 = vmul.f32 %v8089, %v9525
  %v9640 = vmul.f32 %v8090, %v9525
  %v9641 = vmul.f32 %v8091, %v9525
  %v9642 = vmul.f32 %v8092, %v9525
  %v9643 = vmul.f32 %v8093, %v9525
  %v9644 = vmul.f32 %v8094, %v9525
  %v9645 = vmul.f32 %v8095, %v9525
  %v9646 = vmul.f32 %v8096, %v9525
  %v9647 = vmul.f32 %v8097, %v9525
  %v9648 = vmul.f32 %v8098, %v9525
  %v9649 = vmul.f32 %v8099, %v9525
  %v9650 = vmul.f32 %v8100, %v9525
  %v9651 = vmul.f32 %v8101, %v9525
  %v9652 = vmul.f32 %v8102, %v9525
  %v9653 = vmul.f32 %v8103, %v9525
  %v9654 = vmul.f32 %v8104, %v9525
  %v9655 = vmul.f32 %v8105, %v9525
  %v9656 = vmul.f32 %v8106, %v9525
  %v9657 = vmul.f32 %v8107, %v9525
  %v9658 = vmul.f32 %v8108, %v9525
  %v9659 = vmul.f32 %v8109, %v9525
  %v9660 = vmul.f32 %v8110, %v9525
  %v9661 = vmul.f32 %v8111, %v9525
  %v9662 = vmul.f32 %v8112, %v9525
  %v9663 = vmul.f32 %v8113, %v9525
  %v9664 = vmul.f32 %v8114, %v9525
  %v9665 = vmul.f32 %v8115, %v9525
  %v9666 = vmul.f32 %v8116, %v9525
  %v9667 = vmul.f32 %v8117, %v9525
  %v9668 = vmul.f32 %v8118, %v9525
  %v9669 = vmul.f32 %v8119, %v9525
  %v9670 = vmul.f32 %v8120, %v9525
  %v9671 = vmul.f32 %v8121, %v9525
  %v9672 = vmul.f32 %v8122, %v9525
  %v9673 = vmul.f32 %v8123, %v9525
  %v9674 = vmul.f32 %v8124, %v9525
  %v9675 = vmul.f32 %v8125, %v9525
  %v9676 = vmul.f32 %v8126, %v9525
  %v9677 = vmul.f32 %v8127, %v9525
  %v9678 = vmul.f32 %v8128, %v9525
  %v9679 = vmul.f32 %v8129, %v9525
  %v9680 = vmul.f32 %v8130, %v9525
  %v9681 = vmul.f32 %v8131, %v9525
  %v9682 = vmul.f32 %v8132, %v9525
  %v9683 = vmul.f32 %v8133, %v9525
  %v9684 = vmul.f32 %v8134, %v9525
  %v9685 = vmul.f32 %v8135, %v9525
  %v9686 = vmul.f32 %v8136, %v9525
  %v9687 = vmul.f32 %v8137, %v9525
  %v9688 = vmul.f32 %v8138, %v9525
  %v9689 = vmul.f32 %v8139, %v9525
  %v9690 = vmul.f32 %v8140, %v9525
  %v9691 = vmul.f32 %v8141, %v9525
  %v9692 = vmul.f32 %v8142, %v9525
  %v9693 = vmul.f32 %v8143, %v9525
  %v9694 = vmul.f32 %v8144, %v9525
  %v9695 = vmul.f32 %v8145, %v9525
  %v9696 = vmul.f32 %v8146, %v9525
  %v9697 = vmul.f32 %v8147, %v9525
  %v9698 = vmul.f32 %v8148, %v9525
  %v9699 = vmul.f32 %v8149, %v9525
  %v9700 = vmul.f32 %v8150, %v9525
  %v9701 = vmul.f32 %v8151, %v9525
  %v9702 = vmul.f32 %v8152, %v9525
  %v9703 = vmul.f32 %v8153, %v9525
  %v9704 = vmul.f32 %v8154, %v9525
  %v9705 = vmul.f32 %v8155, %v9525
  %v9706 = vmul.f32 %v8156, %v9525
  %v9707 = vmul.f32 %v8157, %v9525
  %v9708 = vmul.f32 %v8158, %v9525
  %v9709 = vmul.f32 %v8159, %v9525
  %v9710 = vmul.f32 %v8160, %v9525
  %v9711 = vmul.f32 %v8161, %v9525
  %v9712 = vmul.f32 %v8162, %v9525
  %v9713 = vmul.f32 %v8163, %v9525
  %v9714 = vmul.f32 %v8164, %v9525
  %v9715 = vmul.f32 %v8165, %v9525
  %v9716 = vmul.f32 %v8166, %v9525
  %v9717 = vmul.f32 %v8167, %v9525
  %v9718 = vmul.f32 %v8168, %v9525
  %v9719 = vmul.f32 %v8169, %v9525
  %v9720 = vmul.f32 %v8170, %v9525
  %v9721 = vmul.f32 %v8171, %v9525
  %v9722 = vmul.f32 %v8172, %v9525
  %v9723 = vmul.f32 %v8173, %v9525
  %v9724 = vmul.f32 %v8174, %v9525
  %v9725 = vmul.f32 %v8175, %v9525
  %v9726 = vmul.f32 %v8176, %v9525
  %v9727 = vmul.f32 %v8177, %v9525
  %v9728 = vmul.f32 %v8178, %v9525
  %v9729 = vmul.f32 %v8179, %v9525
  %v9730 = vmul.f32 %v8180, %v9525
  %v9731 = vmul.f32 %v8181, %v9525
  %v9732 = vmul.f32 %v8182, %v9525
  %v9733 = vmul.f32 %v8183, %v9525
  %v9734 = vmul.f32 %v8184, %v9525
  %v9735 = vmul.f32 %v8185, %v9525
  %v9736 = vmul.f32 %v8186, %v9525
  %v9737 = vmul.f32 %v8187, %v9525
  %v9738 = vmul.f32 %v8188, %v9525
  %v9739 = vmul.f32 %v8189, %v9525
  %v9740 = vmul.f32 %v8190, %v9525
  %v9741 = vmul.f32 %v8191, %v9525
  %v9742 = vmul.f32 %v8192, %v9525
  %v9743 = vmul.f32 %v8193, %v9525
  %v9744 = vmul.f32 %v8194, %v9525
  %v9745 = vmul.f32 %v8195, %v9525
  %v9746 = vmul.f32 %v8196, %v9525
  %v9747 = vmul.f32 %v8197, %v9525
  %v9748 = vmul.f32 %v8198, %v9525
  %v9749 = vmul.f32 %v8199, %v9525
  %v9750 = vmul.f32 %v8200, %v9525
  %v9751 = vmul.f32 %v8201, %v9525
  %v9752 = vmul.f32 %v8202, %v9525
  %v9753 = vmul.f32 %v8203, %v9525
  %v9754 = vmul.f32 %v8204, %v9525
  %v9755 = vmul.f32 %v8205, %v9525
  %v9756 = vmul.f32 %v8206, %v9525
  %v9757 = vmul.f32 %v8207, %v9525
  %v9758 = vmul.f32 %v8208, %v9525
  %v9759 = vmul.f32 %v8209, %v9525
  %v9760 = vmul.f32 %v8210, %v9525
  %v9761 = vmul.f32 %v8211, %v9525
  %v9762 = vmul.f32 %v8212, %v9525
  %v9763 = vmul.f32 %v8213, %v9525
  %v9764 = vmul.f32 %v8214, %v9525
  %v9765 = vmul.f32 %v8215, %v9525
  %v9766 = vmul.f32 %v8216, %v9525
  %v9767 = vmul.f32 %v8217, %v9525
  %v9768 = vmul.f32 %v8218, %v9525
  %v9769 = vmul.f32 %v8219, %v9525
  %v9770 = vmul.f32 %v8220, %v9525
  %v9771 = vmul.f32 %v8221, %v9525
  %v9772 = vmul.f32 %v8222, %v9525
  %v9773 = vmul.f32 %v8223, %v9525
  %v9774 = vmul.f32 %v8224, %v9525
  %v9775 = vmul.f32 %v8225, %v9525
  %v9776 = vmul.f32 %v8226, %v9525
  %v9777 = vmul.f32 %v8227, %v9525
  %v9778 = vmul.f32 %v8228, %v9525
  %v9779 = vmul.f32 %v8229, %v9525
  %v9780 = vmul.f32 %v8230, %v9525
  %v9781 = vmul.f32 %v8231, %v9525
  %v9782 = vmul.f32 %v8232, %v9525
  %vm9783 = vcmask 64512
  %v9784 = vsel %vm9783, %v9527, 0.0
  %9785 = vadd.xlane.f32.xlu0 %v9784
  %v9786 = vpop.xlane.xlu0 %9785
  %v9787 = vsel %vm9783, %v9528, 0.0
  %9788 = vadd.xlane.f32.xlu0 %v9787
  %v9789 = vpop.xlane.xlu0 %9788
  %v9790 = vsel %vm9783, %v9529, 0.0
  %9791 = vadd.xlane.f32.xlu0 %v9790
  %v9792 = vpop.xlane.xlu0 %9791
  %v9793 = vsel %vm9783, %v9530, 0.0
  %9794 = vadd.xlane.f32.xlu0 %v9793
  %v9795 = vpop.xlane.xlu0 %9794
  %v9796 = vsel %vm9783, %v9531, 0.0
  %9797 = vadd.xlane.f32.xlu0 %v9796
  %v9798 = vpop.xlane.xlu0 %9797
  %v9799 = vsel %vm9783, %v9532, 0.0
  %9800 = vadd.xlane.f32.xlu0 %v9799
  %v9801 = vpop.xlane.xlu0 %9800
  %v9802 = vsel %vm9783, %v9533, 0.0
  %9803 = vadd.xlane.f32.xlu0 %v9802
  %v9804 = vpop.xlane.xlu0 %9803
  %v9805 = vsel %vm9783, %v9534, 0.0
  %9806 = vadd.xlane.f32.xlu0 %v9805
  %v9807 = vpop.xlane.xlu0 %9806
  %v9808 = vsel %vm9783, %v9535, 0.0
  %9809 = vadd.xlane.f32.xlu0 %v9808
  %v9810 = vpop.xlane.xlu0 %9809
  %v9811 = vsel %vm9783, %v9536, 0.0
  %9812 = vadd.xlane.f32.xlu0 %v9811
  %v9813 = vpop.xlane.xlu0 %9812
  %v9814 = vsel %vm9783, %v9537, 0.0
  %9815 = vadd.xlane.f32.xlu0 %v9814
  %v9816 = vpop.xlane.xlu0 %9815
  %v9817 = vsel %vm9783, %v9538, 0.0
  %9818 = vadd.xlane.f32.xlu0 %v9817
  %v9819 = vpop.xlane.xlu0 %9818
  %v9820 = vsel %vm9783, %v9539, 0.0
  %9821 = vadd.xlane.f32.xlu0 %v9820
  %v9822 = vpop.xlane.xlu0 %9821
  %v9823 = vsel %vm9783, %v9540, 0.0
  %9824 = vadd.xlane.f32.xlu0 %v9823
  %v9825 = vpop.xlane.xlu0 %9824
  %v9826 = vsel %vm9783, %v9541, 0.0
  %9827 = vadd.xlane.f32.xlu0 %v9826
  %v9828 = vpop.xlane.xlu0 %9827
  %v9829 = vsel %vm9783, %v9542, 0.0
  %9830 = vadd.xlane.f32.xlu0 %v9829
  %v9831 = vpop.xlane.xlu0 %9830
  %v9832 = vsel %vm9783, %v9543, 0.0
  %9833 = vadd.xlane.f32.xlu0 %v9832
  %v9834 = vpop.xlane.xlu0 %9833
  %v9835 = vsel %vm9783, %v9544, 0.0
  %9836 = vadd.xlane.f32.xlu0 %v9835
  %v9837 = vpop.xlane.xlu0 %9836
  %v9838 = vsel %vm9783, %v9545, 0.0
  %9839 = vadd.xlane.f32.xlu0 %v9838
  %v9840 = vpop.xlane.xlu0 %9839
  %v9841 = vsel %vm9783, %v9546, 0.0
  %9842 = vadd.xlane.f32.xlu0 %v9841
  %v9843 = vpop.xlane.xlu0 %9842
  %v9844 = vsel %vm9783, %v9547, 0.0
  %9845 = vadd.xlane.f32.xlu0 %v9844
  %v9846 = vpop.xlane.xlu0 %9845
  %v9847 = vsel %vm9783, %v9548, 0.0
  %9848 = vadd.xlane.f32.xlu0 %v9847
  %v9849 = vpop.xlane.xlu0 %9848
  %v9850 = vsel %vm9783, %v9549, 0.0
  %9851 = vadd.xlane.f32.xlu0 %v9850
  %v9852 = vpop.xlane.xlu0 %9851
  %v9853 = vsel %vm9783, %v9550, 0.0
  %9854 = vadd.xlane.f32.xlu0 %v9853
  %v9855 = vpop.xlane.xlu0 %9854
  %v9856 = vsel %vm9783, %v9551, 0.0
  %9857 = vadd.xlane.f32.xlu0 %v9856
  %v9858 = vpop.xlane.xlu0 %9857
  %v9859 = vsel %vm9783, %v9552, 0.0
  %9860 = vadd.xlane.f32.xlu0 %v9859
  %v9861 = vpop.xlane.xlu0 %9860
  %v9862 = vsel %vm9783, %v9553, 0.0
  %9863 = vadd.xlane.f32.xlu0 %v9862
  %v9864 = vpop.xlane.xlu0 %9863
  %v9865 = vsel %vm9783, %v9554, 0.0
  %9866 = vadd.xlane.f32.xlu0 %v9865
  %v9867 = vpop.xlane.xlu0 %9866
  %v9868 = vsel %vm9783, %v9555, 0.0
  %9869 = vadd.xlane.f32.xlu0 %v9868
  %v9870 = vpop.xlane.xlu0 %9869
  %v9871 = vsel %vm9783, %v9556, 0.0
  %9872 = vadd.xlane.f32.xlu0 %v9871
  %v9873 = vpop.xlane.xlu0 %9872
  %v9874 = vsel %vm9783, %v9557, 0.0
  %9875 = vadd.xlane.f32.xlu0 %v9874
  %v9876 = vpop.xlane.xlu0 %9875
  %v9877 = vsel %vm9783, %v9558, 0.0
  %9878 = vadd.xlane.f32.xlu0 %v9877
  %v9879 = vpop.xlane.xlu0 %9878
  %v9880 = vsel %vm9783, %v9559, 0.0
  %9881 = vadd.xlane.f32.xlu0 %v9880
  %v9882 = vpop.xlane.xlu0 %9881
  %v9883 = vsel %vm9783, %v9560, 0.0
  %9884 = vadd.xlane.f32.xlu0 %v9883
  %v9885 = vpop.xlane.xlu0 %9884
  %v9886 = vsel %vm9783, %v9561, 0.0
  %9887 = vadd.xlane.f32.xlu0 %v9886
  %v9888 = vpop.xlane.xlu0 %9887
  %v9889 = vsel %vm9783, %v9562, 0.0
  %9890 = vadd.xlane.f32.xlu0 %v9889
  %v9891 = vpop.xlane.xlu0 %9890
  %v9892 = vsel %vm9783, %v9563, 0.0
  %9893 = vadd.xlane.f32.xlu0 %v9892
  %v9894 = vpop.xlane.xlu0 %9893
  %v9895 = vsel %vm9783, %v9564, 0.0
  %9896 = vadd.xlane.f32.xlu0 %v9895
  %v9897 = vpop.xlane.xlu0 %9896
  %v9898 = vsel %vm9783, %v9565, 0.0
  %9899 = vadd.xlane.f32.xlu0 %v9898
  %v9900 = vpop.xlane.xlu0 %9899
  %v9901 = vsel %vm9783, %v9566, 0.0
  %9902 = vadd.xlane.f32.xlu0 %v9901
  %v9903 = vpop.xlane.xlu0 %9902
  %v9904 = vsel %vm9783, %v9567, 0.0
  %9905 = vadd.xlane.f32.xlu0 %v9904
  %v9906 = vpop.xlane.xlu0 %9905
  %v9907 = vsel %vm9783, %v9568, 0.0
  %9908 = vadd.xlane.f32.xlu0 %v9907
  %v9909 = vpop.xlane.xlu0 %9908
  %v9910 = vsel %vm9783, %v9569, 0.0
  %9911 = vadd.xlane.f32.xlu0 %v9910
  %v9912 = vpop.xlane.xlu0 %9911
  %v9913 = vsel %vm9783, %v9570, 0.0
  %9914 = vadd.xlane.f32.xlu0 %v9913
  %v9915 = vpop.xlane.xlu0 %9914
  %v9916 = vsel %vm9783, %v9571, 0.0
  %9917 = vadd.xlane.f32.xlu0 %v9916
  %v9918 = vpop.xlane.xlu0 %9917
  %v9919 = vsel %vm9783, %v9572, 0.0
  %9920 = vadd.xlane.f32.xlu0 %v9919
  %v9921 = vpop.xlane.xlu0 %9920
  %v9922 = vsel %vm9783, %v9573, 0.0
  %9923 = vadd.xlane.f32.xlu0 %v9922
  %v9924 = vpop.xlane.xlu0 %9923
  %v9925 = vsel %vm9783, %v9574, 0.0
  %9926 = vadd.xlane.f32.xlu0 %v9925
  %v9927 = vpop.xlane.xlu0 %9926
  %v9928 = vsel %vm9783, %v9575, 0.0
  %9929 = vadd.xlane.f32.xlu0 %v9928
  %v9930 = vpop.xlane.xlu0 %9929
  %v9931 = vsel %vm9783, %v9576, 0.0
  %9932 = vadd.xlane.f32.xlu0 %v9931
  %v9933 = vpop.xlane.xlu0 %9932
  %v9934 = vsel %vm9783, %v9577, 0.0
  %9935 = vadd.xlane.f32.xlu0 %v9934
  %v9936 = vpop.xlane.xlu0 %9935
  %v9937 = vsel %vm9783, %v9578, 0.0
  %9938 = vadd.xlane.f32.xlu0 %v9937
  %v9939 = vpop.xlane.xlu0 %9938
  %v9940 = vsel %vm9783, %v9579, 0.0
  %9941 = vadd.xlane.f32.xlu0 %v9940
  %v9942 = vpop.xlane.xlu0 %9941
  %v9943 = vsel %vm9783, %v9580, 0.0
  %9944 = vadd.xlane.f32.xlu0 %v9943
  %v9945 = vpop.xlane.xlu0 %9944
  %v9946 = vsel %vm9783, %v9581, 0.0
  %9947 = vadd.xlane.f32.xlu0 %v9946
  %v9948 = vpop.xlane.xlu0 %9947
  %v9949 = vsel %vm9783, %v9582, 0.0
  %9950 = vadd.xlane.f32.xlu0 %v9949
  %v9951 = vpop.xlane.xlu0 %9950
  %v9952 = vsel %vm9783, %v9583, 0.0
  %9953 = vadd.xlane.f32.xlu0 %v9952
  %v9954 = vpop.xlane.xlu0 %9953
  %v9955 = vsel %vm9783, %v9584, 0.0
  %9956 = vadd.xlane.f32.xlu0 %v9955
  %v9957 = vpop.xlane.xlu0 %9956
  %v9958 = vsel %vm9783, %v9585, 0.0
  %9959 = vadd.xlane.f32.xlu0 %v9958
  %v9960 = vpop.xlane.xlu0 %9959
  %v9961 = vsel %vm9783, %v9586, 0.0
  %9962 = vadd.xlane.f32.xlu0 %v9961
  %v9963 = vpop.xlane.xlu0 %9962
  %v9964 = vsel %vm9783, %v9587, 0.0
  %9965 = vadd.xlane.f32.xlu0 %v9964
  %v9966 = vpop.xlane.xlu0 %9965
  %v9967 = vsel %vm9783, %v9588, 0.0
  %9968 = vadd.xlane.f32.xlu0 %v9967
  %v9969 = vpop.xlane.xlu0 %9968
  %v9970 = vsel %vm9783, %v9589, 0.0
  %9971 = vadd.xlane.f32.xlu0 %v9970
  %v9972 = vpop.xlane.xlu0 %9971
  %v9973 = vsel %vm9783, %v9590, 0.0
  %9974 = vadd.xlane.f32.xlu0 %v9973
  %v9975 = vpop.xlane.xlu0 %9974
  %v9976 = vsel %vm9783, %v9591, 0.0
  %9977 = vadd.xlane.f32.xlu0 %v9976
  %v9978 = vpop.xlane.xlu0 %9977
  %v9979 = vsel %vm9783, %v9592, 0.0
  %9980 = vadd.xlane.f32.xlu0 %v9979
  %v9981 = vpop.xlane.xlu0 %9980
  %v9982 = vsel %vm9783, %v9593, 0.0
  %9983 = vadd.xlane.f32.xlu0 %v9982
  %v9984 = vpop.xlane.xlu0 %9983
  %v9985 = vsel %vm9783, %v9594, 0.0
  %9986 = vadd.xlane.f32.xlu0 %v9985
  %v9987 = vpop.xlane.xlu0 %9986
  %v9988 = vsel %vm9783, %v9595, 0.0
  %9989 = vadd.xlane.f32.xlu0 %v9988
  %v9990 = vpop.xlane.xlu0 %9989
  %v9991 = vsel %vm9783, %v9596, 0.0
  %9992 = vadd.xlane.f32.xlu0 %v9991
  %v9993 = vpop.xlane.xlu0 %9992
  %v9994 = vsel %vm9783, %v9597, 0.0
  %9995 = vadd.xlane.f32.xlu0 %v9994
  %v9996 = vpop.xlane.xlu0 %9995
  %v9997 = vsel %vm9783, %v9598, 0.0
  %9998 = vadd.xlane.f32.xlu0 %v9997
  %v9999 = vpop.xlane.xlu0 %9998
  %v10000 = vsel %vm9783, %v9599, 0.0
  %10001 = vadd.xlane.f32.xlu0 %v10000
  %v10002 = vpop.xlane.xlu0 %10001
  %v10003 = vsel %vm9783, %v9600, 0.0
  %10004 = vadd.xlane.f32.xlu0 %v10003
  %v10005 = vpop.xlane.xlu0 %10004
  %v10006 = vsel %vm9783, %v9601, 0.0
  %10007 = vadd.xlane.f32.xlu0 %v10006
  %v10008 = vpop.xlane.xlu0 %10007
  %v10009 = vsel %vm9783, %v9602, 0.0
  %10010 = vadd.xlane.f32.xlu0 %v10009
  %v10011 = vpop.xlane.xlu0 %10010
  %v10012 = vsel %vm9783, %v9603, 0.0
  %10013 = vadd.xlane.f32.xlu0 %v10012
  %v10014 = vpop.xlane.xlu0 %10013
  %v10015 = vsel %vm9783, %v9604, 0.0
  %10016 = vadd.xlane.f32.xlu0 %v10015
  %v10017 = vpop.xlane.xlu0 %10016
  %v10018 = vsel %vm9783, %v9605, 0.0
  %10019 = vadd.xlane.f32.xlu0 %v10018
  %v10020 = vpop.xlane.xlu0 %10019
  %v10021 = vsel %vm9783, %v9606, 0.0
  %10022 = vadd.xlane.f32.xlu0 %v10021
  %v10023 = vpop.xlane.xlu0 %10022
  %v10024 = vsel %vm9783, %v9607, 0.0
  %10025 = vadd.xlane.f32.xlu0 %v10024
  %v10026 = vpop.xlane.xlu0 %10025
  %v10027 = vsel %vm9783, %v9608, 0.0
  %10028 = vadd.xlane.f32.xlu0 %v10027
  %v10029 = vpop.xlane.xlu0 %10028
  %v10030 = vsel %vm9783, %v9609, 0.0
  %10031 = vadd.xlane.f32.xlu0 %v10030
  %v10032 = vpop.xlane.xlu0 %10031
  %v10033 = vsel %vm9783, %v9610, 0.0
  %10034 = vadd.xlane.f32.xlu0 %v10033
  %v10035 = vpop.xlane.xlu0 %10034
  %v10036 = vsel %vm9783, %v9611, 0.0
  %10037 = vadd.xlane.f32.xlu0 %v10036
  %v10038 = vpop.xlane.xlu0 %10037
  %v10039 = vsel %vm9783, %v9612, 0.0
  %10040 = vadd.xlane.f32.xlu0 %v10039
  %v10041 = vpop.xlane.xlu0 %10040
  %v10042 = vsel %vm9783, %v9613, 0.0
  %10043 = vadd.xlane.f32.xlu0 %v10042
  %v10044 = vpop.xlane.xlu0 %10043
  %v10045 = vsel %vm9783, %v9614, 0.0
  %10046 = vadd.xlane.f32.xlu0 %v10045
  %v10047 = vpop.xlane.xlu0 %10046
  %v10048 = vsel %vm9783, %v9615, 0.0
  %10049 = vadd.xlane.f32.xlu0 %v10048
  %v10050 = vpop.xlane.xlu0 %10049
  %v10051 = vsel %vm9783, %v9616, 0.0
  %10052 = vadd.xlane.f32.xlu0 %v10051
  %v10053 = vpop.xlane.xlu0 %10052
  %v10054 = vsel %vm9783, %v9617, 0.0
  %10055 = vadd.xlane.f32.xlu0 %v10054
  %v10056 = vpop.xlane.xlu0 %10055
  %v10057 = vsel %vm9783, %v9618, 0.0
  %10058 = vadd.xlane.f32.xlu0 %v10057
  %v10059 = vpop.xlane.xlu0 %10058
  %v10060 = vsel %vm9783, %v9619, 0.0
  %10061 = vadd.xlane.f32.xlu0 %v10060
  %v10062 = vpop.xlane.xlu0 %10061
  %v10063 = vsel %vm9783, %v9620, 0.0
  %10064 = vadd.xlane.f32.xlu0 %v10063
  %v10065 = vpop.xlane.xlu0 %10064
  %v10066 = vsel %vm9783, %v9621, 0.0
  %10067 = vadd.xlane.f32.xlu0 %v10066
  %v10068 = vpop.xlane.xlu0 %10067
  %v10069 = vsel %vm9783, %v9622, 0.0
  %10070 = vadd.xlane.f32.xlu0 %v10069
  %v10071 = vpop.xlane.xlu0 %10070
  %v10072 = vsel %vm9783, %v9623, 0.0
  %10073 = vadd.xlane.f32.xlu0 %v10072
  %v10074 = vpop.xlane.xlu0 %10073
  %v10075 = vsel %vm9783, %v9624, 0.0
  %10076 = vadd.xlane.f32.xlu0 %v10075
  %v10077 = vpop.xlane.xlu0 %10076
  %v10078 = vsel %vm9783, %v9625, 0.0
  %10079 = vadd.xlane.f32.xlu0 %v10078
  %v10080 = vpop.xlane.xlu0 %10079
  %v10081 = vsel %vm9783, %v9626, 0.0
  %10082 = vadd.xlane.f32.xlu0 %v10081
  %v10083 = vpop.xlane.xlu0 %10082
  %v10084 = vsel %vm9783, %v9627, 0.0
  %10085 = vadd.xlane.f32.xlu0 %v10084
  %v10086 = vpop.xlane.xlu0 %10085
  %v10087 = vsel %vm9783, %v9628, 0.0
  %10088 = vadd.xlane.f32.xlu0 %v10087
  %v10089 = vpop.xlane.xlu0 %10088
  %v10090 = vsel %vm9783, %v9629, 0.0
  %10091 = vadd.xlane.f32.xlu0 %v10090
  %v10092 = vpop.xlane.xlu0 %10091
  %v10093 = vsel %vm9783, %v9630, 0.0
  %10094 = vadd.xlane.f32.xlu0 %v10093
  %v10095 = vpop.xlane.xlu0 %10094
  %v10096 = vsel %vm9783, %v9631, 0.0
  %10097 = vadd.xlane.f32.xlu0 %v10096
  %v10098 = vpop.xlane.xlu0 %10097
  %v10099 = vsel %vm9783, %v9632, 0.0
  %10100 = vadd.xlane.f32.xlu0 %v10099
  %v10101 = vpop.xlane.xlu0 %10100
  %v10102 = vsel %vm9783, %v9633, 0.0
  %10103 = vadd.xlane.f32.xlu0 %v10102
  %v10104 = vpop.xlane.xlu0 %10103
  %v10105 = vsel %vm9783, %v9634, 0.0
  %10106 = vadd.xlane.f32.xlu0 %v10105
  %v10107 = vpop.xlane.xlu0 %10106
  %v10108 = vsel %vm9783, %v9635, 0.0
  %10109 = vadd.xlane.f32.xlu0 %v10108
  %v10110 = vpop.xlane.xlu0 %10109
  %v10111 = vsel %vm9783, %v9636, 0.0
  %10112 = vadd.xlane.f32.xlu0 %v10111
  %v10113 = vpop.xlane.xlu0 %10112
  %v10114 = vsel %vm9783, %v9637, 0.0
  %10115 = vadd.xlane.f32.xlu0 %v10114
  %v10116 = vpop.xlane.xlu0 %10115
  %v10117 = vsel %vm9783, %v9638, 0.0
  %10118 = vadd.xlane.f32.xlu0 %v10117
  %v10119 = vpop.xlane.xlu0 %10118
  %v10120 = vsel %vm9783, %v9639, 0.0
  %10121 = vadd.xlane.f32.xlu0 %v10120
  %v10122 = vpop.xlane.xlu0 %10121
  %v10123 = vsel %vm9783, %v9640, 0.0
  %10124 = vadd.xlane.f32.xlu0 %v10123
  %v10125 = vpop.xlane.xlu0 %10124
  %v10126 = vsel %vm9783, %v9641, 0.0
  %10127 = vadd.xlane.f32.xlu0 %v10126
  %v10128 = vpop.xlane.xlu0 %10127
  %v10129 = vsel %vm9783, %v9642, 0.0
  %10130 = vadd.xlane.f32.xlu0 %v10129
  %v10131 = vpop.xlane.xlu0 %10130
  %v10132 = vsel %vm9783, %v9643, 0.0
  %10133 = vadd.xlane.f32.xlu0 %v10132
  %v10134 = vpop.xlane.xlu0 %10133
  %v10135 = vsel %vm9783, %v9644, 0.0
  %10136 = vadd.xlane.f32.xlu0 %v10135
  %v10137 = vpop.xlane.xlu0 %10136
  %v10138 = vsel %vm9783, %v9645, 0.0
  %10139 = vadd.xlane.f32.xlu0 %v10138
  %v10140 = vpop.xlane.xlu0 %10139
  %v10141 = vsel %vm9783, %v9646, 0.0
  %10142 = vadd.xlane.f32.xlu0 %v10141
  %v10143 = vpop.xlane.xlu0 %10142
  %v10144 = vsel %vm9783, %v9647, 0.0
  %10145 = vadd.xlane.f32.xlu0 %v10144
  %v10146 = vpop.xlane.xlu0 %10145
  %v10147 = vsel %vm9783, %v9648, 0.0
  %10148 = vadd.xlane.f32.xlu0 %v10147
  %v10149 = vpop.xlane.xlu0 %10148
  %v10150 = vsel %vm9783, %v9649, 0.0
  %10151 = vadd.xlane.f32.xlu0 %v10150
  %v10152 = vpop.xlane.xlu0 %10151
  %v10153 = vsel %vm9783, %v9650, 0.0
  %10154 = vadd.xlane.f32.xlu0 %v10153
  %v10155 = vpop.xlane.xlu0 %10154
  %v10156 = vsel %vm9783, %v9651, 0.0
  %10157 = vadd.xlane.f32.xlu0 %v10156
  %v10158 = vpop.xlane.xlu0 %10157
  %v10159 = vsel %vm9783, %v9652, 0.0
  %10160 = vadd.xlane.f32.xlu0 %v10159
  %v10161 = vpop.xlane.xlu0 %10160
  %v10162 = vsel %vm9783, %v9653, 0.0
  %10163 = vadd.xlane.f32.xlu0 %v10162
  %v10164 = vpop.xlane.xlu0 %10163
  %v10165 = vsel %vm9783, %v9654, 0.0
  %10166 = vadd.xlane.f32.xlu0 %v10165
  %v10167 = vpop.xlane.xlu0 %10166
  %v10168 = vsel %vm9783, %v9655, 0.0
  %10169 = vadd.xlane.f32.xlu0 %v10168
  %v10170 = vpop.xlane.xlu0 %10169
  %v10171 = vsel %vm9783, %v9656, 0.0
  %10172 = vadd.xlane.f32.xlu0 %v10171
  %v10173 = vpop.xlane.xlu0 %10172
  %v10174 = vsel %vm9783, %v9657, 0.0
  %10175 = vadd.xlane.f32.xlu0 %v10174
  %v10176 = vpop.xlane.xlu0 %10175
  %v10177 = vsel %vm9783, %v9658, 0.0
  %10178 = vadd.xlane.f32.xlu0 %v10177
  %v10179 = vpop.xlane.xlu0 %10178
  %v10180 = vsel %vm9783, %v9659, 0.0
  %10181 = vadd.xlane.f32.xlu0 %v10180
  %v10182 = vpop.xlane.xlu0 %10181
  %v10183 = vsel %vm9783, %v9660, 0.0
  %10184 = vadd.xlane.f32.xlu0 %v10183
  %v10185 = vpop.xlane.xlu0 %10184
  %v10186 = vsel %vm9783, %v9661, 0.0
  %10187 = vadd.xlane.f32.xlu0 %v10186
  %v10188 = vpop.xlane.xlu0 %10187
  %v10189 = vsel %vm9783, %v9662, 0.0
  %10190 = vadd.xlane.f32.xlu0 %v10189
  %v10191 = vpop.xlane.xlu0 %10190
  %v10192 = vsel %vm9783, %v9663, 0.0
  %10193 = vadd.xlane.f32.xlu0 %v10192
  %v10194 = vpop.xlane.xlu0 %10193
  %v10195 = vsel %vm9783, %v9664, 0.0
  %10196 = vadd.xlane.f32.xlu0 %v10195
  %v10197 = vpop.xlane.xlu0 %10196
  %v10198 = vsel %vm9783, %v9665, 0.0
  %10199 = vadd.xlane.f32.xlu0 %v10198
  %v10200 = vpop.xlane.xlu0 %10199
  %v10201 = vsel %vm9783, %v9666, 0.0
  %10202 = vadd.xlane.f32.xlu0 %v10201
  %v10203 = vpop.xlane.xlu0 %10202
  %v10204 = vsel %vm9783, %v9667, 0.0
  %10205 = vadd.xlane.f32.xlu0 %v10204
  %v10206 = vpop.xlane.xlu0 %10205
  %v10207 = vsel %vm9783, %v9668, 0.0
  %10208 = vadd.xlane.f32.xlu0 %v10207
  %v10209 = vpop.xlane.xlu0 %10208
  %v10210 = vsel %vm9783, %v9669, 0.0
  %10211 = vadd.xlane.f32.xlu0 %v10210
  %v10212 = vpop.xlane.xlu0 %10211
  %v10213 = vsel %vm9783, %v9670, 0.0
  %10214 = vadd.xlane.f32.xlu0 %v10213
  %v10215 = vpop.xlane.xlu0 %10214
  %v10216 = vsel %vm9783, %v9671, 0.0
  %10217 = vadd.xlane.f32.xlu0 %v10216
  %v10218 = vpop.xlane.xlu0 %10217
  %v10219 = vsel %vm9783, %v9672, 0.0
  %10220 = vadd.xlane.f32.xlu0 %v10219
  %v10221 = vpop.xlane.xlu0 %10220
  %v10222 = vsel %vm9783, %v9673, 0.0
  %10223 = vadd.xlane.f32.xlu0 %v10222
  %v10224 = vpop.xlane.xlu0 %10223
  %v10225 = vsel %vm9783, %v9674, 0.0
  %10226 = vadd.xlane.f32.xlu0 %v10225
  %v10227 = vpop.xlane.xlu0 %10226
  %v10228 = vsel %vm9783, %v9675, 0.0
  %10229 = vadd.xlane.f32.xlu0 %v10228
  %v10230 = vpop.xlane.xlu0 %10229
  %v10231 = vsel %vm9783, %v9676, 0.0
  %10232 = vadd.xlane.f32.xlu0 %v10231
  %v10233 = vpop.xlane.xlu0 %10232
  %v10234 = vsel %vm9783, %v9677, 0.0
  %10235 = vadd.xlane.f32.xlu0 %v10234
  %v10236 = vpop.xlane.xlu0 %10235
  %v10237 = vsel %vm9783, %v9678, 0.0
  %10238 = vadd.xlane.f32.xlu0 %v10237
  %v10239 = vpop.xlane.xlu0 %10238
  %v10240 = vsel %vm9783, %v9679, 0.0
  %10241 = vadd.xlane.f32.xlu0 %v10240
  %v10242 = vpop.xlane.xlu0 %10241
  %v10243 = vsel %vm9783, %v9680, 0.0
  %10244 = vadd.xlane.f32.xlu0 %v10243
  %v10245 = vpop.xlane.xlu0 %10244
  %v10246 = vsel %vm9783, %v9681, 0.0
  %10247 = vadd.xlane.f32.xlu0 %v10246
  %v10248 = vpop.xlane.xlu0 %10247
  %v10249 = vsel %vm9783, %v9682, 0.0
  %10250 = vadd.xlane.f32.xlu0 %v10249
  %v10251 = vpop.xlane.xlu0 %10250
  %v10252 = vsel %vm9783, %v9683, 0.0
  %10253 = vadd.xlane.f32.xlu0 %v10252
  %v10254 = vpop.xlane.xlu0 %10253
  %v10255 = vsel %vm9783, %v9684, 0.0
  %10256 = vadd.xlane.f32.xlu0 %v10255
  %v10257 = vpop.xlane.xlu0 %10256
  %v10258 = vsel %vm9783, %v9685, 0.0
  %10259 = vadd.xlane.f32.xlu0 %v10258
  %v10260 = vpop.xlane.xlu0 %10259
  %v10261 = vsel %vm9783, %v9686, 0.0
  %10262 = vadd.xlane.f32.xlu0 %v10261
  %v10263 = vpop.xlane.xlu0 %10262
  %v10264 = vsel %vm9783, %v9687, 0.0
  %10265 = vadd.xlane.f32.xlu0 %v10264
  %v10266 = vpop.xlane.xlu0 %10265
  %v10267 = vsel %vm9783, %v9688, 0.0
  %10268 = vadd.xlane.f32.xlu0 %v10267
  %v10269 = vpop.xlane.xlu0 %10268
  %v10270 = vsel %vm9783, %v9689, 0.0
  %10271 = vadd.xlane.f32.xlu0 %v10270
  %v10272 = vpop.xlane.xlu0 %10271
  %v10273 = vsel %vm9783, %v9690, 0.0
  %10274 = vadd.xlane.f32.xlu0 %v10273
  %v10275 = vpop.xlane.xlu0 %10274
  %v10276 = vsel %vm9783, %v9691, 0.0
  %10277 = vadd.xlane.f32.xlu0 %v10276
  %v10278 = vpop.xlane.xlu0 %10277
  %v10279 = vsel %vm9783, %v9692, 0.0
  %10280 = vadd.xlane.f32.xlu0 %v10279
  %v10281 = vpop.xlane.xlu0 %10280
  %v10282 = vsel %vm9783, %v9693, 0.0
  %10283 = vadd.xlane.f32.xlu0 %v10282
  %v10284 = vpop.xlane.xlu0 %10283
  %v10285 = vsel %vm9783, %v9694, 0.0
  %10286 = vadd.xlane.f32.xlu0 %v10285
  %v10287 = vpop.xlane.xlu0 %10286
  %v10288 = vsel %vm9783, %v9695, 0.0
  %10289 = vadd.xlane.f32.xlu0 %v10288
  %v10290 = vpop.xlane.xlu0 %10289
  %v10291 = vsel %vm9783, %v9696, 0.0
  %10292 = vadd.xlane.f32.xlu0 %v10291
  %v10293 = vpop.xlane.xlu0 %10292
  %v10294 = vsel %vm9783, %v9697, 0.0
  %10295 = vadd.xlane.f32.xlu0 %v10294
  %v10296 = vpop.xlane.xlu0 %10295
  %v10297 = vsel %vm9783, %v9698, 0.0
  %10298 = vadd.xlane.f32.xlu0 %v10297
  %v10299 = vpop.xlane.xlu0 %10298
  %v10300 = vsel %vm9783, %v9699, 0.0
  %10301 = vadd.xlane.f32.xlu0 %v10300
  %v10302 = vpop.xlane.xlu0 %10301
  %v10303 = vsel %vm9783, %v9700, 0.0
  %10304 = vadd.xlane.f32.xlu0 %v10303
  %v10305 = vpop.xlane.xlu0 %10304
  %v10306 = vsel %vm9783, %v9701, 0.0
  %10307 = vadd.xlane.f32.xlu0 %v10306
  %v10308 = vpop.xlane.xlu0 %10307
  %v10309 = vsel %vm9783, %v9702, 0.0
  %10310 = vadd.xlane.f32.xlu0 %v10309
  %v10311 = vpop.xlane.xlu0 %10310
  %v10312 = vsel %vm9783, %v9703, 0.0
  %10313 = vadd.xlane.f32.xlu0 %v10312
  %v10314 = vpop.xlane.xlu0 %10313
  %v10315 = vsel %vm9783, %v9704, 0.0
  %10316 = vadd.xlane.f32.xlu0 %v10315
  %v10317 = vpop.xlane.xlu0 %10316
  %v10318 = vsel %vm9783, %v9705, 0.0
  %10319 = vadd.xlane.f32.xlu0 %v10318
  %v10320 = vpop.xlane.xlu0 %10319
  %v10321 = vsel %vm9783, %v9706, 0.0
  %10322 = vadd.xlane.f32.xlu0 %v10321
  %v10323 = vpop.xlane.xlu0 %10322
  %v10324 = vsel %vm9783, %v9707, 0.0
  %10325 = vadd.xlane.f32.xlu0 %v10324
  %v10326 = vpop.xlane.xlu0 %10325
  %v10327 = vsel %vm9783, %v9708, 0.0
  %10328 = vadd.xlane.f32.xlu0 %v10327
  %v10329 = vpop.xlane.xlu0 %10328
  %v10330 = vsel %vm9783, %v9709, 0.0
  %10331 = vadd.xlane.f32.xlu0 %v10330
  %v10332 = vpop.xlane.xlu0 %10331
  %v10333 = vsel %vm9783, %v9710, 0.0
  %10334 = vadd.xlane.f32.xlu0 %v10333
  %v10335 = vpop.xlane.xlu0 %10334
  %v10336 = vsel %vm9783, %v9711, 0.0
  %10337 = vadd.xlane.f32.xlu0 %v10336
  %v10338 = vpop.xlane.xlu0 %10337
  %v10339 = vsel %vm9783, %v9712, 0.0
  %10340 = vadd.xlane.f32.xlu0 %v10339
  %v10341 = vpop.xlane.xlu0 %10340
  %v10342 = vsel %vm9783, %v9713, 0.0
  %10343 = vadd.xlane.f32.xlu0 %v10342
  %v10344 = vpop.xlane.xlu0 %10343
  %v10345 = vsel %vm9783, %v9714, 0.0
  %10346 = vadd.xlane.f32.xlu0 %v10345
  %v10347 = vpop.xlane.xlu0 %10346
  %v10348 = vsel %vm9783, %v9715, 0.0
  %10349 = vadd.xlane.f32.xlu0 %v10348
  %v10350 = vpop.xlane.xlu0 %10349
  %v10351 = vsel %vm9783, %v9716, 0.0
  %10352 = vadd.xlane.f32.xlu0 %v10351
  %v10353 = vpop.xlane.xlu0 %10352
  %v10354 = vsel %vm9783, %v9717, 0.0
  %10355 = vadd.xlane.f32.xlu0 %v10354
  %v10356 = vpop.xlane.xlu0 %10355
  %v10357 = vsel %vm9783, %v9718, 0.0
  %10358 = vadd.xlane.f32.xlu0 %v10357
  %v10359 = vpop.xlane.xlu0 %10358
  %v10360 = vsel %vm9783, %v9719, 0.0
  %10361 = vadd.xlane.f32.xlu0 %v10360
  %v10362 = vpop.xlane.xlu0 %10361
  %v10363 = vsel %vm9783, %v9720, 0.0
  %10364 = vadd.xlane.f32.xlu0 %v10363
  %v10365 = vpop.xlane.xlu0 %10364
  %v10366 = vsel %vm9783, %v9721, 0.0
  %10367 = vadd.xlane.f32.xlu0 %v10366
  %v10368 = vpop.xlane.xlu0 %10367
  %v10369 = vsel %vm9783, %v9722, 0.0
  %10370 = vadd.xlane.f32.xlu0 %v10369
  %v10371 = vpop.xlane.xlu0 %10370
  %v10372 = vsel %vm9783, %v9723, 0.0
  %10373 = vadd.xlane.f32.xlu0 %v10372
  %v10374 = vpop.xlane.xlu0 %10373
  %v10375 = vsel %vm9783, %v9724, 0.0
  %10376 = vadd.xlane.f32.xlu0 %v10375
  %v10377 = vpop.xlane.xlu0 %10376
  %v10378 = vsel %vm9783, %v9725, 0.0
  %10379 = vadd.xlane.f32.xlu0 %v10378
  %v10380 = vpop.xlane.xlu0 %10379
  %v10381 = vsel %vm9783, %v9726, 0.0
  %10382 = vadd.xlane.f32.xlu0 %v10381
  %v10383 = vpop.xlane.xlu0 %10382
  %v10384 = vsel %vm9783, %v9727, 0.0
  %10385 = vadd.xlane.f32.xlu0 %v10384
  %v10386 = vpop.xlane.xlu0 %10385
  %v10387 = vsel %vm9783, %v9728, 0.0
  %10388 = vadd.xlane.f32.xlu0 %v10387
  %v10389 = vpop.xlane.xlu0 %10388
  %v10390 = vsel %vm9783, %v9729, 0.0
  %10391 = vadd.xlane.f32.xlu0 %v10390
  %v10392 = vpop.xlane.xlu0 %10391
  %v10393 = vsel %vm9783, %v9730, 0.0
  %10394 = vadd.xlane.f32.xlu0 %v10393
  %v10395 = vpop.xlane.xlu0 %10394
  %v10396 = vsel %vm9783, %v9731, 0.0
  %10397 = vadd.xlane.f32.xlu0 %v10396
  %v10398 = vpop.xlane.xlu0 %10397
  %v10399 = vsel %vm9783, %v9732, 0.0
  %10400 = vadd.xlane.f32.xlu0 %v10399
  %v10401 = vpop.xlane.xlu0 %10400
  %v10402 = vsel %vm9783, %v9733, 0.0
  %10403 = vadd.xlane.f32.xlu0 %v10402
  %v10404 = vpop.xlane.xlu0 %10403
  %v10405 = vsel %vm9783, %v9734, 0.0
  %10406 = vadd.xlane.f32.xlu0 %v10405
  %v10407 = vpop.xlane.xlu0 %10406
  %v10408 = vsel %vm9783, %v9735, 0.0
  %10409 = vadd.xlane.f32.xlu0 %v10408
  %v10410 = vpop.xlane.xlu0 %10409
  %v10411 = vsel %vm9783, %v9736, 0.0
  %10412 = vadd.xlane.f32.xlu0 %v10411
  %v10413 = vpop.xlane.xlu0 %10412
  %v10414 = vsel %vm9783, %v9737, 0.0
  %10415 = vadd.xlane.f32.xlu0 %v10414
  %v10416 = vpop.xlane.xlu0 %10415
  %v10417 = vsel %vm9783, %v9738, 0.0
  %10418 = vadd.xlane.f32.xlu0 %v10417
  %v10419 = vpop.xlane.xlu0 %10418
  %v10420 = vsel %vm9783, %v9739, 0.0
  %10421 = vadd.xlane.f32.xlu0 %v10420
  %v10422 = vpop.xlane.xlu0 %10421
  %v10423 = vsel %vm9783, %v9740, 0.0
  %10424 = vadd.xlane.f32.xlu0 %v10423
  %v10425 = vpop.xlane.xlu0 %10424
  %v10426 = vsel %vm9783, %v9741, 0.0
  %10427 = vadd.xlane.f32.xlu0 %v10426
  %v10428 = vpop.xlane.xlu0 %10427
  %v10429 = vsel %vm9783, %v9742, 0.0
  %10430 = vadd.xlane.f32.xlu0 %v10429
  %v10431 = vpop.xlane.xlu0 %10430
  %v10432 = vsel %vm9783, %v9743, 0.0
  %10433 = vadd.xlane.f32.xlu0 %v10432
  %v10434 = vpop.xlane.xlu0 %10433
  %v10435 = vsel %vm9783, %v9744, 0.0
  %10436 = vadd.xlane.f32.xlu0 %v10435
  %v10437 = vpop.xlane.xlu0 %10436
  %v10438 = vsel %vm9783, %v9745, 0.0
  %10439 = vadd.xlane.f32.xlu0 %v10438
  %v10440 = vpop.xlane.xlu0 %10439
  %v10441 = vsel %vm9783, %v9746, 0.0
  %10442 = vadd.xlane.f32.xlu0 %v10441
  %v10443 = vpop.xlane.xlu0 %10442
  %v10444 = vsel %vm9783, %v9747, 0.0
  %10445 = vadd.xlane.f32.xlu0 %v10444
  %v10446 = vpop.xlane.xlu0 %10445
  %v10447 = vsel %vm9783, %v9748, 0.0
  %10448 = vadd.xlane.f32.xlu0 %v10447
  %v10449 = vpop.xlane.xlu0 %10448
  %v10450 = vsel %vm9783, %v9749, 0.0
  %10451 = vadd.xlane.f32.xlu0 %v10450
  %v10452 = vpop.xlane.xlu0 %10451
  %v10453 = vsel %vm9783, %v9750, 0.0
  %10454 = vadd.xlane.f32.xlu0 %v10453
  %v10455 = vpop.xlane.xlu0 %10454
  %v10456 = vsel %vm9783, %v9751, 0.0
  %10457 = vadd.xlane.f32.xlu0 %v10456
  %v10458 = vpop.xlane.xlu0 %10457
  %v10459 = vsel %vm9783, %v9752, 0.0
  %10460 = vadd.xlane.f32.xlu0 %v10459
  %v10461 = vpop.xlane.xlu0 %10460
  %v10462 = vsel %vm9783, %v9753, 0.0
  %10463 = vadd.xlane.f32.xlu0 %v10462
  %v10464 = vpop.xlane.xlu0 %10463
  %v10465 = vsel %vm9783, %v9754, 0.0
  %10466 = vadd.xlane.f32.xlu0 %v10465
  %v10467 = vpop.xlane.xlu0 %10466
  %v10468 = vsel %vm9783, %v9755, 0.0
  %10469 = vadd.xlane.f32.xlu0 %v10468
  %v10470 = vpop.xlane.xlu0 %10469
  %v10471 = vsel %vm9783, %v9756, 0.0
  %10472 = vadd.xlane.f32.xlu0 %v10471
  %v10473 = vpop.xlane.xlu0 %10472
  %v10474 = vsel %vm9783, %v9757, 0.0
  %10475 = vadd.xlane.f32.xlu0 %v10474
  %v10476 = vpop.xlane.xlu0 %10475
  %v10477 = vsel %vm9783, %v9758, 0.0
  %10478 = vadd.xlane.f32.xlu0 %v10477
  %v10479 = vpop.xlane.xlu0 %10478
  %v10480 = vsel %vm9783, %v9759, 0.0
  %10481 = vadd.xlane.f32.xlu0 %v10480
  %v10482 = vpop.xlane.xlu0 %10481
  %v10483 = vsel %vm9783, %v9760, 0.0
  %10484 = vadd.xlane.f32.xlu0 %v10483
  %v10485 = vpop.xlane.xlu0 %10484
  %v10486 = vsel %vm9783, %v9761, 0.0
  %10487 = vadd.xlane.f32.xlu0 %v10486
  %v10488 = vpop.xlane.xlu0 %10487
  %v10489 = vsel %vm9783, %v9762, 0.0
  %10490 = vadd.xlane.f32.xlu0 %v10489
  %v10491 = vpop.xlane.xlu0 %10490
  %v10492 = vsel %vm9783, %v9763, 0.0
  %10493 = vadd.xlane.f32.xlu0 %v10492
  %v10494 = vpop.xlane.xlu0 %10493
  %v10495 = vsel %vm9783, %v9764, 0.0
  %10496 = vadd.xlane.f32.xlu0 %v10495
  %v10497 = vpop.xlane.xlu0 %10496
  %v10498 = vsel %vm9783, %v9765, 0.0
  %10499 = vadd.xlane.f32.xlu0 %v10498
  %v10500 = vpop.xlane.xlu0 %10499
  %v10501 = vsel %vm9783, %v9766, 0.0
  %10502 = vadd.xlane.f32.xlu0 %v10501
  %v10503 = vpop.xlane.xlu0 %10502
  %v10504 = vsel %vm9783, %v9767, 0.0
  %10505 = vadd.xlane.f32.xlu0 %v10504
  %v10506 = vpop.xlane.xlu0 %10505
  %v10507 = vsel %vm9783, %v9768, 0.0
  %10508 = vadd.xlane.f32.xlu0 %v10507
  %v10509 = vpop.xlane.xlu0 %10508
  %v10510 = vsel %vm9783, %v9769, 0.0
  %10511 = vadd.xlane.f32.xlu0 %v10510
  %v10512 = vpop.xlane.xlu0 %10511
  %v10513 = vsel %vm9783, %v9770, 0.0
  %10514 = vadd.xlane.f32.xlu0 %v10513
  %v10515 = vpop.xlane.xlu0 %10514
  %v10516 = vsel %vm9783, %v9771, 0.0
  %10517 = vadd.xlane.f32.xlu0 %v10516
  %v10518 = vpop.xlane.xlu0 %10517
  %v10519 = vsel %vm9783, %v9772, 0.0
  %10520 = vadd.xlane.f32.xlu0 %v10519
  %v10521 = vpop.xlane.xlu0 %10520
  %v10522 = vsel %vm9783, %v9773, 0.0
  %10523 = vadd.xlane.f32.xlu0 %v10522
  %v10524 = vpop.xlane.xlu0 %10523
  %v10525 = vsel %vm9783, %v9774, 0.0
  %10526 = vadd.xlane.f32.xlu0 %v10525
  %v10527 = vpop.xlane.xlu0 %10526
  %v10528 = vsel %vm9783, %v9775, 0.0
  %10529 = vadd.xlane.f32.xlu0 %v10528
  %v10530 = vpop.xlane.xlu0 %10529
  %v10531 = vsel %vm9783, %v9776, 0.0
  %10532 = vadd.xlane.f32.xlu0 %v10531
  %v10533 = vpop.xlane.xlu0 %10532
  %v10534 = vsel %vm9783, %v9777, 0.0
  %10535 = vadd.xlane.f32.xlu0 %v10534
  %v10536 = vpop.xlane.xlu0 %10535
  %v10537 = vsel %vm9783, %v9778, 0.0
  %10538 = vadd.xlane.f32.xlu0 %v10537
  %v10539 = vpop.xlane.xlu0 %10538
  %v10540 = vsel %vm9783, %v9779, 0.0
  %10541 = vadd.xlane.f32.xlu0 %v10540
  %v10542 = vpop.xlane.xlu0 %10541
  %v10543 = vsel %vm9783, %v9780, 0.0
  %10544 = vadd.xlane.f32.xlu0 %v10543
  %v10545 = vpop.xlane.xlu0 %10544
  %v10546 = vsel %vm9783, %v9781, 0.0
  %10547 = vadd.xlane.f32.xlu0 %v10546
  %v10548 = vpop.xlane.xlu0 %10547
  %v10549 = vsel %vm9783, %v9782, 0.0
  %10550 = vadd.xlane.f32.xlu0 %v10549
  %v10551 = vpop.xlane.xlu0 %10550
  %v10552 = vadd.f32 %v8754, %v9786
  %v10553 = vadd.f32 %v8757, %v9789
  %v10554 = vadd.f32 %v8760, %v9792
  %v10555 = vadd.f32 %v8763, %v9795
  %v10556 = vadd.f32 %v8766, %v9798
  %v10557 = vadd.f32 %v8769, %v9801
  %v10558 = vadd.f32 %v8772, %v9804
  %v10559 = vadd.f32 %v8775, %v9807
  %v10560 = vadd.f32 %v8778, %v9810
  %v10561 = vadd.f32 %v8781, %v9813
  %v10562 = vadd.f32 %v8784, %v9816
  %v10563 = vadd.f32 %v8787, %v9819
  %v10564 = vadd.f32 %v8790, %v9822
  %v10565 = vadd.f32 %v8793, %v9825
  %v10566 = vadd.f32 %v8796, %v9828
  %v10567 = vadd.f32 %v8799, %v9831
  %v10568 = vadd.f32 %v8802, %v9834
  %v10569 = vadd.f32 %v8805, %v9837
  %v10570 = vadd.f32 %v8808, %v9840
  %v10571 = vadd.f32 %v8811, %v9843
  %v10572 = vadd.f32 %v8814, %v9846
  %v10573 = vadd.f32 %v8817, %v9849
  %v10574 = vadd.f32 %v8820, %v9852
  %v10575 = vadd.f32 %v8823, %v9855
  %v10576 = vadd.f32 %v8826, %v9858
  %v10577 = vadd.f32 %v8829, %v9861
  %v10578 = vadd.f32 %v8832, %v9864
  %v10579 = vadd.f32 %v8835, %v9867
  %v10580 = vadd.f32 %v8838, %v9870
  %v10581 = vadd.f32 %v8841, %v9873
  %v10582 = vadd.f32 %v8844, %v9876
  %v10583 = vadd.f32 %v8847, %v9879
  %v10584 = vadd.f32 %v8850, %v9882
  %v10585 = vadd.f32 %v8853, %v9885
  %v10586 = vadd.f32 %v8856, %v9888
  %v10587 = vadd.f32 %v8859, %v9891
  %v10588 = vadd.f32 %v8862, %v9894
  %v10589 = vadd.f32 %v8865, %v9897
  %v10590 = vadd.f32 %v8868, %v9900
  %v10591 = vadd.f32 %v8871, %v9903
  %v10592 = vadd.f32 %v8874, %v9906
  %v10593 = vadd.f32 %v8877, %v9909
  %v10594 = vadd.f32 %v8880, %v9912
  %v10595 = vadd.f32 %v8883, %v9915
  %v10596 = vadd.f32 %v8886, %v9918
  %v10597 = vadd.f32 %v8889, %v9921
  %v10598 = vadd.f32 %v8892, %v9924
  %v10599 = vadd.f32 %v8895, %v9927
  %v10600 = vadd.f32 %v8898, %v9930
  %v10601 = vadd.f32 %v8901, %v9933
  %v10602 = vadd.f32 %v8904, %v9936
  %v10603 = vadd.f32 %v8907, %v9939
  %v10604 = vadd.f32 %v8910, %v9942
  %v10605 = vadd.f32 %v8913, %v9945
  %v10606 = vadd.f32 %v8916, %v9948
  %v10607 = vadd.f32 %v8919, %v9951
  %v10608 = vadd.f32 %v8922, %v9954
  %v10609 = vadd.f32 %v8925, %v9957
  %v10610 = vadd.f32 %v8928, %v9960
  %v10611 = vadd.f32 %v8931, %v9963
  %v10612 = vadd.f32 %v8934, %v9966
  %v10613 = vadd.f32 %v8937, %v9969
  %v10614 = vadd.f32 %v8940, %v9972
  %v10615 = vadd.f32 %v8943, %v9975
  %v10616 = vadd.f32 %v8946, %v9978
  %v10617 = vadd.f32 %v8949, %v9981
  %v10618 = vadd.f32 %v8952, %v9984
  %v10619 = vadd.f32 %v8955, %v9987
  %v10620 = vadd.f32 %v8958, %v9990
  %v10621 = vadd.f32 %v8961, %v9993
  %v10622 = vadd.f32 %v8964, %v9996
  %v10623 = vadd.f32 %v8967, %v9999
  %v10624 = vadd.f32 %v8970, %v10002
  %v10625 = vadd.f32 %v8973, %v10005
  %v10626 = vadd.f32 %v8976, %v10008
  %v10627 = vadd.f32 %v8979, %v10011
  %v10628 = vadd.f32 %v8982, %v10014
  %v10629 = vadd.f32 %v8985, %v10017
  %v10630 = vadd.f32 %v8988, %v10020
  %v10631 = vadd.f32 %v8991, %v10023
  %v10632 = vadd.f32 %v8994, %v10026
  %v10633 = vadd.f32 %v8997, %v10029
  %v10634 = vadd.f32 %v9000, %v10032
  %v10635 = vadd.f32 %v9003, %v10035
  %v10636 = vadd.f32 %v9006, %v10038
  %v10637 = vadd.f32 %v9009, %v10041
  %v10638 = vadd.f32 %v9012, %v10044
  %v10639 = vadd.f32 %v9015, %v10047
  %v10640 = vadd.f32 %v9018, %v10050
  %v10641 = vadd.f32 %v9021, %v10053
  %v10642 = vadd.f32 %v9024, %v10056
  %v10643 = vadd.f32 %v9027, %v10059
  %v10644 = vadd.f32 %v9030, %v10062
  %v10645 = vadd.f32 %v9033, %v10065
  %v10646 = vadd.f32 %v9036, %v10068
  %v10647 = vadd.f32 %v9039, %v10071
  %v10648 = vadd.f32 %v9042, %v10074
  %v10649 = vadd.f32 %v9045, %v10077
  %v10650 = vadd.f32 %v9048, %v10080
  %v10651 = vadd.f32 %v9051, %v10083
  %v10652 = vadd.f32 %v9054, %v10086
  %v10653 = vadd.f32 %v9057, %v10089
  %v10654 = vadd.f32 %v9060, %v10092
  %v10655 = vadd.f32 %v9063, %v10095
  %v10656 = vadd.f32 %v9066, %v10098
  %v10657 = vadd.f32 %v9069, %v10101
  %v10658 = vadd.f32 %v9072, %v10104
  %v10659 = vadd.f32 %v9075, %v10107
  %v10660 = vadd.f32 %v9078, %v10110
  %v10661 = vadd.f32 %v9081, %v10113
  %v10662 = vadd.f32 %v9084, %v10116
  %v10663 = vadd.f32 %v9087, %v10119
  %v10664 = vadd.f32 %v9090, %v10122
  %v10665 = vadd.f32 %v9093, %v10125
  %v10666 = vadd.f32 %v9096, %v10128
  %v10667 = vadd.f32 %v9099, %v10131
  %v10668 = vadd.f32 %v9102, %v10134
  %v10669 = vadd.f32 %v9105, %v10137
  %v10670 = vadd.f32 %v9108, %v10140
  %v10671 = vadd.f32 %v9111, %v10143
  %v10672 = vadd.f32 %v9114, %v10146
  %v10673 = vadd.f32 %v9117, %v10149
  %v10674 = vadd.f32 %v9120, %v10152
  %v10675 = vadd.f32 %v9123, %v10155
  %v10676 = vadd.f32 %v9126, %v10158
  %v10677 = vadd.f32 %v9129, %v10161
  %v10678 = vadd.f32 %v9132, %v10164
  %v10679 = vadd.f32 %v9135, %v10167
  %v10680 = vadd.f32 %v9138, %v10170
  %v10681 = vadd.f32 %v9141, %v10173
  %v10682 = vadd.f32 %v9144, %v10176
  %v10683 = vadd.f32 %v9147, %v10179
  %v10684 = vadd.f32 %v9150, %v10182
  %v10685 = vadd.f32 %v9153, %v10185
  %v10686 = vadd.f32 %v9156, %v10188
  %v10687 = vadd.f32 %v9159, %v10191
  %v10688 = vadd.f32 %v9162, %v10194
  %v10689 = vadd.f32 %v9165, %v10197
  %v10690 = vadd.f32 %v9168, %v10200
  %v10691 = vadd.f32 %v9171, %v10203
  %v10692 = vadd.f32 %v9174, %v10206
  %v10693 = vadd.f32 %v9177, %v10209
  %v10694 = vadd.f32 %v9180, %v10212
  %v10695 = vadd.f32 %v9183, %v10215
  %v10696 = vadd.f32 %v9186, %v10218
  %v10697 = vadd.f32 %v9189, %v10221
  %v10698 = vadd.f32 %v9192, %v10224
  %v10699 = vadd.f32 %v9195, %v10227
  %v10700 = vadd.f32 %v9198, %v10230
  %v10701 = vadd.f32 %v9201, %v10233
  %v10702 = vadd.f32 %v9204, %v10236
  %v10703 = vadd.f32 %v9207, %v10239
  %v10704 = vadd.f32 %v9210, %v10242
  %v10705 = vadd.f32 %v9213, %v10245
  %v10706 = vadd.f32 %v9216, %v10248
  %v10707 = vadd.f32 %v9219, %v10251
  %v10708 = vadd.f32 %v9222, %v10254
  %v10709 = vadd.f32 %v9225, %v10257
  %v10710 = vadd.f32 %v9228, %v10260
  %v10711 = vadd.f32 %v9231, %v10263
  %v10712 = vadd.f32 %v9234, %v10266
  %v10713 = vadd.f32 %v9237, %v10269
  %v10714 = vadd.f32 %v9240, %v10272
  %v10715 = vadd.f32 %v9243, %v10275
  %v10716 = vadd.f32 %v9246, %v10278
  %v10717 = vadd.f32 %v9249, %v10281
  %v10718 = vadd.f32 %v9252, %v10284
  %v10719 = vadd.f32 %v9255, %v10287
  %v10720 = vadd.f32 %v9258, %v10290
  %v10721 = vadd.f32 %v9261, %v10293
  %v10722 = vadd.f32 %v9264, %v10296
  %v10723 = vadd.f32 %v9267, %v10299
  %v10724 = vadd.f32 %v9270, %v10302
  %v10725 = vadd.f32 %v9273, %v10305
  %v10726 = vadd.f32 %v9276, %v10308
  %v10727 = vadd.f32 %v9279, %v10311
  %v10728 = vadd.f32 %v9282, %v10314
  %v10729 = vadd.f32 %v9285, %v10317
  %v10730 = vadd.f32 %v9288, %v10320
  %v10731 = vadd.f32 %v9291, %v10323
  %v10732 = vadd.f32 %v9294, %v10326
  %v10733 = vadd.f32 %v9297, %v10329
  %v10734 = vadd.f32 %v9300, %v10332
  %v10735 = vadd.f32 %v9303, %v10335
  %v10736 = vadd.f32 %v9306, %v10338
  %v10737 = vadd.f32 %v9309, %v10341
  %v10738 = vadd.f32 %v9312, %v10344
  %v10739 = vadd.f32 %v9315, %v10347
  %v10740 = vadd.f32 %v9318, %v10350
  %v10741 = vadd.f32 %v9321, %v10353
  %v10742 = vadd.f32 %v9324, %v10356
  %v10743 = vadd.f32 %v9327, %v10359
  %v10744 = vadd.f32 %v9330, %v10362
  %v10745 = vadd.f32 %v9333, %v10365
  %v10746 = vadd.f32 %v9336, %v10368
  %v10747 = vadd.f32 %v9339, %v10371
  %v10748 = vadd.f32 %v9342, %v10374
  %v10749 = vadd.f32 %v9345, %v10377
  %v10750 = vadd.f32 %v9348, %v10380
  %v10751 = vadd.f32 %v9351, %v10383
  %v10752 = vadd.f32 %v9354, %v10386
  %v10753 = vadd.f32 %v9357, %v10389
  %v10754 = vadd.f32 %v9360, %v10392
  %v10755 = vadd.f32 %v9363, %v10395
  %v10756 = vadd.f32 %v9366, %v10398
  %v10757 = vadd.f32 %v9369, %v10401
  %v10758 = vadd.f32 %v9372, %v10404
  %v10759 = vadd.f32 %v9375, %v10407
  %v10760 = vadd.f32 %v9378, %v10410
  %v10761 = vadd.f32 %v9381, %v10413
  %v10762 = vadd.f32 %v9384, %v10416
  %v10763 = vadd.f32 %v9387, %v10419
  %v10764 = vadd.f32 %v9390, %v10422
  %v10765 = vadd.f32 %v9393, %v10425
  %v10766 = vadd.f32 %v9396, %v10428
  %v10767 = vadd.f32 %v9399, %v10431
  %v10768 = vadd.f32 %v9402, %v10434
  %v10769 = vadd.f32 %v9405, %v10437
  %v10770 = vadd.f32 %v9408, %v10440
  %v10771 = vadd.f32 %v9411, %v10443
  %v10772 = vadd.f32 %v9414, %v10446
  %v10773 = vadd.f32 %v9417, %v10449
  %v10774 = vadd.f32 %v9420, %v10452
  %v10775 = vadd.f32 %v9423, %v10455
  %v10776 = vadd.f32 %v9426, %v10458
  %v10777 = vadd.f32 %v9429, %v10461
  %v10778 = vadd.f32 %v9432, %v10464
  %v10779 = vadd.f32 %v9435, %v10467
  %v10780 = vadd.f32 %v9438, %v10470
  %v10781 = vadd.f32 %v9441, %v10473
  %v10782 = vadd.f32 %v9444, %v10476
  %v10783 = vadd.f32 %v9447, %v10479
  %v10784 = vadd.f32 %v9450, %v10482
  %v10785 = vadd.f32 %v9453, %v10485
  %v10786 = vadd.f32 %v9456, %v10488
  %v10787 = vadd.f32 %v9459, %v10491
  %v10788 = vadd.f32 %v9462, %v10494
  %v10789 = vadd.f32 %v9465, %v10497
  %v10790 = vadd.f32 %v9468, %v10500
  %v10791 = vadd.f32 %v9471, %v10503
  %v10792 = vadd.f32 %v9474, %v10506
  %v10793 = vadd.f32 %v9477, %v10509
  %v10794 = vadd.f32 %v9480, %v10512
  %v10795 = vadd.f32 %v9483, %v10515
  %v10796 = vadd.f32 %v9486, %v10518
  %v10797 = vadd.f32 %v9489, %v10521
  %v10798 = vadd.f32 %v9492, %v10524
  %v10799 = vadd.f32 %v9495, %v10527
  %v10800 = vadd.f32 %v9498, %v10530
  %v10801 = vadd.f32 %v9501, %v10533
  %v10802 = vadd.f32 %v9504, %v10536
  %v10803 = vadd.f32 %v9507, %v10539
  %v10804 = vadd.f32 %v9510, %v10542
  %v10805 = vadd.f32 %v9513, %v10545
  %v10806 = vadd.f32 %v9516, %v10548
  %v10807 = vadd.f32 %v9519, %v10551
  %s10808 = sld [smem:[#allocation2]]
  %v10809 = vstv %s10808
  %v10810 = vadd.f32 %v10552, %v10809
  %v10811 = vadd.f32 %v10553, %v10809
  %v10812 = vadd.f32 %v10554, %v10809
  %v10813 = vadd.f32 %v10555, %v10809
  %v10814 = vadd.f32 %v10556, %v10809
  %v10815 = vadd.f32 %v10557, %v10809
  %v10816 = vadd.f32 %v10558, %v10809
  %v10817 = vadd.f32 %v10559, %v10809
  %v10818 = vadd.f32 %v10560, %v10809
  %v10819 = vadd.f32 %v10561, %v10809
  %v10820 = vadd.f32 %v10562, %v10809
  %v10821 = vadd.f32 %v10563, %v10809
  %v10822 = vadd.f32 %v10564, %v10809
  %v10823 = vadd.f32 %v10565, %v10809
  %v10824 = vadd.f32 %v10566, %v10809
  %v10825 = vadd.f32 %v10567, %v10809
  %v10826 = vadd.f32 %v10568, %v10809
  %v10827 = vadd.f32 %v10569, %v10809
  %v10828 = vadd.f32 %v10570, %v10809
  %v10829 = vadd.f32 %v10571, %v10809
  %v10830 = vadd.f32 %v10572, %v10809
  %v10831 = vadd.f32 %v10573, %v10809
  %v10832 = vadd.f32 %v10574, %v10809
  %v10833 = vadd.f32 %v10575, %v10809
  %v10834 = vadd.f32 %v10576, %v10809
  %v10835 = vadd.f32 %v10577, %v10809
  %v10836 = vadd.f32 %v10578, %v10809
  %v10837 = vadd.f32 %v10579, %v10809
  %v10838 = vadd.f32 %v10580, %v10809
  %v10839 = vadd.f32 %v10581, %v10809
  %v10840 = vadd.f32 %v10582, %v10809
  %v10841 = vadd.f32 %v10583, %v10809
  %v10842 = vadd.f32 %v10584, %v10809
  %v10843 = vadd.f32 %v10585, %v10809
  %v10844 = vadd.f32 %v10586, %v10809
  %v10845 = vadd.f32 %v10587, %v10809
  %v10846 = vadd.f32 %v10588, %v10809
  %v10847 = vadd.f32 %v10589, %v10809
  %v10848 = vadd.f32 %v10590, %v10809
  %v10849 = vadd.f32 %v10591, %v10809
  %v10850 = vadd.f32 %v10592, %v10809
  %v10851 = vadd.f32 %v10593, %v10809
  %v10852 = vadd.f32 %v10594, %v10809
  %v10853 = vadd.f32 %v10595, %v10809
  %v10854 = vadd.f32 %v10596, %v10809
  %v10855 = vadd.f32 %v10597, %v10809
  %v10856 = vadd.f32 %v10598, %v10809
  %v10857 = vadd.f32 %v10599, %v10809
  %v10858 = vadd.f32 %v10600, %v10809
  %v10859 = vadd.f32 %v10601, %v10809
  %v10860 = vadd.f32 %v10602, %v10809
  %v10861 = vadd.f32 %v10603, %v10809
  %v10862 = vadd.f32 %v10604, %v10809
  %v10863 = vadd.f32 %v10605, %v10809
  %v10864 = vadd.f32 %v10606, %v10809
  %v10865 = vadd.f32 %v10607, %v10809
  %v10866 = vadd.f32 %v10608, %v10809
  %v10867 = vadd.f32 %v10609, %v10809
  %v10868 = vadd.f32 %v10610, %v10809
  %v10869 = vadd.f32 %v10611, %v10809
  %v10870 = vadd.f32 %v10612, %v10809
  %v10871 = vadd.f32 %v10613, %v10809
  %v10872 = vadd.f32 %v10614, %v10809
  %v10873 = vadd.f32 %v10615, %v10809
  %v10874 = vadd.f32 %v10616, %v10809
  %v10875 = vadd.f32 %v10617, %v10809
  %v10876 = vadd.f32 %v10618, %v10809
  %v10877 = vadd.f32 %v10619, %v10809
  %v10878 = vadd.f32 %v10620, %v10809
  %v10879 = vadd.f32 %v10621, %v10809
  %v10880 = vadd.f32 %v10622, %v10809
  %v10881 = vadd.f32 %v10623, %v10809
  %v10882 = vadd.f32 %v10624, %v10809
  %v10883 = vadd.f32 %v10625, %v10809
  %v10884 = vadd.f32 %v10626, %v10809
  %v10885 = vadd.f32 %v10627, %v10809
  %v10886 = vadd.f32 %v10628, %v10809
  %v10887 = vadd.f32 %v10629, %v10809
  %v10888 = vadd.f32 %v10630, %v10809
  %v10889 = vadd.f32 %v10631, %v10809
  %v10890 = vadd.f32 %v10632, %v10809
  %v10891 = vadd.f32 %v10633, %v10809
  %v10892 = vadd.f32 %v10634, %v10809
  %v10893 = vadd.f32 %v10635, %v10809
  %v10894 = vadd.f32 %v10636, %v10809
  %v10895 = vadd.f32 %v10637, %v10809
  %v10896 = vadd.f32 %v10638, %v10809
  %v10897 = vadd.f32 %v10639, %v10809
  %v10898 = vadd.f32 %v10640, %v10809
  %v10899 = vadd.f32 %v10641, %v10809
  %v10900 = vadd.f32 %v10642, %v10809
  %v10901 = vadd.f32 %v10643, %v10809
  %v10902 = vadd.f32 %v10644, %v10809
  %v10903 = vadd.f32 %v10645, %v10809
  %v10904 = vadd.f32 %v10646, %v10809
  %v10905 = vadd.f32 %v10647, %v10809
  %v10906 = vadd.f32 %v10648, %v10809
  %v10907 = vadd.f32 %v10649, %v10809
  %v10908 = vadd.f32 %v10650, %v10809
  %v10909 = vadd.f32 %v10651, %v10809
  %v10910 = vadd.f32 %v10652, %v10809
  %v10911 = vadd.f32 %v10653, %v10809
  %v10912 = vadd.f32 %v10654, %v10809
  %v10913 = vadd.f32 %v10655, %v10809
  %v10914 = vadd.f32 %v10656, %v10809
  %v10915 = vadd.f32 %v10657, %v10809
  %v10916 = vadd.f32 %v10658, %v10809
  %v10917 = vadd.f32 %v10659, %v10809
  %v10918 = vadd.f32 %v10660, %v10809
  %v10919 = vadd.f32 %v10661, %v10809
  %v10920 = vadd.f32 %v10662, %v10809
  %v10921 = vadd.f32 %v10663, %v10809
  %v10922 = vadd.f32 %v10664, %v10809
  %v10923 = vadd.f32 %v10665, %v10809
  %v10924 = vadd.f32 %v10666, %v10809
  %v10925 = vadd.f32 %v10667, %v10809
  %v10926 = vadd.f32 %v10668, %v10809
  %v10927 = vadd.f32 %v10669, %v10809
  %v10928 = vadd.f32 %v10670, %v10809
  %v10929 = vadd.f32 %v10671, %v10809
  %v10930 = vadd.f32 %v10672, %v10809
  %v10931 = vadd.f32 %v10673, %v10809
  %v10932 = vadd.f32 %v10674, %v10809
  %v10933 = vadd.f32 %v10675, %v10809
  %v10934 = vadd.f32 %v10676, %v10809
  %v10935 = vadd.f32 %v10677, %v10809
  %v10936 = vadd.f32 %v10678, %v10809
  %v10937 = vadd.f32 %v10679, %v10809
  %v10938 = vadd.f32 %v10680, %v10809
  %v10939 = vadd.f32 %v10681, %v10809
  %v10940 = vadd.f32 %v10682, %v10809
  %v10941 = vadd.f32 %v10683, %v10809
  %v10942 = vadd.f32 %v10684, %v10809
  %v10943 = vadd.f32 %v10685, %v10809
  %v10944 = vadd.f32 %v10686, %v10809
  %v10945 = vadd.f32 %v10687, %v10809
  %v10946 = vadd.f32 %v10688, %v10809
  %v10947 = vadd.f32 %v10689, %v10809
  %v10948 = vadd.f32 %v10690, %v10809
  %v10949 = vadd.f32 %v10691, %v10809
  %v10950 = vadd.f32 %v10692, %v10809
  %v10951 = vadd.f32 %v10693, %v10809
  %v10952 = vadd.f32 %v10694, %v10809
  %v10953 = vadd.f32 %v10695, %v10809
  %v10954 = vadd.f32 %v10696, %v10809
  %v10955 = vadd.f32 %v10697, %v10809
  %v10956 = vadd.f32 %v10698, %v10809
  %v10957 = vadd.f32 %v10699, %v10809
  %v10958 = vadd.f32 %v10700, %v10809
  %v10959 = vadd.f32 %v10701, %v10809
  %v10960 = vadd.f32 %v10702, %v10809
  %v10961 = vadd.f32 %v10703, %v10809
  %v10962 = vadd.f32 %v10704, %v10809
  %v10963 = vadd.f32 %v10705, %v10809
  %v10964 = vadd.f32 %v10706, %v10809
  %v10965 = vadd.f32 %v10707, %v10809
  %v10966 = vadd.f32 %v10708, %v10809
  %v10967 = vadd.f32 %v10709, %v10809
  %v10968 = vadd.f32 %v10710, %v10809
  %v10969 = vadd.f32 %v10711, %v10809
  %v10970 = vadd.f32 %v10712, %v10809
  %v10971 = vadd.f32 %v10713, %v10809
  %v10972 = vadd.f32 %v10714, %v10809
  %v10973 = vadd.f32 %v10715, %v10809
  %v10974 = vadd.f32 %v10716, %v10809
  %v10975 = vadd.f32 %v10717, %v10809
  %v10976 = vadd.f32 %v10718, %v10809
  %v10977 = vadd.f32 %v10719, %v10809
  %v10978 = vadd.f32 %v10720, %v10809
  %v10979 = vadd.f32 %v10721, %v10809
  %v10980 = vadd.f32 %v10722, %v10809
  %v10981 = vadd.f32 %v10723, %v10809
  %v10982 = vadd.f32 %v10724, %v10809
  %v10983 = vadd.f32 %v10725, %v10809
  %v10984 = vadd.f32 %v10726, %v10809
  %v10985 = vadd.f32 %v10727, %v10809
  %v10986 = vadd.f32 %v10728, %v10809
  %v10987 = vadd.f32 %v10729, %v10809
  %v10988 = vadd.f32 %v10730, %v10809
  %v10989 = vadd.f32 %v10731, %v10809
  %v10990 = vadd.f32 %v10732, %v10809
  %v10991 = vadd.f32 %v10733, %v10809
  %v10992 = vadd.f32 %v10734, %v10809
  %v10993 = vadd.f32 %v10735, %v10809
  %v10994 = vadd.f32 %v10736, %v10809
  %v10995 = vadd.f32 %v10737, %v10809
  %v10996 = vadd.f32 %v10738, %v10809
  %v10997 = vadd.f32 %v10739, %v10809
  %v10998 = vadd.f32 %v10740, %v10809
  %v10999 = vadd.f32 %v10741, %v10809
  %v11000 = vadd.f32 %v10742, %v10809
  %v11001 = vadd.f32 %v10743, %v10809
  %v11002 = vadd.f32 %v10744, %v10809
  %v11003 = vadd.f32 %v10745, %v10809
  %v11004 = vadd.f32 %v10746, %v10809
  %v11005 = vadd.f32 %v10747, %v10809
  %v11006 = vadd.f32 %v10748, %v10809
  %v11007 = vadd.f32 %v10749, %v10809
  %v11008 = vadd.f32 %v10750, %v10809
  %v11009 = vadd.f32 %v10751, %v10809
  %v11010 = vadd.f32 %v10752, %v10809
  %v11011 = vadd.f32 %v10753, %v10809
  %v11012 = vadd.f32 %v10754, %v10809
  %v11013 = vadd.f32 %v10755, %v10809
  %v11014 = vadd.f32 %v10756, %v10809
  %v11015 = vadd.f32 %v10757, %v10809
  %v11016 = vadd.f32 %v10758, %v10809
  %v11017 = vadd.f32 %v10759, %v10809
  %v11018 = vadd.f32 %v10760, %v10809
  %v11019 = vadd.f32 %v10761, %v10809
  %v11020 = vadd.f32 %v10762, %v10809
  %v11021 = vadd.f32 %v10763, %v10809
  %v11022 = vadd.f32 %v10764, %v10809
  %v11023 = vadd.f32 %v10765, %v10809
  %v11024 = vadd.f32 %v10766, %v10809
  %v11025 = vadd.f32 %v10767, %v10809
  %v11026 = vadd.f32 %v10768, %v10809
  %v11027 = vadd.f32 %v10769, %v10809
  %v11028 = vadd.f32 %v10770, %v10809
  %v11029 = vadd.f32 %v10771, %v10809
  %v11030 = vadd.f32 %v10772, %v10809
  %v11031 = vadd.f32 %v10773, %v10809
  %v11032 = vadd.f32 %v10774, %v10809
  %v11033 = vadd.f32 %v10775, %v10809
  %v11034 = vadd.f32 %v10776, %v10809
  %v11035 = vadd.f32 %v10777, %v10809
  %v11036 = vadd.f32 %v10778, %v10809
  %v11037 = vadd.f32 %v10779, %v10809
  %v11038 = vadd.f32 %v10780, %v10809
  %v11039 = vadd.f32 %v10781, %v10809
  %v11040 = vadd.f32 %v10782, %v10809
  %v11041 = vadd.f32 %v10783, %v10809
  %v11042 = vadd.f32 %v10784, %v10809
  %v11043 = vadd.f32 %v10785, %v10809
  %v11044 = vadd.f32 %v10786, %v10809
  %v11045 = vadd.f32 %v10787, %v10809
  %v11046 = vadd.f32 %v10788, %v10809
  %v11047 = vadd.f32 %v10789, %v10809
  %v11048 = vadd.f32 %v10790, %v10809
  %v11049 = vadd.f32 %v10791, %v10809
  %v11050 = vadd.f32 %v10792, %v10809
  %v11051 = vadd.f32 %v10793, %v10809
  %v11052 = vadd.f32 %v10794, %v10809
  %v11053 = vadd.f32 %v10795, %v10809
  %v11054 = vadd.f32 %v10796, %v10809
  %v11055 = vadd.f32 %v10797, %v10809
  %v11056 = vadd.f32 %v10798, %v10809
  %v11057 = vadd.f32 %v10799, %v10809
  %v11058 = vadd.f32 %v10800, %v10809
  %v11059 = vadd.f32 %v10801, %v10809
  %v11060 = vadd.f32 %v10802, %v10809
  %v11061 = vadd.f32 %v10803, %v10809
  %v11062 = vadd.f32 %v10804, %v10809
  %v11063 = vadd.f32 %v10805, %v10809
  %v11064 = vadd.f32 %v10806, %v10809
  %v11065 = vadd.f32 %v10807, %v10809
  %v11066 = vxor.u32 %v10810, 2147483648
  %v11067 = vxor.u32 %v10811, 2147483648
  %v11068 = vxor.u32 %v10812, 2147483648
  %v11069 = vxor.u32 %v10813, 2147483648
  %v11070 = vxor.u32 %v10814, 2147483648
  %v11071 = vxor.u32 %v10815, 2147483648
  %v11072 = vxor.u32 %v10816, 2147483648
  %v11073 = vxor.u32 %v10817, 2147483648
  %v11074 = vxor.u32 %v10818, 2147483648
  %v11075 = vxor.u32 %v10819, 2147483648
  %v11076 = vxor.u32 %v10820, 2147483648
  %v11077 = vxor.u32 %v10821, 2147483648
  %v11078 = vxor.u32 %v10822, 2147483648
  %v11079 = vxor.u32 %v10823, 2147483648
  %v11080 = vxor.u32 %v10824, 2147483648
  %v11081 = vxor.u32 %v10825, 2147483648
  %v11082 = vxor.u32 %v10826, 2147483648
  %v11083 = vxor.u32 %v10827, 2147483648
  %v11084 = vxor.u32 %v10828, 2147483648
  %v11085 = vxor.u32 %v10829, 2147483648
  %v11086 = vxor.u32 %v10830, 2147483648
  %v11087 = vxor.u32 %v10831, 2147483648
  %v11088 = vxor.u32 %v10832, 2147483648
  %v11089 = vxor.u32 %v10833, 2147483648
  %v11090 = vxor.u32 %v10834, 2147483648
  %v11091 = vxor.u32 %v10835, 2147483648
  %v11092 = vxor.u32 %v10836, 2147483648
  %v11093 = vxor.u32 %v10837, 2147483648
  %v11094 = vxor.u32 %v10838, 2147483648
  %v11095 = vxor.u32 %v10839, 2147483648
  %v11096 = vxor.u32 %v10840, 2147483648
  %v11097 = vxor.u32 %v10841, 2147483648
  %v11098 = vxor.u32 %v10842, 2147483648
  %v11099 = vxor.u32 %v10843, 2147483648
  %v11100 = vxor.u32 %v10844, 2147483648
  %v11101 = vxor.u32 %v10845, 2147483648
  %v11102 = vxor.u32 %v10846, 2147483648
  %v11103 = vxor.u32 %v10847, 2147483648
  %v11104 = vxor.u32 %v10848, 2147483648
  %v11105 = vxor.u32 %v10849, 2147483648
  %v11106 = vxor.u32 %v10850, 2147483648
  %v11107 = vxor.u32 %v10851, 2147483648
  %v11108 = vxor.u32 %v10852, 2147483648
  %v11109 = vxor.u32 %v10853, 2147483648
  %v11110 = vxor.u32 %v10854, 2147483648
  %v11111 = vxor.u32 %v10855, 2147483648
  %v11112 = vxor.u32 %v10856, 2147483648
  %v11113 = vxor.u32 %v10857, 2147483648
  %v11114 = vxor.u32 %v10858, 2147483648
  %v11115 = vxor.u32 %v10859, 2147483648
  %v11116 = vxor.u32 %v10860, 2147483648
  %v11117 = vxor.u32 %v10861, 2147483648
  %v11118 = vxor.u32 %v10862, 2147483648
  %v11119 = vxor.u32 %v10863, 2147483648
  %v11120 = vxor.u32 %v10864, 2147483648
  %v11121 = vxor.u32 %v10865, 2147483648
  %v11122 = vxor.u32 %v10866, 2147483648
  %v11123 = vxor.u32 %v10867, 2147483648
  %v11124 = vxor.u32 %v10868, 2147483648
  %v11125 = vxor.u32 %v10869, 2147483648
  %v11126 = vxor.u32 %v10870, 2147483648
  %v11127 = vxor.u32 %v10871, 2147483648
  %v11128 = vxor.u32 %v10872, 2147483648
  %v11129 = vxor.u32 %v10873, 2147483648
  %v11130 = vxor.u32 %v10874, 2147483648
  %v11131 = vxor.u32 %v10875, 2147483648
  %v11132 = vxor.u32 %v10876, 2147483648
  %v11133 = vxor.u32 %v10877, 2147483648
  %v11134 = vxor.u32 %v10878, 2147483648
  %v11135 = vxor.u32 %v10879, 2147483648
  %v11136 = vxor.u32 %v10880, 2147483648
  %v11137 = vxor.u32 %v10881, 2147483648
  %v11138 = vxor.u32 %v10882, 2147483648
  %v11139 = vxor.u32 %v10883, 2147483648
  %v11140 = vxor.u32 %v10884, 2147483648
  %v11141 = vxor.u32 %v10885, 2147483648
  %v11142 = vxor.u32 %v10886, 2147483648
  %v11143 = vxor.u32 %v10887, 2147483648
  %v11144 = vxor.u32 %v10888, 2147483648
  %v11145 = vxor.u32 %v10889, 2147483648
  %v11146 = vxor.u32 %v10890, 2147483648
  %v11147 = vxor.u32 %v10891, 2147483648
  %v11148 = vxor.u32 %v10892, 2147483648
  %v11149 = vxor.u32 %v10893, 2147483648
  %v11150 = vxor.u32 %v10894, 2147483648
  %v11151 = vxor.u32 %v10895, 2147483648
  %v11152 = vxor.u32 %v10896, 2147483648
  %v11153 = vxor.u32 %v10897, 2147483648
  %v11154 = vxor.u32 %v10898, 2147483648
  %v11155 = vxor.u32 %v10899, 2147483648
  %v11156 = vxor.u32 %v10900, 2147483648
  %v11157 = vxor.u32 %v10901, 2147483648
  %v11158 = vxor.u32 %v10902, 2147483648
  %v11159 = vxor.u32 %v10903, 2147483648
  %v11160 = vxor.u32 %v10904, 2147483648
  %v11161 = vxor.u32 %v10905, 2147483648
  %v11162 = vxor.u32 %v10906, 2147483648
  %v11163 = vxor.u32 %v10907, 2147483648
  %v11164 = vxor.u32 %v10908, 2147483648
  %v11165 = vxor.u32 %v10909, 2147483648
  %v11166 = vxor.u32 %v10910, 2147483648
  %v11167 = vxor.u32 %v10911, 2147483648
  %v11168 = vxor.u32 %v10912, 2147483648
  %v11169 = vxor.u32 %v10913, 2147483648
  %v11170 = vxor.u32 %v10914, 2147483648
  %v11171 = vxor.u32 %v10915, 2147483648
  %v11172 = vxor.u32 %v10916, 2147483648
  %v11173 = vxor.u32 %v10917, 2147483648
  %v11174 = vxor.u32 %v10918, 2147483648
  %v11175 = vxor.u32 %v10919, 2147483648
  %v11176 = vxor.u32 %v10920, 2147483648
  %v11177 = vxor.u32 %v10921, 2147483648
  %v11178 = vxor.u32 %v10922, 2147483648
  %v11179 = vxor.u32 %v10923, 2147483648
  %v11180 = vxor.u32 %v10924, 2147483648
  %v11181 = vxor.u32 %v10925, 2147483648
  %v11182 = vxor.u32 %v10926, 2147483648
  %v11183 = vxor.u32 %v10927, 2147483648
  %v11184 = vxor.u32 %v10928, 2147483648
  %v11185 = vxor.u32 %v10929, 2147483648
  %v11186 = vxor.u32 %v10930, 2147483648
  %v11187 = vxor.u32 %v10931, 2147483648
  %v11188 = vxor.u32 %v10932, 2147483648
  %v11189 = vxor.u32 %v10933, 2147483648
  %v11190 = vxor.u32 %v10934, 2147483648
  %v11191 = vxor.u32 %v10935, 2147483648
  %v11192 = vxor.u32 %v10936, 2147483648
  %v11193 = vxor.u32 %v10937, 2147483648
  %v11194 = vxor.u32 %v10938, 2147483648
  %v11195 = vxor.u32 %v10939, 2147483648
  %v11196 = vxor.u32 %v10940, 2147483648
  %v11197 = vxor.u32 %v10941, 2147483648
  %v11198 = vxor.u32 %v10942, 2147483648
  %v11199 = vxor.u32 %v10943, 2147483648
  %v11200 = vxor.u32 %v10944, 2147483648
  %v11201 = vxor.u32 %v10945, 2147483648
  %v11202 = vxor.u32 %v10946, 2147483648
  %v11203 = vxor.u32 %v10947, 2147483648
  %v11204 = vxor.u32 %v10948, 2147483648
  %v11205 = vxor.u32 %v10949, 2147483648
  %v11206 = vxor.u32 %v10950, 2147483648
  %v11207 = vxor.u32 %v10951, 2147483648
  %v11208 = vxor.u32 %v10952, 2147483648
  %v11209 = vxor.u32 %v10953, 2147483648
  %v11210 = vxor.u32 %v10954, 2147483648
  %v11211 = vxor.u32 %v10955, 2147483648
  %v11212 = vxor.u32 %v10956, 2147483648
  %v11213 = vxor.u32 %v10957, 2147483648
  %v11214 = vxor.u32 %v10958, 2147483648
  %v11215 = vxor.u32 %v10959, 2147483648
  %v11216 = vxor.u32 %v10960, 2147483648
  %v11217 = vxor.u32 %v10961, 2147483648
  %v11218 = vxor.u32 %v10962, 2147483648
  %v11219 = vxor.u32 %v10963, 2147483648
  %v11220 = vxor.u32 %v10964, 2147483648
  %v11221 = vxor.u32 %v10965, 2147483648
  %v11222 = vxor.u32 %v10966, 2147483648
  %v11223 = vxor.u32 %v10967, 2147483648
  %v11224 = vxor.u32 %v10968, 2147483648
  %v11225 = vxor.u32 %v10969, 2147483648
  %v11226 = vxor.u32 %v10970, 2147483648
  %v11227 = vxor.u32 %v10971, 2147483648
  %v11228 = vxor.u32 %v10972, 2147483648
  %v11229 = vxor.u32 %v10973, 2147483648
  %v11230 = vxor.u32 %v10974, 2147483648
  %v11231 = vxor.u32 %v10975, 2147483648
  %v11232 = vxor.u32 %v10976, 2147483648
  %v11233 = vxor.u32 %v10977, 2147483648
  %v11234 = vxor.u32 %v10978, 2147483648
  %v11235 = vxor.u32 %v10979, 2147483648
  %v11236 = vxor.u32 %v10980, 2147483648
  %v11237 = vxor.u32 %v10981, 2147483648
  %v11238 = vxor.u32 %v10982, 2147483648
  %v11239 = vxor.u32 %v10983, 2147483648
  %v11240 = vxor.u32 %v10984, 2147483648
  %v11241 = vxor.u32 %v10985, 2147483648
  %v11242 = vxor.u32 %v10986, 2147483648
  %v11243 = vxor.u32 %v10987, 2147483648
  %v11244 = vxor.u32 %v10988, 2147483648
  %v11245 = vxor.u32 %v10989, 2147483648
  %v11246 = vxor.u32 %v10990, 2147483648
  %v11247 = vxor.u32 %v10991, 2147483648
  %v11248 = vxor.u32 %v10992, 2147483648
  %v11249 = vxor.u32 %v10993, 2147483648
  %v11250 = vxor.u32 %v10994, 2147483648
  %v11251 = vxor.u32 %v10995, 2147483648
  %v11252 = vxor.u32 %v10996, 2147483648
  %v11253 = vxor.u32 %v10997, 2147483648
  %v11254 = vxor.u32 %v10998, 2147483648
  %v11255 = vxor.u32 %v10999, 2147483648
  %v11256 = vxor.u32 %v11000, 2147483648
  %v11257 = vxor.u32 %v11001, 2147483648
  %v11258 = vxor.u32 %v11002, 2147483648
  %v11259 = vxor.u32 %v11003, 2147483648
  %v11260 = vxor.u32 %v11004, 2147483648
  %v11261 = vxor.u32 %v11005, 2147483648
  %v11262 = vxor.u32 %v11006, 2147483648
  %v11263 = vxor.u32 %v11007, 2147483648
  %v11264 = vxor.u32 %v11008, 2147483648
  %v11265 = vxor.u32 %v11009, 2147483648
  %v11266 = vxor.u32 %v11010, 2147483648
  %v11267 = vxor.u32 %v11011, 2147483648
  %v11268 = vxor.u32 %v11012, 2147483648
  %v11269 = vxor.u32 %v11013, 2147483648
  %v11270 = vxor.u32 %v11014, 2147483648
  %v11271 = vxor.u32 %v11015, 2147483648
  %v11272 = vxor.u32 %v11016, 2147483648
  %v11273 = vxor.u32 %v11017, 2147483648
  %v11274 = vxor.u32 %v11018, 2147483648
  %v11275 = vxor.u32 %v11019, 2147483648
  %v11276 = vxor.u32 %v11020, 2147483648
  %v11277 = vxor.u32 %v11021, 2147483648
  %v11278 = vxor.u32 %v11022, 2147483648
  %v11279 = vxor.u32 %v11023, 2147483648
  %v11280 = vxor.u32 %v11024, 2147483648
  %v11281 = vxor.u32 %v11025, 2147483648
  %v11282 = vxor.u32 %v11026, 2147483648
  %v11283 = vxor.u32 %v11027, 2147483648
  %v11284 = vxor.u32 %v11028, 2147483648
  %v11285 = vxor.u32 %v11029, 2147483648
  %v11286 = vxor.u32 %v11030, 2147483648
  %v11287 = vxor.u32 %v11031, 2147483648
  %v11288 = vxor.u32 %v11032, 2147483648
  %v11289 = vxor.u32 %v11033, 2147483648
  %v11290 = vxor.u32 %v11034, 2147483648
  %v11291 = vxor.u32 %v11035, 2147483648
  %v11292 = vxor.u32 %v11036, 2147483648
  %v11293 = vxor.u32 %v11037, 2147483648
  %v11294 = vxor.u32 %v11038, 2147483648
  %v11295 = vxor.u32 %v11039, 2147483648
  %v11296 = vxor.u32 %v11040, 2147483648
  %v11297 = vxor.u32 %v11041, 2147483648
  %v11298 = vxor.u32 %v11042, 2147483648
  %v11299 = vxor.u32 %v11043, 2147483648
  %v11300 = vxor.u32 %v11044, 2147483648
  %v11301 = vxor.u32 %v11045, 2147483648
  %v11302 = vxor.u32 %v11046, 2147483648
  %v11303 = vxor.u32 %v11047, 2147483648
  %v11304 = vxor.u32 %v11048, 2147483648
  %v11305 = vxor.u32 %v11049, 2147483648
  %v11306 = vxor.u32 %v11050, 2147483648
  %v11307 = vxor.u32 %v11051, 2147483648
  %v11308 = vxor.u32 %v11052, 2147483648
  %v11309 = vxor.u32 %v11053, 2147483648
  %v11310 = vxor.u32 %v11054, 2147483648
  %v11311 = vxor.u32 %v11055, 2147483648
  %v11312 = vxor.u32 %v11056, 2147483648
  %v11313 = vxor.u32 %v11057, 2147483648
  %v11314 = vxor.u32 %v11058, 2147483648
  %v11315 = vxor.u32 %v11059, 2147483648
  %v11316 = vxor.u32 %v11060, 2147483648
  %v11317 = vxor.u32 %v11061, 2147483648
  %v11318 = vxor.u32 %v11062, 2147483648
  %v11319 = vxor.u32 %v11063, 2147483648
  %v11320 = vxor.u32 %v11064, 2147483648
  %v11321 = vxor.u32 %v11065, 2147483648
  %v11322 = vmul.f32 %v11066, 1.442695
  %v11323 = vpow.pop %v11322
  %v11324 = vmul.f32 %v11067, 1.442695
  %v11325 = vpow.pop %v11324
  %v11326 = vmul.f32 %v11068, 1.442695
  %v11327 = vpow.pop %v11326
  %v11328 = vmul.f32 %v11069, 1.442695
  %v11329 = vpow.pop %v11328
  %v11330 = vmul.f32 %v11070, 1.442695
  %v11331 = vpow.pop %v11330
  %v11332 = vmul.f32 %v11071, 1.442695
  %v11333 = vpow.pop %v11332
  %v11334 = vmul.f32 %v11072, 1.442695
  %v11335 = vpow.pop %v11334
  %v11336 = vmul.f32 %v11073, 1.442695
  %v11337 = vpow.pop %v11336
  %v11338 = vmul.f32 %v11074, 1.442695
  %v11339 = vpow.pop %v11338
  %v11340 = vmul.f32 %v11075, 1.442695
  %v11341 = vpow.pop %v11340
  %v11342 = vmul.f32 %v11076, 1.442695
  %v11343 = vpow.pop %v11342
  %v11344 = vmul.f32 %v11077, 1.442695
  %v11345 = vpow.pop %v11344
  %v11346 = vmul.f32 %v11078, 1.442695
  %v11347 = vpow.pop %v11346
  %v11348 = vmul.f32 %v11079, 1.442695
  %v11349 = vpow.pop %v11348
  %v11350 = vmul.f32 %v11080, 1.442695
  %v11351 = vpow.pop %v11350
  %v11352 = vmul.f32 %v11081, 1.442695
  %v11353 = vpow.pop %v11352
  %v11354 = vmul.f32 %v11082, 1.442695
  %v11355 = vpow.pop %v11354
  %v11356 = vmul.f32 %v11083, 1.442695
  %v11357 = vpow.pop %v11356
  %v11358 = vmul.f32 %v11084, 1.442695
  %v11359 = vpow.pop %v11358
  %v11360 = vmul.f32 %v11085, 1.442695
  %v11361 = vpow.pop %v11360
  %v11362 = vmul.f32 %v11086, 1.442695
  %v11363 = vpow.pop %v11362
  %v11364 = vmul.f32 %v11087, 1.442695
  %v11365 = vpow.pop %v11364
  %v11366 = vmul.f32 %v11088, 1.442695
  %v11367 = vpow.pop %v11366
  %v11368 = vmul.f32 %v11089, 1.442695
  %v11369 = vpow.pop %v11368
  %v11370 = vmul.f32 %v11090, 1.442695
  %v11371 = vpow.pop %v11370
  %v11372 = vmul.f32 %v11091, 1.442695
  %v11373 = vpow.pop %v11372
  %v11374 = vmul.f32 %v11092, 1.442695
  %v11375 = vpow.pop %v11374
  %v11376 = vmul.f32 %v11093, 1.442695
  %v11377 = vpow.pop %v11376
  %v11378 = vmul.f32 %v11094, 1.442695
  %v11379 = vpow.pop %v11378
  %v11380 = vmul.f32 %v11095, 1.442695
  %v11381 = vpow.pop %v11380
  %v11382 = vmul.f32 %v11096, 1.442695
  %v11383 = vpow.pop %v11382
  %v11384 = vmul.f32 %v11097, 1.442695
  %v11385 = vpow.pop %v11384
  %v11386 = vmul.f32 %v11098, 1.442695
  %v11387 = vpow.pop %v11386
  %v11388 = vmul.f32 %v11099, 1.442695
  %v11389 = vpow.pop %v11388
  %v11390 = vmul.f32 %v11100, 1.442695
  %v11391 = vpow.pop %v11390
  %v11392 = vmul.f32 %v11101, 1.442695
  %v11393 = vpow.pop %v11392
  %v11394 = vmul.f32 %v11102, 1.442695
  %v11395 = vpow.pop %v11394
  %v11396 = vmul.f32 %v11103, 1.442695
  %v11397 = vpow.pop %v11396
  %v11398 = vmul.f32 %v11104, 1.442695
  %v11399 = vpow.pop %v11398
  %v11400 = vmul.f32 %v11105, 1.442695
  %v11401 = vpow.pop %v11400
  %v11402 = vmul.f32 %v11106, 1.442695
  %v11403 = vpow.pop %v11402
  %v11404 = vmul.f32 %v11107, 1.442695
  %v11405 = vpow.pop %v11404
  %v11406 = vmul.f32 %v11108, 1.442695
  %v11407 = vpow.pop %v11406
  %v11408 = vmul.f32 %v11109, 1.442695
  %v11409 = vpow.pop %v11408
  %v11410 = vmul.f32 %v11110, 1.442695
  %v11411 = vpow.pop %v11410
  %v11412 = vmul.f32 %v11111, 1.442695
  %v11413 = vpow.pop %v11412
  %v11414 = vmul.f32 %v11112, 1.442695
  %v11415 = vpow.pop %v11414
  %v11416 = vmul.f32 %v11113, 1.442695
  %v11417 = vpow.pop %v11416
  %v11418 = vmul.f32 %v11114, 1.442695
  %v11419 = vpow.pop %v11418
  %v11420 = vmul.f32 %v11115, 1.442695
  %v11421 = vpow.pop %v11420
  %v11422 = vmul.f32 %v11116, 1.442695
  %v11423 = vpow.pop %v11422
  %v11424 = vmul.f32 %v11117, 1.442695
  %v11425 = vpow.pop %v11424
  %v11426 = vmul.f32 %v11118, 1.442695
  %v11427 = vpow.pop %v11426
  %v11428 = vmul.f32 %v11119, 1.442695
  %v11429 = vpow.pop %v11428
  %v11430 = vmul.f32 %v11120, 1.442695
  %v11431 = vpow.pop %v11430
  %v11432 = vmul.f32 %v11121, 1.442695
  %v11433 = vpow.pop %v11432
  %v11434 = vmul.f32 %v11122, 1.442695
  %v11435 = vpow.pop %v11434
  %v11436 = vmul.f32 %v11123, 1.442695
  %v11437 = vpow.pop %v11436
  %v11438 = vmul.f32 %v11124, 1.442695
  %v11439 = vpow.pop %v11438
  %v11440 = vmul.f32 %v11125, 1.442695
  %v11441 = vpow.pop %v11440
  %v11442 = vmul.f32 %v11126, 1.442695
  %v11443 = vpow.pop %v11442
  %v11444 = vmul.f32 %v11127, 1.442695
  %v11445 = vpow.pop %v11444
  %v11446 = vmul.f32 %v11128, 1.442695
  %v11447 = vpow.pop %v11446
  %v11448 = vmul.f32 %v11129, 1.442695
  %v11449 = vpow.pop %v11448
  %v11450 = vmul.f32 %v11130, 1.442695
  %v11451 = vpow.pop %v11450
  %v11452 = vmul.f32 %v11131, 1.442695
  %v11453 = vpow.pop %v11452
  %v11454 = vmul.f32 %v11132, 1.442695
  %v11455 = vpow.pop %v11454
  %v11456 = vmul.f32 %v11133, 1.442695
  %v11457 = vpow.pop %v11456
  %v11458 = vmul.f32 %v11134, 1.442695
  %v11459 = vpow.pop %v11458
  %v11460 = vmul.f32 %v11135, 1.442695
  %v11461 = vpow.pop %v11460
  %v11462 = vmul.f32 %v11136, 1.442695
  %v11463 = vpow.pop %v11462
  %v11464 = vmul.f32 %v11137, 1.442695
  %v11465 = vpow.pop %v11464
  %v11466 = vmul.f32 %v11138, 1.442695
  %v11467 = vpow.pop %v11466
  %v11468 = vmul.f32 %v11139, 1.442695
  %v11469 = vpow.pop %v11468
  %v11470 = vmul.f32 %v11140, 1.442695
  %v11471 = vpow.pop %v11470
  %v11472 = vmul.f32 %v11141, 1.442695
  %v11473 = vpow.pop %v11472
  %v11474 = vmul.f32 %v11142, 1.442695
  %v11475 = vpow.pop %v11474
  %v11476 = vmul.f32 %v11143, 1.442695
  %v11477 = vpow.pop %v11476
  %v11478 = vmul.f32 %v11144, 1.442695
  %v11479 = vpow.pop %v11478
  %v11480 = vmul.f32 %v11145, 1.442695
  %v11481 = vpow.pop %v11480
  %v11482 = vmul.f32 %v11146, 1.442695
  %v11483 = vpow.pop %v11482
  %v11484 = vmul.f32 %v11147, 1.442695
  %v11485 = vpow.pop %v11484
  %v11486 = vmul.f32 %v11148, 1.442695
  %v11487 = vpow.pop %v11486
  %v11488 = vmul.f32 %v11149, 1.442695
  %v11489 = vpow.pop %v11488
  %v11490 = vmul.f32 %v11150, 1.442695
  %v11491 = vpow.pop %v11490
  %v11492 = vmul.f32 %v11151, 1.442695
  %v11493 = vpow.pop %v11492
  %v11494 = vmul.f32 %v11152, 1.442695
  %v11495 = vpow.pop %v11494
  %v11496 = vmul.f32 %v11153, 1.442695
  %v11497 = vpow.pop %v11496
  %v11498 = vmul.f32 %v11154, 1.442695
  %v11499 = vpow.pop %v11498
  %v11500 = vmul.f32 %v11155, 1.442695
  %v11501 = vpow.pop %v11500
  %v11502 = vmul.f32 %v11156, 1.442695
  %v11503 = vpow.pop %v11502
  %v11504 = vmul.f32 %v11157, 1.442695
  %v11505 = vpow.pop %v11504
  %v11506 = vmul.f32 %v11158, 1.442695
  %v11507 = vpow.pop %v11506
  %v11508 = vmul.f32 %v11159, 1.442695
  %v11509 = vpow.pop %v11508
  %v11510 = vmul.f32 %v11160, 1.442695
  %v11511 = vpow.pop %v11510
  %v11512 = vmul.f32 %v11161, 1.442695
  %v11513 = vpow.pop %v11512
  %v11514 = vmul.f32 %v11162, 1.442695
  %v11515 = vpow.pop %v11514
  %v11516 = vmul.f32 %v11163, 1.442695
  %v11517 = vpow.pop %v11516
  %v11518 = vmul.f32 %v11164, 1.442695
  %v11519 = vpow.pop %v11518
  %v11520 = vmul.f32 %v11165, 1.442695
  %v11521 = vpow.pop %v11520
  %v11522 = vmul.f32 %v11166, 1.442695
  %v11523 = vpow.pop %v11522
  %v11524 = vmul.f32 %v11167, 1.442695
  %v11525 = vpow.pop %v11524
  %v11526 = vmul.f32 %v11168, 1.442695
  %v11527 = vpow.pop %v11526
  %v11528 = vmul.f32 %v11169, 1.442695
  %v11529 = vpow.pop %v11528
  %v11530 = vmul.f32 %v11170, 1.442695
  %v11531 = vpow.pop %v11530
  %v11532 = vmul.f32 %v11171, 1.442695
  %v11533 = vpow.pop %v11532
  %v11534 = vmul.f32 %v11172, 1.442695
  %v11535 = vpow.pop %v11534
  %v11536 = vmul.f32 %v11173, 1.442695
  %v11537 = vpow.pop %v11536
  %v11538 = vmul.f32 %v11174, 1.442695
  %v11539 = vpow.pop %v11538
  %v11540 = vmul.f32 %v11175, 1.442695
  %v11541 = vpow.pop %v11540
  %v11542 = vmul.f32 %v11176, 1.442695
  %v11543 = vpow.pop %v11542
  %v11544 = vmul.f32 %v11177, 1.442695
  %v11545 = vpow.pop %v11544
  %v11546 = vmul.f32 %v11178, 1.442695
  %v11547 = vpow.pop %v11546
  %v11548 = vmul.f32 %v11179, 1.442695
  %v11549 = vpow.pop %v11548
  %v11550 = vmul.f32 %v11180, 1.442695
  %v11551 = vpow.pop %v11550
  %v11552 = vmul.f32 %v11181, 1.442695
  %v11553 = vpow.pop %v11552
  %v11554 = vmul.f32 %v11182, 1.442695
  %v11555 = vpow.pop %v11554
  %v11556 = vmul.f32 %v11183, 1.442695
  %v11557 = vpow.pop %v11556
  %v11558 = vmul.f32 %v11184, 1.442695
  %v11559 = vpow.pop %v11558
  %v11560 = vmul.f32 %v11185, 1.442695
  %v11561 = vpow.pop %v11560
  %v11562 = vmul.f32 %v11186, 1.442695
  %v11563 = vpow.pop %v11562
  %v11564 = vmul.f32 %v11187, 1.442695
  %v11565 = vpow.pop %v11564
  %v11566 = vmul.f32 %v11188, 1.442695
  %v11567 = vpow.pop %v11566
  %v11568 = vmul.f32 %v11189, 1.442695
  %v11569 = vpow.pop %v11568
  %v11570 = vmul.f32 %v11190, 1.442695
  %v11571 = vpow.pop %v11570
  %v11572 = vmul.f32 %v11191, 1.442695
  %v11573 = vpow.pop %v11572
  %v11574 = vmul.f32 %v11192, 1.442695
  %v11575 = vpow.pop %v11574
  %v11576 = vmul.f32 %v11193, 1.442695
  %v11577 = vpow.pop %v11576
  %v11578 = vmul.f32 %v11194, 1.442695
  %v11579 = vpow.pop %v11578
  %v11580 = vmul.f32 %v11195, 1.442695
  %v11581 = vpow.pop %v11580
  %v11582 = vmul.f32 %v11196, 1.442695
  %v11583 = vpow.pop %v11582
  %v11584 = vmul.f32 %v11197, 1.442695
  %v11585 = vpow.pop %v11584
  %v11586 = vmul.f32 %v11198, 1.442695
  %v11587 = vpow.pop %v11586
  %v11588 = vmul.f32 %v11199, 1.442695
  %v11589 = vpow.pop %v11588
  %v11590 = vmul.f32 %v11200, 1.442695
  %v11591 = vpow.pop %v11590
  %v11592 = vmul.f32 %v11201, 1.442695
  %v11593 = vpow.pop %v11592
  %v11594 = vmul.f32 %v11202, 1.442695
  %v11595 = vpow.pop %v11594
  %v11596 = vmul.f32 %v11203, 1.442695
  %v11597 = vpow.pop %v11596
  %v11598 = vmul.f32 %v11204, 1.442695
  %v11599 = vpow.pop %v11598
  %v11600 = vmul.f32 %v11205, 1.442695
  %v11601 = vpow.pop %v11600
  %v11602 = vmul.f32 %v11206, 1.442695
  %v11603 = vpow.pop %v11602
  %v11604 = vmul.f32 %v11207, 1.442695
  %v11605 = vpow.pop %v11604
  %v11606 = vmul.f32 %v11208, 1.442695
  %v11607 = vpow.pop %v11606
  %v11608 = vmul.f32 %v11209, 1.442695
  %v11609 = vpow.pop %v11608
  %v11610 = vmul.f32 %v11210, 1.442695
  %v11611 = vpow.pop %v11610
  %v11612 = vmul.f32 %v11211, 1.442695
  %v11613 = vpow.pop %v11612
  %v11614 = vmul.f32 %v11212, 1.442695
  %v11615 = vpow.pop %v11614
  %v11616 = vmul.f32 %v11213, 1.442695
  %v11617 = vpow.pop %v11616
  %v11618 = vmul.f32 %v11214, 1.442695
  %v11619 = vpow.pop %v11618
  %v11620 = vmul.f32 %v11215, 1.442695
  %v11621 = vpow.pop %v11620
  %v11622 = vmul.f32 %v11216, 1.442695
  %v11623 = vpow.pop %v11622
  %v11624 = vmul.f32 %v11217, 1.442695
  %v11625 = vpow.pop %v11624
  %v11626 = vmul.f32 %v11218, 1.442695
  %v11627 = vpow.pop %v11626
  %v11628 = vmul.f32 %v11219, 1.442695
  %v11629 = vpow.pop %v11628
  %v11630 = vmul.f32 %v11220, 1.442695
  %v11631 = vpow.pop %v11630
  %v11632 = vmul.f32 %v11221, 1.442695
  %v11633 = vpow.pop %v11632
  %v11634 = vmul.f32 %v11222, 1.442695
  %v11635 = vpow.pop %v11634
  %v11636 = vmul.f32 %v11223, 1.442695
  %v11637 = vpow.pop %v11636
  %v11638 = vmul.f32 %v11224, 1.442695
  %v11639 = vpow.pop %v11638
  %v11640 = vmul.f32 %v11225, 1.442695
  %v11641 = vpow.pop %v11640
  %v11642 = vmul.f32 %v11226, 1.442695
  %v11643 = vpow.pop %v11642
  %v11644 = vmul.f32 %v11227, 1.442695
  %v11645 = vpow.pop %v11644
  %v11646 = vmul.f32 %v11228, 1.442695
  %v11647 = vpow.pop %v11646
  %v11648 = vmul.f32 %v11229, 1.442695
  %v11649 = vpow.pop %v11648
  %v11650 = vmul.f32 %v11230, 1.442695
  %v11651 = vpow.pop %v11650
  %v11652 = vmul.f32 %v11231, 1.442695
  %v11653 = vpow.pop %v11652
  %v11654 = vmul.f32 %v11232, 1.442695
  %v11655 = vpow.pop %v11654
  %v11656 = vmul.f32 %v11233, 1.442695
  %v11657 = vpow.pop %v11656
  %v11658 = vmul.f32 %v11234, 1.442695
  %v11659 = vpow.pop %v11658
  %v11660 = vmul.f32 %v11235, 1.442695
  %v11661 = vpow.pop %v11660
  %v11662 = vmul.f32 %v11236, 1.442695
  %v11663 = vpow.pop %v11662
  %v11664 = vmul.f32 %v11237, 1.442695
  %v11665 = vpow.pop %v11664
  %v11666 = vmul.f32 %v11238, 1.442695
  %v11667 = vpow.pop %v11666
  %v11668 = vmul.f32 %v11239, 1.442695
  %v11669 = vpow.pop %v11668
  %v11670 = vmul.f32 %v11240, 1.442695
  %v11671 = vpow.pop %v11670
  %v11672 = vmul.f32 %v11241, 1.442695
  %v11673 = vpow.pop %v11672
  %v11674 = vmul.f32 %v11242, 1.442695
  %v11675 = vpow.pop %v11674
  %v11676 = vmul.f32 %v11243, 1.442695
  %v11677 = vpow.pop %v11676
  %v11678 = vmul.f32 %v11244, 1.442695
  %v11679 = vpow.pop %v11678
  %v11680 = vmul.f32 %v11245, 1.442695
  %v11681 = vpow.pop %v11680
  %v11682 = vmul.f32 %v11246, 1.442695
  %v11683 = vpow.pop %v11682
  %v11684 = vmul.f32 %v11247, 1.442695
  %v11685 = vpow.pop %v11684
  %v11686 = vmul.f32 %v11248, 1.442695
  %v11687 = vpow.pop %v11686
  %v11688 = vmul.f32 %v11249, 1.442695
  %v11689 = vpow.pop %v11688
  %v11690 = vmul.f32 %v11250, 1.442695
  %v11691 = vpow.pop %v11690
  %v11692 = vmul.f32 %v11251, 1.442695
  %v11693 = vpow.pop %v11692
  %v11694 = vmul.f32 %v11252, 1.442695
  %v11695 = vpow.pop %v11694
  %v11696 = vmul.f32 %v11253, 1.442695
  %v11697 = vpow.pop %v11696
  %v11698 = vmul.f32 %v11254, 1.442695
  %v11699 = vpow.pop %v11698
  %v11700 = vmul.f32 %v11255, 1.442695
  %v11701 = vpow.pop %v11700
  %v11702 = vmul.f32 %v11256, 1.442695
  %v11703 = vpow.pop %v11702
  %v11704 = vmul.f32 %v11257, 1.442695
  %v11705 = vpow.pop %v11704
  %v11706 = vmul.f32 %v11258, 1.442695
  %v11707 = vpow.pop %v11706
  %v11708 = vmul.f32 %v11259, 1.442695
  %v11709 = vpow.pop %v11708
  %v11710 = vmul.f32 %v11260, 1.442695
  %v11711 = vpow.pop %v11710
  %v11712 = vmul.f32 %v11261, 1.442695
  %v11713 = vpow.pop %v11712
  %v11714 = vmul.f32 %v11262, 1.442695
  %v11715 = vpow.pop %v11714
  %v11716 = vmul.f32 %v11263, 1.442695
  %v11717 = vpow.pop %v11716
  %v11718 = vmul.f32 %v11264, 1.442695
  %v11719 = vpow.pop %v11718
  %v11720 = vmul.f32 %v11265, 1.442695
  %v11721 = vpow.pop %v11720
  %v11722 = vmul.f32 %v11266, 1.442695
  %v11723 = vpow.pop %v11722
  %v11724 = vmul.f32 %v11267, 1.442695
  %v11725 = vpow.pop %v11724
  %v11726 = vmul.f32 %v11268, 1.442695
  %v11727 = vpow.pop %v11726
  %v11728 = vmul.f32 %v11269, 1.442695
  %v11729 = vpow.pop %v11728
  %v11730 = vmul.f32 %v11270, 1.442695
  %v11731 = vpow.pop %v11730
  %v11732 = vmul.f32 %v11271, 1.442695
  %v11733 = vpow.pop %v11732
  %v11734 = vmul.f32 %v11272, 1.442695
  %v11735 = vpow.pop %v11734
  %v11736 = vmul.f32 %v11273, 1.442695
  %v11737 = vpow.pop %v11736
  %v11738 = vmul.f32 %v11274, 1.442695
  %v11739 = vpow.pop %v11738
  %v11740 = vmul.f32 %v11275, 1.442695
  %v11741 = vpow.pop %v11740
  %v11742 = vmul.f32 %v11276, 1.442695
  %v11743 = vpow.pop %v11742
  %v11744 = vmul.f32 %v11277, 1.442695
  %v11745 = vpow.pop %v11744
  %v11746 = vmul.f32 %v11278, 1.442695
  %v11747 = vpow.pop %v11746
  %v11748 = vmul.f32 %v11279, 1.442695
  %v11749 = vpow.pop %v11748
  %v11750 = vmul.f32 %v11280, 1.442695
  %v11751 = vpow.pop %v11750
  %v11752 = vmul.f32 %v11281, 1.442695
  %v11753 = vpow.pop %v11752
  %v11754 = vmul.f32 %v11282, 1.442695
  %v11755 = vpow.pop %v11754
  %v11756 = vmul.f32 %v11283, 1.442695
  %v11757 = vpow.pop %v11756
  %v11758 = vmul.f32 %v11284, 1.442695
  %v11759 = vpow.pop %v11758
  %v11760 = vmul.f32 %v11285, 1.442695
  %v11761 = vpow.pop %v11760
  %v11762 = vmul.f32 %v11286, 1.442695
  %v11763 = vpow.pop %v11762
  %v11764 = vmul.f32 %v11287, 1.442695
  %v11765 = vpow.pop %v11764
  %v11766 = vmul.f32 %v11288, 1.442695
  %v11767 = vpow.pop %v11766
  %v11768 = vmul.f32 %v11289, 1.442695
  %v11769 = vpow.pop %v11768
  %v11770 = vmul.f32 %v11290, 1.442695
  %v11771 = vpow.pop %v11770
  %v11772 = vmul.f32 %v11291, 1.442695
  %v11773 = vpow.pop %v11772
  %v11774 = vmul.f32 %v11292, 1.442695
  %v11775 = vpow.pop %v11774
  %v11776 = vmul.f32 %v11293, 1.442695
  %v11777 = vpow.pop %v11776
  %v11778 = vmul.f32 %v11294, 1.442695
  %v11779 = vpow.pop %v11778
  %v11780 = vmul.f32 %v11295, 1.442695
  %v11781 = vpow.pop %v11780
  %v11782 = vmul.f32 %v11296, 1.442695
  %v11783 = vpow.pop %v11782
  %v11784 = vmul.f32 %v11297, 1.442695
  %v11785 = vpow.pop %v11784
  %v11786 = vmul.f32 %v11298, 1.442695
  %v11787 = vpow.pop %v11786
  %v11788 = vmul.f32 %v11299, 1.442695
  %v11789 = vpow.pop %v11788
  %v11790 = vmul.f32 %v11300, 1.442695
  %v11791 = vpow.pop %v11790
  %v11792 = vmul.f32 %v11301, 1.442695
  %v11793 = vpow.pop %v11792
  %v11794 = vmul.f32 %v11302, 1.442695
  %v11795 = vpow.pop %v11794
  %v11796 = vmul.f32 %v11303, 1.442695
  %v11797 = vpow.pop %v11796
  %v11798 = vmul.f32 %v11304, 1.442695
  %v11799 = vpow.pop %v11798
  %v11800 = vmul.f32 %v11305, 1.442695
  %v11801 = vpow.pop %v11800
  %v11802 = vmul.f32 %v11306, 1.442695
  %v11803 = vpow.pop %v11802
  %v11804 = vmul.f32 %v11307, 1.442695
  %v11805 = vpow.pop %v11804
  %v11806 = vmul.f32 %v11308, 1.442695
  %v11807 = vpow.pop %v11806
  %v11808 = vmul.f32 %v11309, 1.442695
  %v11809 = vpow.pop %v11808
  %v11810 = vmul.f32 %v11310, 1.442695
  %v11811 = vpow.pop %v11810
  %v11812 = vmul.f32 %v11311, 1.442695
  %v11813 = vpow.pop %v11812
  %v11814 = vmul.f32 %v11312, 1.442695
  %v11815 = vpow.pop %v11814
  %v11816 = vmul.f32 %v11313, 1.442695
  %v11817 = vpow.pop %v11816
  %v11818 = vmul.f32 %v11314, 1.442695
  %v11819 = vpow.pop %v11818
  %v11820 = vmul.f32 %v11315, 1.442695
  %v11821 = vpow.pop %v11820
  %v11822 = vmul.f32 %v11316, 1.442695
  %v11823 = vpow.pop %v11822
  %v11824 = vmul.f32 %v11317, 1.442695
  %v11825 = vpow.pop %v11824
  %v11826 = vmul.f32 %v11318, 1.442695
  %v11827 = vpow.pop %v11826
  %v11828 = vmul.f32 %v11319, 1.442695
  %v11829 = vpow.pop %v11828
  %v11830 = vmul.f32 %v11320, 1.442695
  %v11831 = vpow.pop %v11830
  %v11832 = vmul.f32 %v11321, 1.442695
  %v11833 = vpow.pop %v11832
  %v11834 = vadd.f32 %v11323, 1.0
  %v11835 = vadd.f32 %v11325, 1.0
  %v11836 = vadd.f32 %v11327, 1.0
  %v11837 = vadd.f32 %v11329, 1.0
  %v11838 = vadd.f32 %v11331, 1.0
  %v11839 = vadd.f32 %v11333, 1.0
  %v11840 = vadd.f32 %v11335, 1.0
  %v11841 = vadd.f32 %v11337, 1.0
  %v11842 = vadd.f32 %v11339, 1.0
  %v11843 = vadd.f32 %v11341, 1.0
  %v11844 = vadd.f32 %v11343, 1.0
  %v11845 = vadd.f32 %v11345, 1.0
  %v11846 = vadd.f32 %v11347, 1.0
  %v11847 = vadd.f32 %v11349, 1.0
  %v11848 = vadd.f32 %v11351, 1.0
  %v11849 = vadd.f32 %v11353, 1.0
  %v11850 = vadd.f32 %v11355, 1.0
  %v11851 = vadd.f32 %v11357, 1.0
  %v11852 = vadd.f32 %v11359, 1.0
  %v11853 = vadd.f32 %v11361, 1.0
  %v11854 = vadd.f32 %v11363, 1.0
  %v11855 = vadd.f32 %v11365, 1.0
  %v11856 = vadd.f32 %v11367, 1.0
  %v11857 = vadd.f32 %v11369, 1.0
  %v11858 = vadd.f32 %v11371, 1.0
  %v11859 = vadd.f32 %v11373, 1.0
  %v11860 = vadd.f32 %v11375, 1.0
  %v11861 = vadd.f32 %v11377, 1.0
  %v11862 = vadd.f32 %v11379, 1.0
  %v11863 = vadd.f32 %v11381, 1.0
  %v11864 = vadd.f32 %v11383, 1.0
  %v11865 = vadd.f32 %v11385, 1.0
  %v11866 = vadd.f32 %v11387, 1.0
  %v11867 = vadd.f32 %v11389, 1.0
  %v11868 = vadd.f32 %v11391, 1.0
  %v11869 = vadd.f32 %v11393, 1.0
  %v11870 = vadd.f32 %v11395, 1.0
  %v11871 = vadd.f32 %v11397, 1.0
  %v11872 = vadd.f32 %v11399, 1.0
  %v11873 = vadd.f32 %v11401, 1.0
  %v11874 = vadd.f32 %v11403, 1.0
  %v11875 = vadd.f32 %v11405, 1.0
  %v11876 = vadd.f32 %v11407, 1.0
  %v11877 = vadd.f32 %v11409, 1.0
  %v11878 = vadd.f32 %v11411, 1.0
  %v11879 = vadd.f32 %v11413, 1.0
  %v11880 = vadd.f32 %v11415, 1.0
  %v11881 = vadd.f32 %v11417, 1.0
  %v11882 = vadd.f32 %v11419, 1.0
  %v11883 = vadd.f32 %v11421, 1.0
  %v11884 = vadd.f32 %v11423, 1.0
  %v11885 = vadd.f32 %v11425, 1.0
  %v11886 = vadd.f32 %v11427, 1.0
  %v11887 = vadd.f32 %v11429, 1.0
  %v11888 = vadd.f32 %v11431, 1.0
  %v11889 = vadd.f32 %v11433, 1.0
  %v11890 = vadd.f32 %v11435, 1.0
  %v11891 = vadd.f32 %v11437, 1.0
  %v11892 = vadd.f32 %v11439, 1.0
  %v11893 = vadd.f32 %v11441, 1.0
  %v11894 = vadd.f32 %v11443, 1.0
  %v11895 = vadd.f32 %v11445, 1.0
  %v11896 = vadd.f32 %v11447, 1.0
  %v11897 = vadd.f32 %v11449, 1.0
  %v11898 = vadd.f32 %v11451, 1.0
  %v11899 = vadd.f32 %v11453, 1.0
  %v11900 = vadd.f32 %v11455, 1.0
  %v11901 = vadd.f32 %v11457, 1.0
  %v11902 = vadd.f32 %v11459, 1.0
  %v11903 = vadd.f32 %v11461, 1.0
  %v11904 = vadd.f32 %v11463, 1.0
  %v11905 = vadd.f32 %v11465, 1.0
  %v11906 = vadd.f32 %v11467, 1.0
  %v11907 = vadd.f32 %v11469, 1.0
  %v11908 = vadd.f32 %v11471, 1.0
  %v11909 = vadd.f32 %v11473, 1.0
  %v11910 = vadd.f32 %v11475, 1.0
  %v11911 = vadd.f32 %v11477, 1.0
  %v11912 = vadd.f32 %v11479, 1.0
  %v11913 = vadd.f32 %v11481, 1.0
  %v11914 = vadd.f32 %v11483, 1.0
  %v11915 = vadd.f32 %v11485, 1.0
  %v11916 = vadd.f32 %v11487, 1.0
  %v11917 = vadd.f32 %v11489, 1.0
  %v11918 = vadd.f32 %v11491, 1.0
  %v11919 = vadd.f32 %v11493, 1.0
  %v11920 = vadd.f32 %v11495, 1.0
  %v11921 = vadd.f32 %v11497, 1.0
  %v11922 = vadd.f32 %v11499, 1.0
  %v11923 = vadd.f32 %v11501, 1.0
  %v11924 = vadd.f32 %v11503, 1.0
  %v11925 = vadd.f32 %v11505, 1.0
  %v11926 = vadd.f32 %v11507, 1.0
  %v11927 = vadd.f32 %v11509, 1.0
  %v11928 = vadd.f32 %v11511, 1.0
  %v11929 = vadd.f32 %v11513, 1.0
  %v11930 = vadd.f32 %v11515, 1.0
  %v11931 = vadd.f32 %v11517, 1.0
  %v11932 = vadd.f32 %v11519, 1.0
  %v11933 = vadd.f32 %v11521, 1.0
  %v11934 = vadd.f32 %v11523, 1.0
  %v11935 = vadd.f32 %v11525, 1.0
  %v11936 = vadd.f32 %v11527, 1.0
  %v11937 = vadd.f32 %v11529, 1.0
  %v11938 = vadd.f32 %v11531, 1.0
  %v11939 = vadd.f32 %v11533, 1.0
  %v11940 = vadd.f32 %v11535, 1.0
  %v11941 = vadd.f32 %v11537, 1.0
  %v11942 = vadd.f32 %v11539, 1.0
  %v11943 = vadd.f32 %v11541, 1.0
  %v11944 = vadd.f32 %v11543, 1.0
  %v11945 = vadd.f32 %v11545, 1.0
  %v11946 = vadd.f32 %v11547, 1.0
  %v11947 = vadd.f32 %v11549, 1.0
  %v11948 = vadd.f32 %v11551, 1.0
  %v11949 = vadd.f32 %v11553, 1.0
  %v11950 = vadd.f32 %v11555, 1.0
  %v11951 = vadd.f32 %v11557, 1.0
  %v11952 = vadd.f32 %v11559, 1.0
  %v11953 = vadd.f32 %v11561, 1.0
  %v11954 = vadd.f32 %v11563, 1.0
  %v11955 = vadd.f32 %v11565, 1.0
  %v11956 = vadd.f32 %v11567, 1.0
  %v11957 = vadd.f32 %v11569, 1.0
  %v11958 = vadd.f32 %v11571, 1.0
  %v11959 = vadd.f32 %v11573, 1.0
  %v11960 = vadd.f32 %v11575, 1.0
  %v11961 = vadd.f32 %v11577, 1.0
  %v11962 = vadd.f32 %v11579, 1.0
  %v11963 = vadd.f32 %v11581, 1.0
  %v11964 = vadd.f32 %v11583, 1.0
  %v11965 = vadd.f32 %v11585, 1.0
  %v11966 = vadd.f32 %v11587, 1.0
  %v11967 = vadd.f32 %v11589, 1.0
  %v11968 = vadd.f32 %v11591, 1.0
  %v11969 = vadd.f32 %v11593, 1.0
  %v11970 = vadd.f32 %v11595, 1.0
  %v11971 = vadd.f32 %v11597, 1.0
  %v11972 = vadd.f32 %v11599, 1.0
  %v11973 = vadd.f32 %v11601, 1.0
  %v11974 = vadd.f32 %v11603, 1.0
  %v11975 = vadd.f32 %v11605, 1.0
  %v11976 = vadd.f32 %v11607, 1.0
  %v11977 = vadd.f32 %v11609, 1.0
  %v11978 = vadd.f32 %v11611, 1.0
  %v11979 = vadd.f32 %v11613, 1.0
  %v11980 = vadd.f32 %v11615, 1.0
  %v11981 = vadd.f32 %v11617, 1.0
  %v11982 = vadd.f32 %v11619, 1.0
  %v11983 = vadd.f32 %v11621, 1.0
  %v11984 = vadd.f32 %v11623, 1.0
  %v11985 = vadd.f32 %v11625, 1.0
  %v11986 = vadd.f32 %v11627, 1.0
  %v11987 = vadd.f32 %v11629, 1.0
  %v11988 = vadd.f32 %v11631, 1.0
  %v11989 = vadd.f32 %v11633, 1.0
  %v11990 = vadd.f32 %v11635, 1.0
  %v11991 = vadd.f32 %v11637, 1.0
  %v11992 = vadd.f32 %v11639, 1.0
  %v11993 = vadd.f32 %v11641, 1.0
  %v11994 = vadd.f32 %v11643, 1.0
  %v11995 = vadd.f32 %v11645, 1.0
  %v11996 = vadd.f32 %v11647, 1.0
  %v11997 = vadd.f32 %v11649, 1.0
  %v11998 = vadd.f32 %v11651, 1.0
  %v11999 = vadd.f32 %v11653, 1.0
  %v12000 = vadd.f32 %v11655, 1.0
  %v12001 = vadd.f32 %v11657, 1.0
  %v12002 = vadd.f32 %v11659, 1.0
  %v12003 = vadd.f32 %v11661, 1.0
  %v12004 = vadd.f32 %v11663, 1.0
  %v12005 = vadd.f32 %v11665, 1.0
  %v12006 = vadd.f32 %v11667, 1.0
  %v12007 = vadd.f32 %v11669, 1.0
  %v12008 = vadd.f32 %v11671, 1.0
  %v12009 = vadd.f32 %v11673, 1.0
  %v12010 = vadd.f32 %v11675, 1.0
  %v12011 = vadd.f32 %v11677, 1.0
  %v12012 = vadd.f32 %v11679, 1.0
  %v12013 = vadd.f32 %v11681, 1.0
  %v12014 = vadd.f32 %v11683, 1.0
  %v12015 = vadd.f32 %v11685, 1.0
  %v12016 = vadd.f32 %v11687, 1.0
  %v12017 = vadd.f32 %v11689, 1.0
  %v12018 = vadd.f32 %v11691, 1.0
  %v12019 = vadd.f32 %v11693, 1.0
  %v12020 = vadd.f32 %v11695, 1.0
  %v12021 = vadd.f32 %v11697, 1.0
  %v12022 = vadd.f32 %v11699, 1.0
  %v12023 = vadd.f32 %v11701, 1.0
  %v12024 = vadd.f32 %v11703, 1.0
  %v12025 = vadd.f32 %v11705, 1.0
  %v12026 = vadd.f32 %v11707, 1.0
  %v12027 = vadd.f32 %v11709, 1.0
  %v12028 = vadd.f32 %v11711, 1.0
  %v12029 = vadd.f32 %v11713, 1.0
  %v12030 = vadd.f32 %v11715, 1.0
  %v12031 = vadd.f32 %v11717, 1.0
  %v12032 = vadd.f32 %v11719, 1.0
  %v12033 = vadd.f32 %v11721, 1.0
  %v12034 = vadd.f32 %v11723, 1.0
  %v12035 = vadd.f32 %v11725, 1.0
  %v12036 = vadd.f32 %v11727, 1.0
  %v12037 = vadd.f32 %v11729, 1.0
  %v12038 = vadd.f32 %v11731, 1.0
  %v12039 = vadd.f32 %v11733, 1.0
  %v12040 = vadd.f32 %v11735, 1.0
  %v12041 = vadd.f32 %v11737, 1.0
  %v12042 = vadd.f32 %v11739, 1.0
  %v12043 = vadd.f32 %v11741, 1.0
  %v12044 = vadd.f32 %v11743, 1.0
  %v12045 = vadd.f32 %v11745, 1.0
  %v12046 = vadd.f32 %v11747, 1.0
  %v12047 = vadd.f32 %v11749, 1.0
  %v12048 = vadd.f32 %v11751, 1.0
  %v12049 = vadd.f32 %v11753, 1.0
  %v12050 = vadd.f32 %v11755, 1.0
  %v12051 = vadd.f32 %v11757, 1.0
  %v12052 = vadd.f32 %v11759, 1.0
  %v12053 = vadd.f32 %v11761, 1.0
  %v12054 = vadd.f32 %v11763, 1.0
  %v12055 = vadd.f32 %v11765, 1.0
  %v12056 = vadd.f32 %v11767, 1.0
  %v12057 = vadd.f32 %v11769, 1.0
  %v12058 = vadd.f32 %v11771, 1.0
  %v12059 = vadd.f32 %v11773, 1.0
  %v12060 = vadd.f32 %v11775, 1.0
  %v12061 = vadd.f32 %v11777, 1.0
  %v12062 = vadd.f32 %v11779, 1.0
  %v12063 = vadd.f32 %v11781, 1.0
  %v12064 = vadd.f32 %v11783, 1.0
  %v12065 = vadd.f32 %v11785, 1.0
  %v12066 = vadd.f32 %v11787, 1.0
  %v12067 = vadd.f32 %v11789, 1.0
  %v12068 = vadd.f32 %v11791, 1.0
  %v12069 = vadd.f32 %v11793, 1.0
  %v12070 = vadd.f32 %v11795, 1.0
  %v12071 = vadd.f32 %v11797, 1.0
  %v12072 = vadd.f32 %v11799, 1.0
  %v12073 = vadd.f32 %v11801, 1.0
  %v12074 = vadd.f32 %v11803, 1.0
  %v12075 = vadd.f32 %v11805, 1.0
  %v12076 = vadd.f32 %v11807, 1.0
  %v12077 = vadd.f32 %v11809, 1.0
  %v12078 = vadd.f32 %v11811, 1.0
  %v12079 = vadd.f32 %v11813, 1.0
  %v12080 = vadd.f32 %v11815, 1.0
  %v12081 = vadd.f32 %v11817, 1.0
  %v12082 = vadd.f32 %v11819, 1.0
  %v12083 = vadd.f32 %v11821, 1.0
  %v12084 = vadd.f32 %v11823, 1.0
  %v12085 = vadd.f32 %v11825, 1.0
  %v12086 = vadd.f32 %v11827, 1.0
  %v12087 = vadd.f32 %v11829, 1.0
  %v12088 = vadd.f32 %v11831, 1.0
  %v12089 = vadd.f32 %v11833, 1.0
  %v12090 = vrcp.pop %v11834
  %v12091 = vmul.f32 1.0, %v12090
  %v12092 = vrcp.pop %v11835
  %v12093 = vmul.f32 1.0, %v12092
  %v12094 = vrcp.pop %v11836
  %v12095 = vmul.f32 1.0, %v12094
  %v12096 = vrcp.pop %v11837
  %v12097 = vmul.f32 1.0, %v12096
  %v12098 = vrcp.pop %v11838
  %v12099 = vmul.f32 1.0, %v12098
  %v12100 = vrcp.pop %v11839
  %v12101 = vmul.f32 1.0, %v12100
  %v12102 = vrcp.pop %v11840
  %v12103 = vmul.f32 1.0, %v12102
  %v12104 = vrcp.pop %v11841
  %v12105 = vmul.f32 1.0, %v12104
  %v12106 = vrcp.pop %v11842
  %v12107 = vmul.f32 1.0, %v12106
  %v12108 = vrcp.pop %v11843
  %v12109 = vmul.f32 1.0, %v12108
  %v12110 = vrcp.pop %v11844
  %v12111 = vmul.f32 1.0, %v12110
  %v12112 = vrcp.pop %v11845
  %v12113 = vmul.f32 1.0, %v12112
  %v12114 = vrcp.pop %v11846
  %v12115 = vmul.f32 1.0, %v12114
  %v12116 = vrcp.pop %v11847
  %v12117 = vmul.f32 1.0, %v12116
  %v12118 = vrcp.pop %v11848
  %v12119 = vmul.f32 1.0, %v12118
  %v12120 = vrcp.pop %v11849
  %v12121 = vmul.f32 1.0, %v12120
  %v12122 = vrcp.pop %v11850
  %v12123 = vmul.f32 1.0, %v12122
  %v12124 = vrcp.pop %v11851
  %v12125 = vmul.f32 1.0, %v12124
  %v12126 = vrcp.pop %v11852
  %v12127 = vmul.f32 1.0, %v12126
  %v12128 = vrcp.pop %v11853
  %v12129 = vmul.f32 1.0, %v12128
  %v12130 = vrcp.pop %v11854
  %v12131 = vmul.f32 1.0, %v12130
  %v12132 = vrcp.pop %v11855
  %v12133 = vmul.f32 1.0, %v12132
  %v12134 = vrcp.pop %v11856
  %v12135 = vmul.f32 1.0, %v12134
  %v12136 = vrcp.pop %v11857
  %v12137 = vmul.f32 1.0, %v12136
  %v12138 = vrcp.pop %v11858
  %v12139 = vmul.f32 1.0, %v12138
  %v12140 = vrcp.pop %v11859
  %v12141 = vmul.f32 1.0, %v12140
  %v12142 = vrcp.pop %v11860
  %v12143 = vmul.f32 1.0, %v12142
  %v12144 = vrcp.pop %v11861
  %v12145 = vmul.f32 1.0, %v12144
  %v12146 = vrcp.pop %v11862
  %v12147 = vmul.f32 1.0, %v12146
  %v12148 = vrcp.pop %v11863
  %v12149 = vmul.f32 1.0, %v12148
  %v12150 = vrcp.pop %v11864
  %v12151 = vmul.f32 1.0, %v12150
  %v12152 = vrcp.pop %v11865
  %v12153 = vmul.f32 1.0, %v12152
  %v12154 = vrcp.pop %v11866
  %v12155 = vmul.f32 1.0, %v12154
  %v12156 = vrcp.pop %v11867
  %v12157 = vmul.f32 1.0, %v12156
  %v12158 = vrcp.pop %v11868
  %v12159 = vmul.f32 1.0, %v12158
  %v12160 = vrcp.pop %v11869
  %v12161 = vmul.f32 1.0, %v12160
  %v12162 = vrcp.pop %v11870
  %v12163 = vmul.f32 1.0, %v12162
  %v12164 = vrcp.pop %v11871
  %v12165 = vmul.f32 1.0, %v12164
  %v12166 = vrcp.pop %v11872
  %v12167 = vmul.f32 1.0, %v12166
  %v12168 = vrcp.pop %v11873
  %v12169 = vmul.f32 1.0, %v12168
  %v12170 = vrcp.pop %v11874
  %v12171 = vmul.f32 1.0, %v12170
  %v12172 = vrcp.pop %v11875
  %v12173 = vmul.f32 1.0, %v12172
  %v12174 = vrcp.pop %v11876
  %v12175 = vmul.f32 1.0, %v12174
  %v12176 = vrcp.pop %v11877
  %v12177 = vmul.f32 1.0, %v12176
  %v12178 = vrcp.pop %v11878
  %v12179 = vmul.f32 1.0, %v12178
  %v12180 = vrcp.pop %v11879
  %v12181 = vmul.f32 1.0, %v12180
  %v12182 = vrcp.pop %v11880
  %v12183 = vmul.f32 1.0, %v12182
  %v12184 = vrcp.pop %v11881
  %v12185 = vmul.f32 1.0, %v12184
  %v12186 = vrcp.pop %v11882
  %v12187 = vmul.f32 1.0, %v12186
  %v12188 = vrcp.pop %v11883
  %v12189 = vmul.f32 1.0, %v12188
  %v12190 = vrcp.pop %v11884
  %v12191 = vmul.f32 1.0, %v12190
  %v12192 = vrcp.pop %v11885
  %v12193 = vmul.f32 1.0, %v12192
  %v12194 = vrcp.pop %v11886
  %v12195 = vmul.f32 1.0, %v12194
  %v12196 = vrcp.pop %v11887
  %v12197 = vmul.f32 1.0, %v12196
  %v12198 = vrcp.pop %v11888
  %v12199 = vmul.f32 1.0, %v12198
  %v12200 = vrcp.pop %v11889
  %v12201 = vmul.f32 1.0, %v12200
  %v12202 = vrcp.pop %v11890
  %v12203 = vmul.f32 1.0, %v12202
  %v12204 = vrcp.pop %v11891
  %v12205 = vmul.f32 1.0, %v12204
  %v12206 = vrcp.pop %v11892
  %v12207 = vmul.f32 1.0, %v12206
  %v12208 = vrcp.pop %v11893
  %v12209 = vmul.f32 1.0, %v12208
  %v12210 = vrcp.pop %v11894
  %v12211 = vmul.f32 1.0, %v12210
  %v12212 = vrcp.pop %v11895
  %v12213 = vmul.f32 1.0, %v12212
  %v12214 = vrcp.pop %v11896
  %v12215 = vmul.f32 1.0, %v12214
  %v12216 = vrcp.pop %v11897
  %v12217 = vmul.f32 1.0, %v12216
  %v12218 = vrcp.pop %v11898
  %v12219 = vmul.f32 1.0, %v12218
  %v12220 = vrcp.pop %v11899
  %v12221 = vmul.f32 1.0, %v12220
  %v12222 = vrcp.pop %v11900
  %v12223 = vmul.f32 1.0, %v12222
  %v12224 = vrcp.pop %v11901
  %v12225 = vmul.f32 1.0, %v12224
  %v12226 = vrcp.pop %v11902
  %v12227 = vmul.f32 1.0, %v12226
  %v12228 = vrcp.pop %v11903
  %v12229 = vmul.f32 1.0, %v12228
  %v12230 = vrcp.pop %v11904
  %v12231 = vmul.f32 1.0, %v12230
  %v12232 = vrcp.pop %v11905
  %v12233 = vmul.f32 1.0, %v12232
  %v12234 = vrcp.pop %v11906
  %v12235 = vmul.f32 1.0, %v12234
  %v12236 = vrcp.pop %v11907
  %v12237 = vmul.f32 1.0, %v12236
  %v12238 = vrcp.pop %v11908
  %v12239 = vmul.f32 1.0, %v12238
  %v12240 = vrcp.pop %v11909
  %v12241 = vmul.f32 1.0, %v12240
  %v12242 = vrcp.pop %v11910
  %v12243 = vmul.f32 1.0, %v12242
  %v12244 = vrcp.pop %v11911
  %v12245 = vmul.f32 1.0, %v12244
  %v12246 = vrcp.pop %v11912
  %v12247 = vmul.f32 1.0, %v12246
  %v12248 = vrcp.pop %v11913
  %v12249 = vmul.f32 1.0, %v12248
  %v12250 = vrcp.pop %v11914
  %v12251 = vmul.f32 1.0, %v12250
  %v12252 = vrcp.pop %v11915
  %v12253 = vmul.f32 1.0, %v12252
  %v12254 = vrcp.pop %v11916
  %v12255 = vmul.f32 1.0, %v12254
  %v12256 = vrcp.pop %v11917
  %v12257 = vmul.f32 1.0, %v12256
  %v12258 = vrcp.pop %v11918
  %v12259 = vmul.f32 1.0, %v12258
  %v12260 = vrcp.pop %v11919
  %v12261 = vmul.f32 1.0, %v12260
  %v12262 = vrcp.pop %v11920
  %v12263 = vmul.f32 1.0, %v12262
  %v12264 = vrcp.pop %v11921
  %v12265 = vmul.f32 1.0, %v12264
  %v12266 = vrcp.pop %v11922
  %v12267 = vmul.f32 1.0, %v12266
  %v12268 = vrcp.pop %v11923
  %v12269 = vmul.f32 1.0, %v12268
  %v12270 = vrcp.pop %v11924
  %v12271 = vmul.f32 1.0, %v12270
  %v12272 = vrcp.pop %v11925
  %v12273 = vmul.f32 1.0, %v12272
  %v12274 = vrcp.pop %v11926
  %v12275 = vmul.f32 1.0, %v12274
  %v12276 = vrcp.pop %v11927
  %v12277 = vmul.f32 1.0, %v12276
  %v12278 = vrcp.pop %v11928
  %v12279 = vmul.f32 1.0, %v12278
  %v12280 = vrcp.pop %v11929
  %v12281 = vmul.f32 1.0, %v12280
  %v12282 = vrcp.pop %v11930
  %v12283 = vmul.f32 1.0, %v12282
  %v12284 = vrcp.pop %v11931
  %v12285 = vmul.f32 1.0, %v12284
  %v12286 = vrcp.pop %v11932
  %v12287 = vmul.f32 1.0, %v12286
  %v12288 = vrcp.pop %v11933
  %v12289 = vmul.f32 1.0, %v12288
  %v12290 = vrcp.pop %v11934
  %v12291 = vmul.f32 1.0, %v12290
  %v12292 = vrcp.pop %v11935
  %v12293 = vmul.f32 1.0, %v12292
  %v12294 = vrcp.pop %v11936
  %v12295 = vmul.f32 1.0, %v12294
  %v12296 = vrcp.pop %v11937
  %v12297 = vmul.f32 1.0, %v12296
  %v12298 = vrcp.pop %v11938
  %v12299 = vmul.f32 1.0, %v12298
  %v12300 = vrcp.pop %v11939
  %v12301 = vmul.f32 1.0, %v12300
  %v12302 = vrcp.pop %v11940
  %v12303 = vmul.f32 1.0, %v12302
  %v12304 = vrcp.pop %v11941
  %v12305 = vmul.f32 1.0, %v12304
  %v12306 = vrcp.pop %v11942
  %v12307 = vmul.f32 1.0, %v12306
  %v12308 = vrcp.pop %v11943
  %v12309 = vmul.f32 1.0, %v12308
  %v12310 = vrcp.pop %v11944
  %v12311 = vmul.f32 1.0, %v12310
  %v12312 = vrcp.pop %v11945
  %v12313 = vmul.f32 1.0, %v12312
  %v12314 = vrcp.pop %v11946
  %v12315 = vmul.f32 1.0, %v12314
  %v12316 = vrcp.pop %v11947
  %v12317 = vmul.f32 1.0, %v12316
  %v12318 = vrcp.pop %v11948
  %v12319 = vmul.f32 1.0, %v12318
  %v12320 = vrcp.pop %v11949
  %v12321 = vmul.f32 1.0, %v12320
  %v12322 = vrcp.pop %v11950
  %v12323 = vmul.f32 1.0, %v12322
  %v12324 = vrcp.pop %v11951
  %v12325 = vmul.f32 1.0, %v12324
  %v12326 = vrcp.pop %v11952
  %v12327 = vmul.f32 1.0, %v12326
  %v12328 = vrcp.pop %v11953
  %v12329 = vmul.f32 1.0, %v12328
  %v12330 = vrcp.pop %v11954
  %v12331 = vmul.f32 1.0, %v12330
  %v12332 = vrcp.pop %v11955
  %v12333 = vmul.f32 1.0, %v12332
  %v12334 = vrcp.pop %v11956
  %v12335 = vmul.f32 1.0, %v12334
  %v12336 = vrcp.pop %v11957
  %v12337 = vmul.f32 1.0, %v12336
  %v12338 = vrcp.pop %v11958
  %v12339 = vmul.f32 1.0, %v12338
  %v12340 = vrcp.pop %v11959
  %v12341 = vmul.f32 1.0, %v12340
  %v12342 = vrcp.pop %v11960
  %v12343 = vmul.f32 1.0, %v12342
  %v12344 = vrcp.pop %v11961
  %v12345 = vmul.f32 1.0, %v12344
  %v12346 = vrcp.pop %v11962
  %v12347 = vmul.f32 1.0, %v12346
  %v12348 = vrcp.pop %v11963
  %v12349 = vmul.f32 1.0, %v12348
  %v12350 = vrcp.pop %v11964
  %v12351 = vmul.f32 1.0, %v12350
  %v12352 = vrcp.pop %v11965
  %v12353 = vmul.f32 1.0, %v12352
  %v12354 = vrcp.pop %v11966
  %v12355 = vmul.f32 1.0, %v12354
  %v12356 = vrcp.pop %v11967
  %v12357 = vmul.f32 1.0, %v12356
  %v12358 = vrcp.pop %v11968
  %v12359 = vmul.f32 1.0, %v12358
  %v12360 = vrcp.pop %v11969
  %v12361 = vmul.f32 1.0, %v12360
  %v12362 = vrcp.pop %v11970
  %v12363 = vmul.f32 1.0, %v12362
  %v12364 = vrcp.pop %v11971
  %v12365 = vmul.f32 1.0, %v12364
  %v12366 = vrcp.pop %v11972
  %v12367 = vmul.f32 1.0, %v12366
  %v12368 = vrcp.pop %v11973
  %v12369 = vmul.f32 1.0, %v12368
  %v12370 = vrcp.pop %v11974
  %v12371 = vmul.f32 1.0, %v12370
  %v12372 = vrcp.pop %v11975
  %v12373 = vmul.f32 1.0, %v12372
  %v12374 = vrcp.pop %v11976
  %v12375 = vmul.f32 1.0, %v12374
  %v12376 = vrcp.pop %v11977
  %v12377 = vmul.f32 1.0, %v12376
  %v12378 = vrcp.pop %v11978
  %v12379 = vmul.f32 1.0, %v12378
  %v12380 = vrcp.pop %v11979
  %v12381 = vmul.f32 1.0, %v12380
  %v12382 = vrcp.pop %v11980
  %v12383 = vmul.f32 1.0, %v12382
  %v12384 = vrcp.pop %v11981
  %v12385 = vmul.f32 1.0, %v12384
  %v12386 = vrcp.pop %v11982
  %v12387 = vmul.f32 1.0, %v12386
  %v12388 = vrcp.pop %v11983
  %v12389 = vmul.f32 1.0, %v12388
  %v12390 = vrcp.pop %v11984
  %v12391 = vmul.f32 1.0, %v12390
  %v12392 = vrcp.pop %v11985
  %v12393 = vmul.f32 1.0, %v12392
  %v12394 = vrcp.pop %v11986
  %v12395 = vmul.f32 1.0, %v12394
  %v12396 = vrcp.pop %v11987
  %v12397 = vmul.f32 1.0, %v12396
  %v12398 = vrcp.pop %v11988
  %v12399 = vmul.f32 1.0, %v12398
  %v12400 = vrcp.pop %v11989
  %v12401 = vmul.f32 1.0, %v12400
  %v12402 = vrcp.pop %v11990
  %v12403 = vmul.f32 1.0, %v12402
  %v12404 = vrcp.pop %v11991
  %v12405 = vmul.f32 1.0, %v12404
  %v12406 = vrcp.pop %v11992
  %v12407 = vmul.f32 1.0, %v12406
  %v12408 = vrcp.pop %v11993
  %v12409 = vmul.f32 1.0, %v12408
  %v12410 = vrcp.pop %v11994
  %v12411 = vmul.f32 1.0, %v12410
  %v12412 = vrcp.pop %v11995
  %v12413 = vmul.f32 1.0, %v12412
  %v12414 = vrcp.pop %v11996
  %v12415 = vmul.f32 1.0, %v12414
  %v12416 = vrcp.pop %v11997
  %v12417 = vmul.f32 1.0, %v12416
  %v12418 = vrcp.pop %v11998
  %v12419 = vmul.f32 1.0, %v12418
  %v12420 = vrcp.pop %v11999
  %v12421 = vmul.f32 1.0, %v12420
  %v12422 = vrcp.pop %v12000
  %v12423 = vmul.f32 1.0, %v12422
  %v12424 = vrcp.pop %v12001
  %v12425 = vmul.f32 1.0, %v12424
  %v12426 = vrcp.pop %v12002
  %v12427 = vmul.f32 1.0, %v12426
  %v12428 = vrcp.pop %v12003
  %v12429 = vmul.f32 1.0, %v12428
  %v12430 = vrcp.pop %v12004
  %v12431 = vmul.f32 1.0, %v12430
  %v12432 = vrcp.pop %v12005
  %v12433 = vmul.f32 1.0, %v12432
  %v12434 = vrcp.pop %v12006
  %v12435 = vmul.f32 1.0, %v12434
  %v12436 = vrcp.pop %v12007
  %v12437 = vmul.f32 1.0, %v12436
  %v12438 = vrcp.pop %v12008
  %v12439 = vmul.f32 1.0, %v12438
  %v12440 = vrcp.pop %v12009
  %v12441 = vmul.f32 1.0, %v12440
  %v12442 = vrcp.pop %v12010
  %v12443 = vmul.f32 1.0, %v12442
  %v12444 = vrcp.pop %v12011
  %v12445 = vmul.f32 1.0, %v12444
  %v12446 = vrcp.pop %v12012
  %v12447 = vmul.f32 1.0, %v12446
  %v12448 = vrcp.pop %v12013
  %v12449 = vmul.f32 1.0, %v12448
  %v12450 = vrcp.pop %v12014
  %v12451 = vmul.f32 1.0, %v12450
  %v12452 = vrcp.pop %v12015
  %v12453 = vmul.f32 1.0, %v12452
  %v12454 = vrcp.pop %v12016
  %v12455 = vmul.f32 1.0, %v12454
  %v12456 = vrcp.pop %v12017
  %v12457 = vmul.f32 1.0, %v12456
  %v12458 = vrcp.pop %v12018
  %v12459 = vmul.f32 1.0, %v12458
  %v12460 = vrcp.pop %v12019
  %v12461 = vmul.f32 1.0, %v12460
  %v12462 = vrcp.pop %v12020
  %v12463 = vmul.f32 1.0, %v12462
  %v12464 = vrcp.pop %v12021
  %v12465 = vmul.f32 1.0, %v12464
  %v12466 = vrcp.pop %v12022
  %v12467 = vmul.f32 1.0, %v12466
  %v12468 = vrcp.pop %v12023
  %v12469 = vmul.f32 1.0, %v12468
  %v12470 = vrcp.pop %v12024
  %v12471 = vmul.f32 1.0, %v12470
  %v12472 = vrcp.pop %v12025
  %v12473 = vmul.f32 1.0, %v12472
  %v12474 = vrcp.pop %v12026
  %v12475 = vmul.f32 1.0, %v12474
  %v12476 = vrcp.pop %v12027
  %v12477 = vmul.f32 1.0, %v12476
  %v12478 = vrcp.pop %v12028
  %v12479 = vmul.f32 1.0, %v12478
  %v12480 = vrcp.pop %v12029
  %v12481 = vmul.f32 1.0, %v12480
  %v12482 = vrcp.pop %v12030
  %v12483 = vmul.f32 1.0, %v12482
  %v12484 = vrcp.pop %v12031
  %v12485 = vmul.f32 1.0, %v12484
  %v12486 = vrcp.pop %v12032
  %v12487 = vmul.f32 1.0, %v12486
  %v12488 = vrcp.pop %v12033
  %v12489 = vmul.f32 1.0, %v12488
  %v12490 = vrcp.pop %v12034
  %v12491 = vmul.f32 1.0, %v12490
  %v12492 = vrcp.pop %v12035
  %v12493 = vmul.f32 1.0, %v12492
  %v12494 = vrcp.pop %v12036
  %v12495 = vmul.f32 1.0, %v12494
  %v12496 = vrcp.pop %v12037
  %v12497 = vmul.f32 1.0, %v12496
  %v12498 = vrcp.pop %v12038
  %v12499 = vmul.f32 1.0, %v12498
  %v12500 = vrcp.pop %v12039
  %v12501 = vmul.f32 1.0, %v12500
  %v12502 = vrcp.pop %v12040
  %v12503 = vmul.f32 1.0, %v12502
  %v12504 = vrcp.pop %v12041
  %v12505 = vmul.f32 1.0, %v12504
  %v12506 = vrcp.pop %v12042
  %v12507 = vmul.f32 1.0, %v12506
  %v12508 = vrcp.pop %v12043
  %v12509 = vmul.f32 1.0, %v12508
  %v12510 = vrcp.pop %v12044
  %v12511 = vmul.f32 1.0, %v12510
  %v12512 = vrcp.pop %v12045
  %v12513 = vmul.f32 1.0, %v12512
  %v12514 = vrcp.pop %v12046
  %v12515 = vmul.f32 1.0, %v12514
  %v12516 = vrcp.pop %v12047
  %v12517 = vmul.f32 1.0, %v12516
  %v12518 = vrcp.pop %v12048
  %v12519 = vmul.f32 1.0, %v12518
  %v12520 = vrcp.pop %v12049
  %v12521 = vmul.f32 1.0, %v12520
  %v12522 = vrcp.pop %v12050
  %v12523 = vmul.f32 1.0, %v12522
  %v12524 = vrcp.pop %v12051
  %v12525 = vmul.f32 1.0, %v12524
  %v12526 = vrcp.pop %v12052
  %v12527 = vmul.f32 1.0, %v12526
  %v12528 = vrcp.pop %v12053
  %v12529 = vmul.f32 1.0, %v12528
  %v12530 = vrcp.pop %v12054
  %v12531 = vmul.f32 1.0, %v12530
  %v12532 = vrcp.pop %v12055
  %v12533 = vmul.f32 1.0, %v12532
  %v12534 = vrcp.pop %v12056
  %v12535 = vmul.f32 1.0, %v12534
  %v12536 = vrcp.pop %v12057
  %v12537 = vmul.f32 1.0, %v12536
  %v12538 = vrcp.pop %v12058
  %v12539 = vmul.f32 1.0, %v12538
  %v12540 = vrcp.pop %v12059
  %v12541 = vmul.f32 1.0, %v12540
  %v12542 = vrcp.pop %v12060
  %v12543 = vmul.f32 1.0, %v12542
  %v12544 = vrcp.pop %v12061
  %v12545 = vmul.f32 1.0, %v12544
  %v12546 = vrcp.pop %v12062
  %v12547 = vmul.f32 1.0, %v12546
  %v12548 = vrcp.pop %v12063
  %v12549 = vmul.f32 1.0, %v12548
  %v12550 = vrcp.pop %v12064
  %v12551 = vmul.f32 1.0, %v12550
  %v12552 = vrcp.pop %v12065
  %v12553 = vmul.f32 1.0, %v12552
  %v12554 = vrcp.pop %v12066
  %v12555 = vmul.f32 1.0, %v12554
  %v12556 = vrcp.pop %v12067
  %v12557 = vmul.f32 1.0, %v12556
  %v12558 = vrcp.pop %v12068
  %v12559 = vmul.f32 1.0, %v12558
  %v12560 = vrcp.pop %v12069
  %v12561 = vmul.f32 1.0, %v12560
  %v12562 = vrcp.pop %v12070
  %v12563 = vmul.f32 1.0, %v12562
  %v12564 = vrcp.pop %v12071
  %v12565 = vmul.f32 1.0, %v12564
  %v12566 = vrcp.pop %v12072
  %v12567 = vmul.f32 1.0, %v12566
  %v12568 = vrcp.pop %v12073
  %v12569 = vmul.f32 1.0, %v12568
  %v12570 = vrcp.pop %v12074
  %v12571 = vmul.f32 1.0, %v12570
  %v12572 = vrcp.pop %v12075
  %v12573 = vmul.f32 1.0, %v12572
  %v12574 = vrcp.pop %v12076
  %v12575 = vmul.f32 1.0, %v12574
  %v12576 = vrcp.pop %v12077
  %v12577 = vmul.f32 1.0, %v12576
  %v12578 = vrcp.pop %v12078
  %v12579 = vmul.f32 1.0, %v12578
  %v12580 = vrcp.pop %v12079
  %v12581 = vmul.f32 1.0, %v12580
  %v12582 = vrcp.pop %v12080
  %v12583 = vmul.f32 1.0, %v12582
  %v12584 = vrcp.pop %v12081
  %v12585 = vmul.f32 1.0, %v12584
  %v12586 = vrcp.pop %v12082
  %v12587 = vmul.f32 1.0, %v12586
  %v12588 = vrcp.pop %v12083
  %v12589 = vmul.f32 1.0, %v12588
  %v12590 = vrcp.pop %v12084
  %v12591 = vmul.f32 1.0, %v12590
  %v12592 = vrcp.pop %v12085
  %v12593 = vmul.f32 1.0, %v12592
  %v12594 = vrcp.pop %v12086
  %v12595 = vmul.f32 1.0, %v12594
  %v12596 = vrcp.pop %v12087
  %v12597 = vmul.f32 1.0, %v12596
  %v12598 = vrcp.pop %v12088
  %v12599 = vmul.f32 1.0, %v12598
  %v12600 = vrcp.pop %v12089
  %v12601 = vmul.f32 1.0, %v12600
  %v12618 = vlaneseq
  %v12619 = vand.u32 %v12618, 127
  %v12620 = vlaneseq
  %v12621 = vshrl.u32 %v12620, 7
  %v12622 = vsub.s32 %v12619, %v12621
  %v12623 = vrot.slane %v12091, %v12622
  %v12624 = vadd.s32 %v12619, 4294967288
  %v12625 = vlaneseq
  %v12626 = vshrl.u32 %v12625, 7
  %v12627 = vsub.s32 %v12624, %v12626
  %v12628 = vrot.slane %v12093, %v12627
  %vm12629 = vcmask 130112
  %v12630 = vsel %vm12629, %v12628, %v12623
  %v12631 = vadd.s32 %v12619, 4294967280
  %v12632 = vlaneseq
  %v12633 = vshrl.u32 %v12632, 7
  %v12634 = vsub.s32 %v12631, %v12633
  %v12635 = vrot.slane %v12095, %v12634
  %vm12636 = vcmask 195712
  %v12637 = vsel %vm12636, %v12635, %v12630
  %v12638 = vadd.s32 %v12619, 4294967272
  %v12639 = vlaneseq
  %v12640 = vshrl.u32 %v12639, 7
  %v12641 = vsub.s32 %v12638, %v12640
  %v12642 = vrot.slane %v12097, %v12641
  %vm12643 = vcmask 261312
  %v12644 = vsel %vm12643, %v12642, %v12637
  %v12645 = vadd.s32 %v12619, 4294967264
  %v12646 = vlaneseq
  %v12647 = vshrl.u32 %v12646, 7
  %v12648 = vsub.s32 %v12645, %v12647
  %v12649 = vrot.slane %v12099, %v12648
  %vm12650 = vcmask 326912
  %v12651 = vsel %vm12650, %v12649, %v12644
  %v12652 = vadd.s32 %v12619, 4294967256
  %v12653 = vlaneseq
  %v12654 = vshrl.u32 %v12653, 7
  %v12655 = vsub.s32 %v12652, %v12654
  %v12656 = vrot.slane %v12101, %v12655
  %vm12657 = vcmask 392512
  %v12658 = vsel %vm12657, %v12656, %v12651
  %v12659 = vadd.s32 %v12619, 4294967248
  %v12660 = vlaneseq
  %v12661 = vshrl.u32 %v12660, 7
  %v12662 = vsub.s32 %v12659, %v12661
  %v12663 = vrot.slane %v12103, %v12662
  %vm12664 = vcmask 458112
  %v12665 = vsel %vm12664, %v12663, %v12658
  %v12666 = vadd.s32 %v12619, 4294967240
  %v12667 = vlaneseq
  %v12668 = vshrl.u32 %v12667, 7
  %v12669 = vsub.s32 %v12666, %v12668
  %v12670 = vrot.slane %v12105, %v12669
  %vm12671 = vcmask 523712
  %v12672 = vsel %vm12671, %v12670, %v12665
  %v12673 = vadd.s32 %v12619, 4294967232
  %v12674 = vlaneseq
  %v12675 = vshrl.u32 %v12674, 7
  %v12676 = vsub.s32 %v12673, %v12675
  %v12677 = vrot.slane %v12107, %v12676
  %vm12678 = vcmask 589312
  %v12679 = vsel %vm12678, %v12677, %v12672
  %v12680 = vadd.s32 %v12619, 4294967224
  %v12681 = vlaneseq
  %v12682 = vshrl.u32 %v12681, 7
  %v12683 = vsub.s32 %v12680, %v12682
  %v12684 = vrot.slane %v12109, %v12683
  %vm12685 = vcmask 654912
  %v12686 = vsel %vm12685, %v12684, %v12679
  %v12687 = vadd.s32 %v12619, 4294967216
  %v12688 = vlaneseq
  %v12689 = vshrl.u32 %v12688, 7
  %v12690 = vsub.s32 %v12687, %v12689
  %v12691 = vrot.slane %v12111, %v12690
  %vm12692 = vcmask 720512
  %v12693 = vsel %vm12692, %v12691, %v12686
  %v12694 = vadd.s32 %v12619, 4294967208
  %v12695 = vlaneseq
  %v12696 = vshrl.u32 %v12695, 7
  %v12697 = vsub.s32 %v12694, %v12696
  %v12698 = vrot.slane %v12113, %v12697
  %vm12699 = vcmask 786112
  %v12700 = vsel %vm12699, %v12698, %v12693
  %v12701 = vadd.s32 %v12619, 4294967200
  %v12702 = vlaneseq
  %v12703 = vshrl.u32 %v12702, 7
  %v12704 = vsub.s32 %v12701, %v12703
  %v12705 = vrot.slane %v12115, %v12704
  %vm12706 = vcmask 851712
  %v12707 = vsel %vm12706, %v12705, %v12700
  %v12708 = vadd.s32 %v12619, 4294967192
  %v12709 = vlaneseq
  %v12710 = vshrl.u32 %v12709, 7
  %v12711 = vsub.s32 %v12708, %v12710
  %v12712 = vrot.slane %v12117, %v12711
  %vm12713 = vcmask 917312
  %v12714 = vsel %vm12713, %v12712, %v12707
  %v12715 = vadd.s32 %v12619, 4294967184
  %v12716 = vlaneseq
  %v12717 = vshrl.u32 %v12716, 7
  %v12718 = vsub.s32 %v12715, %v12717
  %v12719 = vrot.slane %v12119, %v12718
  %vm12720 = vcmask 982912
  %v12721 = vsel %vm12720, %v12719, %v12714
  %v12722 = vadd.s32 %v12619, 4294967176
  %v12723 = vlaneseq
  %v12724 = vshrl.u32 %v12723, 7
  %v12725 = vsub.s32 %v12722, %v12724
  %v12726 = vrot.slane %v12121, %v12725
  %vm12727 = vcmask 1048512
  %v12728 = vsel %vm12727, %v12726, %v12721
  %12729 = vst [vmem:[%s13] ss:$16 sm:$0x1] %v12728
  %12730 = vst [vmem:[%s13] ss:$16 sm:$0x0] %v12728
  %12731 = vst [vmem:[%s13] ss:$16 sm:$0x0] %v12728
  %12732 = vst [vmem:[%s13] ss:$16 sm:$0x0] %v12728
  %v12749 = vlaneseq
  %v12750 = vshrl.u32 %v12749, 7
  %v12751 = vsub.s32 %v12619, %v12750
  %v12752 = vrot.slane %v12123, %v12751
  %v12753 = vlaneseq
  %v12754 = vshrl.u32 %v12753, 7
  %v12755 = vsub.s32 %v12624, %v12754
  %v12756 = vrot.slane %v12125, %v12755
  %v12757 = vsel %vm12629, %v12756, %v12752
  %v12758 = vlaneseq
  %v12759 = vshrl.u32 %v12758, 7
  %v12760 = vsub.s32 %v12631, %v12759
  %v12761 = vrot.slane %v12127, %v12760
  %v12762 = vsel %vm12636, %v12761, %v12757
  %v12763 = vlaneseq
  %v12764 = vshrl.u32 %v12763, 7
  %v12765 = vsub.s32 %v12638, %v12764
  %v12766 = vrot.slane %v12129, %v12765
  %v12767 = vsel %vm12643, %v12766, %v12762
  %v12768 = vlaneseq
  %v12769 = vshrl.u32 %v12768, 7
  %v12770 = vsub.s32 %v12645, %v12769
  %v12771 = vrot.slane %v12131, %v12770
  %v12772 = vsel %vm12650, %v12771, %v12767
  %v12773 = vlaneseq
  %v12774 = vshrl.u32 %v12773, 7
  %v12775 = vsub.s32 %v12652, %v12774
  %v12776 = vrot.slane %v12133, %v12775
  %v12777 = vsel %vm12657, %v12776, %v12772
  %v12778 = vlaneseq
  %v12779 = vshrl.u32 %v12778, 7
  %v12780 = vsub.s32 %v12659, %v12779
  %v12781 = vrot.slane %v12135, %v12780
  %v12782 = vsel %vm12664, %v12781, %v12777
  %v12783 = vlaneseq
  %v12784 = vshrl.u32 %v12783, 7
  %v12785 = vsub.s32 %v12666, %v12784
  %v12786 = vrot.slane %v12137, %v12785
  %v12787 = vsel %vm12671, %v12786, %v12782
  %v12788 = vlaneseq
  %v12789 = vshrl.u32 %v12788, 7
  %v12790 = vsub.s32 %v12673, %v12789
  %v12791 = vrot.slane %v12139, %v12790
  %v12792 = vsel %vm12678, %v12791, %v12787
  %v12793 = vlaneseq
  %v12794 = vshrl.u32 %v12793, 7
  %v12795 = vsub.s32 %v12680, %v12794
  %v12796 = vrot.slane %v12141, %v12795
  %v12797 = vsel %vm12685, %v12796, %v12792
  %v12798 = vlaneseq
  %v12799 = vshrl.u32 %v12798, 7
  %v12800 = vsub.s32 %v12687, %v12799
  %v12801 = vrot.slane %v12143, %v12800
  %v12802 = vsel %vm12692, %v12801, %v12797
  %v12803 = vlaneseq
  %v12804 = vshrl.u32 %v12803, 7
  %v12805 = vsub.s32 %v12694, %v12804
  %v12806 = vrot.slane %v12145, %v12805
  %v12807 = vsel %vm12699, %v12806, %v12802
  %v12808 = vlaneseq
  %v12809 = vshrl.u32 %v12808, 7
  %v12810 = vsub.s32 %v12701, %v12809
  %v12811 = vrot.slane %v12147, %v12810
  %v12812 = vsel %vm12706, %v12811, %v12807
  %v12813 = vlaneseq
  %v12814 = vshrl.u32 %v12813, 7
  %v12815 = vsub.s32 %v12708, %v12814
  %v12816 = vrot.slane %v12149, %v12815
  %v12817 = vsel %vm12713, %v12816, %v12812
  %v12818 = vlaneseq
  %v12819 = vshrl.u32 %v12818, 7
  %v12820 = vsub.s32 %v12715, %v12819
  %v12821 = vrot.slane %v12151, %v12820
  %v12822 = vsel %vm12720, %v12821, %v12817
  %v12823 = vlaneseq
  %v12824 = vshrl.u32 %v12823, 7
  %v12825 = vsub.s32 %v12722, %v12824
  %v12826 = vrot.slane %v12153, %v12825
  %v12827 = vsel %vm12727, %v12826, %v12822
  %s12828 = scalar_lea.vmem %s13, 1
  %12829 = vst [vmem:[%s12828] ss:$16 sm:$0x1] %v12827
  %12830 = vst [vmem:[%s12828] ss:$16 sm:$0x0] %v12827
  %12831 = vst [vmem:[%s12828] ss:$16 sm:$0x0] %v12827
  %12832 = vst [vmem:[%s12828] ss:$16 sm:$0x0] %v12827
  %v12849 = vlaneseq
  %v12850 = vshrl.u32 %v12849, 7
  %v12851 = vsub.s32 %v12619, %v12850
  %v12852 = vrot.slane %v12155, %v12851
  %v12853 = vlaneseq
  %v12854 = vshrl.u32 %v12853, 7
  %v12855 = vsub.s32 %v12624, %v12854
  %v12856 = vrot.slane %v12157, %v12855
  %v12857 = vsel %vm12629, %v12856, %v12852
  %v12858 = vlaneseq
  %v12859 = vshrl.u32 %v12858, 7
  %v12860 = vsub.s32 %v12631, %v12859
  %v12861 = vrot.slane %v12159, %v12860
  %v12862 = vsel %vm12636, %v12861, %v12857
  %v12863 = vlaneseq
  %v12864 = vshrl.u32 %v12863, 7
  %v12865 = vsub.s32 %v12638, %v12864
  %v12866 = vrot.slane %v12161, %v12865
  %v12867 = vsel %vm12643, %v12866, %v12862
  %v12868 = vlaneseq
  %v12869 = vshrl.u32 %v12868, 7
  %v12870 = vsub.s32 %v12645, %v12869
  %v12871 = vrot.slane %v12163, %v12870
  %v12872 = vsel %vm12650, %v12871, %v12867
  %v12873 = vlaneseq
  %v12874 = vshrl.u32 %v12873, 7
  %v12875 = vsub.s32 %v12652, %v12874
  %v12876 = vrot.slane %v12165, %v12875
  %v12877 = vsel %vm12657, %v12876, %v12872
  %v12878 = vlaneseq
  %v12879 = vshrl.u32 %v12878, 7
  %v12880 = vsub.s32 %v12659, %v12879
  %v12881 = vrot.slane %v12167, %v12880
  %v12882 = vsel %vm12664, %v12881, %v12877
  %v12883 = vlaneseq
  %v12884 = vshrl.u32 %v12883, 7
  %v12885 = vsub.s32 %v12666, %v12884
  %v12886 = vrot.slane %v12169, %v12885
  %v12887 = vsel %vm12671, %v12886, %v12882
  %v12888 = vlaneseq
  %v12889 = vshrl.u32 %v12888, 7
  %v12890 = vsub.s32 %v12673, %v12889
  %v12891 = vrot.slane %v12171, %v12890
  %v12892 = vsel %vm12678, %v12891, %v12887
  %v12893 = vlaneseq
  %v12894 = vshrl.u32 %v12893, 7
  %v12895 = vsub.s32 %v12680, %v12894
  %v12896 = vrot.slane %v12173, %v12895
  %v12897 = vsel %vm12685, %v12896, %v12892
  %v12898 = vlaneseq
  %v12899 = vshrl.u32 %v12898, 7
  %v12900 = vsub.s32 %v12687, %v12899
  %v12901 = vrot.slane %v12175, %v12900
  %v12902 = vsel %vm12692, %v12901, %v12897
  %v12903 = vlaneseq
  %v12904 = vshrl.u32 %v12903, 7
  %v12905 = vsub.s32 %v12694, %v12904
  %v12906 = vrot.slane %v12177, %v12905
  %v12907 = vsel %vm12699, %v12906, %v12902
  %v12908 = vlaneseq
  %v12909 = vshrl.u32 %v12908, 7
  %v12910 = vsub.s32 %v12701, %v12909
  %v12911 = vrot.slane %v12179, %v12910
  %v12912 = vsel %vm12706, %v12911, %v12907
  %v12913 = vlaneseq
  %v12914 = vshrl.u32 %v12913, 7
  %v12915 = vsub.s32 %v12708, %v12914
  %v12916 = vrot.slane %v12181, %v12915
  %v12917 = vsel %vm12713, %v12916, %v12912
  %v12918 = vlaneseq
  %v12919 = vshrl.u32 %v12918, 7
  %v12920 = vsub.s32 %v12715, %v12919
  %v12921 = vrot.slane %v12183, %v12920
  %v12922 = vsel %vm12720, %v12921, %v12917
  %v12923 = vlaneseq
  %v12924 = vshrl.u32 %v12923, 7
  %v12925 = vsub.s32 %v12722, %v12924
  %v12926 = vrot.slane %v12185, %v12925
  %v12927 = vsel %vm12727, %v12926, %v12922
  %s12928 = scalar_lea.vmem %s13, 2
  %12929 = vst [vmem:[%s12928] ss:$16 sm:$0x1] %v12927
  %12930 = vst [vmem:[%s12928] ss:$16 sm:$0x0] %v12927
  %12931 = vst [vmem:[%s12928] ss:$16 sm:$0x0] %v12927
  %12932 = vst [vmem:[%s12928] ss:$16 sm:$0x0] %v12927
  %v12949 = vlaneseq
  %v12950 = vshrl.u32 %v12949, 7
  %v12951 = vsub.s32 %v12619, %v12950
  %v12952 = vrot.slane %v12187, %v12951
  %v12953 = vlaneseq
  %v12954 = vshrl.u32 %v12953, 7
  %v12955 = vsub.s32 %v12624, %v12954
  %v12956 = vrot.slane %v12189, %v12955
  %v12957 = vsel %vm12629, %v12956, %v12952
  %v12958 = vlaneseq
  %v12959 = vshrl.u32 %v12958, 7
  %v12960 = vsub.s32 %v12631, %v12959
  %v12961 = vrot.slane %v12191, %v12960
  %v12962 = vsel %vm12636, %v12961, %v12957
  %v12963 = vlaneseq
  %v12964 = vshrl.u32 %v12963, 7
  %v12965 = vsub.s32 %v12638, %v12964
  %v12966 = vrot.slane %v12193, %v12965
  %v12967 = vsel %vm12643, %v12966, %v12962
  %v12968 = vlaneseq
  %v12969 = vshrl.u32 %v12968, 7
  %v12970 = vsub.s32 %v12645, %v12969
  %v12971 = vrot.slane %v12195, %v12970
  %v12972 = vsel %vm12650, %v12971, %v12967
  %v12973 = vlaneseq
  %v12974 = vshrl.u32 %v12973, 7
  %v12975 = vsub.s32 %v12652, %v12974
  %v12976 = vrot.slane %v12197, %v12975
  %v12977 = vsel %vm12657, %v12976, %v12972
  %v12978 = vlaneseq
  %v12979 = vshrl.u32 %v12978, 7
  %v12980 = vsub.s32 %v12659, %v12979
  %v12981 = vrot.slane %v12199, %v12980
  %v12982 = vsel %vm12664, %v12981, %v12977
  %v12983 = vlaneseq
  %v12984 = vshrl.u32 %v12983, 7
  %v12985 = vsub.s32 %v12666, %v12984
  %v12986 = vrot.slane %v12201, %v12985
  %v12987 = vsel %vm12671, %v12986, %v12982
  %v12988 = vlaneseq
  %v12989 = vshrl.u32 %v12988, 7
  %v12990 = vsub.s32 %v12673, %v12989
  %v12991 = vrot.slane %v12203, %v12990
  %v12992 = vsel %vm12678, %v12991, %v12987
  %v12993 = vlaneseq
  %v12994 = vshrl.u32 %v12993, 7
  %v12995 = vsub.s32 %v12680, %v12994
  %v12996 = vrot.slane %v12205, %v12995
  %v12997 = vsel %vm12685, %v12996, %v12992
  %v12998 = vlaneseq
  %v12999 = vshrl.u32 %v12998, 7
  %v13000 = vsub.s32 %v12687, %v12999
  %v13001 = vrot.slane %v12207, %v13000
  %v13002 = vsel %vm12692, %v13001, %v12997
  %v13003 = vlaneseq
  %v13004 = vshrl.u32 %v13003, 7
  %v13005 = vsub.s32 %v12694, %v13004
  %v13006 = vrot.slane %v12209, %v13005
  %v13007 = vsel %vm12699, %v13006, %v13002
  %v13008 = vlaneseq
  %v13009 = vshrl.u32 %v13008, 7
  %v13010 = vsub.s32 %v12701, %v13009
  %v13011 = vrot.slane %v12211, %v13010
  %v13012 = vsel %vm12706, %v13011, %v13007
  %v13013 = vlaneseq
  %v13014 = vshrl.u32 %v13013, 7
  %v13015 = vsub.s32 %v12708, %v13014
  %v13016 = vrot.slane %v12213, %v13015
  %v13017 = vsel %vm12713, %v13016, %v13012
  %v13018 = vlaneseq
  %v13019 = vshrl.u32 %v13018, 7
  %v13020 = vsub.s32 %v12715, %v13019
  %v13021 = vrot.slane %v12215, %v13020
  %v13022 = vsel %vm12720, %v13021, %v13017
  %v13023 = vlaneseq
  %v13024 = vshrl.u32 %v13023, 7
  %v13025 = vsub.s32 %v12722, %v13024
  %v13026 = vrot.slane %v12217, %v13025
  %v13027 = vsel %vm12727, %v13026, %v13022
  %s13028 = scalar_lea.vmem %s13, 3
  %13029 = vst [vmem:[%s13028] ss:$16 sm:$0x1] %v13027
  %13030 = vst [vmem:[%s13028] ss:$16 sm:$0x0] %v13027
  %13031 = vst [vmem:[%s13028] ss:$16 sm:$0x0] %v13027
  %13032 = vst [vmem:[%s13028] ss:$16 sm:$0x0] %v13027
  %v13049 = vlaneseq
  %v13050 = vshrl.u32 %v13049, 7
  %v13051 = vsub.s32 %v12619, %v13050
  %v13052 = vrot.slane %v12219, %v13051
  %v13053 = vlaneseq
  %v13054 = vshrl.u32 %v13053, 7
  %v13055 = vsub.s32 %v12624, %v13054
  %v13056 = vrot.slane %v12221, %v13055
  %v13057 = vsel %vm12629, %v13056, %v13052
  %v13058 = vlaneseq
  %v13059 = vshrl.u32 %v13058, 7
  %v13060 = vsub.s32 %v12631, %v13059
  %v13061 = vrot.slane %v12223, %v13060
  %v13062 = vsel %vm12636, %v13061, %v13057
  %v13063 = vlaneseq
  %v13064 = vshrl.u32 %v13063, 7
  %v13065 = vsub.s32 %v12638, %v13064
  %v13066 = vrot.slane %v12225, %v13065
  %v13067 = vsel %vm12643, %v13066, %v13062
  %v13068 = vlaneseq
  %v13069 = vshrl.u32 %v13068, 7
  %v13070 = vsub.s32 %v12645, %v13069
  %v13071 = vrot.slane %v12227, %v13070
  %v13072 = vsel %vm12650, %v13071, %v13067
  %v13073 = vlaneseq
  %v13074 = vshrl.u32 %v13073, 7
  %v13075 = vsub.s32 %v12652, %v13074
  %v13076 = vrot.slane %v12229, %v13075
  %v13077 = vsel %vm12657, %v13076, %v13072
  %v13078 = vlaneseq
  %v13079 = vshrl.u32 %v13078, 7
  %v13080 = vsub.s32 %v12659, %v13079
  %v13081 = vrot.slane %v12231, %v13080
  %v13082 = vsel %vm12664, %v13081, %v13077
  %v13083 = vlaneseq
  %v13084 = vshrl.u32 %v13083, 7
  %v13085 = vsub.s32 %v12666, %v13084
  %v13086 = vrot.slane %v12233, %v13085
  %v13087 = vsel %vm12671, %v13086, %v13082
  %v13088 = vlaneseq
  %v13089 = vshrl.u32 %v13088, 7
  %v13090 = vsub.s32 %v12673, %v13089
  %v13091 = vrot.slane %v12235, %v13090
  %v13092 = vsel %vm12678, %v13091, %v13087
  %v13093 = vlaneseq
  %v13094 = vshrl.u32 %v13093, 7
  %v13095 = vsub.s32 %v12680, %v13094
  %v13096 = vrot.slane %v12237, %v13095
  %v13097 = vsel %vm12685, %v13096, %v13092
  %v13098 = vlaneseq
  %v13099 = vshrl.u32 %v13098, 7
  %v13100 = vsub.s32 %v12687, %v13099
  %v13101 = vrot.slane %v12239, %v13100
  %v13102 = vsel %vm12692, %v13101, %v13097
  %v13103 = vlaneseq
  %v13104 = vshrl.u32 %v13103, 7
  %v13105 = vsub.s32 %v12694, %v13104
  %v13106 = vrot.slane %v12241, %v13105
  %v13107 = vsel %vm12699, %v13106, %v13102
  %v13108 = vlaneseq
  %v13109 = vshrl.u32 %v13108, 7
  %v13110 = vsub.s32 %v12701, %v13109
  %v13111 = vrot.slane %v12243, %v13110
  %v13112 = vsel %vm12706, %v13111, %v13107
  %v13113 = vlaneseq
  %v13114 = vshrl.u32 %v13113, 7
  %v13115 = vsub.s32 %v12708, %v13114
  %v13116 = vrot.slane %v12245, %v13115
  %v13117 = vsel %vm12713, %v13116, %v13112
  %v13118 = vlaneseq
  %v13119 = vshrl.u32 %v13118, 7
  %v13120 = vsub.s32 %v12715, %v13119
  %v13121 = vrot.slane %v12247, %v13120
  %v13122 = vsel %vm12720, %v13121, %v13117
  %v13123 = vlaneseq
  %v13124 = vshrl.u32 %v13123, 7
  %v13125 = vsub.s32 %v12722, %v13124
  %v13126 = vrot.slane %v12249, %v13125
  %v13127 = vsel %vm12727, %v13126, %v13122
  %s13128 = scalar_lea.vmem %s13, 4
  %13129 = vst [vmem:[%s13128] ss:$16 sm:$0x1] %v13127
  %13130 = vst [vmem:[%s13128] ss:$16 sm:$0x0] %v13127
  %13131 = vst [vmem:[%s13128] ss:$16 sm:$0x0] %v13127
  %13132 = vst [vmem:[%s13128] ss:$16 sm:$0x0] %v13127
  %v13149 = vlaneseq
  %v13150 = vshrl.u32 %v13149, 7
  %v13151 = vsub.s32 %v12619, %v13150
  %v13152 = vrot.slane %v12251, %v13151
  %v13153 = vlaneseq
  %v13154 = vshrl.u32 %v13153, 7
  %v13155 = vsub.s32 %v12624, %v13154
  %v13156 = vrot.slane %v12253, %v13155
  %v13157 = vsel %vm12629, %v13156, %v13152
  %v13158 = vlaneseq
  %v13159 = vshrl.u32 %v13158, 7
  %v13160 = vsub.s32 %v12631, %v13159
  %v13161 = vrot.slane %v12255, %v13160
  %v13162 = vsel %vm12636, %v13161, %v13157
  %v13163 = vlaneseq
  %v13164 = vshrl.u32 %v13163, 7
  %v13165 = vsub.s32 %v12638, %v13164
  %v13166 = vrot.slane %v12257, %v13165
  %v13167 = vsel %vm12643, %v13166, %v13162
  %v13168 = vlaneseq
  %v13169 = vshrl.u32 %v13168, 7
  %v13170 = vsub.s32 %v12645, %v13169
  %v13171 = vrot.slane %v12259, %v13170
  %v13172 = vsel %vm12650, %v13171, %v13167
  %v13173 = vlaneseq
  %v13174 = vshrl.u32 %v13173, 7
  %v13175 = vsub.s32 %v12652, %v13174
  %v13176 = vrot.slane %v12261, %v13175
  %v13177 = vsel %vm12657, %v13176, %v13172
  %v13178 = vlaneseq
  %v13179 = vshrl.u32 %v13178, 7
  %v13180 = vsub.s32 %v12659, %v13179
  %v13181 = vrot.slane %v12263, %v13180
  %v13182 = vsel %vm12664, %v13181, %v13177
  %v13183 = vlaneseq
  %v13184 = vshrl.u32 %v13183, 7
  %v13185 = vsub.s32 %v12666, %v13184
  %v13186 = vrot.slane %v12265, %v13185
  %v13187 = vsel %vm12671, %v13186, %v13182
  %v13188 = vlaneseq
  %v13189 = vshrl.u32 %v13188, 7
  %v13190 = vsub.s32 %v12673, %v13189
  %v13191 = vrot.slane %v12267, %v13190
  %v13192 = vsel %vm12678, %v13191, %v13187
  %v13193 = vlaneseq
  %v13194 = vshrl.u32 %v13193, 7
  %v13195 = vsub.s32 %v12680, %v13194
  %v13196 = vrot.slane %v12269, %v13195
  %v13197 = vsel %vm12685, %v13196, %v13192
  %v13198 = vlaneseq
  %v13199 = vshrl.u32 %v13198, 7
  %v13200 = vsub.s32 %v12687, %v13199
  %v13201 = vrot.slane %v12271, %v13200
  %v13202 = vsel %vm12692, %v13201, %v13197
  %v13203 = vlaneseq
  %v13204 = vshrl.u32 %v13203, 7
  %v13205 = vsub.s32 %v12694, %v13204
  %v13206 = vrot.slane %v12273, %v13205
  %v13207 = vsel %vm12699, %v13206, %v13202
  %v13208 = vlaneseq
  %v13209 = vshrl.u32 %v13208, 7
  %v13210 = vsub.s32 %v12701, %v13209
  %v13211 = vrot.slane %v12275, %v13210
  %v13212 = vsel %vm12706, %v13211, %v13207
  %v13213 = vlaneseq
  %v13214 = vshrl.u32 %v13213, 7
  %v13215 = vsub.s32 %v12708, %v13214
  %v13216 = vrot.slane %v12277, %v13215
  %v13217 = vsel %vm12713, %v13216, %v13212
  %v13218 = vlaneseq
  %v13219 = vshrl.u32 %v13218, 7
  %v13220 = vsub.s32 %v12715, %v13219
  %v13221 = vrot.slane %v12279, %v13220
  %v13222 = vsel %vm12720, %v13221, %v13217
  %v13223 = vlaneseq
  %v13224 = vshrl.u32 %v13223, 7
  %v13225 = vsub.s32 %v12722, %v13224
  %v13226 = vrot.slane %v12281, %v13225
  %v13227 = vsel %vm12727, %v13226, %v13222
  %s13228 = scalar_lea.vmem %s13, 5
  %13229 = vst [vmem:[%s13228] ss:$16 sm:$0x1] %v13227
  %13230 = vst [vmem:[%s13228] ss:$16 sm:$0x0] %v13227
  %13231 = vst [vmem:[%s13228] ss:$16 sm:$0x0] %v13227
  %13232 = vst [vmem:[%s13228] ss:$16 sm:$0x0] %v13227
  %v13249 = vlaneseq
  %v13250 = vshrl.u32 %v13249, 7
  %v13251 = vsub.s32 %v12619, %v13250
  %v13252 = vrot.slane %v12283, %v13251
  %v13253 = vlaneseq
  %v13254 = vshrl.u32 %v13253, 7
  %v13255 = vsub.s32 %v12624, %v13254
  %v13256 = vrot.slane %v12285, %v13255
  %v13257 = vsel %vm12629, %v13256, %v13252
  %v13258 = vlaneseq
  %v13259 = vshrl.u32 %v13258, 7
  %v13260 = vsub.s32 %v12631, %v13259
  %v13261 = vrot.slane %v12287, %v13260
  %v13262 = vsel %vm12636, %v13261, %v13257
  %v13263 = vlaneseq
  %v13264 = vshrl.u32 %v13263, 7
  %v13265 = vsub.s32 %v12638, %v13264
  %v13266 = vrot.slane %v12289, %v13265
  %v13267 = vsel %vm12643, %v13266, %v13262
  %v13268 = vlaneseq
  %v13269 = vshrl.u32 %v13268, 7
  %v13270 = vsub.s32 %v12645, %v13269
  %v13271 = vrot.slane %v12291, %v13270
  %v13272 = vsel %vm12650, %v13271, %v13267
  %v13273 = vlaneseq
  %v13274 = vshrl.u32 %v13273, 7
  %v13275 = vsub.s32 %v12652, %v13274
  %v13276 = vrot.slane %v12293, %v13275
  %v13277 = vsel %vm12657, %v13276, %v13272
  %v13278 = vlaneseq
  %v13279 = vshrl.u32 %v13278, 7
  %v13280 = vsub.s32 %v12659, %v13279
  %v13281 = vrot.slane %v12295, %v13280
  %v13282 = vsel %vm12664, %v13281, %v13277
  %v13283 = vlaneseq
  %v13284 = vshrl.u32 %v13283, 7
  %v13285 = vsub.s32 %v12666, %v13284
  %v13286 = vrot.slane %v12297, %v13285
  %v13287 = vsel %vm12671, %v13286, %v13282
  %v13288 = vlaneseq
  %v13289 = vshrl.u32 %v13288, 7
  %v13290 = vsub.s32 %v12673, %v13289
  %v13291 = vrot.slane %v12299, %v13290
  %v13292 = vsel %vm12678, %v13291, %v13287
  %v13293 = vlaneseq
  %v13294 = vshrl.u32 %v13293, 7
  %v13295 = vsub.s32 %v12680, %v13294
  %v13296 = vrot.slane %v12301, %v13295
  %v13297 = vsel %vm12685, %v13296, %v13292
  %v13298 = vlaneseq
  %v13299 = vshrl.u32 %v13298, 7
  %v13300 = vsub.s32 %v12687, %v13299
  %v13301 = vrot.slane %v12303, %v13300
  %v13302 = vsel %vm12692, %v13301, %v13297
  %v13303 = vlaneseq
  %v13304 = vshrl.u32 %v13303, 7
  %v13305 = vsub.s32 %v12694, %v13304
  %v13306 = vrot.slane %v12305, %v13305
  %v13307 = vsel %vm12699, %v13306, %v13302
  %v13308 = vlaneseq
  %v13309 = vshrl.u32 %v13308, 7
  %v13310 = vsub.s32 %v12701, %v13309
  %v13311 = vrot.slane %v12307, %v13310
  %v13312 = vsel %vm12706, %v13311, %v13307
  %v13313 = vlaneseq
  %v13314 = vshrl.u32 %v13313, 7
  %v13315 = vsub.s32 %v12708, %v13314
  %v13316 = vrot.slane %v12309, %v13315
  %v13317 = vsel %vm12713, %v13316, %v13312
  %v13318 = vlaneseq
  %v13319 = vshrl.u32 %v13318, 7
  %v13320 = vsub.s32 %v12715, %v13319
  %v13321 = vrot.slane %v12311, %v13320
  %v13322 = vsel %vm12720, %v13321, %v13317
  %v13323 = vlaneseq
  %v13324 = vshrl.u32 %v13323, 7
  %v13325 = vsub.s32 %v12722, %v13324
  %v13326 = vrot.slane %v12313, %v13325
  %v13327 = vsel %vm12727, %v13326, %v13322
  %s13328 = scalar_lea.vmem %s13, 6
  %13329 = vst [vmem:[%s13328] ss:$16 sm:$0x1] %v13327
  %13330 = vst [vmem:[%s13328] ss:$16 sm:$0x0] %v13327
  %13331 = vst [vmem:[%s13328] ss:$16 sm:$0x0] %v13327
  %13332 = vst [vmem:[%s13328] ss:$16 sm:$0x0] %v13327
  %v13349 = vlaneseq
  %v13350 = vshrl.u32 %v13349, 7
  %v13351 = vsub.s32 %v12619, %v13350
  %v13352 = vrot.slane %v12315, %v13351
  %v13353 = vlaneseq
  %v13354 = vshrl.u32 %v13353, 7
  %v13355 = vsub.s32 %v12624, %v13354
  %v13356 = vrot.slane %v12317, %v13355
  %v13357 = vsel %vm12629, %v13356, %v13352
  %v13358 = vlaneseq
  %v13359 = vshrl.u32 %v13358, 7
  %v13360 = vsub.s32 %v12631, %v13359
  %v13361 = vrot.slane %v12319, %v13360
  %v13362 = vsel %vm12636, %v13361, %v13357
  %v13363 = vlaneseq
  %v13364 = vshrl.u32 %v13363, 7
  %v13365 = vsub.s32 %v12638, %v13364
  %v13366 = vrot.slane %v12321, %v13365
  %v13367 = vsel %vm12643, %v13366, %v13362
  %v13368 = vlaneseq
  %v13369 = vshrl.u32 %v13368, 7
  %v13370 = vsub.s32 %v12645, %v13369
  %v13371 = vrot.slane %v12323, %v13370
  %v13372 = vsel %vm12650, %v13371, %v13367
  %v13373 = vlaneseq
  %v13374 = vshrl.u32 %v13373, 7
  %v13375 = vsub.s32 %v12652, %v13374
  %v13376 = vrot.slane %v12325, %v13375
  %v13377 = vsel %vm12657, %v13376, %v13372
  %v13378 = vlaneseq
  %v13379 = vshrl.u32 %v13378, 7
  %v13380 = vsub.s32 %v12659, %v13379
  %v13381 = vrot.slane %v12327, %v13380
  %v13382 = vsel %vm12664, %v13381, %v13377
  %v13383 = vlaneseq
  %v13384 = vshrl.u32 %v13383, 7
  %v13385 = vsub.s32 %v12666, %v13384
  %v13386 = vrot.slane %v12329, %v13385
  %v13387 = vsel %vm12671, %v13386, %v13382
  %v13388 = vlaneseq
  %v13389 = vshrl.u32 %v13388, 7
  %v13390 = vsub.s32 %v12673, %v13389
  %v13391 = vrot.slane %v12331, %v13390
  %v13392 = vsel %vm12678, %v13391, %v13387
  %v13393 = vlaneseq
  %v13394 = vshrl.u32 %v13393, 7
  %v13395 = vsub.s32 %v12680, %v13394
  %v13396 = vrot.slane %v12333, %v13395
  %v13397 = vsel %vm12685, %v13396, %v13392
  %v13398 = vlaneseq
  %v13399 = vshrl.u32 %v13398, 7
  %v13400 = vsub.s32 %v12687, %v13399
  %v13401 = vrot.slane %v12335, %v13400
  %v13402 = vsel %vm12692, %v13401, %v13397
  %v13403 = vlaneseq
  %v13404 = vshrl.u32 %v13403, 7
  %v13405 = vsub.s32 %v12694, %v13404
  %v13406 = vrot.slane %v12337, %v13405
  %v13407 = vsel %vm12699, %v13406, %v13402
  %v13408 = vlaneseq
  %v13409 = vshrl.u32 %v13408, 7
  %v13410 = vsub.s32 %v12701, %v13409
  %v13411 = vrot.slane %v12339, %v13410
  %v13412 = vsel %vm12706, %v13411, %v13407
  %v13413 = vlaneseq
  %v13414 = vshrl.u32 %v13413, 7
  %v13415 = vsub.s32 %v12708, %v13414
  %v13416 = vrot.slane %v12341, %v13415
  %v13417 = vsel %vm12713, %v13416, %v13412
  %v13418 = vlaneseq
  %v13419 = vshrl.u32 %v13418, 7
  %v13420 = vsub.s32 %v12715, %v13419
  %v13421 = vrot.slane %v12343, %v13420
  %v13422 = vsel %vm12720, %v13421, %v13417
  %v13423 = vlaneseq
  %v13424 = vshrl.u32 %v13423, 7
  %v13425 = vsub.s32 %v12722, %v13424
  %v13426 = vrot.slane %v12345, %v13425
  %v13427 = vsel %vm12727, %v13426, %v13422
  %s13428 = scalar_lea.vmem %s13, 7
  %13429 = vst [vmem:[%s13428] ss:$16 sm:$0x1] %v13427
  %13430 = vst [vmem:[%s13428] ss:$16 sm:$0x0] %v13427
  %13431 = vst [vmem:[%s13428] ss:$16 sm:$0x0] %v13427
  %13432 = vst [vmem:[%s13428] ss:$16 sm:$0x0] %v13427
  %v13449 = vlaneseq
  %v13450 = vshrl.u32 %v13449, 7
  %v13451 = vsub.s32 %v12619, %v13450
  %v13452 = vrot.slane %v12347, %v13451
  %v13453 = vlaneseq
  %v13454 = vshrl.u32 %v13453, 7
  %v13455 = vsub.s32 %v12624, %v13454
  %v13456 = vrot.slane %v12349, %v13455
  %v13457 = vsel %vm12629, %v13456, %v13452
  %v13458 = vlaneseq
  %v13459 = vshrl.u32 %v13458, 7
  %v13460 = vsub.s32 %v12631, %v13459
  %v13461 = vrot.slane %v12351, %v13460
  %v13462 = vsel %vm12636, %v13461, %v13457
  %v13463 = vlaneseq
  %v13464 = vshrl.u32 %v13463, 7
  %v13465 = vsub.s32 %v12638, %v13464
  %v13466 = vrot.slane %v12353, %v13465
  %v13467 = vsel %vm12643, %v13466, %v13462
  %v13468 = vlaneseq
  %v13469 = vshrl.u32 %v13468, 7
  %v13470 = vsub.s32 %v12645, %v13469
  %v13471 = vrot.slane %v12355, %v13470
  %v13472 = vsel %vm12650, %v13471, %v13467
  %v13473 = vlaneseq
  %v13474 = vshrl.u32 %v13473, 7
  %v13475 = vsub.s32 %v12652, %v13474
  %v13476 = vrot.slane %v12357, %v13475
  %v13477 = vsel %vm12657, %v13476, %v13472
  %v13478 = vlaneseq
  %v13479 = vshrl.u32 %v13478, 7
  %v13480 = vsub.s32 %v12659, %v13479
  %v13481 = vrot.slane %v12359, %v13480
  %v13482 = vsel %vm12664, %v13481, %v13477
  %v13483 = vlaneseq
  %v13484 = vshrl.u32 %v13483, 7
  %v13485 = vsub.s32 %v12666, %v13484
  %v13486 = vrot.slane %v12361, %v13485
  %v13487 = vsel %vm12671, %v13486, %v13482
  %v13488 = vlaneseq
  %v13489 = vshrl.u32 %v13488, 7
  %v13490 = vsub.s32 %v12673, %v13489
  %v13491 = vrot.slane %v12363, %v13490
  %v13492 = vsel %vm12678, %v13491, %v13487
  %v13493 = vlaneseq
  %v13494 = vshrl.u32 %v13493, 7
  %v13495 = vsub.s32 %v12680, %v13494
  %v13496 = vrot.slane %v12365, %v13495
  %v13497 = vsel %vm12685, %v13496, %v13492
  %v13498 = vlaneseq
  %v13499 = vshrl.u32 %v13498, 7
  %v13500 = vsub.s32 %v12687, %v13499
  %v13501 = vrot.slane %v12367, %v13500
  %v13502 = vsel %vm12692, %v13501, %v13497
  %v13503 = vlaneseq
  %v13504 = vshrl.u32 %v13503, 7
  %v13505 = vsub.s32 %v12694, %v13504
  %v13506 = vrot.slane %v12369, %v13505
  %v13507 = vsel %vm12699, %v13506, %v13502
  %v13508 = vlaneseq
  %v13509 = vshrl.u32 %v13508, 7
  %v13510 = vsub.s32 %v12701, %v13509
  %v13511 = vrot.slane %v12371, %v13510
  %v13512 = vsel %vm12706, %v13511, %v13507
  %v13513 = vlaneseq
  %v13514 = vshrl.u32 %v13513, 7
  %v13515 = vsub.s32 %v12708, %v13514
  %v13516 = vrot.slane %v12373, %v13515
  %v13517 = vsel %vm12713, %v13516, %v13512
  %v13518 = vlaneseq
  %v13519 = vshrl.u32 %v13518, 7
  %v13520 = vsub.s32 %v12715, %v13519
  %v13521 = vrot.slane %v12375, %v13520
  %v13522 = vsel %vm12720, %v13521, %v13517
  %v13523 = vlaneseq
  %v13524 = vshrl.u32 %v13523, 7
  %v13525 = vsub.s32 %v12722, %v13524
  %v13526 = vrot.slane %v12377, %v13525
  %v13527 = vsel %vm12727, %v13526, %v13522
  %s13528 = scalar_lea.vmem %s13, 8
  %13529 = vst [vmem:[%s13528] ss:$16 sm:$0x1] %v13527
  %13530 = vst [vmem:[%s13528] ss:$16 sm:$0x0] %v13527
  %13531 = vst [vmem:[%s13528] ss:$16 sm:$0x0] %v13527
  %13532 = vst [vmem:[%s13528] ss:$16 sm:$0x0] %v13527
  %v13549 = vlaneseq
  %v13550 = vshrl.u32 %v13549, 7
  %v13551 = vsub.s32 %v12619, %v13550
  %v13552 = vrot.slane %v12379, %v13551
  %v13553 = vlaneseq
  %v13554 = vshrl.u32 %v13553, 7
  %v13555 = vsub.s32 %v12624, %v13554
  %v13556 = vrot.slane %v12381, %v13555
  %v13557 = vsel %vm12629, %v13556, %v13552
  %v13558 = vlaneseq
  %v13559 = vshrl.u32 %v13558, 7
  %v13560 = vsub.s32 %v12631, %v13559
  %v13561 = vrot.slane %v12383, %v13560
  %v13562 = vsel %vm12636, %v13561, %v13557
  %v13563 = vlaneseq
  %v13564 = vshrl.u32 %v13563, 7
  %v13565 = vsub.s32 %v12638, %v13564
  %v13566 = vrot.slane %v12385, %v13565
  %v13567 = vsel %vm12643, %v13566, %v13562
  %v13568 = vlaneseq
  %v13569 = vshrl.u32 %v13568, 7
  %v13570 = vsub.s32 %v12645, %v13569
  %v13571 = vrot.slane %v12387, %v13570
  %v13572 = vsel %vm12650, %v13571, %v13567
  %v13573 = vlaneseq
  %v13574 = vshrl.u32 %v13573, 7
  %v13575 = vsub.s32 %v12652, %v13574
  %v13576 = vrot.slane %v12389, %v13575
  %v13577 = vsel %vm12657, %v13576, %v13572
  %v13578 = vlaneseq
  %v13579 = vshrl.u32 %v13578, 7
  %v13580 = vsub.s32 %v12659, %v13579
  %v13581 = vrot.slane %v12391, %v13580
  %v13582 = vsel %vm12664, %v13581, %v13577
  %v13583 = vlaneseq
  %v13584 = vshrl.u32 %v13583, 7
  %v13585 = vsub.s32 %v12666, %v13584
  %v13586 = vrot.slane %v12393, %v13585
  %v13587 = vsel %vm12671, %v13586, %v13582
  %v13588 = vlaneseq
  %v13589 = vshrl.u32 %v13588, 7
  %v13590 = vsub.s32 %v12673, %v13589
  %v13591 = vrot.slane %v12395, %v13590
  %v13592 = vsel %vm12678, %v13591, %v13587
  %v13593 = vlaneseq
  %v13594 = vshrl.u32 %v13593, 7
  %v13595 = vsub.s32 %v12680, %v13594
  %v13596 = vrot.slane %v12397, %v13595
  %v13597 = vsel %vm12685, %v13596, %v13592
  %v13598 = vlaneseq
  %v13599 = vshrl.u32 %v13598, 7
  %v13600 = vsub.s32 %v12687, %v13599
  %v13601 = vrot.slane %v12399, %v13600
  %v13602 = vsel %vm12692, %v13601, %v13597
  %v13603 = vlaneseq
  %v13604 = vshrl.u32 %v13603, 7
  %v13605 = vsub.s32 %v12694, %v13604
  %v13606 = vrot.slane %v12401, %v13605
  %v13607 = vsel %vm12699, %v13606, %v13602
  %v13608 = vlaneseq
  %v13609 = vshrl.u32 %v13608, 7
  %v13610 = vsub.s32 %v12701, %v13609
  %v13611 = vrot.slane %v12403, %v13610
  %v13612 = vsel %vm12706, %v13611, %v13607
  %v13613 = vlaneseq
  %v13614 = vshrl.u32 %v13613, 7
  %v13615 = vsub.s32 %v12708, %v13614
  %v13616 = vrot.slane %v12405, %v13615
  %v13617 = vsel %vm12713, %v13616, %v13612
  %v13618 = vlaneseq
  %v13619 = vshrl.u32 %v13618, 7
  %v13620 = vsub.s32 %v12715, %v13619
  %v13621 = vrot.slane %v12407, %v13620
  %v13622 = vsel %vm12720, %v13621, %v13617
  %v13623 = vlaneseq
  %v13624 = vshrl.u32 %v13623, 7
  %v13625 = vsub.s32 %v12722, %v13624
  %v13626 = vrot.slane %v12409, %v13625
  %v13627 = vsel %vm12727, %v13626, %v13622
  %s13628 = scalar_lea.vmem %s13, 9
  %13629 = vst [vmem:[%s13628] ss:$16 sm:$0x1] %v13627
  %13630 = vst [vmem:[%s13628] ss:$16 sm:$0x0] %v13627
  %13631 = vst [vmem:[%s13628] ss:$16 sm:$0x0] %v13627
  %13632 = vst [vmem:[%s13628] ss:$16 sm:$0x0] %v13627
  %v13649 = vlaneseq
  %v13650 = vshrl.u32 %v13649, 7
  %v13651 = vsub.s32 %v12619, %v13650
  %v13652 = vrot.slane %v12411, %v13651
  %v13653 = vlaneseq
  %v13654 = vshrl.u32 %v13653, 7
  %v13655 = vsub.s32 %v12624, %v13654
  %v13656 = vrot.slane %v12413, %v13655
  %v13657 = vsel %vm12629, %v13656, %v13652
  %v13658 = vlaneseq
  %v13659 = vshrl.u32 %v13658, 7
  %v13660 = vsub.s32 %v12631, %v13659
  %v13661 = vrot.slane %v12415, %v13660
  %v13662 = vsel %vm12636, %v13661, %v13657
  %v13663 = vlaneseq
  %v13664 = vshrl.u32 %v13663, 7
  %v13665 = vsub.s32 %v12638, %v13664
  %v13666 = vrot.slane %v12417, %v13665
  %v13667 = vsel %vm12643, %v13666, %v13662
  %v13668 = vlaneseq
  %v13669 = vshrl.u32 %v13668, 7
  %v13670 = vsub.s32 %v12645, %v13669
  %v13671 = vrot.slane %v12419, %v13670
  %v13672 = vsel %vm12650, %v13671, %v13667
  %v13673 = vlaneseq
  %v13674 = vshrl.u32 %v13673, 7
  %v13675 = vsub.s32 %v12652, %v13674
  %v13676 = vrot.slane %v12421, %v13675
  %v13677 = vsel %vm12657, %v13676, %v13672
  %v13678 = vlaneseq
  %v13679 = vshrl.u32 %v13678, 7
  %v13680 = vsub.s32 %v12659, %v13679
  %v13681 = vrot.slane %v12423, %v13680
  %v13682 = vsel %vm12664, %v13681, %v13677
  %v13683 = vlaneseq
  %v13684 = vshrl.u32 %v13683, 7
  %v13685 = vsub.s32 %v12666, %v13684
  %v13686 = vrot.slane %v12425, %v13685
  %v13687 = vsel %vm12671, %v13686, %v13682
  %v13688 = vlaneseq
  %v13689 = vshrl.u32 %v13688, 7
  %v13690 = vsub.s32 %v12673, %v13689
  %v13691 = vrot.slane %v12427, %v13690
  %v13692 = vsel %vm12678, %v13691, %v13687
  %v13693 = vlaneseq
  %v13694 = vshrl.u32 %v13693, 7
  %v13695 = vsub.s32 %v12680, %v13694
  %v13696 = vrot.slane %v12429, %v13695
  %v13697 = vsel %vm12685, %v13696, %v13692
  %v13698 = vlaneseq
  %v13699 = vshrl.u32 %v13698, 7
  %v13700 = vsub.s32 %v12687, %v13699
  %v13701 = vrot.slane %v12431, %v13700
  %v13702 = vsel %vm12692, %v13701, %v13697
  %v13703 = vlaneseq
  %v13704 = vshrl.u32 %v13703, 7
  %v13705 = vsub.s32 %v12694, %v13704
  %v13706 = vrot.slane %v12433, %v13705
  %v13707 = vsel %vm12699, %v13706, %v13702
  %v13708 = vlaneseq
  %v13709 = vshrl.u32 %v13708, 7
  %v13710 = vsub.s32 %v12701, %v13709
  %v13711 = vrot.slane %v12435, %v13710
  %v13712 = vsel %vm12706, %v13711, %v13707
  %v13713 = vlaneseq
  %v13714 = vshrl.u32 %v13713, 7
  %v13715 = vsub.s32 %v12708, %v13714
  %v13716 = vrot.slane %v12437, %v13715
  %v13717 = vsel %vm12713, %v13716, %v13712
  %v13718 = vlaneseq
  %v13719 = vshrl.u32 %v13718, 7
  %v13720 = vsub.s32 %v12715, %v13719
  %v13721 = vrot.slane %v12439, %v13720
  %v13722 = vsel %vm12720, %v13721, %v13717
  %v13723 = vlaneseq
  %v13724 = vshrl.u32 %v13723, 7
  %v13725 = vsub.s32 %v12722, %v13724
  %v13726 = vrot.slane %v12441, %v13725
  %v13727 = vsel %vm12727, %v13726, %v13722
  %s13728 = scalar_lea.vmem %s13, 10
  %13729 = vst [vmem:[%s13728] ss:$16 sm:$0x1] %v13727
  %13730 = vst [vmem:[%s13728] ss:$16 sm:$0x0] %v13727
  %13731 = vst [vmem:[%s13728] ss:$16 sm:$0x0] %v13727
  %13732 = vst [vmem:[%s13728] ss:$16 sm:$0x0] %v13727
  %v13749 = vlaneseq
  %v13750 = vshrl.u32 %v13749, 7
  %v13751 = vsub.s32 %v12619, %v13750
  %v13752 = vrot.slane %v12443, %v13751
  %v13753 = vlaneseq
  %v13754 = vshrl.u32 %v13753, 7
  %v13755 = vsub.s32 %v12624, %v13754
  %v13756 = vrot.slane %v12445, %v13755
  %v13757 = vsel %vm12629, %v13756, %v13752
  %v13758 = vlaneseq
  %v13759 = vshrl.u32 %v13758, 7
  %v13760 = vsub.s32 %v12631, %v13759
  %v13761 = vrot.slane %v12447, %v13760
  %v13762 = vsel %vm12636, %v13761, %v13757
  %v13763 = vlaneseq
  %v13764 = vshrl.u32 %v13763, 7
  %v13765 = vsub.s32 %v12638, %v13764
  %v13766 = vrot.slane %v12449, %v13765
  %v13767 = vsel %vm12643, %v13766, %v13762
  %v13768 = vlaneseq
  %v13769 = vshrl.u32 %v13768, 7
  %v13770 = vsub.s32 %v12645, %v13769
  %v13771 = vrot.slane %v12451, %v13770
  %v13772 = vsel %vm12650, %v13771, %v13767
  %v13773 = vlaneseq
  %v13774 = vshrl.u32 %v13773, 7
  %v13775 = vsub.s32 %v12652, %v13774
  %v13776 = vrot.slane %v12453, %v13775
  %v13777 = vsel %vm12657, %v13776, %v13772
  %v13778 = vlaneseq
  %v13779 = vshrl.u32 %v13778, 7
  %v13780 = vsub.s32 %v12659, %v13779
  %v13781 = vrot.slane %v12455, %v13780
  %v13782 = vsel %vm12664, %v13781, %v13777
  %v13783 = vlaneseq
  %v13784 = vshrl.u32 %v13783, 7
  %v13785 = vsub.s32 %v12666, %v13784
  %v13786 = vrot.slane %v12457, %v13785
  %v13787 = vsel %vm12671, %v13786, %v13782
  %v13788 = vlaneseq
  %v13789 = vshrl.u32 %v13788, 7
  %v13790 = vsub.s32 %v12673, %v13789
  %v13791 = vrot.slane %v12459, %v13790
  %v13792 = vsel %vm12678, %v13791, %v13787
  %v13793 = vlaneseq
  %v13794 = vshrl.u32 %v13793, 7
  %v13795 = vsub.s32 %v12680, %v13794
  %v13796 = vrot.slane %v12461, %v13795
  %v13797 = vsel %vm12685, %v13796, %v13792
  %v13798 = vlaneseq
  %v13799 = vshrl.u32 %v13798, 7
  %v13800 = vsub.s32 %v12687, %v13799
  %v13801 = vrot.slane %v12463, %v13800
  %v13802 = vsel %vm12692, %v13801, %v13797
  %v13803 = vlaneseq
  %v13804 = vshrl.u32 %v13803, 7
  %v13805 = vsub.s32 %v12694, %v13804
  %v13806 = vrot.slane %v12465, %v13805
  %v13807 = vsel %vm12699, %v13806, %v13802
  %v13808 = vlaneseq
  %v13809 = vshrl.u32 %v13808, 7
  %v13810 = vsub.s32 %v12701, %v13809
  %v13811 = vrot.slane %v12467, %v13810
  %v13812 = vsel %vm12706, %v13811, %v13807
  %v13813 = vlaneseq
  %v13814 = vshrl.u32 %v13813, 7
  %v13815 = vsub.s32 %v12708, %v13814
  %v13816 = vrot.slane %v12469, %v13815
  %v13817 = vsel %vm12713, %v13816, %v13812
  %v13818 = vlaneseq
  %v13819 = vshrl.u32 %v13818, 7
  %v13820 = vsub.s32 %v12715, %v13819
  %v13821 = vrot.slane %v12471, %v13820
  %v13822 = vsel %vm12720, %v13821, %v13817
  %v13823 = vlaneseq
  %v13824 = vshrl.u32 %v13823, 7
  %v13825 = vsub.s32 %v12722, %v13824
  %v13826 = vrot.slane %v12473, %v13825
  %v13827 = vsel %vm12727, %v13826, %v13822
  %s13828 = scalar_lea.vmem %s13, 11
  %13829 = vst [vmem:[%s13828] ss:$16 sm:$0x1] %v13827
  %13830 = vst [vmem:[%s13828] ss:$16 sm:$0x0] %v13827
  %13831 = vst [vmem:[%s13828] ss:$16 sm:$0x0] %v13827
  %13832 = vst [vmem:[%s13828] ss:$16 sm:$0x0] %v13827
  %v13849 = vlaneseq
  %v13850 = vshrl.u32 %v13849, 7
  %v13851 = vsub.s32 %v12619, %v13850
  %v13852 = vrot.slane %v12475, %v13851
  %v13853 = vlaneseq
  %v13854 = vshrl.u32 %v13853, 7
  %v13855 = vsub.s32 %v12624, %v13854
  %v13856 = vrot.slane %v12477, %v13855
  %v13857 = vsel %vm12629, %v13856, %v13852
  %v13858 = vlaneseq
  %v13859 = vshrl.u32 %v13858, 7
  %v13860 = vsub.s32 %v12631, %v13859
  %v13861 = vrot.slane %v12479, %v13860
  %v13862 = vsel %vm12636, %v13861, %v13857
  %v13863 = vlaneseq
  %v13864 = vshrl.u32 %v13863, 7
  %v13865 = vsub.s32 %v12638, %v13864
  %v13866 = vrot.slane %v12481, %v13865
  %v13867 = vsel %vm12643, %v13866, %v13862
  %v13868 = vlaneseq
  %v13869 = vshrl.u32 %v13868, 7
  %v13870 = vsub.s32 %v12645, %v13869
  %v13871 = vrot.slane %v12483, %v13870
  %v13872 = vsel %vm12650, %v13871, %v13867
  %v13873 = vlaneseq
  %v13874 = vshrl.u32 %v13873, 7
  %v13875 = vsub.s32 %v12652, %v13874
  %v13876 = vrot.slane %v12485, %v13875
  %v13877 = vsel %vm12657, %v13876, %v13872
  %v13878 = vlaneseq
  %v13879 = vshrl.u32 %v13878, 7
  %v13880 = vsub.s32 %v12659, %v13879
  %v13881 = vrot.slane %v12487, %v13880
  %v13882 = vsel %vm12664, %v13881, %v13877
  %v13883 = vlaneseq
  %v13884 = vshrl.u32 %v13883, 7
  %v13885 = vsub.s32 %v12666, %v13884
  %v13886 = vrot.slane %v12489, %v13885
  %v13887 = vsel %vm12671, %v13886, %v13882
  %v13888 = vlaneseq
  %v13889 = vshrl.u32 %v13888, 7
  %v13890 = vsub.s32 %v12673, %v13889
  %v13891 = vrot.slane %v12491, %v13890
  %v13892 = vsel %vm12678, %v13891, %v13887
  %v13893 = vlaneseq
  %v13894 = vshrl.u32 %v13893, 7
  %v13895 = vsub.s32 %v12680, %v13894
  %v13896 = vrot.slane %v12493, %v13895
  %v13897 = vsel %vm12685, %v13896, %v13892
  %v13898 = vlaneseq
  %v13899 = vshrl.u32 %v13898, 7
  %v13900 = vsub.s32 %v12687, %v13899
  %v13901 = vrot.slane %v12495, %v13900
  %v13902 = vsel %vm12692, %v13901, %v13897
  %v13903 = vlaneseq
  %v13904 = vshrl.u32 %v13903, 7
  %v13905 = vsub.s32 %v12694, %v13904
  %v13906 = vrot.slane %v12497, %v13905
  %v13907 = vsel %vm12699, %v13906, %v13902
  %v13908 = vlaneseq
  %v13909 = vshrl.u32 %v13908, 7
  %v13910 = vsub.s32 %v12701, %v13909
  %v13911 = vrot.slane %v12499, %v13910
  %v13912 = vsel %vm12706, %v13911, %v13907
  %v13913 = vlaneseq
  %v13914 = vshrl.u32 %v13913, 7
  %v13915 = vsub.s32 %v12708, %v13914
  %v13916 = vrot.slane %v12501, %v13915
  %v13917 = vsel %vm12713, %v13916, %v13912
  %v13918 = vlaneseq
  %v13919 = vshrl.u32 %v13918, 7
  %v13920 = vsub.s32 %v12715, %v13919
  %v13921 = vrot.slane %v12503, %v13920
  %v13922 = vsel %vm12720, %v13921, %v13917
  %v13923 = vlaneseq
  %v13924 = vshrl.u32 %v13923, 7
  %v13925 = vsub.s32 %v12722, %v13924
  %v13926 = vrot.slane %v12505, %v13925
  %v13927 = vsel %vm12727, %v13926, %v13922
  %s13928 = scalar_lea.vmem %s13, 12
  %13929 = vst [vmem:[%s13928] ss:$16 sm:$0x1] %v13927
  %13930 = vst [vmem:[%s13928] ss:$16 sm:$0x0] %v13927
  %13931 = vst [vmem:[%s13928] ss:$16 sm:$0x0] %v13927
  %13932 = vst [vmem:[%s13928] ss:$16 sm:$0x0] %v13927
  %v13949 = vlaneseq
  %v13950 = vshrl.u32 %v13949, 7
  %v13951 = vsub.s32 %v12619, %v13950
  %v13952 = vrot.slane %v12507, %v13951
  %v13953 = vlaneseq
  %v13954 = vshrl.u32 %v13953, 7
  %v13955 = vsub.s32 %v12624, %v13954
  %v13956 = vrot.slane %v12509, %v13955
  %v13957 = vsel %vm12629, %v13956, %v13952
  %v13958 = vlaneseq
  %v13959 = vshrl.u32 %v13958, 7
  %v13960 = vsub.s32 %v12631, %v13959
  %v13961 = vrot.slane %v12511, %v13960
  %v13962 = vsel %vm12636, %v13961, %v13957
  %v13963 = vlaneseq
  %v13964 = vshrl.u32 %v13963, 7
  %v13965 = vsub.s32 %v12638, %v13964
  %v13966 = vrot.slane %v12513, %v13965
  %v13967 = vsel %vm12643, %v13966, %v13962
  %v13968 = vlaneseq
  %v13969 = vshrl.u32 %v13968, 7
  %v13970 = vsub.s32 %v12645, %v13969
  %v13971 = vrot.slane %v12515, %v13970
  %v13972 = vsel %vm12650, %v13971, %v13967
  %v13973 = vlaneseq
  %v13974 = vshrl.u32 %v13973, 7
  %v13975 = vsub.s32 %v12652, %v13974
  %v13976 = vrot.slane %v12517, %v13975
  %v13977 = vsel %vm12657, %v13976, %v13972
  %v13978 = vlaneseq
  %v13979 = vshrl.u32 %v13978, 7
  %v13980 = vsub.s32 %v12659, %v13979
  %v13981 = vrot.slane %v12519, %v13980
  %v13982 = vsel %vm12664, %v13981, %v13977
  %v13983 = vlaneseq
  %v13984 = vshrl.u32 %v13983, 7
  %v13985 = vsub.s32 %v12666, %v13984
  %v13986 = vrot.slane %v12521, %v13985
  %v13987 = vsel %vm12671, %v13986, %v13982
  %v13988 = vlaneseq
  %v13989 = vshrl.u32 %v13988, 7
  %v13990 = vsub.s32 %v12673, %v13989
  %v13991 = vrot.slane %v12523, %v13990
  %v13992 = vsel %vm12678, %v13991, %v13987
  %v13993 = vlaneseq
  %v13994 = vshrl.u32 %v13993, 7
  %v13995 = vsub.s32 %v12680, %v13994
  %v13996 = vrot.slane %v12525, %v13995
  %v13997 = vsel %vm12685, %v13996, %v13992
  %v13998 = vlaneseq
  %v13999 = vshrl.u32 %v13998, 7
  %v14000 = vsub.s32 %v12687, %v13999
  %v14001 = vrot.slane %v12527, %v14000
  %v14002 = vsel %vm12692, %v14001, %v13997
  %v14003 = vlaneseq
  %v14004 = vshrl.u32 %v14003, 7
  %v14005 = vsub.s32 %v12694, %v14004
  %v14006 = vrot.slane %v12529, %v14005
  %v14007 = vsel %vm12699, %v14006, %v14002
  %v14008 = vlaneseq
  %v14009 = vshrl.u32 %v14008, 7
  %v14010 = vsub.s32 %v12701, %v14009
  %v14011 = vrot.slane %v12531, %v14010
  %v14012 = vsel %vm12706, %v14011, %v14007
  %v14013 = vlaneseq
  %v14014 = vshrl.u32 %v14013, 7
  %v14015 = vsub.s32 %v12708, %v14014
  %v14016 = vrot.slane %v12533, %v14015
  %v14017 = vsel %vm12713, %v14016, %v14012
  %v14018 = vlaneseq
  %v14019 = vshrl.u32 %v14018, 7
  %v14020 = vsub.s32 %v12715, %v14019
  %v14021 = vrot.slane %v12535, %v14020
  %v14022 = vsel %vm12720, %v14021, %v14017
  %v14023 = vlaneseq
  %v14024 = vshrl.u32 %v14023, 7
  %v14025 = vsub.s32 %v12722, %v14024
  %v14026 = vrot.slane %v12537, %v14025
  %v14027 = vsel %vm12727, %v14026, %v14022
  %s14028 = scalar_lea.vmem %s13, 13
  %14029 = vst [vmem:[%s14028] ss:$16 sm:$0x1] %v14027
  %14030 = vst [vmem:[%s14028] ss:$16 sm:$0x0] %v14027
  %14031 = vst [vmem:[%s14028] ss:$16 sm:$0x0] %v14027
  %14032 = vst [vmem:[%s14028] ss:$16 sm:$0x0] %v14027
  %v14049 = vlaneseq
  %v14050 = vshrl.u32 %v14049, 7
  %v14051 = vsub.s32 %v12619, %v14050
  %v14052 = vrot.slane %v12539, %v14051
  %v14053 = vlaneseq
  %v14054 = vshrl.u32 %v14053, 7
  %v14055 = vsub.s32 %v12624, %v14054
  %v14056 = vrot.slane %v12541, %v14055
  %v14057 = vsel %vm12629, %v14056, %v14052
  %v14058 = vlaneseq
  %v14059 = vshrl.u32 %v14058, 7
  %v14060 = vsub.s32 %v12631, %v14059
  %v14061 = vrot.slane %v12543, %v14060
  %v14062 = vsel %vm12636, %v14061, %v14057
  %v14063 = vlaneseq
  %v14064 = vshrl.u32 %v14063, 7
  %v14065 = vsub.s32 %v12638, %v14064
  %v14066 = vrot.slane %v12545, %v14065
  %v14067 = vsel %vm12643, %v14066, %v14062
  %v14068 = vlaneseq
  %v14069 = vshrl.u32 %v14068, 7
  %v14070 = vsub.s32 %v12645, %v14069
  %v14071 = vrot.slane %v12547, %v14070
  %v14072 = vsel %vm12650, %v14071, %v14067
  %v14073 = vlaneseq
  %v14074 = vshrl.u32 %v14073, 7
  %v14075 = vsub.s32 %v12652, %v14074
  %v14076 = vrot.slane %v12549, %v14075
  %v14077 = vsel %vm12657, %v14076, %v14072
  %v14078 = vlaneseq
  %v14079 = vshrl.u32 %v14078, 7
  %v14080 = vsub.s32 %v12659, %v14079
  %v14081 = vrot.slane %v12551, %v14080
  %v14082 = vsel %vm12664, %v14081, %v14077
  %v14083 = vlaneseq
  %v14084 = vshrl.u32 %v14083, 7
  %v14085 = vsub.s32 %v12666, %v14084
  %v14086 = vrot.slane %v12553, %v14085
  %v14087 = vsel %vm12671, %v14086, %v14082
  %v14088 = vlaneseq
  %v14089 = vshrl.u32 %v14088, 7
  %v14090 = vsub.s32 %v12673, %v14089
  %v14091 = vrot.slane %v12555, %v14090
  %v14092 = vsel %vm12678, %v14091, %v14087
  %v14093 = vlaneseq
  %v14094 = vshrl.u32 %v14093, 7
  %v14095 = vsub.s32 %v12680, %v14094
  %v14096 = vrot.slane %v12557, %v14095
  %v14097 = vsel %vm12685, %v14096, %v14092
  %v14098 = vlaneseq
  %v14099 = vshrl.u32 %v14098, 7
  %v14100 = vsub.s32 %v12687, %v14099
  %v14101 = vrot.slane %v12559, %v14100
  %v14102 = vsel %vm12692, %v14101, %v14097
  %v14103 = vlaneseq
  %v14104 = vshrl.u32 %v14103, 7
  %v14105 = vsub.s32 %v12694, %v14104
  %v14106 = vrot.slane %v12561, %v14105
  %v14107 = vsel %vm12699, %v14106, %v14102
  %v14108 = vlaneseq
  %v14109 = vshrl.u32 %v14108, 7
  %v14110 = vsub.s32 %v12701, %v14109
  %v14111 = vrot.slane %v12563, %v14110
  %v14112 = vsel %vm12706, %v14111, %v14107
  %v14113 = vlaneseq
  %v14114 = vshrl.u32 %v14113, 7
  %v14115 = vsub.s32 %v12708, %v14114
  %v14116 = vrot.slane %v12565, %v14115
  %v14117 = vsel %vm12713, %v14116, %v14112
  %v14118 = vlaneseq
  %v14119 = vshrl.u32 %v14118, 7
  %v14120 = vsub.s32 %v12715, %v14119
  %v14121 = vrot.slane %v12567, %v14120
  %v14122 = vsel %vm12720, %v14121, %v14117
  %v14123 = vlaneseq
  %v14124 = vshrl.u32 %v14123, 7
  %v14125 = vsub.s32 %v12722, %v14124
  %v14126 = vrot.slane %v12569, %v14125
  %v14127 = vsel %vm12727, %v14126, %v14122
  %s14128 = scalar_lea.vmem %s13, 14
  %14129 = vst [vmem:[%s14128] ss:$16 sm:$0x1] %v14127
  %14130 = vst [vmem:[%s14128] ss:$16 sm:$0x0] %v14127
  %14131 = vst [vmem:[%s14128] ss:$16 sm:$0x0] %v14127
  %14132 = vst [vmem:[%s14128] ss:$16 sm:$0x0] %v14127
  %v14149 = vlaneseq
  %v14150 = vshrl.u32 %v14149, 7
  %v14151 = vsub.s32 %v12619, %v14150
  %v14152 = vrot.slane %v12571, %v14151
  %v14153 = vlaneseq
  %v14154 = vshrl.u32 %v14153, 7
  %v14155 = vsub.s32 %v12624, %v14154
  %v14156 = vrot.slane %v12573, %v14155
  %v14157 = vsel %vm12629, %v14156, %v14152
  %v14158 = vlaneseq
  %v14159 = vshrl.u32 %v14158, 7
  %v14160 = vsub.s32 %v12631, %v14159
  %v14161 = vrot.slane %v12575, %v14160
  %v14162 = vsel %vm12636, %v14161, %v14157
  %v14163 = vlaneseq
  %v14164 = vshrl.u32 %v14163, 7
  %v14165 = vsub.s32 %v12638, %v14164
  %v14166 = vrot.slane %v12577, %v14165
  %v14167 = vsel %vm12643, %v14166, %v14162
  %v14168 = vlaneseq
  %v14169 = vshrl.u32 %v14168, 7
  %v14170 = vsub.s32 %v12645, %v14169
  %v14171 = vrot.slane %v12579, %v14170
  %v14172 = vsel %vm12650, %v14171, %v14167
  %v14173 = vlaneseq
  %v14174 = vshrl.u32 %v14173, 7
  %v14175 = vsub.s32 %v12652, %v14174
  %v14176 = vrot.slane %v12581, %v14175
  %v14177 = vsel %vm12657, %v14176, %v14172
  %v14178 = vlaneseq
  %v14179 = vshrl.u32 %v14178, 7
  %v14180 = vsub.s32 %v12659, %v14179
  %v14181 = vrot.slane %v12583, %v14180
  %v14182 = vsel %vm12664, %v14181, %v14177
  %v14183 = vlaneseq
  %v14184 = vshrl.u32 %v14183, 7
  %v14185 = vsub.s32 %v12666, %v14184
  %v14186 = vrot.slane %v12585, %v14185
  %v14187 = vsel %vm12671, %v14186, %v14182
  %v14188 = vlaneseq
  %v14189 = vshrl.u32 %v14188, 7
  %v14190 = vsub.s32 %v12673, %v14189
  %v14191 = vrot.slane %v12587, %v14190
  %v14192 = vsel %vm12678, %v14191, %v14187
  %v14193 = vlaneseq
  %v14194 = vshrl.u32 %v14193, 7
  %v14195 = vsub.s32 %v12680, %v14194
  %v14196 = vrot.slane %v12589, %v14195
  %v14197 = vsel %vm12685, %v14196, %v14192
  %v14198 = vlaneseq
  %v14199 = vshrl.u32 %v14198, 7
  %v14200 = vsub.s32 %v12687, %v14199
  %v14201 = vrot.slane %v12591, %v14200
  %v14202 = vsel %vm12692, %v14201, %v14197
  %v14203 = vlaneseq
  %v14204 = vshrl.u32 %v14203, 7
  %v14205 = vsub.s32 %v12694, %v14204
  %v14206 = vrot.slane %v12593, %v14205
  %v14207 = vsel %vm12699, %v14206, %v14202
  %v14208 = vlaneseq
  %v14209 = vshrl.u32 %v14208, 7
  %v14210 = vsub.s32 %v12701, %v14209
  %v14211 = vrot.slane %v12595, %v14210
  %v14212 = vsel %vm12706, %v14211, %v14207
  %v14213 = vlaneseq
  %v14214 = vshrl.u32 %v14213, 7
  %v14215 = vsub.s32 %v12708, %v14214
  %v14216 = vrot.slane %v12597, %v14215
  %v14217 = vsel %vm12713, %v14216, %v14212
  %v14218 = vlaneseq
  %v14219 = vshrl.u32 %v14218, 7
  %v14220 = vsub.s32 %v12715, %v14219
  %v14221 = vrot.slane %v12599, %v14220
  %v14222 = vsel %vm12720, %v14221, %v14217
  %v14223 = vlaneseq
  %v14224 = vshrl.u32 %v14223, 7
  %v14225 = vsub.s32 %v12722, %v14224
  %v14226 = vrot.slane %v12601, %v14225
  %v14227 = vsel %vm12727, %v14226, %v14222
  %s14228 = scalar_lea.vmem %s13, 15
  %14229 = vst [vmem:[%s14228] ss:$16 sm:$0x1] %v14227
  %14230 = vst [vmem:[%s14228] ss:$16 sm:$0x0] %v14227
  %14231 = vst [vmem:[%s14228] ss:$16 sm:$0x0] %v14227
  %14232 = vst [vmem:[%s14228] ss:$16 sm:$0x0] %v14227
  // Predicated region
  $region54: #{ncf_forward.1} parent=0 // pred_check
    _
  $region55: #{ncf_forward.1} parent=0 // pred_check_branch
    %14234 = sbr.rel (0) target = $region57
  $region56: #{ncf_forward.1} parent=0 // pred_region
    _
  $region57: #{ncf_forward.1} parent=0 // pred_fallthru
    _
  // Predicated region
  $region58: #{ncf_forward.1} parent=0 // pred_check
    _
  $region59: #{ncf_forward.1} parent=0 // pred_check_branch
    %14236 = sbr.rel (0) target = $region61
  $region60: #{ncf_forward.1} parent=0 // pred_region
    _
  $region61: #{ncf_forward.1} parent=0 // pred_fallthru
    _

</llo_original>
